<compile_context>
chip_gen: v7x
topology: tpu7x:2x2x1
jax: 0.10.0
libtpu: 0.0.40
codegen_flags: <defaults>
</compile_context>

<pallas_src>
import math

import jax
import jax.numpy as jnp
from jax import lax
from jax.experimental import pallas as pl
from jax.experimental.pallas import tpu as pltpu

# ---------------- hyper-params (small but consistent with the module) ----------------
BATCH = 2
SEQ_LEN = 8          # params['seq_len']
INPUT_DIM = 11       # params['input_dim'] (module default)
EMBED_DIM = 32       # params['embed_dim']
NUM_HEADS = 4        # embed_dim % num_heads == 0
HEAD_DIM = EMBED_DIM // NUM_HEADS
NUM_LAYERS = 2       # nn.TransformerEncoder(num_layers=2)
FF_DIM = 2 * EMBED_DIM
REGIME_HIDDEN = 64
CONV_CHANNELS = (64, 128, EMBED_DIM)
LN_EPS = 1e-5
BN_EPS = 1e-5
LANE = 128           # slab width


# ---------------- static slab layouts (compile-time constants) ----------------
def _make_layouts():
    # --- weight slab: each (in, out) matrix occupies rows [off, off+in), cols [0, out) ---
    w_entries = [('in_proj', INPUT_DIM, EMBED_DIM)]
    for l in range(NUM_LAYERS):
        w_entries += [(f'wq{l}', EMBED_DIM, EMBED_DIM), (f'wk{l}', EMBED_DIM, EMBED_DIM),
                      (f'wv{l}', EMBED_DIM, EMBED_DIM), (f'wo{l}', EMBED_DIM, EMBED_DIM),
                      (f'ff1{l}', EMBED_DIM, FF_DIM), (f'ff2{l}', FF_DIM, EMBED_DIM)]
    cin = INPUT_DIM
    for ci, cout in enumerate(CONV_CHANNELS):
        for t in range(3):
            w_entries.append((f'conv{ci}_t{t}', cin, cout))
        cin = cout
    w_entries += [('comb_t', EMBED_DIM, EMBED_DIM), ('comb_c', EMBED_DIM, EMBED_DIM),
                  ('reg1', EMBED_DIM, REGIME_HIDDEN), ('reg2', REGIME_HIDDEN, 3),
                  ('trend', EMBED_DIM, EMBED_DIM), ('range', EMBED_DIM, EMBED_DIM),
                  ('vol', EMBED_DIM, EMBED_DIM), ('proj', EMBED_DIM, EMBED_DIM)]
    w_layout, off = {}, 0
    for name, i, o in w_entries:
        w_layout[name] = (off, i, o)
        off += ((i + 15) // 16) * 16          # bf16 sublane-tile aligned row blocks
    w_rows = off

    # --- vector slab: one row per 1-D param (pos enc takes SEQ_LEN rows) ---
    v_entries = [('in_proj_b', 1, EMBED_DIM), ('pos', SEQ_LEN, EMBED_DIM)]
    for l in range(NUM_LAYERS):
        v_entries += [(f'ln1_g{l}', 1, EMBED_DIM), (f'ln1_b{l}', 1, EMBED_DIM),
                      (f'bq{l}', 1, EMBED_DIM), (f'bk{l}', 1, EMBED_DIM),
                      (f'bv{l}', 1, EMBED_DIM), (f'bo{l}', 1, EMBED_DIM),
                      (f'ln2_g{l}', 1, EMBED_DIM), (f'ln2_b{l}', 1, EMBED_DIM),
                      (f'ff1_b{l}', 1, FF_DIM), (f'ff2_b{l}', 1, EMBED_DIM)]
    for ci, cout in enumerate(CONV_CHANNELS):
        v_entries.append((f'conv{ci}_b', 1, cout))
    v_entries += [('comb_b', 1, EMBED_DIM), ('comb_g', 1, EMBED_DIM), ('comb_beta', 1, EMBED_DIM),
                  ('reg1_b', 1, REGIME_HIDDEN), ('reg2_b', 1, 3),
                  ('trend_b', 1, EMBED_DIM), ('range_b', 1, EMBED_DIM),
                  ('vol_b', 1, EMBED_DIM), ('proj_b', 1, EMBED_DIM)]
    v_layout, off = {}, 0
    for name, r, c in v_entries:
        v_layout[name] = (off, r, c)
        off += r
    v_rows = ((off + 7) // 8) * 8
    return w_layout, w_rows, v_layout, v_rows


W_LAYOUT, W_ROWS, V_LAYOUT, V_ROWS = _make_layouts()


# ---------------- in-kernel math helpers (f32 VPU/EUP math) ----------------
def _layer_norm(x, gamma, beta, eps=LN_EPS):
    mu = jnp.mean(x, axis=-1, keepdims=True)
    var = jnp.mean((x - mu) * (x - mu), axis=-1, keepdims=True)
    return (x - mu) * lax.rsqrt(var + eps) * gamma + beta


def _softmax(x):
    m = jnp.max(x, axis=-1, keepdims=True)
    e = jnp.exp(x - m)
    # approx reciprocal = single EUP vrcp; exp already sits on the EUP slot.
    return e * pl.reciprocal(jnp.sum(e, axis=-1, keepdims=True), approx=True)


def _gelu_tanh(x):
    # TODO(synk): PyTorch F.gelu default is the exact erf form; tanh approximation used so the
    # transcendental lands on the (idle) EUP slot; deviation <~1e-3, acceptable for inference.
    return 0.5 * x * (1.0 + jnp.tanh(0.7978845608028654 * (x + 0.044715 * x * x * x)))


# ---------------- the single fused kernel ----------------
def fused_forward_kernel(x_ref, w_ref, v_ref, o_ref):
    f32, bf16 = jnp.float32, jnp.bfloat16
    E, H, Dh = EMBED_DIM, NUM_HEADS, HEAD_DIM

    def wmat(name):                            # bf16 (in, out) weight via static ref slice
        off, i, o = W_LAYOUT[name]
        return w_ref[off:off + i, 0:o]

    def vec(name):                             # f32 bias / LN / pos block
        off, r, c = V_LAYOUT[name]
        val = v_ref[off:off + r, 0:c]
        return val[0] if r == 1 else val

    def mm(a_bf16, name):                      # bf16 x bf16 -> f32 accumulation on the MXU
        return jnp.dot(a_bf16, wmat(name), preferred_element_type=f32)

    x = x_ref[...]                             # (Bb, S, Din) f32
    Bb, S, Din = x.shape
    BS = Bb * S

    # ======== SimplifiedTransformer branch (pre-norm, GELU, 2 layers, no final norm) ========
    h = (mm(x.reshape(BS, Din).astype(bf16), 'in_proj') + vec('in_proj_b')).reshape(Bb, S, E)
    h = h + vec('pos')                         # (S, E) broadcast over batch

    for l in range(NUM_LAYERS):
        # --- h = h + MHA(LN1(h)) ---
        hn2 = _layer_norm(h, vec(f'ln1_g{l}'), vec(f'ln1_b{l}')).reshape(BS, E).astype(bf16)
        qoff = W_LAYOUT[f'wq{l}'][0]
        koff = W_LAYOUT[f'wk{l}'][0]
        voff = W_LAYOUT[f'wv{l}'][0]
        ooff = W_LAYOUT[f'wo{l}'][0]
        bqo = V_LAYOUT[f'bq{l}'][0]
        bko = V_LAYOUT[f'bk{l}'][0]
        bvo = V_LAYOUT[f'bv{l}'][0]

        attn = jnp.zeros((BS, E), f32)
        for hh in range(H):                    # static loop: weight-ref slices, no lane concats
            c0, c1 = hh * Dh, (hh + 1) * Dh
            q = jnp.dot(hn2, w_ref[qoff:qoff + E, c0:c1],
                        preferred_element_type=f32) + v_ref[bqo:bqo + 1, c0:c1]  # Q pre-scaled
            k = jnp.dot(hn2, w_ref[koff:koff + E, c0:c1],
                        preferred_element_type=f32) + v_ref[bko:bko + 1, c0:c1]
            v = jnp.dot(hn2, w_ref[voff:voff + E, c0:c1],
                        preferred_element_type=f32) + v_ref[bvo:bvo + 1, c0:c1]
            q = q.reshape(Bb, S, Dh).astype(bf16)
            k = k.reshape(Bb, S, Dh).astype(bf16)
            v = v.reshape(Bb, S, Dh).astype(bf16)
            s = jnp.einsum('bqd,bkd->bqk', q, k, preferred_element_type=f32)
            p = _softmax(s)                    # attention dropout = identity (eval)
            av = jnp.einsum('bqk,bkd->bqd', p.astype(bf16), v, preferred_element_type=f32)
            # fold this head straight into the output projection (no concat):
            attn = attn + jnp.dot(av.reshape(BS, Dh).astype(bf16),
                                  w_ref[ooff + c0:ooff + c1, 0:E],
                                  preferred_element_type=f32)
        attn = attn + vec(f'bo{l}')
        h = h + attn.reshape(Bb, S, E)

        # --- h = h + W2 @ gelu(W1 @ LN2(h)) ---
        hn2 = _layer_norm(h, vec(f'ln2_g{l}'), vec(f'ln2_b{l}')).reshape(BS, E).astype(bf16)
        f = _gelu_tanh(mm(hn2, f'ff1{l}') + vec(f'ff1_b{l}'))
        f = mm(f.astype(bf16), f'ff2{l}') + vec(f'ff2_b{l}')
        h = h + f.reshape(Bb, S, E)

    # ======== LightweightCNN branch (BN folded; shift-matrix taps instead of im2col concats) ==
    row = lax.broadcasted_iota(jnp.int32, (BS, BS), 0)
    col = lax.broadcasted_iota(jnp.int32, (BS, BS), 1)
    in_seq = row % S
    m_prev = jnp.where((col == row - 1) & (in_seq > 0), 1.0, 0.0).astype(jnp.bfloat16)
    m_next = jnp.where((col == row + 1) & (in_seq < S - 1), 1.0, 0.0).astype(jnp.bfloat16)

    c2 = x.reshape(BS, Din)                    # channels-last conv input
    for ci, cout in enumerate(CONV_CHANNELS):
        cb = c2.astype(bf16)
        prv = jnp.dot(m_prev, cb, preferred_element_type=f32).astype(bf16)   # x[s-1], zero pad
        nxt = jnp.dot(m_next, cb, preferred_element_type=f32).astype(bf16)   # x[s+1], zero pad
        y = (mm(prv, f'conv{ci}_t0') + mm(cb, f'conv{ci}_t1') + mm(nxt, f'conv{ci}_t2')
             + vec(f'conv{ci}_b'))
        c2 = jnp.maximum(y, 0.0)               # ReLU (BN already folded into w/b)

    # ======== EnhancedEnsembleModel head ========
    t_pool = jnp.mean(h, axis=1)                                   # (Bb, E)
    c_pool = jnp.mean(c2.reshape(Bb, S, EMBED_DIM), axis=1)        # (Bb, E)
    # concat-free combiner: [t, c] @ W == t @ W_top + c @ W_bot
    feat = (mm(t_pool.astype(bf16), 'comb_t') + mm(c_pool.astype(bf16), 'comb_c')
            + vec('comb_b'))
    feat = jnp.maximum(_layer_norm(feat, vec('comb_g'), vec('comb_beta')), 0.0)  # Dropout=id
    fb = feat.astype(bf16)

    r = jnp.maximum(mm(fb, 'reg1') + vec('reg1_b'), 0.0)
    r = mm(r.astype(bf16), 'reg2') + vec('reg2_b')                 # (Bb, 3)
    rw = _softmax(r)                                               # regime weights

    expert = ((mm(fb, 'trend') + vec('trend_b')) * rw[:, 0:1]
              + (mm(fb, 'range') + vec('range_b')) * rw[:, 1:2]
              + (mm(fb, 'vol') + vec('vol_b')) * rw[:, 2:3])
    o_ref[...] = mm(expert.astype(bf16), 'proj') + vec('proj_b')


# ---------------- pallas_call wrapper ----------------
def cnn_transformer_forward(x, w_slab, v_slab, *, batch_block=None):
    """x: (B, S, INPUT_DIM) f32 -> (B, EMBED_DIM) f32.  One fused pallas_call.

    batch_block: per-grid-step batch tile.  For serving (B*S >= MXU rows) pass a block that is
    a multiple of 8 so the output tile stays sublane-aligned; size it for v7x's 64 MiB physical
    (32 MiB scoped) / v5e's 16 MiB scoped VMEM.  The batch grid axis is "parallel" so v7x's
    second TensorCore is engaged automatically once there is more than one block.
    """
    B = x.shape[0]
    bb = B if batch_block is None else batch_block
    assert B % bb == 0, (B, bb)
    return pl.pallas_call(
        fused_forward_kernel,
        out_shape=jax.ShapeDtypeStruct((B, EMBED_DIM), jnp.float32),
        grid=(B // bb,),
        in_specs=[
            pl.BlockSpec((bb, SEQ_LEN, INPUT_DIM), lambda i: (i, 0, 0)),
            pl.BlockSpec((W_ROWS, LANE), lambda i: (0, 0)),   # bf16 weight slab (resident)
            pl.BlockSpec((V_ROWS, LANE), lambda i: (0, 0)),   # f32 bias/LN/pos slab
        ],
        out_specs=pl.BlockSpec((bb, EMBED_DIM), lambda i: (i, 0)),
        compiler_params=pltpu.CompilerParams(
            dimension_semantics=("parallel",),
            vmem_limit_bytes=32 * 1024 * 1024),
        cost_estimate=pl.CostEstimate(flops=4_000_000, transcendentals=6_000,
                                      bytes_accessed=400_000),
    )(x, w_slab, v_slab)


# ---------------- host-side one-time parameter packing ----------------
def pack_params(p):
    """Fold BatchNorm into the conv weights, fold 1/sqrt(Dh) into the Q projection, and pack
    everything into one bf16 weight slab + one f32 bias/LN/pos slab (3 DMAs total).
    # TODO(synk): real PyTorch checkpoints need Linear / in_proj weights transposed to (in, out)
    # and Conv1d weights permuted from (Cout, Cin, 3) to (tap, Cin, Cout) before packing."""
    w = jnp.zeros((W_ROWS, LANE), jnp.float32)
    v = jnp.zeros((V_ROWS, LANE), jnp.float32)

    def pw(slab, name, mat):
        off, i, o = W_LAYOUT[name]
        return slab.at[off:off + i, 0:o].set(jnp.asarray(mat, jnp.float32).reshape(i, o))

    def pv(slab, name, mat):
        off, r, c = V_LAYOUT[name]
        return slab.at[off:off + r, 0:c].set(jnp.asarray(mat, jnp.float32).reshape(r, c))

    w = pw(w, 'in_proj', p['in_proj_w'])
    v = pv(v, 'in_proj_b', p['in_proj_b'])
    v = pv(v, 'pos', p['pos_enc'])

    scale = 1.0 / math.sqrt(HEAD_DIM)
    for l, lay in enumerate(p['layers']):
        w = pw(w, f'wq{l}', lay['wq'] * scale)                 # fold attention scale into Q
        w = pw(w, f'wk{l}', lay['wk'])
        w = pw(w, f'wv{l}', lay['wv'])
        w = pw(w, f'wo{l}', lay['wo'])
        w = pw(w, f'ff1{l}', lay['ff1_w'])
        w = pw(w, f'ff2{l}', lay['ff2_w'])
        v = pv(v, f'ln1_g{l}', lay['ln1_g']); v = pv(v, f'ln1_b{l}', lay['ln1_b'])
        v = pv(v, f'bq{l}', lay['bq'] * scale)
        v = pv(v, f'bk{l}', lay['bk']); v = pv(v, f'bv{l}', lay['bv'])
        v = pv(v, f'bo{l}', lay['bo'])
        v = pv(v, f'ln2_g{l}', lay['ln2_g']); v = pv(v, f'ln2_b{l}', lay['ln2_b'])
        v = pv(v, f'ff1_b{l}', lay['ff1_b']); v = pv(v, f'ff2_b{l}', lay['ff2_b'])

    for ci, conv in enumerate(p['convs']):
        scl = conv['g'] / jnp.sqrt(conv['var'] + BN_EPS)       # (1, Cout)
        for t in range(3):
            w = pw(w, f'conv{ci}_t{t}', conv['w'][t] * scl)    # BN scale folded per tap
        v = pv(v, f'conv{ci}_b', (conv['b'] - conv['mu']) * scl + conv['beta'])

    w = pw(w, 'comb_t', p['comb_w'][:EMBED_DIM])
    w = pw(w, 'comb_c', p['comb_w'][EMBED_DIM:])
    w = pw(w, 'reg1', p['reg1_w']); w = pw(w, 'reg2', p['reg2_w'])
    for nm in ('trend', 'range', 'vol', 'proj'):
        w = pw(w, nm, p[nm + '_w'])
    v = pv(v, 'comb_b', p['comb_b']); v = pv(v, 'comb_g', p['comb_g'])
    v = pv(v, 'comb_beta', p['comb_beta'])
    v = pv(v, 'reg1_b', p['reg1_b']); v = pv(v, 'reg2_b', p['reg2_b'])
    for nm in ('trend', 'range', 'vol', 'proj'):
        v = pv(v, nm + '_b', p[nm + '_b'])
    return w.astype(jnp.bfloat16), v


# ---------------- deterministic parameter initialization ----------------
def init_params(key):
    kit = iter(jax.random.split(key, 96))

    def nrm(shape, scale=0.1):
        return (scale * jax.random.normal(next(kit), shape)).astype(jnp.float32)

    p = {'in_proj_w': nrm((INPUT_DIM, EMBED_DIM)),
         'in_proj_b': nrm((1, EMBED_DIM), 0.01),
         'pos_enc': nrm((SEQ_LEN, EMBED_DIM), 0.02)}

    layers = []
    for _ in range(NUM_LAYERS):
        layers.append(dict(
            ln1_g=1.0 + nrm((1, EMBED_DIM), 0.01), ln1_b=nrm((1, EMBED_DIM), 0.01),
            wq=nrm((EMBED_DIM, EMBED_DIM)), bq=nrm((1, EMBED_DIM), 0.01),
            wk=nrm((EMBED_DIM, EMBED_DIM)), bk=nrm((1, EMBED_DIM), 0.01),
            wv=nrm((EMBED_DIM, EMBED_DIM)), bv=nrm((1, EMBED_DIM), 0.01),
            wo=nrm((EMBED_DIM, EMBED_DIM)), bo=nrm((1, EMBED_DIM), 0.01),
            ln2_g=1.0 + nrm((1, EMBED_DIM), 0.01), ln2_b=nrm((1, EMBED_DIM), 0.01),
            ff1_w=nrm((EMBED_DIM, FF_DIM)), ff1_b=nrm((1, FF_DIM), 0.01),
            ff2_w=nrm((FF_DIM, EMBED_DIM)), ff2_b=nrm((1, EMBED_DIM), 0.01)))
    p['layers'] = layers

    convs = []
    cin = INPUT_DIM
    for cout in CONV_CHANNELS:
        convs.append(dict(
            w=nrm((3, cin, cout)), b=nrm((1, cout), 0.01),
            g=1.0 + nrm((1, cout), 0.01), beta=nrm((1, cout), 0.01),
            mu=nrm((1, cout), 0.05),
            var=jax.random.uniform(next(kit), (1, cout), dtype=jnp.float32,
                                   minval=0.5, maxval=1.5)))
        cin = cout
    p['convs'] = convs

    p['comb_w'] = nrm((2 * EMBED_DIM, EMBED_DIM)); p['comb_b'] = nrm((1, EMBED_DIM), 0.01)
    p['comb_g'] = 1.0 + nrm((1, EMBED_DIM), 0.01); p['comb_beta'] = nrm((1, EMBED_DIM), 0.01)
    p['reg1_w'] = nrm((EMBED_DIM, REGIME_HIDDEN)); p['reg1_b'] = nrm((1, REGIME_HIDDEN), 0.01)
    p['reg2_w'] = nrm((REGIME_HIDDEN, 3)); p['reg2_b'] = nrm((1, 3), 0.01)
    for nm in ('trend', 'range', 'vol', 'proj'):
        p[nm + '_w'] = nrm((EMBED_DIM, EMBED_DIM)); p[nm + '_b'] = nrm((1, EMBED_DIM), 0.01)
    return p


if __name__ == "__main__":
    key = jax.random.PRNGKey(0)
    kx, kp = jax.random.split(key)
    x = jax.random.normal(kx, (BATCH, SEQ_LEN, INPUT_DIM), dtype=jnp.float32)

    w_slab, v_slab = pack_params(init_params(kp))    # one-time host-side folding + packing

    out = jax.jit(cnn_transformer_forward)(x, w_slab, v_slab)
    out = jax.block_until_ready(out)

    assert out.shape == (BATCH, EMBED_DIM), out.shape
    assert bool(jnp.all(jnp.isfinite(out)))
    print("KERNEL_OK")
</pallas_src>

<mosaic_0001>
module attributes {stable_mosaic.version = 11 : i64} {
  func.func @fused_forward_kernel(%arg0: i32, %arg1: memref<2x8x11xf32, #tpu.memory_space<vmem>>, %arg2: memref<1376x128xbf16, #tpu.memory_space<vmem>>, %arg3: memref<48x128xf32, #tpu.memory_space<vmem>>, %arg4: memref<2x32xf32, #tpu.memory_space<vmem>>) attributes {dimension_semantics = [#tpu.dimension_semantics<parallel>], iteration_bounds = array<i64: 1>, scalar_prefetch = 0 : i64, scratch_operands = 0 : i64, tpu.core_type = #tpu.core_type<tc>, window_params = [{transform_indices = @transform_0, window_bounds = array<i64: 2, 8, 11>}, {pipeline_mode = #tpu.pipeline_mode<synchronous>, transform_indices = @transform_1, window_bounds = array<i64: 1376, 128>}, {pipeline_mode = #tpu.pipeline_mode<synchronous>, transform_indices = @transform_2, window_bounds = array<i64: 48, 128>}, {transform_indices = @transform_3, window_bounds = array<i64: 2, 32>}]} {
    %c0 = arith.constant 0 : index
    %c0_0 = arith.constant 0 : index
    %c0_1 = arith.constant 0 : index
    %0 = vector.load %arg1[%c0, %c0_0, %c0_1] : memref<2x8x11xf32, #tpu.memory_space<vmem>>, vector<2x8x11xf32>
    %1 = vector.shape_cast %0 : vector<2x8x11xf32> to vector<16x11xf32>
    %2 = arith.truncf %1 : vector<16x11xf32> to vector<16x11xbf16>
    %c0_2 = arith.constant 0 : index
    %c0_3 = arith.constant 0 : index
    %3 = vector.load %arg2[%c0_2, %c0_3] : memref<1376x128xbf16, #tpu.memory_space<vmem>>, vector<11x32xbf16>
    %cst = arith.constant dense<0.000000e+00> : vector<16x32xf32>
    %4 = tpu.matmul %2, %3, %cst {dimension_numbers = #tpu.dot_dimension_numbers<[1], [0], [0], [1], [0, 0, 1, 1], [], []>} : vector<16x11xbf16>, vector<11x32xbf16>, vector<16x32xf32> -> vector<16x32xf32>
    %c0_4 = arith.constant 0 : index
    %c0_5 = arith.constant 0 : index
    %5 = vector.load %arg3[%c0_4, %c0_5] : memref<48x128xf32, #tpu.memory_space<vmem>>, vector<1x32xf32>
    %6 = vector.shape_cast %5 : vector<1x32xf32> to vector<32xf32>
    %7 = vector.shape_cast %6 : vector<32xf32> to vector<1x32xf32>
    %8 = vector.broadcast %7 : vector<1x32xf32> to vector<16x32xf32>
    %9 = arith.addf %4, %8 : vector<16x32xf32>
    %10 = vector.shape_cast %9 : vector<16x32xf32> to vector<2x8x32xf32>
    %c1 = arith.constant 1 : index
    %c0_6 = arith.constant 0 : index
    %11 = vector.load %arg3[%c1, %c0_6] : memref<48x128xf32, #tpu.memory_space<vmem>>, vector<8x32xf32>
    %12 = vector.shape_cast %11 : vector<8x32xf32> to vector<1x8x32xf32>
    %13 = vector.broadcast %12 : vector<1x8x32xf32> to vector<2x8x32xf32>
    %14 = arith.addf %10, %13 : vector<2x8x32xf32>
    %c9 = arith.constant 9 : index
    %c0_7 = arith.constant 0 : index
    %15 = vector.load %arg3[%c9, %c0_7] : memref<48x128xf32, #tpu.memory_space<vmem>>, vector<1x32xf32>
    %16 = vector.shape_cast %15 : vector<1x32xf32> to vector<32xf32>
    %c10 = arith.constant 10 : index
    %c0_8 = arith.constant 0 : index
    %17 = vector.load %arg3[%c10, %c0_8] : memref<48x128xf32, #tpu.memory_space<vmem>>, vector<1x32xf32>
    %18 = vector.shape_cast %17 : vector<1x32xf32> to vector<32xf32>
    %cst_9 = arith.constant dense<0.000000e+00> : vector<2x8xf32>
    %19 = vector.multi_reduction <add>, %14, %cst_9 [2] : vector<2x8x32xf32> to vector<2x8xf32>
    %20 = vector.shape_cast %19 : vector<2x8xf32> to vector<2x8x1xf32>
    %cst_10 = arith.constant 3.200000e+01 : f32
    %21 = vector.broadcast %cst_10 : f32 to vector<2x8x1xf32>
    %22 = arith.divf %20, %21 : vector<2x8x1xf32>
    %23 = vector.broadcast %22 : vector<2x8x1xf32> to vector<2x8x32xf32>
    %24 = arith.subf %14, %23 : vector<2x8x32xf32>
    %25 = vector.broadcast %22 : vector<2x8x1xf32> to vector<2x8x32xf32>
    %26 = arith.subf %14, %25 : vector<2x8x32xf32>
    %27 = arith.mulf %24, %26 : vector<2x8x32xf32>
    %cst_11 = arith.constant dense<0.000000e+00> : vector<2x8xf32>
    %28 = vector.multi_reduction <add>, %27, %cst_11 [2] : vector<2x8x32xf32> to vector<2x8xf32>
    %29 = vector.shape_cast %28 : vector<2x8xf32> to vector<2x8x1xf32>
    %cst_12 = arith.constant 3.200000e+01 : f32
    %30 = vector.broadcast %cst_12 : f32 to vector<2x8x1xf32>
    %31 = arith.divf %29, %30 : vector<2x8x1xf32>
    %32 = vector.broadcast %22 : vector<2x8x1xf32> to vector<2x8x32xf32>
    %33 = arith.subf %14, %32 : vector<2x8x32xf32>
    %cst_13 = arith.constant 9.99999974E-6 : f32
    %34 = vector.broadcast %cst_13 : f32 to vector<2x8x1xf32>
    %35 = arith.addf %31, %34 : vector<2x8x1xf32>
    %36 = math.rsqrt %35 : vector<2x8x1xf32>
    %37 = vector.broadcast %36 : vector<2x8x1xf32> to vector<2x8x32xf32>
    %38 = arith.mulf %33, %37 : vector<2x8x32xf32>
    %39 = vector.shape_cast %16 : vector<32xf32> to vector<1x1x32xf32>
    %40 = vector.broadcast %39 : vector<1x1x32xf32> to vector<2x8x32xf32>
    %41 = arith.mulf %38, %40 : vector<2x8x32xf32>
    %42 = vector.shape_cast %18 : vector<32xf32> to vector<1x1x32xf32>
    %43 = vector.broadcast %42 : vector<1x1x32xf32> to vector<2x8x32xf32>
    %44 = arith.addf %41, %43 : vector<2x8x32xf32>
    %45 = vector.shape_cast %44 : vector<2x8x32xf32> to vector<16x32xf32>
    %46 = arith.truncf %45 : vector<16x32xf32> to vector<16x32xbf16>
    %cst_14 = arith.constant 0.000000e+00 : f32
    %47 = vector.broadcast %cst_14 : f32 to vector<16x32xf32>
    %c16 = arith.constant 16 : index
    %c0_15 = arith.constant 0 : index
    %48 = vector.load %arg2[%c16, %c0_15] : memref<1376x128xbf16, #tpu.memory_space<vmem>>, vector<32x8xbf16>
    %cst_16 = arith.constant dense<0.000000e+00> : vector<16x8xf32>
    %49 = tpu.matmul %46, %48, %cst_16 {dimension_numbers = #tpu.dot_dimension_numbers<[1], [0], [0], [1], [0, 0, 1, 1], [], []>} : vector<16x32xbf16>, vector<32x8xbf16>, vector<16x8xf32> -> vector<16x8xf32>
    %c11 = arith.constant 11 : index
    %c0_17 = arith.constant 0 : index
    %50 = vector.load %arg3[%c11, %c0_17] : memref<48x128xf32, #tpu.memory_space<vmem>>, vector<1x8xf32>
    %51 = vector.broadcast %50 : vector<1x8xf32> to vector<16x8xf32>
    %52 = arith.addf %49, %51 : vector<16x8xf32>
    %c48 = arith.constant 48 : index
    %c0_18 = arith.constant 0 : index
    %53 = vector.load %arg2[%c48, %c0_18] : memref<1376x128xbf16, #tpu.memory_space<vmem>>, vector<32x8xbf16>
    %cst_19 = arith.constant dense<0.000000e+00> : vector<16x8xf32>
    %54 = tpu.matmul %46, %53, %cst_19 {dimension_numbers = #tpu.dot_dimension_numbers<[1], [0], [0], [1], [0, 0, 1, 1], [], []>} : vector<16x32xbf16>, vector<32x8xbf16>, vector<16x8xf32> -> vector<16x8xf32>
    %c12 = arith.constant 12 : index
    %c0_20 = arith.constant 0 : index
    %55 = vector.load %arg3[%c12, %c0_20] : memref<48x128xf32, #tpu.memory_space<vmem>>, vector<1x8xf32>
    %56 = vector.broadcast %55 : vector<1x8xf32> to vector<16x8xf32>
    %57 = arith.addf %54, %56 : vector<16x8xf32>
    %c80 = arith.constant 80 : index
    %c0_21 = arith.constant 0 : index
    %58 = vector.load %arg2[%c80, %c0_21] : memref<1376x128xbf16, #tpu.memory_space<vmem>>, vector<32x8xbf16>
    %cst_22 = arith.constant dense<0.000000e+00> : vector<16x8xf32>
    %59 = tpu.matmul %46, %58, %cst_22 {dimension_numbers = #tpu.dot_dimension_numbers<[1], [0], [0], [1], [0, 0, 1, 1], [], []>} : vector<16x32xbf16>, vector<32x8xbf16>, vector<16x8xf32> -> vector<16x8xf32>
    %c13 = arith.constant 13 : index
    %c0_23 = arith.constant 0 : index
    %60 = vector.load %arg3[%c13, %c0_23] : memref<48x128xf32, #tpu.memory_space<vmem>>, vector<1x8xf32>
    %61 = vector.broadcast %60 : vector<1x8xf32> to vector<16x8xf32>
    %62 = arith.addf %59, %61 : vector<16x8xf32>
    %63 = vector.shape_cast %52 : vector<16x8xf32> to vector<2x8x8xf32>
    %64 = arith.truncf %63 : vector<2x8x8xf32> to vector<2x8x8xbf16>
    %65 = vector.shape_cast %57 : vector<16x8xf32> to vector<2x8x8xf32>
    %66 = arith.truncf %65 : vector<2x8x8xf32> to vector<2x8x8xbf16>
    %67 = vector.shape_cast %62 : vector<16x8xf32> to vector<2x8x8xf32>
    %68 = arith.truncf %67 : vector<2x8x8xf32> to vector<2x8x8xbf16>
    "tpu.trace_start"() <{level = 10 : i32, message = "bqd,bkd->bqk"}> : () -> ()
    %cst_24 = arith.constant dense<0.000000e+00> : vector<2x8x8xf32>
    %69 = tpu.matmul %64, %66, %cst_24 {dimension_numbers = #tpu.dot_dimension_numbers<[2], [2], [1], [1], [0, 0, 0, 1, 1, 1], [0], [0]>} : vector<2x8x8xbf16>, vector<2x8x8xbf16>, vector<2x8x8xf32> -> vector<2x8x8xf32>
    "tpu.trace_stop"() : () -> ()
    %cst_25 = arith.constant dense<0xFF800000> : vector<2x8xf32>
    %70 = vector.multi_reduction <maximumf>, %69, %cst_25 [2] : vector<2x8x8xf32> to vector<2x8xf32>
    %71 = vector.shape_cast %70 : vector<2x8xf32> to vector<2x8x1xf32>
    %72 = vector.broadcast %71 : vector<2x8x1xf32> to vector<2x8x8xf32>
    %73 = arith.subf %69, %72 : vector<2x8x8xf32>
    %74 = math.exp %73 : vector<2x8x8xf32>
    %cst_26 = arith.constant dense<0.000000e+00> : vector<2x8xf32>
    %75 = vector.multi_reduction <add>, %74, %cst_26 [2] : vector<2x8x8xf32> to vector<2x8xf32>
    %76 = vector.shape_cast %75 : vector<2x8xf32> to vector<2x8x1xf32>
    %77 = tpu.reciprocal %76 {approx = true} : vector<2x8x1xf32> -> vector<2x8x1xf32>
    %78 = vector.broadcast %77 : vector<2x8x1xf32> to vector<2x8x8xf32>
    %79 = arith.mulf %74, %78 : vector<2x8x8xf32>
    %80 = arith.truncf %79 : vector<2x8x8xf32> to vector<2x8x8xbf16>
    "tpu.trace_start"() <{level = 10 : i32, message = "bqk,bkd->bqd"}> : () -> ()
    %cst_27 = arith.constant dense<0.000000e+00> : vector<2x8x8xf32>
    %81 = tpu.matmul %80, %68, %cst_27 {dimension_numbers = #tpu.dot_dimension_numbers<[2], [1], [1], [2], [0, 0, 0, 1, 1, 2], [0], [0]>} : vector<2x8x8xbf16>, vector<2x8x8xbf16>, vector<2x8x8xf32> -> vector<2x8x8xf32>
    "tpu.trace_stop"() : () -> ()
    %82 = vector.shape_cast %81 : vector<2x8x8xf32> to vector<16x8xf32>
    %83 = arith.truncf %82 : vector<16x8xf32> to vector<16x8xbf16>
    %c112 = arith.constant 112 : index
    %c0_28 = arith.constant 0 : index
    %84 = vector.load %arg2[%c112, %c0_28] : memref<1376x128xbf16, #tpu.memory_space<vmem>>, vector<8x32xbf16>
    %cst_29 = arith.constant dense<0.000000e+00> : vector<16x32xf32>
    %85 = tpu.matmul %83, %84, %cst_29 {dimension_numbers = #tpu.dot_dimension_numbers<[1], [0], [0], [1], [0, 0, 1, 1], [], []>} : vector<16x8xbf16>, vector<8x32xbf16>, vector<16x32xf32> -> vector<16x32xf32>
    %86 = arith.addf %47, %85 : vector<16x32xf32>
    %c16_30 = arith.constant 16 : index
    %c8 = arith.constant 8 : index
    %87 = vector.load %arg2[%c16_30, %c8] : memref<1376x128xbf16, #tpu.memory_space<vmem>>, vector<32x8xbf16>
    %cst_31 = arith.constant dense<0.000000e+00> : vector<16x8xf32>
    %88 = tpu.matmul %46, %87, %cst_31 {dimension_numbers = #tpu.dot_dimension_numbers<[1], [0], [0], [1], [0, 0, 1, 1], [], []>} : vector<16x32xbf16>, vector<32x8xbf16>, vector<16x8xf32> -> vector<16x8xf32>
    %c11_32 = arith.constant 11 : index
    %c8_33 = arith.constant 8 : index
    %89 = vector.load %arg3[%c11_32, %c8_33] : memref<48x128xf32, #tpu.memory_space<vmem>>, vector<1x8xf32>
    %90 = vector.broadcast %89 : vector<1x8xf32> to vector<16x8xf32>
    %91 = arith.addf %88, %90 : vector<16x8xf32>
    %c48_34 = arith.constant 48 : index
    %c8_35 = arith.constant 8 : index
    %92 = vector.load %arg2[%c48_34, %c8_35] : memref<1376x128xbf16, #tpu.memory_space<vmem>>, vector<32x8xbf16>
    %cst_36 = arith.constant dense<0.000000e+00> : vector<16x8xf32>
    %93 = tpu.matmul %46, %92, %cst_36 {dimension_numbers = #tpu.dot_dimension_numbers<[1], [0], [0], [1], [0, 0, 1, 1], [], []>} : vector<16x32xbf16>, vector<32x8xbf16>, vector<16x8xf32> -> vector<16x8xf32>
    %c12_37 = arith.constant 12 : index
    %c8_38 = arith.constant 8 : index
    %94 = vector.load %arg3[%c12_37, %c8_38] : memref<48x128xf32, #tpu.memory_space<vmem>>, vector<1x8xf32>
    %95 = vector.broadcast %94 : vector<1x8xf32> to vector<16x8xf32>
    %96 = arith.addf %93, %95 : vector<16x8xf32>
    %c80_39 = arith.constant 80 : index
    %c8_40 = arith.constant 8 : index
    %97 = vector.load %arg2[%c80_39, %c8_40] : memref<1376x128xbf16, #tpu.memory_space<vmem>>, vector<32x8xbf16>
    %cst_41 = arith.constant dense<0.000000e+00> : vector<16x8xf32>
    %98 = tpu.matmul %46, %97, %cst_41 {dimension_numbers = #tpu.dot_dimension_numbers<[1], [0], [0], [1], [0, 0, 1, 1], [], []>} : vector<16x32xbf16>, vector<32x8xbf16>, vector<16x8xf32> -> vector<16x8xf32>
    %c13_42 = arith.constant 13 : index
    %c8_43 = arith.constant 8 : index
    %99 = vector.load %arg3[%c13_42, %c8_43] : memref<48x128xf32, #tpu.memory_space<vmem>>, vector<1x8xf32>
    %100 = vector.broadcast %99 : vector<1x8xf32> to vector<16x8xf32>
    %101 = arith.addf %98, %100 : vector<16x8xf32>
    %102 = vector.shape_cast %91 : vector<16x8xf32> to vector<2x8x8xf32>
    %103 = arith.truncf %102 : vector<2x8x8xf32> to vector<2x8x8xbf16>
    %104 = vector.shape_cast %96 : vector<16x8xf32> to vector<2x8x8xf32>
    %105 = arith.truncf %104 : vector<2x8x8xf32> to vector<2x8x8xbf16>
    %106 = vector.shape_cast %101 : vector<16x8xf32> to vector<2x8x8xf32>
    %107 = arith.truncf %106 : vector<2x8x8xf32> to vector<2x8x8xbf16>
    "tpu.trace_start"() <{level = 10 : i32, message = "bqd,bkd->bqk"}> : () -> ()
    %cst_44 = arith.constant dense<0.000000e+00> : vector<2x8x8xf32>
    %108 = tpu.matmul %103, %105, %cst_44 {dimension_numbers = #tpu.dot_dimension_numbers<[2], [2], [1], [1], [0, 0, 0, 1, 1, 1], [0], [0]>} : vector<2x8x8xbf16>, vector<2x8x8xbf16>, vector<2x8x8xf32> -> vector<2x8x8xf32>
    "tpu.trace_stop"() : () -> ()
    %cst_45 = arith.constant dense<0xFF800000> : vector<2x8xf32>
    %109 = vector.multi_reduction <maximumf>, %108, %cst_45 [2] : vector<2x8x8xf32> to vector<2x8xf32>
    %110 = vector.shape_cast %109 : vector<2x8xf32> to vector<2x8x1xf32>
    %111 = vector.broadcast %110 : vector<2x8x1xf32> to vector<2x8x8xf32>
    %112 = arith.subf %108, %111 : vector<2x8x8xf32>
    %113 = math.exp %112 : vector<2x8x8xf32>
    %cst_46 = arith.constant dense<0.000000e+00> : vector<2x8xf32>
    %114 = vector.multi_reduction <add>, %113, %cst_46 [2] : vector<2x8x8xf32> to vector<2x8xf32>
    %115 = vector.shape_cast %114 : vector<2x8xf32> to vector<2x8x1xf32>
    %116 = tpu.reciprocal %115 {approx = true} : vector<2x8x1xf32> -> vector<2x8x1xf32>
    %117 = vector.broadcast %116 : vector<2x8x1xf32> to vector<2x8x8xf32>
    %118 = arith.mulf %113, %117 : vector<2x8x8xf32>
    %119 = arith.truncf %118 : vector<2x8x8xf32> to vector<2x8x8xbf16>
    "tpu.trace_start"() <{level = 10 : i32, message = "bqk,bkd->bqd"}> : () -> ()
    %cst_47 = arith.constant dense<0.000000e+00> : vector<2x8x8xf32>
    %120 = tpu.matmul %119, %107, %cst_47 {dimension_numbers = #tpu.dot_dimension_numbers<[2], [1], [1], [2], [0, 0, 0, 1, 1, 2], [0], [0]>} : vector<2x8x8xbf16>, vector<2x8x8xbf16>, vector<2x8x8xf32> -> vector<2x8x8xf32>
    "tpu.trace_stop"() : () -> ()
    %121 = vector.shape_cast %120 : vector<2x8x8xf32> to vector<16x8xf32>
    %122 = arith.truncf %121 : vector<16x8xf32> to vector<16x8xbf16>
    %c120 = arith.constant 120 : index
    %c0_48 = arith.constant 0 : index
    %123 = vector.load %arg2[%c120, %c0_48] : memref<1376x128xbf16, #tpu.memory_space<vmem>>, vector<8x32xbf16>
    %cst_49 = arith.constant dense<0.000000e+00> : vector<16x32xf32>
    %124 = tpu.matmul %122, %123, %cst_49 {dimension_numbers = #tpu.dot_dimension_numbers<[1], [0], [0], [1], [0, 0, 1, 1], [], []>} : vector<16x8xbf16>, vector<8x32xbf16>, vector<16x32xf32> -> vector<16x32xf32>
    %125 = arith.addf %86, %124 : vector<16x32xf32>
    %c16_50 = arith.constant 16 : index
    %c16_51 = arith.constant 16 : index
    %126 = vector.load %arg2[%c16_50, %c16_51] : memref<1376x128xbf16, #tpu.memory_space<vmem>>, vector<32x8xbf16>
    %cst_52 = arith.constant dense<0.000000e+00> : vector<16x8xf32>
    %127 = tpu.matmul %46, %126, %cst_52 {dimension_numbers = #tpu.dot_dimension_numbers<[1], [0], [0], [1], [0, 0, 1, 1], [], []>} : vector<16x32xbf16>, vector<32x8xbf16>, vector<16x8xf32> -> vector<16x8xf32>
    %c11_53 = arith.constant 11 : index
    %c16_54 = arith.constant 16 : index
    %128 = vector.load %arg3[%c11_53, %c16_54] : memref<48x128xf32, #tpu.memory_space<vmem>>, vector<1x8xf32>
    %129 = vector.broadcast %128 : vector<1x8xf32> to vector<16x8xf32>
    %130 = arith.addf %127, %129 : vector<16x8xf32>
    %c48_55 = arith.constant 48 : index
    %c16_56 = arith.constant 16 : index
    %131 = vector.load %arg2[%c48_55, %c16_56] : memref<1376x128xbf16, #tpu.memory_space<vmem>>, vector<32x8xbf16>
    %cst_57 = arith.constant dense<0.000000e+00> : vector<16x8xf32>
    %132 = tpu.matmul %46, %131, %cst_57 {dimension_numbers = #tpu.dot_dimension_numbers<[1], [0], [0], [1], [0, 0, 1, 1], [], []>} : vector<16x32xbf16>, vector<32x8xbf16>, vector<16x8xf32> -> vector<16x8xf32>
    %c12_58 = arith.constant 12 : index
    %c16_59 = arith.constant 16 : index
    %133 = vector.load %arg3[%c12_58, %c16_59] : memref<48x128xf32, #tpu.memory_space<vmem>>, vector<1x8xf32>
    %134 = vector.broadcast %133 : vector<1x8xf32> to vector<16x8xf32>
    %135 = arith.addf %132, %134 : vector<16x8xf32>
    %c80_60 = arith.constant 80 : index
    %c16_61 = arith.constant 16 : index
    %136 = vector.load %arg2[%c80_60, %c16_61] : memref<1376x128xbf16, #tpu.memory_space<vmem>>, vector<32x8xbf16>
    %cst_62 = arith.constant dense<0.000000e+00> : vector<16x8xf32>
    %137 = tpu.matmul %46, %136, %cst_62 {dimension_numbers = #tpu.dot_dimension_numbers<[1], [0], [0], [1], [0, 0, 1, 1], [], []>} : vector<16x32xbf16>, vector<32x8xbf16>, vector<16x8xf32> -> vector<16x8xf32>
    %c13_63 = arith.constant 13 : index
    %c16_64 = arith.constant 16 : index
    %138 = vector.load %arg3[%c13_63, %c16_64] : memref<48x128xf32, #tpu.memory_space<vmem>>, vector<1x8xf32>
    %139 = vector.broadcast %138 : vector<1x8xf32> to vector<16x8xf32>
    %140 = arith.addf %137, %139 : vector<16x8xf32>
    %141 = vector.shape_cast %130 : vector<16x8xf32> to vector<2x8x8xf32>
    %142 = arith.truncf %141 : vector<2x8x8xf32> to vector<2x8x8xbf16>
    %143 = vector.shape_cast %135 : vector<16x8xf32> to vector<2x8x8xf32>
    %144 = arith.truncf %143 : vector<2x8x8xf32> to vector<2x8x8xbf16>
    %145 = vector.shape_cast %140 : vector<16x8xf32> to vector<2x8x8xf32>
    %146 = arith.truncf %145 : vector<2x8x8xf32> to vector<2x8x8xbf16>
    "tpu.trace_start"() <{level = 10 : i32, message = "bqd,bkd->bqk"}> : () -> ()
    %cst_65 = arith.constant dense<0.000000e+00> : vector<2x8x8xf32>
    %147 = tpu.matmul %142, %144, %cst_65 {dimension_numbers = #tpu.dot_dimension_numbers<[2], [2], [1], [1], [0, 0, 0, 1, 1, 1], [0], [0]>} : vector<2x8x8xbf16>, vector<2x8x8xbf16>, vector<2x8x8xf32> -> vector<2x8x8xf32>
    "tpu.trace_stop"() : () -> ()
    %cst_66 = arith.constant dense<0xFF800000> : vector<2x8xf32>
    %148 = vector.multi_reduction <maximumf>, %147, %cst_66 [2] : vector<2x8x8xf32> to vector<2x8xf32>
    %149 = vector.shape_cast %148 : vector<2x8xf32> to vector<2x8x1xf32>
    %150 = vector.broadcast %149 : vector<2x8x1xf32> to vector<2x8x8xf32>
    %151 = arith.subf %147, %150 : vector<2x8x8xf32>
    %152 = math.exp %151 : vector<2x8x8xf32>
    %cst_67 = arith.constant dense<0.000000e+00> : vector<2x8xf32>
    %153 = vector.multi_reduction <add>, %152, %cst_67 [2] : vector<2x8x8xf32> to vector<2x8xf32>
    %154 = vector.shape_cast %153 : vector<2x8xf32> to vector<2x8x1xf32>
    %155 = tpu.reciprocal %154 {approx = true} : vector<2x8x1xf32> -> vector<2x8x1xf32>
    %156 = vector.broadcast %155 : vector<2x8x1xf32> to vector<2x8x8xf32>
    %157 = arith.mulf %152, %156 : vector<2x8x8xf32>
    %158 = arith.truncf %157 : vector<2x8x8xf32> to vector<2x8x8xbf16>
    "tpu.trace_start"() <{level = 10 : i32, message = "bqk,bkd->bqd"}> : () -> ()
    %cst_68 = arith.constant dense<0.000000e+00> : vector<2x8x8xf32>
    %159 = tpu.matmul %158, %146, %cst_68 {dimension_numbers = #tpu.dot_dimension_numbers<[2], [1], [1], [2], [0, 0, 0, 1, 1, 2], [0], [0]>} : vector<2x8x8xbf16>, vector<2x8x8xbf16>, vector<2x8x8xf32> -> vector<2x8x8xf32>
    "tpu.trace_stop"() : () -> ()
    %160 = vector.shape_cast %159 : vector<2x8x8xf32> to vector<16x8xf32>
    %161 = arith.truncf %160 : vector<16x8xf32> to vector<16x8xbf16>
    %c128 = arith.constant 128 : index
    %c0_69 = arith.constant 0 : index
    %162 = vector.load %arg2[%c128, %c0_69] : memref<1376x128xbf16, #tpu.memory_space<vmem>>, vector<8x32xbf16>
    %cst_70 = arith.constant dense<0.000000e+00> : vector<16x32xf32>
    %163 = tpu.matmul %161, %162, %cst_70 {dimension_numbers = #tpu.dot_dimension_numbers<[1], [0], [0], [1], [0, 0, 1, 1], [], []>} : vector<16x8xbf16>, vector<8x32xbf16>, vector<16x32xf32> -> vector<16x32xf32>
    %164 = arith.addf %125, %163 : vector<16x32xf32>
    %c16_71 = arith.constant 16 : index
    %c24 = arith.constant 24 : index
    %165 = vector.load %arg2[%c16_71, %c24] : memref<1376x128xbf16, #tpu.memory_space<vmem>>, vector<32x8xbf16>
    %cst_72 = arith.constant dense<0.000000e+00> : vector<16x8xf32>
    %166 = tpu.matmul %46, %165, %cst_72 {dimension_numbers = #tpu.dot_dimension_numbers<[1], [0], [0], [1], [0, 0, 1, 1], [], []>} : vector<16x32xbf16>, vector<32x8xbf16>, vector<16x8xf32> -> vector<16x8xf32>
    %c11_73 = arith.constant 11 : index
    %c24_74 = arith.constant 24 : index
    %167 = vector.load %arg3[%c11_73, %c24_74] : memref<48x128xf32, #tpu.memory_space<vmem>>, vector<1x8xf32>
    %168 = vector.broadcast %167 : vector<1x8xf32> to vector<16x8xf32>
    %169 = arith.addf %166, %168 : vector<16x8xf32>
    %c48_75 = arith.constant 48 : index
    %c24_76 = arith.constant 24 : index
    %170 = vector.load %arg2[%c48_75, %c24_76] : memref<1376x128xbf16, #tpu.memory_space<vmem>>, vector<32x8xbf16>
    %cst_77 = arith.constant dense<0.000000e+00> : vector<16x8xf32>
    %171 = tpu.matmul %46, %170, %cst_77 {dimension_numbers = #tpu.dot_dimension_numbers<[1], [0], [0], [1], [0, 0, 1, 1], [], []>} : vector<16x32xbf16>, vector<32x8xbf16>, vector<16x8xf32> -> vector<16x8xf32>
    %c12_78 = arith.constant 12 : index
    %c24_79 = arith.constant 24 : index
    %172 = vector.load %arg3[%c12_78, %c24_79] : memref<48x128xf32, #tpu.memory_space<vmem>>, vector<1x8xf32>
    %173 = vector.broadcast %172 : vector<1x8xf32> to vector<16x8xf32>
    %174 = arith.addf %171, %173 : vector<16x8xf32>
    %c80_80 = arith.constant 80 : index
    %c24_81 = arith.constant 24 : index
    %175 = vector.load %arg2[%c80_80, %c24_81] : memref<1376x128xbf16, #tpu.memory_space<vmem>>, vector<32x8xbf16>
    %cst_82 = arith.constant dense<0.000000e+00> : vector<16x8xf32>
    %176 = tpu.matmul %46, %175, %cst_82 {dimension_numbers = #tpu.dot_dimension_numbers<[1], [0], [0], [1], [0, 0, 1, 1], [], []>} : vector<16x32xbf16>, vector<32x8xbf16>, vector<16x8xf32> -> vector<16x8xf32>
    %c13_83 = arith.constant 13 : index
    %c24_84 = arith.constant 24 : index
    %177 = vector.load %arg3[%c13_83, %c24_84] : memref<48x128xf32, #tpu.memory_space<vmem>>, vector<1x8xf32>
    %178 = vector.broadcast %177 : vector<1x8xf32> to vector<16x8xf32>
    %179 = arith.addf %176, %178 : vector<16x8xf32>
    %180 = vector.shape_cast %169 : vector<16x8xf32> to vector<2x8x8xf32>
    %181 = arith.truncf %180 : vector<2x8x8xf32> to vector<2x8x8xbf16>
    %182 = vector.shape_cast %174 : vector<16x8xf32> to vector<2x8x8xf32>
    %183 = arith.truncf %182 : vector<2x8x8xf32> to vector<2x8x8xbf16>
    %184 = vector.shape_cast %179 : vector<16x8xf32> to vector<2x8x8xf32>
    %185 = arith.truncf %184 : vector<2x8x8xf32> to vector<2x8x8xbf16>
    "tpu.trace_start"() <{level = 10 : i32, message = "bqd,bkd->bqk"}> : () -> ()
    %cst_85 = arith.constant dense<0.000000e+00> : vector<2x8x8xf32>
    %186 = tpu.matmul %181, %183, %cst_85 {dimension_numbers = #tpu.dot_dimension_numbers<[2], [2], [1], [1], [0, 0, 0, 1, 1, 1], [0], [0]>} : vector<2x8x8xbf16>, vector<2x8x8xbf16>, vector<2x8x8xf32> -> vector<2x8x8xf32>
    "tpu.trace_stop"() : () -> ()
    %cst_86 = arith.constant dense<0xFF800000> : vector<2x8xf32>
    %187 = vector.multi_reduction <maximumf>, %186, %cst_86 [2] : vector<2x8x8xf32> to vector<2x8xf32>
    %188 = vector.shape_cast %187 : vector<2x8xf32> to vector<2x8x1xf32>
    %189 = vector.broadcast %188 : vector<2x8x1xf32> to vector<2x8x8xf32>
    %190 = arith.subf %186, %189 : vector<2x8x8xf32>
    %191 = math.exp %190 : vector<2x8x8xf32>
    %cst_87 = arith.constant dense<0.000000e+00> : vector<2x8xf32>
    %192 = vector.multi_reduction <add>, %191, %cst_87 [2] : vector<2x8x8xf32> to vector<2x8xf32>
    %193 = vector.shape_cast %192 : vector<2x8xf32> to vector<2x8x1xf32>
    %194 = tpu.reciprocal %193 {approx = true} : vector<2x8x1xf32> -> vector<2x8x1xf32>
    %195 = vector.broadcast %194 : vector<2x8x1xf32> to vector<2x8x8xf32>
    %196 = arith.mulf %191, %195 : vector<2x8x8xf32>
    %197 = arith.truncf %196 : vector<2x8x8xf32> to vector<2x8x8xbf16>
    "tpu.trace_start"() <{level = 10 : i32, message = "bqk,bkd->bqd"}> : () -> ()
    %cst_88 = arith.constant dense<0.000000e+00> : vector<2x8x8xf32>
    %198 = tpu.matmul %197, %185, %cst_88 {dimension_numbers = #tpu.dot_dimension_numbers<[2], [1], [1], [2], [0, 0, 0, 1, 1, 2], [0], [0]>} : vector<2x8x8xbf16>, vector<2x8x8xbf16>, vector<2x8x8xf32> -> vector<2x8x8xf32>
    "tpu.trace_stop"() : () -> ()
    %199 = vector.shape_cast %198 : vector<2x8x8xf32> to vector<16x8xf32>
    %200 = arith.truncf %199 : vector<16x8xf32> to vector<16x8xbf16>
    %c136 = arith.constant 136 : index
    %c0_89 = arith.constant 0 : index
    %201 = vector.load %arg2[%c136, %c0_89] : memref<1376x128xbf16, #tpu.memory_space<vmem>>, vector<8x32xbf16>
    %cst_90 = arith.constant dense<0.000000e+00> : vector<16x32xf32>
    %202 = tpu.matmul %200, %201, %cst_90 {dimension_numbers = #tpu.dot_dimension_numbers<[1], [0], [0], [1], [0, 0, 1, 1], [], []>} : vector<16x8xbf16>, vector<8x32xbf16>, vector<16x32xf32> -> vector<16x32xf32>
    %203 = arith.addf %164, %202 : vector<16x32xf32>
    %c14 = arith.constant 14 : index
    %c0_91 = arith.constant 0 : index
    %204 = vector.load %arg3[%c14, %c0_91] : memref<48x128xf32, #tpu.memory_space<vmem>>, vector<1x32xf32>
    %205 = vector.shape_cast %204 : vector<1x32xf32> to vector<32xf32>
    %206 = vector.shape_cast %205 : vector<32xf32> to vector<1x32xf32>
    %207 = vector.broadcast %206 : vector<1x32xf32> to vector<16x32xf32>
    %208 = arith.addf %203, %207 : vector<16x32xf32>
    %209 = vector.shape_cast %208 : vector<16x32xf32> to vector<2x8x32xf32>
    %210 = arith.addf %14, %209 : vector<2x8x32xf32>
    %c15 = arith.constant 15 : index
    %c0_92 = arith.constant 0 : index
    %211 = vector.load %arg3[%c15, %c0_92] : memref<48x128xf32, #tpu.memory_space<vmem>>, vector<1x32xf32>
    %212 = vector.shape_cast %211 : vector<1x32xf32> to vector<32xf32>
    %c16_93 = arith.constant 16 : index
    %c0_94 = arith.constant 0 : index
    %213 = vector.load %arg3[%c16_93, %c0_94] : memref<48x128xf32, #tpu.memory_space<vmem>>, vector<1x32xf32>
    %214 = vector.shape_cast %213 : vector<1x32xf32> to vector<32xf32>
    %cst_95 = arith.constant dense<0.000000e+00> : vector<2x8xf32>
    %215 = vector.multi_reduction <add>, %210, %cst_95 [2] : vector<2x8x32xf32> to vector<2x8xf32>
    %216 = vector.shape_cast %215 : vector<2x8xf32> to vector<2x8x1xf32>
    %cst_96 = arith.constant 3.200000e+01 : f32
    %217 = vector.broadcast %cst_96 : f32 to vector<2x8x1xf32>
    %218 = arith.divf %216, %217 : vector<2x8x1xf32>
    %219 = vector.broadcast %218 : vector<2x8x1xf32> to vector<2x8x32xf32>
    %220 = arith.subf %210, %219 : vector<2x8x32xf32>
    %221 = vector.broadcast %218 : vector<2x8x1xf32> to vector<2x8x32xf32>
    %222 = arith.subf %210, %221 : vector<2x8x32xf32>
    %223 = arith.mulf %220, %222 : vector<2x8x32xf32>
    %cst_97 = arith.constant dense<0.000000e+00> : vector<2x8xf32>
    %224 = vector.multi_reduction <add>, %223, %cst_97 [2] : vector<2x8x32xf32> to vector<2x8xf32>
    %225 = vector.shape_cast %224 : vector<2x8xf32> to vector<2x8x1xf32>
    %cst_98 = arith.constant 3.200000e+01 : f32
    %226 = vector.broadcast %cst_98 : f32 to vector<2x8x1xf32>
    %227 = arith.divf %225, %226 : vector<2x8x1xf32>
    %228 = vector.broadcast %218 : vector<2x8x1xf32> to vector<2x8x32xf32>
    %229 = arith.subf %210, %228 : vector<2x8x32xf32>
    %cst_99 = arith.constant 9.99999974E-6 : f32
    %230 = vector.broadcast %cst_99 : f32 to vector<2x8x1xf32>
    %231 = arith.addf %227, %230 : vector<2x8x1xf32>
    %232 = math.rsqrt %231 : vector<2x8x1xf32>
    %233 = vector.broadcast %232 : vector<2x8x1xf32> to vector<2x8x32xf32>
    %234 = arith.mulf %229, %233 : vector<2x8x32xf32>
    %235 = vector.shape_cast %212 : vector<32xf32> to vector<1x1x32xf32>
    %236 = vector.broadcast %235 : vector<1x1x32xf32> to vector<2x8x32xf32>
    %237 = arith.mulf %234, %236 : vector<2x8x32xf32>
    %238 = vector.shape_cast %214 : vector<32xf32> to vector<1x1x32xf32>
    %239 = vector.broadcast %238 : vector<1x1x32xf32> to vector<2x8x32xf32>
    %240 = arith.addf %237, %239 : vector<2x8x32xf32>
    %241 = vector.shape_cast %240 : vector<2x8x32xf32> to vector<16x32xf32>
    %242 = arith.truncf %241 : vector<16x32xf32> to vector<16x32xbf16>
    %c144 = arith.constant 144 : index
    %c0_100 = arith.constant 0 : index
    %243 = vector.load %arg2[%c144, %c0_100] : memref<1376x128xbf16, #tpu.memory_space<vmem>>, vector<32x64xbf16>
    %cst_101 = arith.constant dense<0.000000e+00> : vector<16x64xf32>
    %244 = tpu.matmul %242, %243, %cst_101 {dimension_numbers = #tpu.dot_dimension_numbers<[1], [0], [0], [1], [0, 0, 1, 1], [], []>} : vector<16x32xbf16>, vector<32x64xbf16>, vector<16x64xf32> -> vector<16x64xf32>
    %c17 = arith.constant 17 : index
    %c0_102 = arith.constant 0 : index
    %245 = vector.load %arg3[%c17, %c0_102] : memref<48x128xf32, #tpu.memory_space<vmem>>, vector<1x64xf32>
    %246 = vector.shape_cast %245 : vector<1x64xf32> to vector<64xf32>
    %247 = vector.shape_cast %246 : vector<64xf32> to vector<1x64xf32>
    %248 = vector.broadcast %247 : vector<1x64xf32> to vector<16x64xf32>
    %249 = arith.addf %244, %248 : vector<16x64xf32>
    %cst_103 = arith.constant 5.000000e-01 : f32
    %250 = vector.broadcast %cst_103 : f32 to vector<16x64xf32>
    %251 = arith.mulf %250, %249 : vector<16x64xf32>
    %cst_104 = arith.constant 4.471500e-02 : f32
    %252 = vector.broadcast %cst_104 : f32 to vector<16x64xf32>
    %253 = arith.mulf %252, %249 : vector<16x64xf32>
    %254 = arith.mulf %253, %249 : vector<16x64xf32>
    %255 = arith.mulf %254, %249 : vector<16x64xf32>
    %256 = arith.addf %249, %255 : vector<16x64xf32>
    %cst_105 = arith.constant 0.797884583 : f32
    %257 = vector.broadcast %cst_105 : f32 to vector<16x64xf32>
    %258 = arith.mulf %257, %256 : vector<16x64xf32>
    %259 = math.tanh %258 : vector<16x64xf32>
    %cst_106 = arith.constant 1.000000e+00 : f32
    %260 = vector.broadcast %cst_106 : f32 to vector<16x64xf32>
    %261 = arith.addf %260, %259 : vector<16x64xf32>
    %262 = arith.mulf %251, %261 : vector<16x64xf32>
    %263 = arith.truncf %262 : vector<16x64xf32> to vector<16x64xbf16>
    %c176 = arith.constant 176 : index
    %c0_107 = arith.constant 0 : index
    %264 = vector.load %arg2[%c176, %c0_107] : memref<1376x128xbf16, #tpu.memory_space<vmem>>, vector<64x32xbf16>
    %cst_108 = arith.constant dense<0.000000e+00> : vector<16x32xf32>
    %265 = tpu.matmul %263, %264, %cst_108 {dimension_numbers = #tpu.dot_dimension_numbers<[1], [0], [0], [1], [0, 0, 1, 1], [], []>} : vector<16x64xbf16>, vector<64x32xbf16>, vector<16x32xf32> -> vector<16x32xf32>
    %c18 = arith.constant 18 : index
    %c0_109 = arith.constant 0 : index
    %266 = vector.load %arg3[%c18, %c0_109] : memref<48x128xf32, #tpu.memory_space<vmem>>, vector<1x32xf32>
    %267 = vector.shape_cast %266 : vector<1x32xf32> to vector<32xf32>
    %268 = vector.shape_cast %267 : vector<32xf32> to vector<1x32xf32>
    %269 = vector.broadcast %268 : vector<1x32xf32> to vector<16x32xf32>
    %270 = arith.addf %265, %269 : vector<16x32xf32>
    %271 = vector.shape_cast %270 : vector<16x32xf32> to vector<2x8x32xf32>
    %272 = arith.addf %210, %271 : vector<2x8x32xf32>
    %c19 = arith.constant 19 : index
    %c0_110 = arith.constant 0 : index
    %273 = vector.load %arg3[%c19, %c0_110] : memref<48x128xf32, #tpu.memory_space<vmem>>, vector<1x32xf32>
    %274 = vector.shape_cast %273 : vector<1x32xf32> to vector<32xf32>
    %c20 = arith.constant 20 : index
    %c0_111 = arith.constant 0 : index
    %275 = vector.load %arg3[%c20, %c0_111] : memref<48x128xf32, #tpu.memory_space<vmem>>, vector<1x32xf32>
    %276 = vector.shape_cast %275 : vector<1x32xf32> to vector<32xf32>
    %cst_112 = arith.constant dense<0.000000e+00> : vector<2x8xf32>
    %277 = vector.multi_reduction <add>, %272, %cst_112 [2] : vector<2x8x32xf32> to vector<2x8xf32>
    %278 = vector.shape_cast %277 : vector<2x8xf32> to vector<2x8x1xf32>
    %cst_113 = arith.constant 3.200000e+01 : f32
    %279 = vector.broadcast %cst_113 : f32 to vector<2x8x1xf32>
    %280 = arith.divf %278, %279 : vector<2x8x1xf32>
    %281 = vector.broadcast %280 : vector<2x8x1xf32> to vector<2x8x32xf32>
    %282 = arith.subf %272, %281 : vector<2x8x32xf32>
    %283 = vector.broadcast %280 : vector<2x8x1xf32> to vector<2x8x32xf32>
    %284 = arith.subf %272, %283 : vector<2x8x32xf32>
    %285 = arith.mulf %282, %284 : vector<2x8x32xf32>
    %cst_114 = arith.constant dense<0.000000e+00> : vector<2x8xf32>
    %286 = vector.multi_reduction <add>, %285, %cst_114 [2] : vector<2x8x32xf32> to vector<2x8xf32>
    %287 = vector.shape_cast %286 : vector<2x8xf32> to vector<2x8x1xf32>
    %cst_115 = arith.constant 3.200000e+01 : f32
    %288 = vector.broadcast %cst_115 : f32 to vector<2x8x1xf32>
    %289 = arith.divf %287, %288 : vector<2x8x1xf32>
    %290 = vector.broadcast %280 : vector<2x8x1xf32> to vector<2x8x32xf32>
    %291 = arith.subf %272, %290 : vector<2x8x32xf32>
    %cst_116 = arith.constant 9.99999974E-6 : f32
    %292 = vector.broadcast %cst_116 : f32 to vector<2x8x1xf32>
    %293 = arith.addf %289, %292 : vector<2x8x1xf32>
    %294 = math.rsqrt %293 : vector<2x8x1xf32>
    %295 = vector.broadcast %294 : vector<2x8x1xf32> to vector<2x8x32xf32>
    %296 = arith.mulf %291, %295 : vector<2x8x32xf32>
    %297 = vector.shape_cast %274 : vector<32xf32> to vector<1x1x32xf32>
    %298 = vector.broadcast %297 : vector<1x1x32xf32> to vector<2x8x32xf32>
    %299 = arith.mulf %296, %298 : vector<2x8x32xf32>
    %300 = vector.shape_cast %276 : vector<32xf32> to vector<1x1x32xf32>
    %301 = vector.broadcast %300 : vector<1x1x32xf32> to vector<2x8x32xf32>
    %302 = arith.addf %299, %301 : vector<2x8x32xf32>
    %303 = vector.shape_cast %302 : vector<2x8x32xf32> to vector<16x32xf32>
    %304 = arith.truncf %303 : vector<16x32xf32> to vector<16x32xbf16>
    %cst_117 = arith.constant 0.000000e+00 : f32
    %305 = vector.broadcast %cst_117 : f32 to vector<16x32xf32>
    %c240 = arith.constant 240 : index
    %c0_118 = arith.constant 0 : index
    %306 = vector.load %arg2[%c240, %c0_118] : memref<1376x128xbf16, #tpu.memory_space<vmem>>, vector<32x8xbf16>
    %cst_119 = arith.constant dense<0.000000e+00> : vector<16x8xf32>
    %307 = tpu.matmul %304, %306, %cst_119 {dimension_numbers = #tpu.dot_dimension_numbers<[1], [0], [0], [1], [0, 0, 1, 1], [], []>} : vector<16x32xbf16>, vector<32x8xbf16>, vector<16x8xf32> -> vector<16x8xf32>
    %c21 = arith.constant 21 : index
    %c0_120 = arith.constant 0 : index
    %308 = vector.load %arg3[%c21, %c0_120] : memref<48x128xf32, #tpu.memory_space<vmem>>, vector<1x8xf32>
    %309 = vector.broadcast %308 : vector<1x8xf32> to vector<16x8xf32>
    %310 = arith.addf %307, %309 : vector<16x8xf32>
    %c272 = arith.constant 272 : index
    %c0_121 = arith.constant 0 : index
    %311 = vector.load %arg2[%c272, %c0_121] : memref<1376x128xbf16, #tpu.memory_space<vmem>>, vector<32x8xbf16>
    %cst_122 = arith.constant dense<0.000000e+00> : vector<16x8xf32>
    %312 = tpu.matmul %304, %311, %cst_122 {dimension_numbers = #tpu.dot_dimension_numbers<[1], [0], [0], [1], [0, 0, 1, 1], [], []>} : vector<16x32xbf16>, vector<32x8xbf16>, vector<16x8xf32> -> vector<16x8xf32>
    %c22 = arith.constant 22 : index
    %c0_123 = arith.constant 0 : index
    %313 = vector.load %arg3[%c22, %c0_123] : memref<48x128xf32, #tpu.memory_space<vmem>>, vector<1x8xf32>
    %314 = vector.broadcast %313 : vector<1x8xf32> to vector<16x8xf32>
    %315 = arith.addf %312, %314 : vector<16x8xf32>
    %c304 = arith.constant 304 : index
    %c0_124 = arith.constant 0 : index
    %316 = vector.load %arg2[%c304, %c0_124] : memref<1376x128xbf16, #tpu.memory_space<vmem>>, vector<32x8xbf16>
    %cst_125 = arith.constant dense<0.000000e+00> : vector<16x8xf32>
    %317 = tpu.matmul %304, %316, %cst_125 {dimension_numbers = #tpu.dot_dimension_numbers<[1], [0], [0], [1], [0, 0, 1, 1], [], []>} : vector<16x32xbf16>, vector<32x8xbf16>, vector<16x8xf32> -> vector<16x8xf32>
    %c23 = arith.constant 23 : index
    %c0_126 = arith.constant 0 : index
    %318 = vector.load %arg3[%c23, %c0_126] : memref<48x128xf32, #tpu.memory_space<vmem>>, vector<1x8xf32>
    %319 = vector.broadcast %318 : vector<1x8xf32> to vector<16x8xf32>
    %320 = arith.addf %317, %319 : vector<16x8xf32>
    %321 = vector.shape_cast %310 : vector<16x8xf32> to vector<2x8x8xf32>
    %322 = arith.truncf %321 : vector<2x8x8xf32> to vector<2x8x8xbf16>
    %323 = vector.shape_cast %315 : vector<16x8xf32> to vector<2x8x8xf32>
    %324 = arith.truncf %323 : vector<2x8x8xf32> to vector<2x8x8xbf16>
    %325 = vector.shape_cast %320 : vector<16x8xf32> to vector<2x8x8xf32>
    %326 = arith.truncf %325 : vector<2x8x8xf32> to vector<2x8x8xbf16>
    "tpu.trace_start"() <{level = 10 : i32, message = "bqd,bkd->bqk"}> : () -> ()
    %cst_127 = arith.constant dense<0.000000e+00> : vector<2x8x8xf32>
    %327 = tpu.matmul %322, %324, %cst_127 {dimension_numbers = #tpu.dot_dimension_numbers<[2], [2], [1], [1], [0, 0, 0, 1, 1, 1], [0], [0]>} : vector<2x8x8xbf16>, vector<2x8x8xbf16>, vector<2x8x8xf32> -> vector<2x8x8xf32>
    "tpu.trace_stop"() : () -> ()
    %cst_128 = arith.constant dense<0xFF800000> : vector<2x8xf32>
    %328 = vector.multi_reduction <maximumf>, %327, %cst_128 [2] : vector<2x8x8xf32> to vector<2x8xf32>
    %329 = vector.shape_cast %328 : vector<2x8xf32> to vector<2x8x1xf32>
    %330 = vector.broadcast %329 : vector<2x8x1xf32> to vector<2x8x8xf32>
    %331 = arith.subf %327, %330 : vector<2x8x8xf32>
    %332 = math.exp %331 : vector<2x8x8xf32>
    %cst_129 = arith.constant dense<0.000000e+00> : vector<2x8xf32>
    %333 = vector.multi_reduction <add>, %332, %cst_129 [2] : vector<2x8x8xf32> to vector<2x8xf32>
    %334 = vector.shape_cast %333 : vector<2x8xf32> to vector<2x8x1xf32>
    %335 = tpu.reciprocal %334 {approx = true} : vector<2x8x1xf32> -> vector<2x8x1xf32>
    %336 = vector.broadcast %335 : vector<2x8x1xf32> to vector<2x8x8xf32>
    %337 = arith.mulf %332, %336 : vector<2x8x8xf32>
    %338 = arith.truncf %337 : vector<2x8x8xf32> to vector<2x8x8xbf16>
    "tpu.trace_start"() <{level = 10 : i32, message = "bqk,bkd->bqd"}> : () -> ()
    %cst_130 = arith.constant dense<0.000000e+00> : vector<2x8x8xf32>
    %339 = tpu.matmul %338, %326, %cst_130 {dimension_numbers = #tpu.dot_dimension_numbers<[2], [1], [1], [2], [0, 0, 0, 1, 1, 2], [0], [0]>} : vector<2x8x8xbf16>, vector<2x8x8xbf16>, vector<2x8x8xf32> -> vector<2x8x8xf32>
    "tpu.trace_stop"() : () -> ()
    %340 = vector.shape_cast %339 : vector<2x8x8xf32> to vector<16x8xf32>
    %341 = arith.truncf %340 : vector<16x8xf32> to vector<16x8xbf16>
    %c336 = arith.constant 336 : index
    %c0_131 = arith.constant 0 : index
    %342 = vector.load %arg2[%c336, %c0_131] : memref<1376x128xbf16, #tpu.memory_space<vmem>>, vector<8x32xbf16>
    %cst_132 = arith.constant dense<0.000000e+00> : vector<16x32xf32>
    %343 = tpu.matmul %341, %342, %cst_132 {dimension_numbers = #tpu.dot_dimension_numbers<[1], [0], [0], [1], [0, 0, 1, 1], [], []>} : vector<16x8xbf16>, vector<8x32xbf16>, vector<16x32xf32> -> vector<16x32xf32>
    %344 = arith.addf %305, %343 : vector<16x32xf32>
    %c240_133 = arith.constant 240 : index
    %c8_134 = arith.constant 8 : index
    %345 = vector.load %arg2[%c240_133, %c8_134] : memref<1376x128xbf16, #tpu.memory_space<vmem>>, vector<32x8xbf16>
    %cst_135 = arith.constant dense<0.000000e+00> : vector<16x8xf32>
    %346 = tpu.matmul %304, %345, %cst_135 {dimension_numbers = #tpu.dot_dimension_numbers<[1], [0], [0], [1], [0, 0, 1, 1], [], []>} : vector<16x32xbf16>, vector<32x8xbf16>, vector<16x8xf32> -> vector<16x8xf32>
    %c21_136 = arith.constant 21 : index
    %c8_137 = arith.constant 8 : index
    %347 = vector.load %arg3[%c21_136, %c8_137] : memref<48x128xf32, #tpu.memory_space<vmem>>, vector<1x8xf32>
    %348 = vector.broadcast %347 : vector<1x8xf32> to vector<16x8xf32>
    %349 = arith.addf %346, %348 : vector<16x8xf32>
    %c272_138 = arith.constant 272 : index
    %c8_139 = arith.constant 8 : index
    %350 = vector.load %arg2[%c272_138, %c8_139] : memref<1376x128xbf16, #tpu.memory_space<vmem>>, vector<32x8xbf16>
    %cst_140 = arith.constant dense<0.000000e+00> : vector<16x8xf32>
    %351 = tpu.matmul %304, %350, %cst_140 {dimension_numbers = #tpu.dot_dimension_numbers<[1], [0], [0], [1], [0, 0, 1, 1], [], []>} : vector<16x32xbf16>, vector<32x8xbf16>, vector<16x8xf32> -> vector<16x8xf32>
    %c22_141 = arith.constant 22 : index
    %c8_142 = arith.constant 8 : index
    %352 = vector.load %arg3[%c22_141, %c8_142] : memref<48x128xf32, #tpu.memory_space<vmem>>, vector<1x8xf32>
    %353 = vector.broadcast %352 : vector<1x8xf32> to vector<16x8xf32>
    %354 = arith.addf %351, %353 : vector<16x8xf32>
    %c304_143 = arith.constant 304 : index
    %c8_144 = arith.constant 8 : index
    %355 = vector.load %arg2[%c304_143, %c8_144] : memref<1376x128xbf16, #tpu.memory_space<vmem>>, vector<32x8xbf16>
    %cst_145 = arith.constant dense<0.000000e+00> : vector<16x8xf32>
    %356 = tpu.matmul %304, %355, %cst_145 {dimension_numbers = #tpu.dot_dimension_numbers<[1], [0], [0], [1], [0, 0, 1, 1], [], []>} : vector<16x32xbf16>, vector<32x8xbf16>, vector<16x8xf32> -> vector<16x8xf32>
    %c23_146 = arith.constant 23 : index
    %c8_147 = arith.constant 8 : index
    %357 = vector.load %arg3[%c23_146, %c8_147] : memref<48x128xf32, #tpu.memory_space<vmem>>, vector<1x8xf32>
    %358 = vector.broadcast %357 : vector<1x8xf32> to vector<16x8xf32>
    %359 = arith.addf %356, %358 : vector<16x8xf32>
    %360 = vector.shape_cast %349 : vector<16x8xf32> to vector<2x8x8xf32>
    %361 = arith.truncf %360 : vector<2x8x8xf32> to vector<2x8x8xbf16>
    %362 = vector.shape_cast %354 : vector<16x8xf32> to vector<2x8x8xf32>
    %363 = arith.truncf %362 : vector<2x8x8xf32> to vector<2x8x8xbf16>
    %364 = vector.shape_cast %359 : vector<16x8xf32> to vector<2x8x8xf32>
    %365 = arith.truncf %364 : vector<2x8x8xf32> to vector<2x8x8xbf16>
    "tpu.trace_start"() <{level = 10 : i32, message = "bqd,bkd->bqk"}> : () -> ()
    %cst_148 = arith.constant dense<0.000000e+00> : vector<2x8x8xf32>
    %366 = tpu.matmul %361, %363, %cst_148 {dimension_numbers = #tpu.dot_dimension_numbers<[2], [2], [1], [1], [0, 0, 0, 1, 1, 1], [0], [0]>} : vector<2x8x8xbf16>, vector<2x8x8xbf16>, vector<2x8x8xf32> -> vector<2x8x8xf32>
    "tpu.trace_stop"() : () -> ()
    %cst_149 = arith.constant dense<0xFF800000> : vector<2x8xf32>
    %367 = vector.multi_reduction <maximumf>, %366, %cst_149 [2] : vector<2x8x8xf32> to vector<2x8xf32>
    %368 = vector.shape_cast %367 : vector<2x8xf32> to vector<2x8x1xf32>
    %369 = vector.broadcast %368 : vector<2x8x1xf32> to vector<2x8x8xf32>
    %370 = arith.subf %366, %369 : vector<2x8x8xf32>
    %371 = math.exp %370 : vector<2x8x8xf32>
    %cst_150 = arith.constant dense<0.000000e+00> : vector<2x8xf32>
    %372 = vector.multi_reduction <add>, %371, %cst_150 [2] : vector<2x8x8xf32> to vector<2x8xf32>
    %373 = vector.shape_cast %372 : vector<2x8xf32> to vector<2x8x1xf32>
    %374 = tpu.reciprocal %373 {approx = true} : vector<2x8x1xf32> -> vector<2x8x1xf32>
    %375 = vector.broadcast %374 : vector<2x8x1xf32> to vector<2x8x8xf32>
    %376 = arith.mulf %371, %375 : vector<2x8x8xf32>
    %377 = arith.truncf %376 : vector<2x8x8xf32> to vector<2x8x8xbf16>
    "tpu.trace_start"() <{level = 10 : i32, message = "bqk,bkd->bqd"}> : () -> ()
    %cst_151 = arith.constant dense<0.000000e+00> : vector<2x8x8xf32>
    %378 = tpu.matmul %377, %365, %cst_151 {dimension_numbers = #tpu.dot_dimension_numbers<[2], [1], [1], [2], [0, 0, 0, 1, 1, 2], [0], [0]>} : vector<2x8x8xbf16>, vector<2x8x8xbf16>, vector<2x8x8xf32> -> vector<2x8x8xf32>
    "tpu.trace_stop"() : () -> ()
    %379 = vector.shape_cast %378 : vector<2x8x8xf32> to vector<16x8xf32>
    %380 = arith.truncf %379 : vector<16x8xf32> to vector<16x8xbf16>
    %c344 = arith.constant 344 : index
    %c0_152 = arith.constant 0 : index
    %381 = vector.load %arg2[%c344, %c0_152] : memref<1376x128xbf16, #tpu.memory_space<vmem>>, vector<8x32xbf16>
    %cst_153 = arith.constant dense<0.000000e+00> : vector<16x32xf32>
    %382 = tpu.matmul %380, %381, %cst_153 {dimension_numbers = #tpu.dot_dimension_numbers<[1], [0], [0], [1], [0, 0, 1, 1], [], []>} : vector<16x8xbf16>, vector<8x32xbf16>, vector<16x32xf32> -> vector<16x32xf32>
    %383 = arith.addf %344, %382 : vector<16x32xf32>
    %c240_154 = arith.constant 240 : index
    %c16_155 = arith.constant 16 : index
    %384 = vector.load %arg2[%c240_154, %c16_155] : memref<1376x128xbf16, #tpu.memory_space<vmem>>, vector<32x8xbf16>
    %cst_156 = arith.constant dense<0.000000e+00> : vector<16x8xf32>
    %385 = tpu.matmul %304, %384, %cst_156 {dimension_numbers = #tpu.dot_dimension_numbers<[1], [0], [0], [1], [0, 0, 1, 1], [], []>} : vector<16x32xbf16>, vector<32x8xbf16>, vector<16x8xf32> -> vector<16x8xf32>
    %c21_157 = arith.constant 21 : index
    %c16_158 = arith.constant 16 : index
    %386 = vector.load %arg3[%c21_157, %c16_158] : memref<48x128xf32, #tpu.memory_space<vmem>>, vector<1x8xf32>
    %387 = vector.broadcast %386 : vector<1x8xf32> to vector<16x8xf32>
    %388 = arith.addf %385, %387 : vector<16x8xf32>
    %c272_159 = arith.constant 272 : index
    %c16_160 = arith.constant 16 : index
    %389 = vector.load %arg2[%c272_159, %c16_160] : memref<1376x128xbf16, #tpu.memory_space<vmem>>, vector<32x8xbf16>
    %cst_161 = arith.constant dense<0.000000e+00> : vector<16x8xf32>
    %390 = tpu.matmul %304, %389, %cst_161 {dimension_numbers = #tpu.dot_dimension_numbers<[1], [0], [0], [1], [0, 0, 1, 1], [], []>} : vector<16x32xbf16>, vector<32x8xbf16>, vector<16x8xf32> -> vector<16x8xf32>
    %c22_162 = arith.constant 22 : index
    %c16_163 = arith.constant 16 : index
    %391 = vector.load %arg3[%c22_162, %c16_163] : memref<48x128xf32, #tpu.memory_space<vmem>>, vector<1x8xf32>
    %392 = vector.broadcast %391 : vector<1x8xf32> to vector<16x8xf32>
    %393 = arith.addf %390, %392 : vector<16x8xf32>
    %c304_164 = arith.constant 304 : index
    %c16_165 = arith.constant 16 : index
    %394 = vector.load %arg2[%c304_164, %c16_165] : memref<1376x128xbf16, #tpu.memory_space<vmem>>, vector<32x8xbf16>
    %cst_166 = arith.constant dense<0.000000e+00> : vector<16x8xf32>
    %395 = tpu.matmul %304, %394, %cst_166 {dimension_numbers = #tpu.dot_dimension_numbers<[1], [0], [0], [1], [0, 0, 1, 1], [], []>} : vector<16x32xbf16>, vector<32x8xbf16>, vector<16x8xf32> -> vector<16x8xf32>
    %c23_167 = arith.constant 23 : index
    %c16_168 = arith.constant 16 : index
    %396 = vector.load %arg3[%c23_167, %c16_168] : memref<48x128xf32, #tpu.memory_space<vmem>>, vector<1x8xf32>
    %397 = vector.broadcast %396 : vector<1x8xf32> to vector<16x8xf32>
    %398 = arith.addf %395, %397 : vector<16x8xf32>
    %399 = vector.shape_cast %388 : vector<16x8xf32> to vector<2x8x8xf32>
    %400 = arith.truncf %399 : vector<2x8x8xf32> to vector<2x8x8xbf16>
    %401 = vector.shape_cast %393 : vector<16x8xf32> to vector<2x8x8xf32>
    %402 = arith.truncf %401 : vector<2x8x8xf32> to vector<2x8x8xbf16>
    %403 = vector.shape_cast %398 : vector<16x8xf32> to vector<2x8x8xf32>
    %404 = arith.truncf %403 : vector<2x8x8xf32> to vector<2x8x8xbf16>
    "tpu.trace_start"() <{level = 10 : i32, message = "bqd,bkd->bqk"}> : () -> ()
    %cst_169 = arith.constant dense<0.000000e+00> : vector<2x8x8xf32>
    %405 = tpu.matmul %400, %402, %cst_169 {dimension_numbers = #tpu.dot_dimension_numbers<[2], [2], [1], [1], [0, 0, 0, 1, 1, 1], [0], [0]>} : vector<2x8x8xbf16>, vector<2x8x8xbf16>, vector<2x8x8xf32> -> vector<2x8x8xf32>
    "tpu.trace_stop"() : () -> ()
    %cst_170 = arith.constant dense<0xFF800000> : vector<2x8xf32>
    %406 = vector.multi_reduction <maximumf>, %405, %cst_170 [2] : vector<2x8x8xf32> to vector<2x8xf32>
    %407 = vector.shape_cast %406 : vector<2x8xf32> to vector<2x8x1xf32>
    %408 = vector.broadcast %407 : vector<2x8x1xf32> to vector<2x8x8xf32>
    %409 = arith.subf %405, %408 : vector<2x8x8xf32>
    %410 = math.exp %409 : vector<2x8x8xf32>
    %cst_171 = arith.constant dense<0.000000e+00> : vector<2x8xf32>
    %411 = vector.multi_reduction <add>, %410, %cst_171 [2] : vector<2x8x8xf32> to vector<2x8xf32>
    %412 = vector.shape_cast %411 : vector<2x8xf32> to vector<2x8x1xf32>
    %413 = tpu.reciprocal %412 {approx = true} : vector<2x8x1xf32> -> vector<2x8x1xf32>
    %414 = vector.broadcast %413 : vector<2x8x1xf32> to vector<2x8x8xf32>
    %415 = arith.mulf %410, %414 : vector<2x8x8xf32>
    %416 = arith.truncf %415 : vector<2x8x8xf32> to vector<2x8x8xbf16>
    "tpu.trace_start"() <{level = 10 : i32, message = "bqk,bkd->bqd"}> : () -> ()
    %cst_172 = arith.constant dense<0.000000e+00> : vector<2x8x8xf32>
    %417 = tpu.matmul %416, %404, %cst_172 {dimension_numbers = #tpu.dot_dimension_numbers<[2], [1], [1], [2], [0, 0, 0, 1, 1, 2], [0], [0]>} : vector<2x8x8xbf16>, vector<2x8x8xbf16>, vector<2x8x8xf32> -> vector<2x8x8xf32>
    "tpu.trace_stop"() : () -> ()
    %418 = vector.shape_cast %417 : vector<2x8x8xf32> to vector<16x8xf32>
    %419 = arith.truncf %418 : vector<16x8xf32> to vector<16x8xbf16>
    %c352 = arith.constant 352 : index
    %c0_173 = arith.constant 0 : index
    %420 = vector.load %arg2[%c352, %c0_173] : memref<1376x128xbf16, #tpu.memory_space<vmem>>, vector<8x32xbf16>
    %cst_174 = arith.constant dense<0.000000e+00> : vector<16x32xf32>
    %421 = tpu.matmul %419, %420, %cst_174 {dimension_numbers = #tpu.dot_dimension_numbers<[1], [0], [0], [1], [0, 0, 1, 1], [], []>} : vector<16x8xbf16>, vector<8x32xbf16>, vector<16x32xf32> -> vector<16x32xf32>
    %422 = arith.addf %383, %421 : vector<16x32xf32>
    %c240_175 = arith.constant 240 : index
    %c24_176 = arith.constant 24 : index
    %423 = vector.load %arg2[%c240_175, %c24_176] : memref<1376x128xbf16, #tpu.memory_space<vmem>>, vector<32x8xbf16>
    %cst_177 = arith.constant dense<0.000000e+00> : vector<16x8xf32>
    %424 = tpu.matmul %304, %423, %cst_177 {dimension_numbers = #tpu.dot_dimension_numbers<[1], [0], [0], [1], [0, 0, 1, 1], [], []>} : vector<16x32xbf16>, vector<32x8xbf16>, vector<16x8xf32> -> vector<16x8xf32>
    %c21_178 = arith.constant 21 : index
    %c24_179 = arith.constant 24 : index
    %425 = vector.load %arg3[%c21_178, %c24_179] : memref<48x128xf32, #tpu.memory_space<vmem>>, vector<1x8xf32>
    %426 = vector.broadcast %425 : vector<1x8xf32> to vector<16x8xf32>
    %427 = arith.addf %424, %426 : vector<16x8xf32>
    %c272_180 = arith.constant 272 : index
    %c24_181 = arith.constant 24 : index
    %428 = vector.load %arg2[%c272_180, %c24_181] : memref<1376x128xbf16, #tpu.memory_space<vmem>>, vector<32x8xbf16>
    %cst_182 = arith.constant dense<0.000000e+00> : vector<16x8xf32>
    %429 = tpu.matmul %304, %428, %cst_182 {dimension_numbers = #tpu.dot_dimension_numbers<[1], [0], [0], [1], [0, 0, 1, 1], [], []>} : vector<16x32xbf16>, vector<32x8xbf16>, vector<16x8xf32> -> vector<16x8xf32>
    %c22_183 = arith.constant 22 : index
    %c24_184 = arith.constant 24 : index
    %430 = vector.load %arg3[%c22_183, %c24_184] : memref<48x128xf32, #tpu.memory_space<vmem>>, vector<1x8xf32>
    %431 = vector.broadcast %430 : vector<1x8xf32> to vector<16x8xf32>
    %432 = arith.addf %429, %431 : vector<16x8xf32>
    %c304_185 = arith.constant 304 : index
    %c24_186 = arith.constant 24 : index
    %433 = vector.load %arg2[%c304_185, %c24_186] : memref<1376x128xbf16, #tpu.memory_space<vmem>>, vector<32x8xbf16>
    %cst_187 = arith.constant dense<0.000000e+00> : vector<16x8xf32>
    %434 = tpu.matmul %304, %433, %cst_187 {dimension_numbers = #tpu.dot_dimension_numbers<[1], [0], [0], [1], [0, 0, 1, 1], [], []>} : vector<16x32xbf16>, vector<32x8xbf16>, vector<16x8xf32> -> vector<16x8xf32>
    %c23_188 = arith.constant 23 : index
    %c24_189 = arith.constant 24 : index
    %435 = vector.load %arg3[%c23_188, %c24_189] : memref<48x128xf32, #tpu.memory_space<vmem>>, vector<1x8xf32>
    %436 = vector.broadcast %435 : vector<1x8xf32> to vector<16x8xf32>
    %437 = arith.addf %434, %436 : vector<16x8xf32>
    %438 = vector.shape_cast %427 : vector<16x8xf32> to vector<2x8x8xf32>
    %439 = arith.truncf %438 : vector<2x8x8xf32> to vector<2x8x8xbf16>
    %440 = vector.shape_cast %432 : vector<16x8xf32> to vector<2x8x8xf32>
    %441 = arith.truncf %440 : vector<2x8x8xf32> to vector<2x8x8xbf16>
    %442 = vector.shape_cast %437 : vector<16x8xf32> to vector<2x8x8xf32>
    %443 = arith.truncf %442 : vector<2x8x8xf32> to vector<2x8x8xbf16>
    "tpu.trace_start"() <{level = 10 : i32, message = "bqd,bkd->bqk"}> : () -> ()
    %cst_190 = arith.constant dense<0.000000e+00> : vector<2x8x8xf32>
    %444 = tpu.matmul %439, %441, %cst_190 {dimension_numbers = #tpu.dot_dimension_numbers<[2], [2], [1], [1], [0, 0, 0, 1, 1, 1], [0], [0]>} : vector<2x8x8xbf16>, vector<2x8x8xbf16>, vector<2x8x8xf32> -> vector<2x8x8xf32>
    "tpu.trace_stop"() : () -> ()
    %cst_191 = arith.constant dense<0xFF800000> : vector<2x8xf32>
    %445 = vector.multi_reduction <maximumf>, %444, %cst_191 [2] : vector<2x8x8xf32> to vector<2x8xf32>
    %446 = vector.shape_cast %445 : vector<2x8xf32> to vector<2x8x1xf32>
    %447 = vector.broadcast %446 : vector<2x8x1xf32> to vector<2x8x8xf32>
    %448 = arith.subf %444, %447 : vector<2x8x8xf32>
    %449 = math.exp %448 : vector<2x8x8xf32>
    %cst_192 = arith.constant dense<0.000000e+00> : vector<2x8xf32>
    %450 = vector.multi_reduction <add>, %449, %cst_192 [2] : vector<2x8x8xf32> to vector<2x8xf32>
    %451 = vector.shape_cast %450 : vector<2x8xf32> to vector<2x8x1xf32>
    %452 = tpu.reciprocal %451 {approx = true} : vector<2x8x1xf32> -> vector<2x8x1xf32>
    %453 = vector.broadcast %452 : vector<2x8x1xf32> to vector<2x8x8xf32>
    %454 = arith.mulf %449, %453 : vector<2x8x8xf32>
    %455 = arith.truncf %454 : vector<2x8x8xf32> to vector<2x8x8xbf16>
    "tpu.trace_start"() <{level = 10 : i32, message = "bqk,bkd->bqd"}> : () -> ()
    %cst_193 = arith.constant dense<0.000000e+00> : vector<2x8x8xf32>
    %456 = tpu.matmul %455, %443, %cst_193 {dimension_numbers = #tpu.dot_dimension_numbers<[2], [1], [1], [2], [0, 0, 0, 1, 1, 2], [0], [0]>} : vector<2x8x8xbf16>, vector<2x8x8xbf16>, vector<2x8x8xf32> -> vector<2x8x8xf32>
    "tpu.trace_stop"() : () -> ()
    %457 = vector.shape_cast %456 : vector<2x8x8xf32> to vector<16x8xf32>
    %458 = arith.truncf %457 : vector<16x8xf32> to vector<16x8xbf16>
    %c360 = arith.constant 360 : index
    %c0_194 = arith.constant 0 : index
    %459 = vector.load %arg2[%c360, %c0_194] : memref<1376x128xbf16, #tpu.memory_space<vmem>>, vector<8x32xbf16>
    %cst_195 = arith.constant dense<0.000000e+00> : vector<16x32xf32>
    %460 = tpu.matmul %458, %459, %cst_195 {dimension_numbers = #tpu.dot_dimension_numbers<[1], [0], [0], [1], [0, 0, 1, 1], [], []>} : vector<16x8xbf16>, vector<8x32xbf16>, vector<16x32xf32> -> vector<16x32xf32>
    %461 = arith.addf %422, %460 : vector<16x32xf32>
    %c24_196 = arith.constant 24 : index
    %c0_197 = arith.constant 0 : index
    %462 = vector.load %arg3[%c24_196, %c0_197] : memref<48x128xf32, #tpu.memory_space<vmem>>, vector<1x32xf32>
    %463 = vector.shape_cast %462 : vector<1x32xf32> to vector<32xf32>
    %464 = vector.shape_cast %463 : vector<32xf32> to vector<1x32xf32>
    %465 = vector.broadcast %464 : vector<1x32xf32> to vector<16x32xf32>
    %466 = arith.addf %461, %465 : vector<16x32xf32>
    %467 = vector.shape_cast %466 : vector<16x32xf32> to vector<2x8x32xf32>
    %468 = arith.addf %272, %467 : vector<2x8x32xf32>
    %c25 = arith.constant 25 : index
    %c0_198 = arith.constant 0 : index
    %469 = vector.load %arg3[%c25, %c0_198] : memref<48x128xf32, #tpu.memory_space<vmem>>, vector<1x32xf32>
    %470 = vector.shape_cast %469 : vector<1x32xf32> to vector<32xf32>
    %c26 = arith.constant 26 : index
    %c0_199 = arith.constant 0 : index
    %471 = vector.load %arg3[%c26, %c0_199] : memref<48x128xf32, #tpu.memory_space<vmem>>, vector<1x32xf32>
    %472 = vector.shape_cast %471 : vector<1x32xf32> to vector<32xf32>
    %cst_200 = arith.constant dense<0.000000e+00> : vector<2x8xf32>
    %473 = vector.multi_reduction <add>, %468, %cst_200 [2] : vector<2x8x32xf32> to vector<2x8xf32>
    %474 = vector.shape_cast %473 : vector<2x8xf32> to vector<2x8x1xf32>
    %cst_201 = arith.constant 3.200000e+01 : f32
    %475 = vector.broadcast %cst_201 : f32 to vector<2x8x1xf32>
    %476 = arith.divf %474, %475 : vector<2x8x1xf32>
    %477 = vector.broadcast %476 : vector<2x8x1xf32> to vector<2x8x32xf32>
    %478 = arith.subf %468, %477 : vector<2x8x32xf32>
    %479 = vector.broadcast %476 : vector<2x8x1xf32> to vector<2x8x32xf32>
    %480 = arith.subf %468, %479 : vector<2x8x32xf32>
    %481 = arith.mulf %478, %480 : vector<2x8x32xf32>
    %cst_202 = arith.constant dense<0.000000e+00> : vector<2x8xf32>
    %482 = vector.multi_reduction <add>, %481, %cst_202 [2] : vector<2x8x32xf32> to vector<2x8xf32>
    %483 = vector.shape_cast %482 : vector<2x8xf32> to vector<2x8x1xf32>
    %cst_203 = arith.constant 3.200000e+01 : f32
    %484 = vector.broadcast %cst_203 : f32 to vector<2x8x1xf32>
    %485 = arith.divf %483, %484 : vector<2x8x1xf32>
    %486 = vector.broadcast %476 : vector<2x8x1xf32> to vector<2x8x32xf32>
    %487 = arith.subf %468, %486 : vector<2x8x32xf32>
    %cst_204 = arith.constant 9.99999974E-6 : f32
    %488 = vector.broadcast %cst_204 : f32 to vector<2x8x1xf32>
    %489 = arith.addf %485, %488 : vector<2x8x1xf32>
    %490 = math.rsqrt %489 : vector<2x8x1xf32>
    %491 = vector.broadcast %490 : vector<2x8x1xf32> to vector<2x8x32xf32>
    %492 = arith.mulf %487, %491 : vector<2x8x32xf32>
    %493 = vector.shape_cast %470 : vector<32xf32> to vector<1x1x32xf32>
    %494 = vector.broadcast %493 : vector<1x1x32xf32> to vector<2x8x32xf32>
    %495 = arith.mulf %492, %494 : vector<2x8x32xf32>
    %496 = vector.shape_cast %472 : vector<32xf32> to vector<1x1x32xf32>
    %497 = vector.broadcast %496 : vector<1x1x32xf32> to vector<2x8x32xf32>
    %498 = arith.addf %495, %497 : vector<2x8x32xf32>
    %499 = vector.shape_cast %498 : vector<2x8x32xf32> to vector<16x32xf32>
    %500 = arith.truncf %499 : vector<16x32xf32> to vector<16x32xbf16>
    %c368 = arith.constant 368 : index
    %c0_205 = arith.constant 0 : index
    %501 = vector.load %arg2[%c368, %c0_205] : memref<1376x128xbf16, #tpu.memory_space<vmem>>, vector<32x64xbf16>
    %cst_206 = arith.constant dense<0.000000e+00> : vector<16x64xf32>
    %502 = tpu.matmul %500, %501, %cst_206 {dimension_numbers = #tpu.dot_dimension_numbers<[1], [0], [0], [1], [0, 0, 1, 1], [], []>} : vector<16x32xbf16>, vector<32x64xbf16>, vector<16x64xf32> -> vector<16x64xf32>
    %c27 = arith.constant 27 : index
    %c0_207 = arith.constant 0 : index
    %503 = vector.load %arg3[%c27, %c0_207] : memref<48x128xf32, #tpu.memory_space<vmem>>, vector<1x64xf32>
    %504 = vector.shape_cast %503 : vector<1x64xf32> to vector<64xf32>
    %505 = vector.shape_cast %504 : vector<64xf32> to vector<1x64xf32>
    %506 = vector.broadcast %505 : vector<1x64xf32> to vector<16x64xf32>
    %507 = arith.addf %502, %506 : vector<16x64xf32>
    %cst_208 = arith.constant 5.000000e-01 : f32
    %508 = vector.broadcast %cst_208 : f32 to vector<16x64xf32>
    %509 = arith.mulf %508, %507 : vector<16x64xf32>
    %cst_209 = arith.constant 4.471500e-02 : f32
    %510 = vector.broadcast %cst_209 : f32 to vector<16x64xf32>
    %511 = arith.mulf %510, %507 : vector<16x64xf32>
    %512 = arith.mulf %511, %507 : vector<16x64xf32>
    %513 = arith.mulf %512, %507 : vector<16x64xf32>
    %514 = arith.addf %507, %513 : vector<16x64xf32>
    %cst_210 = arith.constant 0.797884583 : f32
    %515 = vector.broadcast %cst_210 : f32 to vector<16x64xf32>
    %516 = arith.mulf %515, %514 : vector<16x64xf32>
    %517 = math.tanh %516 : vector<16x64xf32>
    %cst_211 = arith.constant 1.000000e+00 : f32
    %518 = vector.broadcast %cst_211 : f32 to vector<16x64xf32>
    %519 = arith.addf %518, %517 : vector<16x64xf32>
    %520 = arith.mulf %509, %519 : vector<16x64xf32>
    %521 = arith.truncf %520 : vector<16x64xf32> to vector<16x64xbf16>
    %c400 = arith.constant 400 : index
    %c0_212 = arith.constant 0 : index
    %522 = vector.load %arg2[%c400, %c0_212] : memref<1376x128xbf16, #tpu.memory_space<vmem>>, vector<64x32xbf16>
    %cst_213 = arith.constant dense<0.000000e+00> : vector<16x32xf32>
    %523 = tpu.matmul %521, %522, %cst_213 {dimension_numbers = #tpu.dot_dimension_numbers<[1], [0], [0], [1], [0, 0, 1, 1], [], []>} : vector<16x64xbf16>, vector<64x32xbf16>, vector<16x32xf32> -> vector<16x32xf32>
    %c28 = arith.constant 28 : index
    %c0_214 = arith.constant 0 : index
    %524 = vector.load %arg3[%c28, %c0_214] : memref<48x128xf32, #tpu.memory_space<vmem>>, vector<1x32xf32>
    %525 = vector.shape_cast %524 : vector<1x32xf32> to vector<32xf32>
    %526 = vector.shape_cast %525 : vector<32xf32> to vector<1x32xf32>
    %527 = vector.broadcast %526 : vector<1x32xf32> to vector<16x32xf32>
    %528 = arith.addf %523, %527 : vector<16x32xf32>
    %529 = vector.shape_cast %528 : vector<16x32xf32> to vector<2x8x32xf32>
    %530 = arith.addf %468, %529 : vector<2x8x32xf32>
    %531 = tpu.iota {dimensions = array<i32: 0>} : vector<16x16xi32>
    %532 = tpu.iota {dimensions = array<i32: 1>} : vector<16x16xi32>
    %c8_i32 = arith.constant 8 : i32
    %c0_i32 = arith.constant 0 : i32
    %533 = arith.cmpi eq, %c8_i32, %c0_i32 : i32
    %c1_i32 = arith.constant 1 : i32
    %534 = arith.select %533, %c1_i32, %c8_i32 : i32
    %535 = vector.broadcast %534 : i32 to vector<16x16xi32>
    %536 = arith.remsi %531, %535 : vector<16x16xi32>
    %c0_i32_215 = arith.constant 0 : i32
    %537 = vector.broadcast %c0_i32_215 : i32 to vector<16x16xi32>
    %538 = arith.cmpi ne, %536, %537 : vector<16x16xi32>
    %c0_i32_216 = arith.constant 0 : i32
    %539 = vector.broadcast %c0_i32_216 : i32 to vector<16x16xi32>
    %540 = arith.cmpi slt, %536, %539 : vector<16x16xi32>
    %c0_i32_217 = arith.constant 0 : i32
    %541 = arith.cmpi slt, %534, %c0_i32_217 : i32
    %542 = vector.broadcast %541 : i1 to vector<16x16xi1>
    %543 = vector.broadcast %542 : vector<16x16xi1> to vector<16x16xi1>
    %544 = arith.xori %540, %543 : vector<16x16xi1>
    %545 = arith.andi %544, %538 : vector<16x16xi1>
    %546 = vector.broadcast %534 : i32 to vector<16x16xi32>
    %547 = arith.addi %536, %546 : vector<16x16xi32>
    %548 = arith.select %545, %547, %536 : vector<16x16xi1>, vector<16x16xi32>
    %c1_i32_218 = arith.constant 1 : i32
    %549 = vector.broadcast %c1_i32_218 : i32 to vector<16x16xi32>
    %550 = arith.subi %531, %549 : vector<16x16xi32>
    %551 = arith.cmpi eq, %532, %550 : vector<16x16xi32>
    %c0_i32_219 = arith.constant 0 : i32
    %552 = vector.broadcast %c0_i32_219 : i32 to vector<16x16xi32>
    %553 = arith.cmpi sgt, %548, %552 : vector<16x16xi32>
    %554 = arith.andi %551, %553 : vector<16x16xi1>
    %cst_220 = arith.constant 1.000000e+00 : f32
    %cst_221 = arith.constant 0.000000e+00 : f32
    %555 = vector.broadcast %cst_220 : f32 to vector<16x16xf32>
    %556 = vector.broadcast %cst_221 : f32 to vector<16x16xf32>
    %557 = arith.select %554, %555, %556 : vector<16x16xi1>, vector<16x16xf32>
    %558 = arith.truncf %557 : vector<16x16xf32> to vector<16x16xbf16>
    %c1_i32_222 = arith.constant 1 : i32
    %559 = vector.broadcast %c1_i32_222 : i32 to vector<16x16xi32>
    %560 = arith.addi %531, %559 : vector<16x16xi32>
    %561 = arith.cmpi eq, %532, %560 : vector<16x16xi32>
    %c7_i32 = arith.constant 7 : i32
    %562 = vector.broadcast %c7_i32 : i32 to vector<16x16xi32>
    %563 = arith.cmpi slt, %548, %562 : vector<16x16xi32>
    %564 = arith.andi %561, %563 : vector<16x16xi1>
    %cst_223 = arith.constant 1.000000e+00 : f32
    %cst_224 = arith.constant 0.000000e+00 : f32
    %565 = vector.broadcast %cst_223 : f32 to vector<16x16xf32>
    %566 = vector.broadcast %cst_224 : f32 to vector<16x16xf32>
    %567 = arith.select %564, %565, %566 : vector<16x16xi1>, vector<16x16xf32>
    %568 = arith.truncf %567 : vector<16x16xf32> to vector<16x16xbf16>
    %569 = vector.shape_cast %0 : vector<2x8x11xf32> to vector<16x11xf32>
    %570 = arith.truncf %569 : vector<16x11xf32> to vector<16x11xbf16>
    %cst_225 = arith.constant dense<0.000000e+00> : vector<16x11xf32>
    %571 = tpu.matmul %558, %570, %cst_225 {dimension_numbers = #tpu.dot_dimension_numbers<[1], [0], [0], [1], [0, 0, 1, 1], [], []>} : vector<16x16xbf16>, vector<16x11xbf16>, vector<16x11xf32> -> vector<16x11xf32>
    %572 = arith.truncf %571 : vector<16x11xf32> to vector<16x11xbf16>
    %cst_226 = arith.constant dense<0.000000e+00> : vector<16x11xf32>
    %573 = tpu.matmul %568, %570, %cst_226 {dimension_numbers = #tpu.dot_dimension_numbers<[1], [0], [0], [1], [0, 0, 1, 1], [], []>} : vector<16x16xbf16>, vector<16x11xbf16>, vector<16x11xf32> -> vector<16x11xf32>
    %574 = arith.truncf %573 : vector<16x11xf32> to vector<16x11xbf16>
    %c464 = arith.constant 464 : index
    %c0_227 = arith.constant 0 : index
    %575 = vector.load %arg2[%c464, %c0_227] : memref<1376x128xbf16, #tpu.memory_space<vmem>>, vector<11x64xbf16>
    %cst_228 = arith.constant dense<0.000000e+00> : vector<16x64xf32>
    %576 = tpu.matmul %572, %575, %cst_228 {dimension_numbers = #tpu.dot_dimension_numbers<[1], [0], [0], [1], [0, 0, 1, 1], [], []>} : vector<16x11xbf16>, vector<11x64xbf16>, vector<16x64xf32> -> vector<16x64xf32>
    %c480 = arith.constant 480 : index
    %c0_229 = arith.constant 0 : index
    %577 = vector.load %arg2[%c480, %c0_229] : memref<1376x128xbf16, #tpu.memory_space<vmem>>, vector<11x64xbf16>
    %cst_230 = arith.constant dense<0.000000e+00> : vector<16x64xf32>
    %578 = tpu.matmul %570, %577, %cst_230 {dimension_numbers = #tpu.dot_dimension_numbers<[1], [0], [0], [1], [0, 0, 1, 1], [], []>} : vector<16x11xbf16>, vector<11x64xbf16>, vector<16x64xf32> -> vector<16x64xf32>
    %579 = arith.addf %576, %578 : vector<16x64xf32>
    %c496 = arith.constant 496 : index
    %c0_231 = arith.constant 0 : index
    %580 = vector.load %arg2[%c496, %c0_231] : memref<1376x128xbf16, #tpu.memory_space<vmem>>, vector<11x64xbf16>
    %cst_232 = arith.constant dense<0.000000e+00> : vector<16x64xf32>
    %581 = tpu.matmul %574, %580, %cst_232 {dimension_numbers = #tpu.dot_dimension_numbers<[1], [0], [0], [1], [0, 0, 1, 1], [], []>} : vector<16x11xbf16>, vector<11x64xbf16>, vector<16x64xf32> -> vector<16x64xf32>
    %582 = arith.addf %579, %581 : vector<16x64xf32>
    %c29 = arith.constant 29 : index
    %c0_233 = arith.constant 0 : index
    %583 = vector.load %arg3[%c29, %c0_233] : memref<48x128xf32, #tpu.memory_space<vmem>>, vector<1x64xf32>
    %584 = vector.shape_cast %583 : vector<1x64xf32> to vector<64xf32>
    %585 = vector.shape_cast %584 : vector<64xf32> to vector<1x64xf32>
    %586 = vector.broadcast %585 : vector<1x64xf32> to vector<16x64xf32>
    %587 = arith.addf %582, %586 : vector<16x64xf32>
    %cst_234 = arith.constant 0.000000e+00 : f32
    %588 = vector.broadcast %cst_234 : f32 to vector<16x64xf32>
    %589 = arith.maximumf %587, %588 : vector<16x64xf32>
    %590 = arith.truncf %589 : vector<16x64xf32> to vector<16x64xbf16>
    %cst_235 = arith.constant dense<0.000000e+00> : vector<16x64xf32>
    %591 = tpu.matmul %558, %590, %cst_235 {dimension_numbers = #tpu.dot_dimension_numbers<[1], [0], [0], [1], [0, 0, 1, 1], [], []>} : vector<16x16xbf16>, vector<16x64xbf16>, vector<16x64xf32> -> vector<16x64xf32>
    %592 = arith.truncf %591 : vector<16x64xf32> to vector<16x64xbf16>
    %cst_236 = arith.constant dense<0.000000e+00> : vector<16x64xf32>
    %593 = tpu.matmul %568, %590, %cst_236 {dimension_numbers = #tpu.dot_dimension_numbers<[1], [0], [0], [1], [0, 0, 1, 1], [], []>} : vector<16x16xbf16>, vector<16x64xbf16>, vector<16x64xf32> -> vector<16x64xf32>
    %594 = arith.truncf %593 : vector<16x64xf32> to vector<16x64xbf16>
    %c512 = arith.constant 512 : index
    %c0_237 = arith.constant 0 : index
    %595 = vector.load %arg2[%c512, %c0_237] : memref<1376x128xbf16, #tpu.memory_space<vmem>>, vector<64x128xbf16>
    %cst_238 = arith.constant dense<0.000000e+00> : vector<16x128xf32>
    %596 = tpu.matmul %592, %595, %cst_238 {dimension_numbers = #tpu.dot_dimension_numbers<[1], [0], [0], [1], [0, 0, 1, 1], [], []>} : vector<16x64xbf16>, vector<64x128xbf16>, vector<16x128xf32> -> vector<16x128xf32>
    %c576 = arith.constant 576 : index
    %c0_239 = arith.constant 0 : index
    %597 = vector.load %arg2[%c576, %c0_239] : memref<1376x128xbf16, #tpu.memory_space<vmem>>, vector<64x128xbf16>
    %cst_240 = arith.constant dense<0.000000e+00> : vector<16x128xf32>
    %598 = tpu.matmul %590, %597, %cst_240 {dimension_numbers = #tpu.dot_dimension_numbers<[1], [0], [0], [1], [0, 0, 1, 1], [], []>} : vector<16x64xbf16>, vector<64x128xbf16>, vector<16x128xf32> -> vector<16x128xf32>
    %599 = arith.addf %596, %598 : vector<16x128xf32>
    %c640 = arith.constant 640 : index
    %c0_241 = arith.constant 0 : index
    %600 = vector.load %arg2[%c640, %c0_241] : memref<1376x128xbf16, #tpu.memory_space<vmem>>, vector<64x128xbf16>
    %cst_242 = arith.constant dense<0.000000e+00> : vector<16x128xf32>
    %601 = tpu.matmul %594, %600, %cst_242 {dimension_numbers = #tpu.dot_dimension_numbers<[1], [0], [0], [1], [0, 0, 1, 1], [], []>} : vector<16x64xbf16>, vector<64x128xbf16>, vector<16x128xf32> -> vector<16x128xf32>
    %602 = arith.addf %599, %601 : vector<16x128xf32>
    %c30 = arith.constant 30 : index
    %c0_243 = arith.constant 0 : index
    %603 = vector.load %arg3[%c30, %c0_243] : memref<48x128xf32, #tpu.memory_space<vmem>>, vector<1x128xf32>
    %604 = vector.shape_cast %603 : vector<1x128xf32> to vector<128xf32>
    %605 = vector.shape_cast %604 : vector<128xf32> to vector<1x128xf32>
    %606 = vector.broadcast %605 : vector<1x128xf32> to vector<16x128xf32>
    %607 = arith.addf %602, %606 : vector<16x128xf32>
    %cst_244 = arith.constant 0.000000e+00 : f32
    %608 = vector.broadcast %cst_244 : f32 to vector<16x128xf32>
    %609 = arith.maximumf %607, %608 : vector<16x128xf32>
    %610 = arith.truncf %609 : vector<16x128xf32> to vector<16x128xbf16>
    %cst_245 = arith.constant dense<0.000000e+00> : vector<16x128xf32>
    %611 = tpu.matmul %558, %610, %cst_245 {dimension_numbers = #tpu.dot_dimension_numbers<[1], [0], [0], [1], [0, 0, 1, 1], [], []>} : vector<16x16xbf16>, vector<16x128xbf16>, vector<16x128xf32> -> vector<16x128xf32>
    %612 = arith.truncf %611 : vector<16x128xf32> to vector<16x128xbf16>
    %cst_246 = arith.constant dense<0.000000e+00> : vector<16x128xf32>
    %613 = tpu.matmul %568, %610, %cst_246 {dimension_numbers = #tpu.dot_dimension_numbers<[1], [0], [0], [1], [0, 0, 1, 1], [], []>} : vector<16x16xbf16>, vector<16x128xbf16>, vector<16x128xf32> -> vector<16x128xf32>
    %614 = arith.truncf %613 : vector<16x128xf32> to vector<16x128xbf16>
    %c704 = arith.constant 704 : index
    %c0_247 = arith.constant 0 : index
    %615 = vector.load %arg2[%c704, %c0_247] : memref<1376x128xbf16, #tpu.memory_space<vmem>>, vector<128x32xbf16>
    %cst_248 = arith.constant dense<0.000000e+00> : vector<16x32xf32>
    %616 = tpu.matmul %612, %615, %cst_248 {dimension_numbers = #tpu.dot_dimension_numbers<[1], [0], [0], [1], [0, 0, 1, 1], [], []>} : vector<16x128xbf16>, vector<128x32xbf16>, vector<16x32xf32> -> vector<16x32xf32>
    %c832 = arith.constant 832 : index
    %c0_249 = arith.constant 0 : index
    %617 = vector.load %arg2[%c832, %c0_249] : memref<1376x128xbf16, #tpu.memory_space<vmem>>, vector<128x32xbf16>
    %cst_250 = arith.constant dense<0.000000e+00> : vector<16x32xf32>
    %618 = tpu.matmul %610, %617, %cst_250 {dimension_numbers = #tpu.dot_dimension_numbers<[1], [0], [0], [1], [0, 0, 1, 1], [], []>} : vector<16x128xbf16>, vector<128x32xbf16>, vector<16x32xf32> -> vector<16x32xf32>
    %619 = arith.addf %616, %618 : vector<16x32xf32>
    %c960 = arith.constant 960 : index
    %c0_251 = arith.constant 0 : index
    %620 = vector.load %arg2[%c960, %c0_251] : memref<1376x128xbf16, #tpu.memory_space<vmem>>, vector<128x32xbf16>
    %cst_252 = arith.constant dense<0.000000e+00> : vector<16x32xf32>
    %621 = tpu.matmul %614, %620, %cst_252 {dimension_numbers = #tpu.dot_dimension_numbers<[1], [0], [0], [1], [0, 0, 1, 1], [], []>} : vector<16x128xbf16>, vector<128x32xbf16>, vector<16x32xf32> -> vector<16x32xf32>
    %622 = arith.addf %619, %621 : vector<16x32xf32>
    %c31 = arith.constant 31 : index
    %c0_253 = arith.constant 0 : index
    %623 = vector.load %arg3[%c31, %c0_253] : memref<48x128xf32, #tpu.memory_space<vmem>>, vector<1x32xf32>
    %624 = vector.shape_cast %623 : vector<1x32xf32> to vector<32xf32>
    %625 = vector.shape_cast %624 : vector<32xf32> to vector<1x32xf32>
    %626 = vector.broadcast %625 : vector<1x32xf32> to vector<16x32xf32>
    %627 = arith.addf %622, %626 : vector<16x32xf32>
    %cst_254 = arith.constant 0.000000e+00 : f32
    %628 = vector.broadcast %cst_254 : f32 to vector<16x32xf32>
    %629 = arith.maximumf %627, %628 : vector<16x32xf32>
    %cst_255 = arith.constant dense<0.000000e+00> : vector<2x32xf32>
    %630 = vector.multi_reduction <add>, %530, %cst_255 [1] : vector<2x8x32xf32> to vector<2x32xf32>
    %cst_256 = arith.constant 8.000000e+00 : f32
    %631 = vector.broadcast %cst_256 : f32 to vector<2x32xf32>
    %632 = arith.divf %630, %631 : vector<2x32xf32>
    %633 = vector.shape_cast %629 : vector<16x32xf32> to vector<2x8x32xf32>
    %cst_257 = arith.constant dense<0.000000e+00> : vector<2x32xf32>
    %634 = vector.multi_reduction <add>, %633, %cst_257 [1] : vector<2x8x32xf32> to vector<2x32xf32>
    %cst_258 = arith.constant 8.000000e+00 : f32
    %635 = vector.broadcast %cst_258 : f32 to vector<2x32xf32>
    %636 = arith.divf %634, %635 : vector<2x32xf32>
    %637 = arith.truncf %632 : vector<2x32xf32> to vector<2x32xbf16>
    %c1088 = arith.constant 1088 : index
    %c0_259 = arith.constant 0 : index
    %638 = vector.load %arg2[%c1088, %c0_259] : memref<1376x128xbf16, #tpu.memory_space<vmem>>, vector<32x32xbf16>
    %cst_260 = arith.constant dense<0.000000e+00> : vector<2x32xf32>
    %639 = tpu.matmul %637, %638, %cst_260 {dimension_numbers = #tpu.dot_dimension_numbers<[1], [0], [0], [1], [0, 0, 1, 1], [], []>} : vector<2x32xbf16>, vector<32x32xbf16>, vector<2x32xf32> -> vector<2x32xf32>
    %640 = arith.truncf %636 : vector<2x32xf32> to vector<2x32xbf16>
    %c1120 = arith.constant 1120 : index
    %c0_261 = arith.constant 0 : index
    %641 = vector.load %arg2[%c1120, %c0_261] : memref<1376x128xbf16, #tpu.memory_space<vmem>>, vector<32x32xbf16>
    %cst_262 = arith.constant dense<0.000000e+00> : vector<2x32xf32>
    %642 = tpu.matmul %640, %641, %cst_262 {dimension_numbers = #tpu.dot_dimension_numbers<[1], [0], [0], [1], [0, 0, 1, 1], [], []>} : vector<2x32xbf16>, vector<32x32xbf16>, vector<2x32xf32> -> vector<2x32xf32>
    %643 = arith.addf %639, %642 : vector<2x32xf32>
    %c32 = arith.constant 32 : index
    %c0_263 = arith.constant 0 : index
    %644 = vector.load %arg3[%c32, %c0_263] : memref<48x128xf32, #tpu.memory_space<vmem>>, vector<1x32xf32>
    %645 = vector.shape_cast %644 : vector<1x32xf32> to vector<32xf32>
    %646 = vector.shape_cast %645 : vector<32xf32> to vector<1x32xf32>
    %647 = vector.broadcast %646 : vector<1x32xf32> to vector<2x32xf32>
    %648 = arith.addf %643, %647 : vector<2x32xf32>
    %c33 = arith.constant 33 : index
    %c0_264 = arith.constant 0 : index
    %649 = vector.load %arg3[%c33, %c0_264] : memref<48x128xf32, #tpu.memory_space<vmem>>, vector<1x32xf32>
    %650 = vector.shape_cast %649 : vector<1x32xf32> to vector<32xf32>
    %c34 = arith.constant 34 : index
    %c0_265 = arith.constant 0 : index
    %651 = vector.load %arg3[%c34, %c0_265] : memref<48x128xf32, #tpu.memory_space<vmem>>, vector<1x32xf32>
    %652 = vector.shape_cast %651 : vector<1x32xf32> to vector<32xf32>
    %cst_266 = arith.constant dense<0.000000e+00> : vector<2xf32>
    %653 = vector.multi_reduction <add>, %648, %cst_266 [1] : vector<2x32xf32> to vector<2xf32>
    %654 = vector.shape_cast %653 : vector<2xf32> to vector<2x1xf32>
    %cst_267 = arith.constant 3.200000e+01 : f32
    %655 = vector.broadcast %cst_267 : f32 to vector<2x1xf32>
    %656 = arith.divf %654, %655 : vector<2x1xf32>
    %657 = vector.broadcast %656 : vector<2x1xf32> to vector<2x32xf32>
    %658 = arith.subf %648, %657 : vector<2x32xf32>
    %659 = vector.broadcast %656 : vector<2x1xf32> to vector<2x32xf32>
    %660 = arith.subf %648, %659 : vector<2x32xf32>
    %661 = arith.mulf %658, %660 : vector<2x32xf32>
    %cst_268 = arith.constant dense<0.000000e+00> : vector<2xf32>
    %662 = vector.multi_reduction <add>, %661, %cst_268 [1] : vector<2x32xf32> to vector<2xf32>
    %663 = vector.shape_cast %662 : vector<2xf32> to vector<2x1xf32>
    %cst_269 = arith.constant 3.200000e+01 : f32
    %664 = vector.broadcast %cst_269 : f32 to vector<2x1xf32>
    %665 = arith.divf %663, %664 : vector<2x1xf32>
    %666 = vector.broadcast %656 : vector<2x1xf32> to vector<2x32xf32>
    %667 = arith.subf %648, %666 : vector<2x32xf32>
    %cst_270 = arith.constant 9.99999974E-6 : f32
    %668 = vector.broadcast %cst_270 : f32 to vector<2x1xf32>
    %669 = arith.addf %665, %668 : vector<2x1xf32>
    %670 = math.rsqrt %669 : vector<2x1xf32>
    %671 = vector.broadcast %670 : vector<2x1xf32> to vector<2x32xf32>
    %672 = arith.mulf %667, %671 : vector<2x32xf32>
    %673 = vector.shape_cast %650 : vector<32xf32> to vector<1x32xf32>
    %674 = vector.broadcast %673 : vector<1x32xf32> to vector<2x32xf32>
    %675 = arith.mulf %672, %674 : vector<2x32xf32>
    %676 = vector.shape_cast %652 : vector<32xf32> to vector<1x32xf32>
    %677 = vector.broadcast %676 : vector<1x32xf32> to vector<2x32xf32>
    %678 = arith.addf %675, %677 : vector<2x32xf32>
    %cst_271 = arith.constant 0.000000e+00 : f32
    %679 = vector.broadcast %cst_271 : f32 to vector<2x32xf32>
    %680 = arith.maximumf %678, %679 : vector<2x32xf32>
    %681 = arith.truncf %680 : vector<2x32xf32> to vector<2x32xbf16>
    %c1152 = arith.constant 1152 : index
    %c0_272 = arith.constant 0 : index
    %682 = vector.load %arg2[%c1152, %c0_272] : memref<1376x128xbf16, #tpu.memory_space<vmem>>, vector<32x64xbf16>
    %cst_273 = arith.constant dense<0.000000e+00> : vector<2x64xf32>
    %683 = tpu.matmul %681, %682, %cst_273 {dimension_numbers = #tpu.dot_dimension_numbers<[1], [0], [0], [1], [0, 0, 1, 1], [], []>} : vector<2x32xbf16>, vector<32x64xbf16>, vector<2x64xf32> -> vector<2x64xf32>
    %c35 = arith.constant 35 : index
    %c0_274 = arith.constant 0 : index
    %684 = vector.load %arg3[%c35, %c0_274] : memref<48x128xf32, #tpu.memory_space<vmem>>, vector<1x64xf32>
    %685 = vector.shape_cast %684 : vector<1x64xf32> to vector<64xf32>
    %686 = vector.shape_cast %685 : vector<64xf32> to vector<1x64xf32>
    %687 = vector.broadcast %686 : vector<1x64xf32> to vector<2x64xf32>
    %688 = arith.addf %683, %687 : vector<2x64xf32>
    %cst_275 = arith.constant 0.000000e+00 : f32
    %689 = vector.broadcast %cst_275 : f32 to vector<2x64xf32>
    %690 = arith.maximumf %688, %689 : vector<2x64xf32>
    %691 = arith.truncf %690 : vector<2x64xf32> to vector<2x64xbf16>
    %c1184 = arith.constant 1184 : index
    %c0_276 = arith.constant 0 : index
    %692 = vector.load %arg2[%c1184, %c0_276] : memref<1376x128xbf16, #tpu.memory_space<vmem>>, vector<64x3xbf16>
    %cst_277 = arith.constant dense<0.000000e+00> : vector<2x3xf32>
    %693 = tpu.matmul %691, %692, %cst_277 {dimension_numbers = #tpu.dot_dimension_numbers<[1], [0], [0], [1], [0, 0, 1, 1], [], []>} : vector<2x64xbf16>, vector<64x3xbf16>, vector<2x3xf32> -> vector<2x3xf32>
    %c36 = arith.constant 36 : index
    %c0_278 = arith.constant 0 : index
    %694 = vector.load %arg3[%c36, %c0_278] : memref<48x128xf32, #tpu.memory_space<vmem>>, vector<1x3xf32>
    %695 = vector.shape_cast %694 : vector<1x3xf32> to vector<3xf32>
    %696 = vector.shape_cast %695 : vector<3xf32> to vector<1x3xf32>
    %697 = vector.broadcast %696 : vector<1x3xf32> to vector<2x3xf32>
    %698 = arith.addf %693, %697 : vector<2x3xf32>
    %cst_279 = arith.constant dense<0xFF800000> : vector<2xf32>
    %699 = vector.multi_reduction <maximumf>, %698, %cst_279 [1] : vector<2x3xf32> to vector<2xf32>
    %700 = vector.shape_cast %699 : vector<2xf32> to vector<2x1xf32>
    %701 = vector.broadcast %700 : vector<2x1xf32> to vector<2x3xf32>
    %702 = arith.subf %698, %701 : vector<2x3xf32>
    %703 = math.exp %702 : vector<2x3xf32>
    %cst_280 = arith.constant dense<0.000000e+00> : vector<2xf32>
    %704 = vector.multi_reduction <add>, %703, %cst_280 [1] : vector<2x3xf32> to vector<2xf32>
    %705 = vector.shape_cast %704 : vector<2xf32> to vector<2x1xf32>
    %706 = tpu.reciprocal %705 {approx = true} : vector<2x1xf32> -> vector<2x1xf32>
    %707 = vector.broadcast %706 : vector<2x1xf32> to vector<2x3xf32>
    %708 = arith.mulf %703, %707 : vector<2x3xf32>
    %c1248 = arith.constant 1248 : index
    %c0_281 = arith.constant 0 : index
    %709 = vector.load %arg2[%c1248, %c0_281] : memref<1376x128xbf16, #tpu.memory_space<vmem>>, vector<32x32xbf16>
    %cst_282 = arith.constant dense<0.000000e+00> : vector<2x32xf32>
    %710 = tpu.matmul %681, %709, %cst_282 {dimension_numbers = #tpu.dot_dimension_numbers<[1], [0], [0], [1], [0, 0, 1, 1], [], []>} : vector<2x32xbf16>, vector<32x32xbf16>, vector<2x32xf32> -> vector<2x32xf32>
    %c37 = arith.constant 37 : index
    %c0_283 = arith.constant 0 : index
    %711 = vector.load %arg3[%c37, %c0_283] : memref<48x128xf32, #tpu.memory_space<vmem>>, vector<1x32xf32>
    %712 = vector.shape_cast %711 : vector<1x32xf32> to vector<32xf32>
    %713 = vector.shape_cast %712 : vector<32xf32> to vector<1x32xf32>
    %714 = vector.broadcast %713 : vector<1x32xf32> to vector<2x32xf32>
    %715 = arith.addf %710, %714 : vector<2x32xf32>
    %716 = vector.extract_strided_slice %708 {offsets = [0, 0], sizes = [2, 1], strides = [1, 1]} : vector<2x3xf32> to vector<2x1xf32>
    %717 = vector.broadcast %716 : vector<2x1xf32> to vector<2x32xf32>
    %718 = arith.mulf %715, %717 : vector<2x32xf32>
    %c1280 = arith.constant 1280 : index
    %c0_284 = arith.constant 0 : index
    %719 = vector.load %arg2[%c1280, %c0_284] : memref<1376x128xbf16, #tpu.memory_space<vmem>>, vector<32x32xbf16>
    %cst_285 = arith.constant dense<0.000000e+00> : vector<2x32xf32>
    %720 = tpu.matmul %681, %719, %cst_285 {dimension_numbers = #tpu.dot_dimension_numbers<[1], [0], [0], [1], [0, 0, 1, 1], [], []>} : vector<2x32xbf16>, vector<32x32xbf16>, vector<2x32xf32> -> vector<2x32xf32>
    %c38 = arith.constant 38 : index
    %c0_286 = arith.constant 0 : index
    %721 = vector.load %arg3[%c38, %c0_286] : memref<48x128xf32, #tpu.memory_space<vmem>>, vector<1x32xf32>
    %722 = vector.shape_cast %721 : vector<1x32xf32> to vector<32xf32>
    %723 = vector.shape_cast %722 : vector<32xf32> to vector<1x32xf32>
    %724 = vector.broadcast %723 : vector<1x32xf32> to vector<2x32xf32>
    %725 = arith.addf %720, %724 : vector<2x32xf32>
    %726 = vector.extract_strided_slice %708 {offsets = [0, 1], sizes = [2, 1], strides = [1, 1]} : vector<2x3xf32> to vector<2x1xf32>
    %727 = vector.broadcast %726 : vector<2x1xf32> to vector<2x32xf32>
    %728 = arith.mulf %725, %727 : vector<2x32xf32>
    %729 = arith.addf %718, %728 : vector<2x32xf32>
    %c1312 = arith.constant 1312 : index
    %c0_287 = arith.constant 0 : index
    %730 = vector.load %arg2[%c1312, %c0_287] : memref<1376x128xbf16, #tpu.memory_space<vmem>>, vector<32x32xbf16>
    %cst_288 = arith.constant dense<0.000000e+00> : vector<2x32xf32>
    %731 = tpu.matmul %681, %730, %cst_288 {dimension_numbers = #tpu.dot_dimension_numbers<[1], [0], [0], [1], [0, 0, 1, 1], [], []>} : vector<2x32xbf16>, vector<32x32xbf16>, vector<2x32xf32> -> vector<2x32xf32>
    %c39 = arith.constant 39 : index
    %c0_289 = arith.constant 0 : index
    %732 = vector.load %arg3[%c39, %c0_289] : memref<48x128xf32, #tpu.memory_space<vmem>>, vector<1x32xf32>
    %733 = vector.shape_cast %732 : vector<1x32xf32> to vector<32xf32>
    %734 = vector.shape_cast %733 : vector<32xf32> to vector<1x32xf32>
    %735 = vector.broadcast %734 : vector<1x32xf32> to vector<2x32xf32>
    %736 = arith.addf %731, %735 : vector<2x32xf32>
    %737 = vector.extract_strided_slice %708 {offsets = [0, 2], sizes = [2, 1], strides = [1, 1]} : vector<2x3xf32> to vector<2x1xf32>
    %738 = vector.broadcast %737 : vector<2x1xf32> to vector<2x32xf32>
    %739 = arith.mulf %736, %738 : vector<2x32xf32>
    %740 = arith.addf %729, %739 : vector<2x32xf32>
    %741 = arith.truncf %740 : vector<2x32xf32> to vector<2x32xbf16>
    %c1344 = arith.constant 1344 : index
    %c0_290 = arith.constant 0 : index
    %742 = vector.load %arg2[%c1344, %c0_290] : memref<1376x128xbf16, #tpu.memory_space<vmem>>, vector<32x32xbf16>
    %cst_291 = arith.constant dense<0.000000e+00> : vector<2x32xf32>
    %743 = tpu.matmul %741, %742, %cst_291 {dimension_numbers = #tpu.dot_dimension_numbers<[1], [0], [0], [1], [0, 0, 1, 1], [], []>} : vector<2x32xbf16>, vector<32x32xbf16>, vector<2x32xf32> -> vector<2x32xf32>
    %c40 = arith.constant 40 : index
    %c0_292 = arith.constant 0 : index
    %744 = vector.load %arg3[%c40, %c0_292] : memref<48x128xf32, #tpu.memory_space<vmem>>, vector<1x32xf32>
    %745 = vector.shape_cast %744 : vector<1x32xf32> to vector<32xf32>
    %746 = vector.shape_cast %745 : vector<32xf32> to vector<1x32xf32>
    %747 = vector.broadcast %746 : vector<1x32xf32> to vector<2x32xf32>
    %748 = arith.addf %743, %747 : vector<2x32xf32>
    %c0_293 = arith.constant 0 : index
    %c0_294 = arith.constant 0 : index
    %749 = vector.load %arg4[%c0_293, %c0_294] : memref<2x32xf32, #tpu.memory_space<vmem>>, vector<2x32xf32>
    tpu.vector_store %arg4[%c0_293, %c0_294], %748 {strides = array<i32>} : memref<2x32xf32, #tpu.memory_space<vmem>>, vector<2x32xf32>,
    return
  }
  func.func @transform_0(%arg0: i32) -> (i32, i32, i32) {
    %c0_i32 = arith.constant 0 : i32
    %c0_i32_0 = arith.constant 0 : i32
    %c0_i32_1 = arith.constant 0 : i32
    return %arg0, %c0_i32, %c0_i32_0 : i32, i32, i32
  }
  func.func @transform_1(%arg0: i32) -> (i32, i32) {
    %c0_i32 = arith.constant 0 : i32
    %c0_i32_0 = arith.constant 0 : i32
    %c0_i32_1 = arith.constant 0 : i32
    return %c0_i32, %c0_i32_0 : i32, i32
  }
  func.func @transform_2(%arg0: i32) -> (i32, i32) {
    %c0_i32 = arith.constant 0 : i32
    %c0_i32_0 = arith.constant 0 : i32
    %c0_i32_1 = arith.constant 0 : i32
    return %c0_i32, %c0_i32_0 : i32, i32
  }
  func.func @transform_3(%arg0: i32) -> (i32, i32) {
    %c0_i32 = arith.constant 0 : i32
    %c0_i32_0 = arith.constant 0 : i32
    return %arg0, %c0_i32 : i32, i32
  }
}

</mosaic_0001>

<llo_original>
// kernel: cnn_transformer_forward.1
$region0: #{cnn_transformer_forward.1}
  #allocation0 [shape = 'u32[]', space=smem, size = 0x4, offset = 0x4, fixed_abs, tag = 'smem constant byte address 0x4 - core index']
  #allocation1 [shape = 'u32[144,128]{1,0:T(1,128)}', space=vmem, size = 0x12000, scoped, tag = 'internal scratch']
  %s0 = inlined_call_operand.hbm [shape: f32[2,8,11], index: 0, kind: input, shape index: {}]
  %s1 = inlined_call_operand.hbm [shape: bf16[1376,128], index: 1, kind: input, shape index: {}]
  %s2 = inlined_call_operand.hbm [shape: f32[48,128], index: 2, kind: input, shape index: {}]
  %s3 = inlined_call_operand.hbm [shape: f32[2,32], index: 3, kind: output, shape index: {}]
  %s4 = sld [smem:[#allocation0]]
  $region34: #{cnn_transformer_forward.1} parent=0
    _
  %s6 = ssub.s32 1, %s4
  %s7 = scalar_select 0, %s6, %s4
  $region1: #{cnn_transformer_forward.1} parent=0
    #allocation2 [shape = 'u8[8192]{0}', space=vmem, size = 0x2000, scoped, tag = 'input window, operand 0, single buffered']
    #allocation3 [shape = 's32[1]{0}', space=sflag, size = 0x4, scoped, tag = 'scoped memory for cnn_transformer_forward.1']
    #allocation4 [shape = 's32[1]{0}', space=sflag, size = 0x4, scoped, tag = 'scoped memory for cnn_transformer_forward.1']
    #allocation5 [shape = 'u8[352256]{0}', space=vmem, size = 0x56000, scoped, tag = 'input window, operand 1, single buffered']
    #allocation6 [shape = 's32[1]{0}', space=sflag, size = 0x4, scoped, tag = 'scoped memory for cnn_transformer_forward.1']
    #allocation7 [shape = 'u8[24576]{0}', space=vmem, size = 0x6000, scoped, tag = 'input window, operand 2, single buffered']
    #allocation8 [shape = 'u8[1024]{0}', space=vmem, size = 0x400, scoped, tag = 'output window, operand 0, single buffered']
    %8 = vsyncpa [#allocation3], 0
    %9 = vsyncpa [#allocation6], 0
    %10 = vsyncpa [#allocation4], 0
    // Predicated region
    $region2: #{cnn_transformer_forward.1} parent=1 // pred_check
      _
    $region3: #{cnn_transformer_forward.1} parent=1 // pred_check_branch
      %12 = sbr.rel (0) target = $region5
    $region4: #{cnn_transformer_forward.1} parent=1 // pred_region
      %s14 = ssub.s32 256, 256
      %15 = vsyncadd [#allocation3], %s14
      %s16 = sshll.u32 [#allocation2], 4
      %s17 = int_to_ptr.vmem [resolvable:$true] %s16
      %22 = dma.hbm_to_vmem [thread:$0]  %s0, 256, %s17, [#allocation3], 128, 128, 8
    $region5: #{cnn_transformer_forward.1} parent=1 // pred_fallthru
      _
    // Predicated region
    $region6: #{cnn_transformer_forward.1} parent=1 // pred_check
      _
    $region7: #{cnn_transformer_forward.1} parent=1 // pred_check_branch
      %24 = sbr.rel (0) target = $region9
    $region8: #{cnn_transformer_forward.1} parent=1 // pred_region
      %s26 = ssub.s32 11008, 11008
      %27 = vsyncadd [#allocation6], %s26
      %s28 = sshll.u32 [#allocation5], 4
      %s29 = int_to_ptr.vmem [resolvable:$true] %s28
      %34 = dma.hbm_to_vmem [thread:$0]  %s1, 11008, %s29, [#allocation6], 64, 64, 4
    $region9: #{cnn_transformer_forward.1} parent=1 // pred_fallthru
      _
    // Predicated region
    $region10: #{cnn_transformer_forward.1} parent=1 // pred_check
      _
    $region11: #{cnn_transformer_forward.1} parent=1 // pred_check_branch
      %36 = sbr.rel (0) target = $region13
    $region12: #{cnn_transformer_forward.1} parent=1 // pred_region
      %s38 = ssub.s32 768, 768
      %39 = vsyncadd [#allocation6], %s38
      %s40 = sshll.u32 [#allocation7], 4
      %s41 = int_to_ptr.vmem [resolvable:$true] %s40
      %46 = dma.hbm_to_vmem [thread:$0]  %s2, 768, %s41, [#allocation6], 128, 128, 8
    $region13: #{cnn_transformer_forward.1} parent=1 // pred_fallthru
      _
    // Predicated region
    $region14: #{cnn_transformer_forward.1} parent=1 // pred_check
      _
    $region15: #{cnn_transformer_forward.1} parent=1 // pred_check_branch
      %48 = sbr.rel (0) target = $region17
    $region16: #{cnn_transformer_forward.1} parent=1 // pred_region
      %49 = dma.done [#allocation3], 256
    $region17: #{cnn_transformer_forward.1} parent=1 // pred_fallthru
      _
    // Predicated region
    $region18: #{cnn_transformer_forward.1} parent=1 // pred_check
      _
    $region19: #{cnn_transformer_forward.1} parent=1 // pred_check_branch
      %51 = sbr.rel (0) target = $region21
    $region20: #{cnn_transformer_forward.1} parent=1 // pred_region
      %52 = dma.done [#allocation6], 11008
    $region21: #{cnn_transformer_forward.1} parent=1 // pred_fallthru
      _
    // Predicated region
    $region22: #{cnn_transformer_forward.1} parent=1 // pred_check
      _
    $region23: #{cnn_transformer_forward.1} parent=1 // pred_check_branch
      %54 = sbr.rel (0) target = $region25
    $region24: #{cnn_transformer_forward.1} parent=1 // pred_region
      %55 = dma.done [#allocation6], 768
    $region25: #{cnn_transformer_forward.1} parent=1 // pred_fallthru
      _
    %v57 = vld [vmem:[#allocation2] sm:$0xff]
    %v58 = vld [vmem:[#allocation2 + $0x8] sm:$0xff]
    %v59 = vpack.c.bf16 %v58, %v57
    %v60 = vld [vmem:[#allocation5] sm:$0xf]
    %v61 = vld [vmem:[#allocation5 + $0x4] sm:$0x3]
    %v62 = vld [vmem:[#allocation7] sm:$0x1]
    %v63 = vlaneseq
    %v64 = vshrl.u32 %v63, 7
    %v65 = vsub.s32 0, %v64
    %v66 = vrot.slane %v62, %v65
    %v69 = vunpack.c.l.b16 %v60
    %v70 = vunpack.c.l.b16 %v61
    %v71 = vpack.c.b16 %v70, %v69
    %vm72 = vcmask 89088
    %v74 = vsel %vm72, %v59, 0
    %vm76 = vcmask 1044480
    %vm77 = vcmask 1045504
    %v78 = vsel %vm76, 4294967295, 65535
    %v79 = vsel %vm77, %v78, 0
    %v81 = vand.u32 %v71, %v79
    %83 = vmatprep.subr.bf16.mxu0 0
    %84 = vmatpush1.bf16.msra.mxu0 %v81
    %85 = vmatprep.subr.bf16.mxu0 0
    %86 = vmatpush1.bf16.msra.mxu0 0
    %87 = vmatprep.subr.bf16.mxu0 0
    %88 = vmatpush1.bf16.msra.mxu0 0
    %89 = vmatprep.subr.bf16.mxu0 0
    %90 = vmatpush1.bf16.msra.mxu0 0
    %91 = vmatprep.subr.bf16.mxu0 0
    %92 = vmatpush1.bf16.msra.mxu0 0
    %93 = vmatprep.subr.bf16.mxu0 0
    %94 = vmatpush1.bf16.msra.mxu0 0
    %95 = vmatprep.subr.bf16.mxu0 0
    %96 = vmatpush1.bf16.msra.mxu0 0
    %97 = vmatprep.subr.bf16.mxu0 0
    %98 = vmatpush1.bf16.msra.mxu0 0
    %99 = vmatprep.subr.bf16.mxu0 0
    %100 = vmatpush1.bf16.msra.mxu0 0
    %101 = vmatprep.subr.bf16.mxu0 0
    %102 = vmatpush1.bf16.msra.mxu0 0
    %103 = vmatprep.subr.bf16.mxu0 0
    %104 = vmatpush1.bf16.msra.mxu0 0
    %105 = vmatprep.subr.bf16.mxu0 0
    %106 = vmatpush1.bf16.msra.mxu0 0
    %107 = vmatprep.subr.bf16.mxu0 0
    %108 = vmatpush1.bf16.msra.mxu0 0
    %109 = vmatprep.subr.bf16.mxu0 0
    %110 = vmatpush1.bf16.msra.mxu0 0
    %111 = vmatprep.subr.bf16.mxu0 0
    %112 = vmatpush1.bf16.msra.mxu0 0
    %113 = vmatprep.subr.bf16.mxu0 0
    %114 = vmatpush1.bf16.msra.mxu0 0
    %115 = vmatprep.mubr.bf16.mxu0 0
    %116 = vmatmul.mubr.bf16.gmra.mrb[0].mxu0 %v74
    %v117 = vpop.f32.mrb[0].mxu0
    %v118 = vadd.f32 %v66, %v117
    %v119 = vpop.f32.mrb[0].mxu0
    %v120 = vpop.f32.mrb[0].mxu0
    %v121 = vadd.f32 %v66, %v120
    %v122 = vpop.f32.mrb[0].mxu0
    %123 = vdwg.mxu0
    %v124 = vld [vmem:[#allocation7 + $0x1] sm:$0xff]
    %v125 = vadd.f32 %v118, %v124
    %v126 = vadd.f32 %v121, %v124
    %v127 = vld [vmem:[#allocation7 + $0x9] sm:$0x1]
    %v128 = vld [vmem:[#allocation7 + $0xa] sm:$0x1]
    %vm129 = vcmask 261120
    %v130 = vsel %vm129, %v125, 0.0
    %131 = vadd.xlane.f32.xlu0 %v130
    %v132 = vpop.xlane.xlu0 %131
    %v133 = vsel %vm129, %v126, 0.0
    %134 = vadd.xlane.f32.xlu0 %v133
    %v135 = vpop.xlane.xlu0 %134
    %v136 = vrcp.pop 32.0
    %v137 = vmul.f32 %v132, %v136
    %v138 = vmul.f32 %v135, %v136
    %v139 = vsub.f32 %v125, %v137
    %v140 = vsub.f32 %v126, %v138
    %v141 = vmul.f32 %v139, %v139
    %v142 = vmul.f32 %v140, %v140
    %v143 = vsel %vm129, %v141, 0.0
    %144 = vadd.xlane.f32.xlu0 %v143
    %v145 = vpop.xlane.xlu0 %144
    %v146 = vsel %vm129, %v142, 0.0
    %147 = vadd.xlane.f32.xlu0 %v146
    %v148 = vpop.xlane.xlu0 %147
    %v149 = vmul.f32 %v145, %v136
    %v150 = vmul.f32 %v148, %v136
    %v151 = vadd.f32 %v149, 1e-05
    %v152 = vadd.f32 %v150, 1e-05
    %v153 = vrsqrt.pop %v151
    %v154 = vrsqrt.pop %v152
    %v155 = vmul.f32 %v139, %v153
    %v156 = vmul.f32 %v140, %v154
    %v157 = vlaneseq
    %v158 = vshrl.u32 %v157, 7
    %v159 = vsub.s32 0, %v158
    %v160 = vrot.slane %v127, %v159
    %v161 = vmul.f32 %v155, %v160
    %v162 = vmul.f32 %v156, %v160
    %v163 = vlaneseq
    %v164 = vshrl.u32 %v163, 7
    %v165 = vsub.s32 0, %v164
    %v166 = vrot.slane %v128, %v165
    %v167 = vadd.f32 %v161, %v166
    %v168 = vadd.f32 %v162, %v166
    %v169 = vpack.c.bf16 %v168, %v167
    %v170 = vld [vmem:[#allocation5 + $0x8] sm:$0xf]
    %v171 = vld [vmem:[#allocation5 + $0xc] sm:$0xf]
    %v172 = vld [vmem:[#allocation5 + $0x10] sm:$0xf]
    %v173 = vld [vmem:[#allocation5 + $0x14] sm:$0xf]
    %v174 = vld [vmem:[#allocation7 + $0xb] sm:$0x1]
    %v175 = vlaneseq
    %v176 = vshrl.u32 %v175, 7
    %v177 = vsub.s32 0, %v176
    %v178 = vrot.slane %v174, %v177
    %v183 = vunpack.c.l.b16 %v170
    %v184 = vunpack.c.l.b16 %v171
    %v185 = vunpack.c.l.b16 %v172
    %v186 = vunpack.c.l.b16 %v173
    %v187 = vpack.c.b16 %v184, %v183
    %v188 = vpack.c.b16 %v186, %v185
    %v192 = vsel %vm129, %v169, 0
    %194 = vmatprep.subr.bf16.mxu0 0
    %195 = vmatpush1.bf16.msra.mxu0 %v187
    %196 = vmatprep.subr.bf16.mxu0 0
    %197 = vmatpush1.bf16.msra.mxu0 %v188
    %198 = vmatprep.subr.bf16.mxu0 0
    %199 = vmatpush1.bf16.msra.mxu0 0
    %200 = vmatprep.subr.bf16.mxu0 0
    %201 = vmatpush1.bf16.msra.mxu0 0
    %202 = vmatprep.subr.bf16.mxu0 0
    %203 = vmatpush1.bf16.msra.mxu0 0
    %204 = vmatprep.subr.bf16.mxu0 0
    %205 = vmatpush1.bf16.msra.mxu0 0
    %206 = vmatprep.subr.bf16.mxu0 0
    %207 = vmatpush1.bf16.msra.mxu0 0
    %208 = vmatprep.subr.bf16.mxu0 0
    %209 = vmatpush1.bf16.msra.mxu0 0
    %210 = vmatprep.subr.bf16.mxu0 0
    %211 = vmatpush1.bf16.msra.mxu0 0
    %212 = vmatprep.subr.bf16.mxu0 0
    %213 = vmatpush1.bf16.msra.mxu0 0
    %214 = vmatprep.subr.bf16.mxu0 0
    %215 = vmatpush1.bf16.msra.mxu0 0
    %216 = vmatprep.subr.bf16.mxu0 0
    %217 = vmatpush1.bf16.msra.mxu0 0
    %218 = vmatprep.subr.bf16.mxu0 0
    %219 = vmatpush1.bf16.msra.mxu0 0
    %220 = vmatprep.subr.bf16.mxu0 0
    %221 = vmatpush1.bf16.msra.mxu0 0
    %222 = vmatprep.subr.bf16.mxu0 0
    %223 = vmatpush1.bf16.msra.mxu0 0
    %224 = vmatprep.subr.bf16.mxu0 0
    %225 = vmatpush1.bf16.msra.mxu0 0
    %226 = vmatprep.mubr.bf16.mxu0 0
    %227 = vmatmul.mubr.bf16.gmra.mrb[0].mxu0 %v192
    %v228 = vpop.f32.mrb[0].mxu0
    %v229 = vadd.f32 %v178, %v228
    %v230 = vpop.f32.mrb[0].mxu0
    %v231 = vpop.f32.mrb[0].mxu0
    %v232 = vadd.f32 %v178, %v231
    %v233 = vpop.f32.mrb[0].mxu0
    %234 = vdwg.mxu0
    %v235 = vld [vmem:[#allocation5 + $0x18] sm:$0xf]
    %v236 = vld [vmem:[#allocation5 + $0x1c] sm:$0xf]
    %v237 = vld [vmem:[#allocation5 + $0x20] sm:$0xf]
    %v238 = vld [vmem:[#allocation5 + $0x24] sm:$0xf]
    %v239 = vld [vmem:[#allocation7 + $0xc] sm:$0x1]
    %v240 = vlaneseq
    %v241 = vshrl.u32 %v240, 7
    %v242 = vsub.s32 0, %v241
    %v243 = vrot.slane %v239, %v242
    %v248 = vunpack.c.l.b16 %v235
    %v249 = vunpack.c.l.b16 %v236
    %v250 = vunpack.c.l.b16 %v237
    %v251 = vunpack.c.l.b16 %v238
    %v252 = vpack.c.b16 %v249, %v248
    %v253 = vpack.c.b16 %v251, %v250
    %256 = vmatprep.subr.bf16.mxu0 0
    %257 = vmatpush1.bf16.msra.mxu0 %v252
    %258 = vmatprep.subr.bf16.mxu0 0
    %259 = vmatpush1.bf16.msra.mxu0 %v253
    %260 = vmatprep.subr.bf16.mxu0 0
    %261 = vmatpush1.bf16.msra.mxu0 0
    %262 = vmatprep.subr.bf16.mxu0 0
    %263 = vmatpush1.bf16.msra.mxu0 0
    %264 = vmatprep.subr.bf16.mxu0 0
    %265 = vmatpush1.bf16.msra.mxu0 0
    %266 = vmatprep.subr.bf16.mxu0 0
    %267 = vmatpush1.bf16.msra.mxu0 0
    %268 = vmatprep.subr.bf16.mxu0 0
    %269 = vmatpush1.bf16.msra.mxu0 0
    %270 = vmatprep.subr.bf16.mxu0 0
    %271 = vmatpush1.bf16.msra.mxu0 0
    %272 = vmatprep.subr.bf16.mxu0 0
    %273 = vmatpush1.bf16.msra.mxu0 0
    %274 = vmatprep.subr.bf16.mxu0 0
    %275 = vmatpush1.bf16.msra.mxu0 0
    %276 = vmatprep.subr.bf16.mxu0 0
    %277 = vmatpush1.bf16.msra.mxu0 0
    %278 = vmatprep.subr.bf16.mxu0 0
    %279 = vmatpush1.bf16.msra.mxu0 0
    %280 = vmatprep.subr.bf16.mxu0 0
    %281 = vmatpush1.bf16.msra.mxu0 0
    %282 = vmatprep.subr.bf16.mxu0 0
    %283 = vmatpush1.bf16.msra.mxu0 0
    %284 = vmatprep.subr.bf16.mxu0 0
    %285 = vmatpush1.bf16.msra.mxu0 0
    %286 = vmatprep.subr.bf16.mxu0 0
    %287 = vmatpush1.bf16.msra.mxu0 0
    %288 = vmatprep.mubr.bf16.mxu0 0
    %289 = vmatmul.mubr.bf16.gmra.mrb[0].mxu0 %v192
    %v290 = vpop.f32.mrb[0].mxu0
    %v291 = vadd.f32 %v243, %v290
    %v292 = vpop.f32.mrb[0].mxu0
    %v293 = vpop.f32.mrb[0].mxu0
    %v294 = vadd.f32 %v243, %v293
    %v295 = vpop.f32.mrb[0].mxu0
    %296 = vdwg.mxu0
    %v297 = vld [vmem:[#allocation5 + $0x28] sm:$0xf]
    %v298 = vld [vmem:[#allocation5 + $0x2c] sm:$0xf]
    %v299 = vld [vmem:[#allocation5 + $0x30] sm:$0xf]
    %v300 = vld [vmem:[#allocation5 + $0x34] sm:$0xf]
    %v301 = vld [vmem:[#allocation7 + $0xd] sm:$0x1]
    %v302 = vlaneseq
    %v303 = vshrl.u32 %v302, 7
    %v304 = vsub.s32 0, %v303
    %v305 = vrot.slane %v301, %v304
    %v310 = vunpack.c.l.b16 %v297
    %v311 = vunpack.c.l.b16 %v298
    %v312 = vunpack.c.l.b16 %v299
    %v313 = vunpack.c.l.b16 %v300
    %v314 = vpack.c.b16 %v311, %v310
    %v315 = vpack.c.b16 %v313, %v312
    %318 = vmatprep.subr.bf16.mxu0 0
    %319 = vmatpush1.bf16.msra.mxu0 %v314
    %320 = vmatprep.subr.bf16.mxu0 0
    %321 = vmatpush1.bf16.msra.mxu0 %v315
    %322 = vmatprep.subr.bf16.mxu0 0
    %323 = vmatpush1.bf16.msra.mxu0 0
    %324 = vmatprep.subr.bf16.mxu0 0
    %325 = vmatpush1.bf16.msra.mxu0 0
    %326 = vmatprep.subr.bf16.mxu0 0
    %327 = vmatpush1.bf16.msra.mxu0 0
    %328 = vmatprep.subr.bf16.mxu0 0
    %329 = vmatpush1.bf16.msra.mxu0 0
    %330 = vmatprep.subr.bf16.mxu0 0
    %331 = vmatpush1.bf16.msra.mxu0 0
    %332 = vmatprep.subr.bf16.mxu0 0
    %333 = vmatpush1.bf16.msra.mxu0 0
    %334 = vmatprep.subr.bf16.mxu0 0
    %335 = vmatpush1.bf16.msra.mxu0 0
    %336 = vmatprep.subr.bf16.mxu0 0
    %337 = vmatpush1.bf16.msra.mxu0 0
    %338 = vmatprep.subr.bf16.mxu0 0
    %339 = vmatpush1.bf16.msra.mxu0 0
    %340 = vmatprep.subr.bf16.mxu0 0
    %341 = vmatpush1.bf16.msra.mxu0 0
    %342 = vmatprep.subr.bf16.mxu0 0
    %343 = vmatpush1.bf16.msra.mxu0 0
    %344 = vmatprep.subr.bf16.mxu0 0
    %345 = vmatpush1.bf16.msra.mxu0 0
    %346 = vmatprep.subr.bf16.mxu0 0
    %347 = vmatpush1.bf16.msra.mxu0 0
    %348 = vmatprep.subr.bf16.mxu0 0
    %349 = vmatpush1.bf16.msra.mxu0 0
    %350 = vmatprep.mubr.bf16.mxu0 0
    %351 = vmatmul.mubr.bf16.gmra.mrb[0].mxu0 %v192
    %v352 = vpop.f32.mrb[0].mxu0
    %v353 = vadd.f32 %v305, %v352
    %v354 = vpop.f32.mrb[0].mxu0
    %v355 = vpop.f32.mrb[0].mxu0
    %v356 = vadd.f32 %v305, %v355
    %v357 = vpop.f32.mrb[0].mxu0
    %358 = vdwg.mxu0
    %v359 = vpack.c.bf16 %v229, %v229
    %v360 = vpack.c.bf16 %v232, %v232
    %v361 = vpack.c.bf16 %v291, %v291
    %v362 = vpack.c.bf16 %v294, %v294
    %v363 = vpack.c.bf16 %v353, %v353
    %v364 = vpack.c.bf16 %v356, %v356
    %vm365 = vcmask 64512
    %v367 = vsel %vm365, %v359, 0
    %v370 = vsel %vm365, %v361, 0
    %372 = vmatprep.subr.bf16.mxu0 0
    %373 = vmatpush1.bf16.xpose.msra.mxu0 %v370
    %374 = vmatprep.subr.bf16.mxu0 0
    %375 = vmatpush1.bf16.xpose.msra.mxu0 0
    %376 = vmatprep.subr.bf16.mxu0 0
    %377 = vmatpush1.bf16.xpose.msra.mxu0 0
    %378 = vmatprep.subr.bf16.mxu0 0
    %379 = vmatpush1.bf16.xpose.msra.mxu0 0
    %380 = vmatprep.subr.bf16.mxu0 0
    %381 = vmatpush1.bf16.xpose.msra.mxu0 0
    %382 = vmatprep.subr.bf16.mxu0 0
    %383 = vmatpush1.bf16.xpose.msra.mxu0 0
    %384 = vmatprep.subr.bf16.mxu0 0
    %385 = vmatpush1.bf16.xpose.msra.mxu0 0
    %386 = vmatprep.subr.bf16.mxu0 0
    %387 = vmatpush1.bf16.xpose.msra.mxu0 0
    %388 = vmatprep.subr.bf16.mxu0 0
    %389 = vmatpush1.bf16.xpose.msra.mxu0 0
    %390 = vmatprep.subr.bf16.mxu0 0
    %391 = vmatpush1.bf16.xpose.msra.mxu0 0
    %392 = vmatprep.subr.bf16.mxu0 0
    %393 = vmatpush1.bf16.xpose.msra.mxu0 0
    %394 = vmatprep.subr.bf16.mxu0 0
    %395 = vmatpush1.bf16.xpose.msra.mxu0 0
    %396 = vmatprep.subr.bf16.mxu0 0
    %397 = vmatpush1.bf16.xpose.msra.mxu0 0
    %398 = vmatprep.subr.bf16.mxu0 0
    %399 = vmatpush1.bf16.xpose.msra.mxu0 0
    %400 = vmatprep.subr.bf16.mxu0 0
    %401 = vmatpush1.bf16.xpose.msra.mxu0 0
    %402 = vmatprep.subr.bf16.mxu0 0
    %403 = vmatpush1.bf16.xpose.msra.mxu0 0
    %404 = vmatprep.mubr.bf16.mxu0 0
    %405 = vmatmul.mubr.bf16.gmra.mrb[0].mxu0 %v367
    %v406 = vpop.f32.mrb[0].mxu0
    %v407 = vadd.f32 0.0, %v406
    %v408 = vpop.f32.mrb[0].mxu0
    %v409 = vpop.f32.mrb[0].mxu0
    %v410 = vpop.f32.mrb[0].mxu0
    %411 = vdwg.mxu0
    %v413 = vsel %vm365, %v360, 0
    %v416 = vsel %vm365, %v362, 0
    %418 = vmatprep.subr.bf16.mxu0 0
    %419 = vmatpush1.bf16.xpose.msra.mxu0 %v416
    %420 = vmatprep.subr.bf16.mxu0 0
    %421 = vmatpush1.bf16.xpose.msra.mxu0 0
    %422 = vmatprep.subr.bf16.mxu0 0
    %423 = vmatpush1.bf16.xpose.msra.mxu0 0
    %424 = vmatprep.subr.bf16.mxu0 0
    %425 = vmatpush1.bf16.xpose.msra.mxu0 0
    %426 = vmatprep.subr.bf16.mxu0 0
    %427 = vmatpush1.bf16.xpose.msra.mxu0 0
    %428 = vmatprep.subr.bf16.mxu0 0
    %429 = vmatpush1.bf16.xpose.msra.mxu0 0
    %430 = vmatprep.subr.bf16.mxu0 0
    %431 = vmatpush1.bf16.xpose.msra.mxu0 0
    %432 = vmatprep.subr.bf16.mxu0 0
    %433 = vmatpush1.bf16.xpose.msra.mxu0 0
    %434 = vmatprep.subr.bf16.mxu0 0
    %435 = vmatpush1.bf16.xpose.msra.mxu0 0
    %436 = vmatprep.subr.bf16.mxu0 0
    %437 = vmatpush1.bf16.xpose.msra.mxu0 0
    %438 = vmatprep.subr.bf16.mxu0 0
    %439 = vmatpush1.bf16.xpose.msra.mxu0 0
    %440 = vmatprep.subr.bf16.mxu0 0
    %441 = vmatpush1.bf16.xpose.msra.mxu0 0
    %442 = vmatprep.subr.bf16.mxu0 0
    %443 = vmatpush1.bf16.xpose.msra.mxu0 0
    %444 = vmatprep.subr.bf16.mxu0 0
    %445 = vmatpush1.bf16.xpose.msra.mxu0 0
    %446 = vmatprep.subr.bf16.mxu0 0
    %447 = vmatpush1.bf16.xpose.msra.mxu0 0
    %448 = vmatprep.subr.bf16.mxu0 0
    %449 = vmatpush1.bf16.xpose.msra.mxu0 0
    %450 = vmatprep.mubr.bf16.mxu0 0
    %451 = vmatmul.mubr.bf16.gmra.mrb[0].mxu0 %v413
    %v452 = vpop.f32.mrb[0].mxu0
    %v453 = vadd.f32 0.0, %v452
    %v454 = vpop.f32.mrb[0].mxu0
    %v455 = vpop.f32.mrb[0].mxu0
    %v456 = vpop.f32.mrb[0].mxu0
    %457 = vdwg.mxu0
    %v458 = vsel %vm365, %v407, -inf
    %459 = vmax.xlane.f32.xlu0 %v458
    %v460 = vpop.xlane.xlu0 %459
    %v461 = vsel %vm365, %v453, -inf
    %462 = vmax.xlane.f32.xlu0 %v461
    %v463 = vpop.xlane.xlu0 %462
    %v464 = vsub.f32 %v407, %v460
    %v465 = vsub.f32 %v453, %v463
    %v466 = vmul.f32 %v464, 1.442695
    %v467 = vpow.pop %v466
    %v468 = vmul.f32 %v465, 1.442695
    %v469 = vpow.pop %v468
    %v470 = vsel %vm365, %v467, 0.0
    %471 = vadd.xlane.f32.xlu0 %v470
    %v472 = vpop.xlane.xlu0 %471
    %v473 = vsel %vm365, %v469, 0.0
    %474 = vadd.xlane.f32.xlu0 %v473
    %v475 = vpop.xlane.xlu0 %474
    %v476 = vrcp.pop %v472
    %v477 = vrcp.pop %v475
    %v478 = vmul.f32 %v467, %v476
    %v479 = vmul.f32 %v469, %v477
    %v480 = vpack.c.bf16 %v478, %v478
    %v481 = vpack.c.bf16 %v479, %v479
    %v483 = vsel %vm365, %v480, 0
    %vm485 = vcmask 1043456
    %v487 = vsel %vm485, %v363, 0
    %489 = vmatprep.subr.bf16.mxu0 0
    %490 = vmatpush1.bf16.msra.mxu0 %v487
    %491 = vmatprep.subr.bf16.mxu0 0
    %492 = vmatpush1.bf16.msra.mxu0 0
    %493 = vmatprep.subr.bf16.mxu0 0
    %494 = vmatpush1.bf16.msra.mxu0 0
    %495 = vmatprep.subr.bf16.mxu0 0
    %496 = vmatpush1.bf16.msra.mxu0 0
    %497 = vmatprep.subr.bf16.mxu0 0
    %498 = vmatpush1.bf16.msra.mxu0 0
    %499 = vmatprep.subr.bf16.mxu0 0
    %500 = vmatpush1.bf16.msra.mxu0 0
    %501 = vmatprep.subr.bf16.mxu0 0
    %502 = vmatpush1.bf16.msra.mxu0 0
    %503 = vmatprep.subr.bf16.mxu0 0
    %504 = vmatpush1.bf16.msra.mxu0 0
    %505 = vmatprep.subr.bf16.mxu0 0
    %506 = vmatpush1.bf16.msra.mxu0 0
    %507 = vmatprep.subr.bf16.mxu0 0
    %508 = vmatpush1.bf16.msra.mxu0 0
    %509 = vmatprep.subr.bf16.mxu0 0
    %510 = vmatpush1.bf16.msra.mxu0 0
    %511 = vmatprep.subr.bf16.mxu0 0
    %512 = vmatpush1.bf16.msra.mxu0 0
    %513 = vmatprep.subr.bf16.mxu0 0
    %514 = vmatpush1.bf16.msra.mxu0 0
    %515 = vmatprep.subr.bf16.mxu0 0
    %516 = vmatpush1.bf16.msra.mxu0 0
    %517 = vmatprep.subr.bf16.mxu0 0
    %518 = vmatpush1.bf16.msra.mxu0 0
    %519 = vmatprep.subr.bf16.mxu0 0
    %520 = vmatpush1.bf16.msra.mxu0 0
    %521 = vmatprep.mubr.bf16.mxu0 0
    %522 = vmatmul.mubr.bf16.gmra.mrb[0].mxu0 %v483
    %v523 = vpop.f32.mrb[0].mxu0
    %v524 = vadd.f32 0.0, %v523
    %v525 = vpop.f32.mrb[0].mxu0
    %v526 = vpop.f32.mrb[0].mxu0
    %v527 = vpop.f32.mrb[0].mxu0
    %528 = vdwg.mxu0
    %v530 = vsel %vm365, %v481, 0
    %v533 = vsel %vm485, %v364, 0
    %535 = vmatprep.subr.bf16.mxu0 0
    %536 = vmatpush1.bf16.msra.mxu0 %v533
    %537 = vmatprep.subr.bf16.mxu0 0
    %538 = vmatpush1.bf16.msra.mxu0 0
    %539 = vmatprep.subr.bf16.mxu0 0
    %540 = vmatpush1.bf16.msra.mxu0 0
    %541 = vmatprep.subr.bf16.mxu0 0
    %542 = vmatpush1.bf16.msra.mxu0 0
    %543 = vmatprep.subr.bf16.mxu0 0
    %544 = vmatpush1.bf16.msra.mxu0 0
    %545 = vmatprep.subr.bf16.mxu0 0
    %546 = vmatpush1.bf16.msra.mxu0 0
    %547 = vmatprep.subr.bf16.mxu0 0
    %548 = vmatpush1.bf16.msra.mxu0 0
    %549 = vmatprep.subr.bf16.mxu0 0
    %550 = vmatpush1.bf16.msra.mxu0 0
    %551 = vmatprep.subr.bf16.mxu0 0
    %552 = vmatpush1.bf16.msra.mxu0 0
    %553 = vmatprep.subr.bf16.mxu0 0
    %554 = vmatpush1.bf16.msra.mxu0 0
    %555 = vmatprep.subr.bf16.mxu0 0
    %556 = vmatpush1.bf16.msra.mxu0 0
    %557 = vmatprep.subr.bf16.mxu0 0
    %558 = vmatpush1.bf16.msra.mxu0 0
    %559 = vmatprep.subr.bf16.mxu0 0
    %560 = vmatpush1.bf16.msra.mxu0 0
    %561 = vmatprep.subr.bf16.mxu0 0
    %562 = vmatpush1.bf16.msra.mxu0 0
    %563 = vmatprep.subr.bf16.mxu0 0
    %564 = vmatpush1.bf16.msra.mxu0 0
    %565 = vmatprep.subr.bf16.mxu0 0
    %566 = vmatpush1.bf16.msra.mxu0 0
    %567 = vmatprep.mubr.bf16.mxu0 0
    %568 = vmatmul.mubr.bf16.gmra.mrb[0].mxu0 %v530
    %v569 = vpop.f32.mrb[0].mxu0
    %v570 = vadd.f32 0.0, %v569
    %v571 = vpop.f32.mrb[0].mxu0
    %v572 = vpop.f32.mrb[0].mxu0
    %v573 = vpop.f32.mrb[0].mxu0
    %574 = vdwg.mxu0
    %v575 = vpack.c.bf16 %v570, %v524
    %v576 = vld [vmem:[#allocation5 + $0x38] sm:$0xf]
    %v577 = vld [vmem:[#allocation5 + $0x8] sm:$0xf]
    %v578 = vld [vmem:[#allocation5 + $0xc] sm:$0xf]
    %v579 = vld [vmem:[#allocation5 + $0x10] sm:$0xf]
    %v580 = vld [vmem:[#allocation5 + $0x14] sm:$0xf]
    %v581 = vld [vmem:[#allocation7 + $0xb] sm:$0x1]
    %v582 = vlaneseq
    %v583 = vshrl.u32 %v582, 7
    %v584 = vsub.s32 0, %v583
    %v585 = vrot.slane %v581, %v584
    %v590 = vunpack.c.l.b16 %v577
    %v591 = vunpack.c.l.b16 %v578
    %v592 = vunpack.c.l.b16 %v579
    %v593 = vunpack.c.l.b16 %v580
    %v594 = vpack.c.b16 %v591, %v590
    %v595 = vpack.c.b16 %v593, %v592
    %596 = vrot.lane.b32.xlu0 %v594, 120
    %v597 = vpop.permute.xlu0 %596
    %598 = vrot.lane.b32.xlu0 %v595, 120
    %v599 = vpop.permute.xlu0 %598
    %603 = vrot.lane.b32.xlu0 %v585, 120
    %v604 = vpop.permute.xlu0 %603
    %606 = vmatprep.subr.bf16.mxu0 0
    %607 = vmatpush1.bf16.msra.mxu0 %v597
    %608 = vmatprep.subr.bf16.mxu0 0
    %609 = vmatpush1.bf16.msra.mxu0 %v599
    %610 = vmatprep.subr.bf16.mxu0 0
    %611 = vmatpush1.bf16.msra.mxu0 0
    %612 = vmatprep.subr.bf16.mxu0 0
    %613 = vmatpush1.bf16.msra.mxu0 0
    %614 = vmatprep.subr.bf16.mxu0 0
    %615 = vmatpush1.bf16.msra.mxu0 0
    %616 = vmatprep.subr.bf16.mxu0 0
    %617 = vmatpush1.bf16.msra.mxu0 0
    %618 = vmatprep.subr.bf16.mxu0 0
    %619 = vmatpush1.bf16.msra.mxu0 0
    %620 = vmatprep.subr.bf16.mxu0 0
    %621 = vmatpush1.bf16.msra.mxu0 0
    %622 = vmatprep.subr.bf16.mxu0 0
    %623 = vmatpush1.bf16.msra.mxu0 0
    %624 = vmatprep.subr.bf16.mxu0 0
    %625 = vmatpush1.bf16.msra.mxu0 0
    %626 = vmatprep.subr.bf16.mxu0 0
    %627 = vmatpush1.bf16.msra.mxu0 0
    %628 = vmatprep.subr.bf16.mxu0 0
    %629 = vmatpush1.bf16.msra.mxu0 0
    %630 = vmatprep.subr.bf16.mxu0 0
    %631 = vmatpush1.bf16.msra.mxu0 0
    %632 = vmatprep.subr.bf16.mxu0 0
    %633 = vmatpush1.bf16.msra.mxu0 0
    %634 = vmatprep.subr.bf16.mxu0 0
    %635 = vmatpush1.bf16.msra.mxu0 0
    %636 = vmatprep.subr.bf16.mxu0 0
    %637 = vmatpush1.bf16.msra.mxu0 0
    %638 = vmatprep.mubr.bf16.mxu0 0
    %639 = vmatmul.mubr.bf16.gmra.mrb[0].mxu0 %v192
    %v640 = vpop.f32.mrb[0].mxu0
    %v641 = vadd.f32 %v604, %v640
    %v642 = vpop.f32.mrb[0].mxu0
    %v643 = vpop.f32.mrb[0].mxu0
    %v644 = vadd.f32 %v604, %v643
    %v645 = vpop.f32.mrb[0].mxu0
    %646 = vdwg.mxu0
    %v647 = vld [vmem:[#allocation5 + $0x18] sm:$0xf]
    %v648 = vld [vmem:[#allocation5 + $0x1c] sm:$0xf]
    %v649 = vld [vmem:[#allocation5 + $0x20] sm:$0xf]
    %v650 = vld [vmem:[#allocation5 + $0x24] sm:$0xf]
    %v651 = vld [vmem:[#allocation7 + $0xc] sm:$0x1]
    %v652 = vlaneseq
    %v653 = vshrl.u32 %v652, 7
    %v654 = vsub.s32 0, %v653
    %v655 = vrot.slane %v651, %v654
    %v660 = vunpack.c.l.b16 %v647
    %v661 = vunpack.c.l.b16 %v648
    %v662 = vunpack.c.l.b16 %v649
    %v663 = vunpack.c.l.b16 %v650
    %v664 = vpack.c.b16 %v661, %v660
    %v665 = vpack.c.b16 %v663, %v662
    %666 = vrot.lane.b32.xlu0 %v664, 120
    %v667 = vpop.permute.xlu0 %666
    %668 = vrot.lane.b32.xlu0 %v665, 120
    %v669 = vpop.permute.xlu0 %668
    %673 = vrot.lane.b32.xlu0 %v655, 120
    %v674 = vpop.permute.xlu0 %673
    %676 = vmatprep.subr.bf16.mxu0 0
    %677 = vmatpush1.bf16.msra.mxu0 %v667
    %678 = vmatprep.subr.bf16.mxu0 0
    %679 = vmatpush1.bf16.msra.mxu0 %v669
    %680 = vmatprep.subr.bf16.mxu0 0
    %681 = vmatpush1.bf16.msra.mxu0 0
    %682 = vmatprep.subr.bf16.mxu0 0
    %683 = vmatpush1.bf16.msra.mxu0 0
    %684 = vmatprep.subr.bf16.mxu0 0
    %685 = vmatpush1.bf16.msra.mxu0 0
    %686 = vmatprep.subr.bf16.mxu0 0
    %687 = vmatpush1.bf16.msra.mxu0 0
    %688 = vmatprep.subr.bf16.mxu0 0
    %689 = vmatpush1.bf16.msra.mxu0 0
    %690 = vmatprep.subr.bf16.mxu0 0
    %691 = vmatpush1.bf16.msra.mxu0 0
    %692 = vmatprep.subr.bf16.mxu0 0
    %693 = vmatpush1.bf16.msra.mxu0 0
    %694 = vmatprep.subr.bf16.mxu0 0
    %695 = vmatpush1.bf16.msra.mxu0 0
    %696 = vmatprep.subr.bf16.mxu0 0
    %697 = vmatpush1.bf16.msra.mxu0 0
    %698 = vmatprep.subr.bf16.mxu0 0
    %699 = vmatpush1.bf16.msra.mxu0 0
    %700 = vmatprep.subr.bf16.mxu0 0
    %701 = vmatpush1.bf16.msra.mxu0 0
    %702 = vmatprep.subr.bf16.mxu0 0
    %703 = vmatpush1.bf16.msra.mxu0 0
    %704 = vmatprep.subr.bf16.mxu0 0
    %705 = vmatpush1.bf16.msra.mxu0 0
    %706 = vmatprep.subr.bf16.mxu0 0
    %707 = vmatpush1.bf16.msra.mxu0 0
    %708 = vmatprep.mubr.bf16.mxu0 0
    %709 = vmatmul.mubr.bf16.gmra.mrb[0].mxu0 %v192
    %v710 = vpop.f32.mrb[0].mxu0
    %v711 = vadd.f32 %v674, %v710
    %v712 = vpop.f32.mrb[0].mxu0
    %v713 = vpop.f32.mrb[0].mxu0
    %v714 = vadd.f32 %v674, %v713
    %v715 = vpop.f32.mrb[0].mxu0
    %716 = vdwg.mxu0
    %v717 = vld [vmem:[#allocation5 + $0x28] sm:$0xf]
    %v718 = vld [vmem:[#allocation5 + $0x2c] sm:$0xf]
    %v719 = vld [vmem:[#allocation5 + $0x30] sm:$0xf]
    %v720 = vld [vmem:[#allocation5 + $0x34] sm:$0xf]
    %v721 = vld [vmem:[#allocation7 + $0xd] sm:$0x1]
    %v722 = vlaneseq
    %v723 = vshrl.u32 %v722, 7
    %v724 = vsub.s32 0, %v723
    %v725 = vrot.slane %v721, %v724
    %v730 = vunpack.c.l.b16 %v717
    %v731 = vunpack.c.l.b16 %v718
    %v732 = vunpack.c.l.b16 %v719
    %v733 = vunpack.c.l.b16 %v720
    %v734 = vpack.c.b16 %v731, %v730
    %v735 = vpack.c.b16 %v733, %v732
    %736 = vrot.lane.b32.xlu0 %v734, 120
    %v737 = vpop.permute.xlu0 %736
    %738 = vrot.lane.b32.xlu0 %v735, 120
    %v739 = vpop.permute.xlu0 %738
    %743 = vrot.lane.b32.xlu0 %v725, 120
    %v744 = vpop.permute.xlu0 %743
    %746 = vmatprep.subr.bf16.mxu0 0
    %747 = vmatpush1.bf16.msra.mxu0 %v737
    %748 = vmatprep.subr.bf16.mxu0 0
    %749 = vmatpush1.bf16.msra.mxu0 %v739
    %750 = vmatprep.subr.bf16.mxu0 0
    %751 = vmatpush1.bf16.msra.mxu0 0
    %752 = vmatprep.subr.bf16.mxu0 0
    %753 = vmatpush1.bf16.msra.mxu0 0
    %754 = vmatprep.subr.bf16.mxu0 0
    %755 = vmatpush1.bf16.msra.mxu0 0
    %756 = vmatprep.subr.bf16.mxu0 0
    %757 = vmatpush1.bf16.msra.mxu0 0
    %758 = vmatprep.subr.bf16.mxu0 0
    %759 = vmatpush1.bf16.msra.mxu0 0
    %760 = vmatprep.subr.bf16.mxu0 0
    %761 = vmatpush1.bf16.msra.mxu0 0
    %762 = vmatprep.subr.bf16.mxu0 0
    %763 = vmatpush1.bf16.msra.mxu0 0
    %764 = vmatprep.subr.bf16.mxu0 0
    %765 = vmatpush1.bf16.msra.mxu0 0
    %766 = vmatprep.subr.bf16.mxu0 0
    %767 = vmatpush1.bf16.msra.mxu0 0
    %768 = vmatprep.subr.bf16.mxu0 0
    %769 = vmatpush1.bf16.msra.mxu0 0
    %770 = vmatprep.subr.bf16.mxu0 0
    %771 = vmatpush1.bf16.msra.mxu0 0
    %772 = vmatprep.subr.bf16.mxu0 0
    %773 = vmatpush1.bf16.msra.mxu0 0
    %774 = vmatprep.subr.bf16.mxu0 0
    %775 = vmatpush1.bf16.msra.mxu0 0
    %776 = vmatprep.subr.bf16.mxu0 0
    %777 = vmatpush1.bf16.msra.mxu0 0
    %778 = vmatprep.mubr.bf16.mxu0 0
    %779 = vmatmul.mubr.bf16.gmra.mrb[0].mxu0 %v192
    %v780 = vpop.f32.mrb[0].mxu0
    %v781 = vadd.f32 %v744, %v780
    %v782 = vpop.f32.mrb[0].mxu0
    %v783 = vpop.f32.mrb[0].mxu0
    %v784 = vadd.f32 %v744, %v783
    %v785 = vpop.f32.mrb[0].mxu0
    %786 = vdwg.mxu0
    %v787 = vpack.c.bf16 %v641, %v641
    %v788 = vpack.c.bf16 %v644, %v644
    %v789 = vpack.c.bf16 %v711, %v711
    %v790 = vpack.c.bf16 %v714, %v714
    %v791 = vpack.c.bf16 %v781, %v781
    %v792 = vpack.c.bf16 %v784, %v784
    %v794 = vsel %vm365, %v787, 0
    %v797 = vsel %vm365, %v789, 0
    %799 = vmatprep.subr.bf16.mxu0 0
    %800 = vmatpush1.bf16.xpose.msra.mxu0 %v797
    %801 = vmatprep.subr.bf16.mxu0 0
    %802 = vmatpush1.bf16.xpose.msra.mxu0 0
    %803 = vmatprep.subr.bf16.mxu0 0
    %804 = vmatpush1.bf16.xpose.msra.mxu0 0
    %805 = vmatprep.subr.bf16.mxu0 0
    %806 = vmatpush1.bf16.xpose.msra.mxu0 0
    %807 = vmatprep.subr.bf16.mxu0 0
    %808 = vmatpush1.bf16.xpose.msra.mxu0 0
    %809 = vmatprep.subr.bf16.mxu0 0
    %810 = vmatpush1.bf16.xpose.msra.mxu0 0
    %811 = vmatprep.subr.bf16.mxu0 0
    %812 = vmatpush1.bf16.xpose.msra.mxu0 0
    %813 = vmatprep.subr.bf16.mxu0 0
    %814 = vmatpush1.bf16.xpose.msra.mxu0 0
    %815 = vmatprep.subr.bf16.mxu0 0
    %816 = vmatpush1.bf16.xpose.msra.mxu0 0
    %817 = vmatprep.subr.bf16.mxu0 0
    %818 = vmatpush1.bf16.xpose.msra.mxu0 0
    %819 = vmatprep.subr.bf16.mxu0 0
    %820 = vmatpush1.bf16.xpose.msra.mxu0 0
    %821 = vmatprep.subr.bf16.mxu0 0
    %822 = vmatpush1.bf16.xpose.msra.mxu0 0
    %823 = vmatprep.subr.bf16.mxu0 0
    %824 = vmatpush1.bf16.xpose.msra.mxu0 0
    %825 = vmatprep.subr.bf16.mxu0 0
    %826 = vmatpush1.bf16.xpose.msra.mxu0 0
    %827 = vmatprep.subr.bf16.mxu0 0
    %828 = vmatpush1.bf16.xpose.msra.mxu0 0
    %829 = vmatprep.subr.bf16.mxu0 0
    %830 = vmatpush1.bf16.xpose.msra.mxu0 0
    %831 = vmatprep.mubr.bf16.mxu0 0
    %832 = vmatmul.mubr.bf16.gmra.mrb[0].mxu0 %v794
    %v833 = vpop.f32.mrb[0].mxu0
    %v834 = vadd.f32 0.0, %v833
    %v835 = vpop.f32.mrb[0].mxu0
    %v836 = vpop.f32.mrb[0].mxu0
    %v837 = vpop.f32.mrb[0].mxu0
    %838 = vdwg.mxu0
    %v840 = vsel %vm365, %v788, 0
    %v843 = vsel %vm365, %v790, 0
    %845 = vmatprep.subr.bf16.mxu0 0
    %846 = vmatpush1.bf16.xpose.msra.mxu0 %v843
    %847 = vmatprep.subr.bf16.mxu0 0
    %848 = vmatpush1.bf16.xpose.msra.mxu0 0
    %849 = vmatprep.subr.bf16.mxu0 0
    %850 = vmatpush1.bf16.xpose.msra.mxu0 0
    %851 = vmatprep.subr.bf16.mxu0 0
    %852 = vmatpush1.bf16.xpose.msra.mxu0 0
    %853 = vmatprep.subr.bf16.mxu0 0
    %854 = vmatpush1.bf16.xpose.msra.mxu0 0
    %855 = vmatprep.subr.bf16.mxu0 0
    %856 = vmatpush1.bf16.xpose.msra.mxu0 0
    %857 = vmatprep.subr.bf16.mxu0 0
    %858 = vmatpush1.bf16.xpose.msra.mxu0 0
    %859 = vmatprep.subr.bf16.mxu0 0
    %860 = vmatpush1.bf16.xpose.msra.mxu0 0
    %861 = vmatprep.subr.bf16.mxu0 0
    %862 = vmatpush1.bf16.xpose.msra.mxu0 0
    %863 = vmatprep.subr.bf16.mxu0 0
    %864 = vmatpush1.bf16.xpose.msra.mxu0 0
    %865 = vmatprep.subr.bf16.mxu0 0
    %866 = vmatpush1.bf16.xpose.msra.mxu0 0
    %867 = vmatprep.subr.bf16.mxu0 0
    %868 = vmatpush1.bf16.xpose.msra.mxu0 0
    %869 = vmatprep.subr.bf16.mxu0 0
    %870 = vmatpush1.bf16.xpose.msra.mxu0 0
    %871 = vmatprep.subr.bf16.mxu0 0
    %872 = vmatpush1.bf16.xpose.msra.mxu0 0
    %873 = vmatprep.subr.bf16.mxu0 0
    %874 = vmatpush1.bf16.xpose.msra.mxu0 0
    %875 = vmatprep.subr.bf16.mxu0 0
    %876 = vmatpush1.bf16.xpose.msra.mxu0 0
    %877 = vmatprep.mubr.bf16.mxu0 0
    %878 = vmatmul.mubr.bf16.gmra.mrb[0].mxu0 %v840
    %v879 = vpop.f32.mrb[0].mxu0
    %v880 = vadd.f32 0.0, %v879
    %v881 = vpop.f32.mrb[0].mxu0
    %v882 = vpop.f32.mrb[0].mxu0
    %v883 = vpop.f32.mrb[0].mxu0
    %884 = vdwg.mxu0
    %v885 = vsel %vm365, %v834, -inf
    %886 = vmax.xlane.f32.xlu0 %v885
    %v887 = vpop.xlane.xlu0 %886
    %v888 = vsel %vm365, %v880, -inf
    %889 = vmax.xlane.f32.xlu0 %v888
    %v890 = vpop.xlane.xlu0 %889
    %v891 = vsub.f32 %v834, %v887
    %v892 = vsub.f32 %v880, %v890
    %v893 = vmul.f32 %v891, 1.442695
    %v894 = vpow.pop %v893
    %v895 = vmul.f32 %v892, 1.442695
    %v896 = vpow.pop %v895
    %v897 = vsel %vm365, %v894, 0.0
    %898 = vadd.xlane.f32.xlu0 %v897
    %v899 = vpop.xlane.xlu0 %898
    %v900 = vsel %vm365, %v896, 0.0
    %901 = vadd.xlane.f32.xlu0 %v900
    %v902 = vpop.xlane.xlu0 %901
    %v903 = vrcp.pop %v899
    %v904 = vrcp.pop %v902
    %v905 = vmul.f32 %v894, %v903
    %v906 = vmul.f32 %v896, %v904
    %v907 = vpack.c.bf16 %v905, %v905
    %v908 = vpack.c.bf16 %v906, %v906
    %v910 = vsel %vm365, %v907, 0
    %v913 = vsel %vm485, %v791, 0
    %915 = vmatprep.subr.bf16.mxu0 0
    %916 = vmatpush1.bf16.msra.mxu0 %v913
    %917 = vmatprep.subr.bf16.mxu0 0
    %918 = vmatpush1.bf16.msra.mxu0 0
    %919 = vmatprep.subr.bf16.mxu0 0
    %920 = vmatpush1.bf16.msra.mxu0 0
    %921 = vmatprep.subr.bf16.mxu0 0
    %922 = vmatpush1.bf16.msra.mxu0 0
    %923 = vmatprep.subr.bf16.mxu0 0
    %924 = vmatpush1.bf16.msra.mxu0 0
    %925 = vmatprep.subr.bf16.mxu0 0
    %926 = vmatpush1.bf16.msra.mxu0 0
    %927 = vmatprep.subr.bf16.mxu0 0
    %928 = vmatpush1.bf16.msra.mxu0 0
    %929 = vmatprep.subr.bf16.mxu0 0
    %930 = vmatpush1.bf16.msra.mxu0 0
    %931 = vmatprep.subr.bf16.mxu0 0
    %932 = vmatpush1.bf16.msra.mxu0 0
    %933 = vmatprep.subr.bf16.mxu0 0
    %934 = vmatpush1.bf16.msra.mxu0 0
    %935 = vmatprep.subr.bf16.mxu0 0
    %936 = vmatpush1.bf16.msra.mxu0 0
    %937 = vmatprep.subr.bf16.mxu0 0
    %938 = vmatpush1.bf16.msra.mxu0 0
    %939 = vmatprep.subr.bf16.mxu0 0
    %940 = vmatpush1.bf16.msra.mxu0 0
    %941 = vmatprep.subr.bf16.mxu0 0
    %942 = vmatpush1.bf16.msra.mxu0 0
    %943 = vmatprep.subr.bf16.mxu0 0
    %944 = vmatpush1.bf16.msra.mxu0 0
    %945 = vmatprep.subr.bf16.mxu0 0
    %946 = vmatpush1.bf16.msra.mxu0 0
    %947 = vmatprep.mubr.bf16.mxu0 0
    %948 = vmatmul.mubr.bf16.gmra.mrb[0].mxu0 %v910
    %v949 = vpop.f32.mrb[0].mxu0
    %v950 = vadd.f32 0.0, %v949
    %v951 = vpop.f32.mrb[0].mxu0
    %v952 = vpop.f32.mrb[0].mxu0
    %v953 = vpop.f32.mrb[0].mxu0
    %954 = vdwg.mxu0
    %v956 = vsel %vm365, %v908, 0
    %v959 = vsel %vm485, %v792, 0
    %961 = vmatprep.subr.bf16.mxu0 0
    %962 = vmatpush1.bf16.msra.mxu0 %v959
    %963 = vmatprep.subr.bf16.mxu0 0
    %964 = vmatpush1.bf16.msra.mxu0 0
    %965 = vmatprep.subr.bf16.mxu0 0
    %966 = vmatpush1.bf16.msra.mxu0 0
    %967 = vmatprep.subr.bf16.mxu0 0
    %968 = vmatpush1.bf16.msra.mxu0 0
    %969 = vmatprep.subr.bf16.mxu0 0
    %970 = vmatpush1.bf16.msra.mxu0 0
    %971 = vmatprep.subr.bf16.mxu0 0
    %972 = vmatpush1.bf16.msra.mxu0 0
    %973 = vmatprep.subr.bf16.mxu0 0
    %974 = vmatpush1.bf16.msra.mxu0 0
    %975 = vmatprep.subr.bf16.mxu0 0
    %976 = vmatpush1.bf16.msra.mxu0 0
    %977 = vmatprep.subr.bf16.mxu0 0
    %978 = vmatpush1.bf16.msra.mxu0 0
    %979 = vmatprep.subr.bf16.mxu0 0
    %980 = vmatpush1.bf16.msra.mxu0 0
    %981 = vmatprep.subr.bf16.mxu0 0
    %982 = vmatpush1.bf16.msra.mxu0 0
    %983 = vmatprep.subr.bf16.mxu0 0
    %984 = vmatpush1.bf16.msra.mxu0 0
    %985 = vmatprep.subr.bf16.mxu0 0
    %986 = vmatpush1.bf16.msra.mxu0 0
    %987 = vmatprep.subr.bf16.mxu0 0
    %988 = vmatpush1.bf16.msra.mxu0 0
    %989 = vmatprep.subr.bf16.mxu0 0
    %990 = vmatpush1.bf16.msra.mxu0 0
    %991 = vmatprep.subr.bf16.mxu0 0
    %992 = vmatpush1.bf16.msra.mxu0 0
    %993 = vmatprep.mubr.bf16.mxu0 0
    %994 = vmatmul.mubr.bf16.gmra.mrb[0].mxu0 %v956
    %v995 = vpop.f32.mrb[0].mxu0
    %v996 = vadd.f32 0.0, %v995
    %v997 = vpop.f32.mrb[0].mxu0
    %v998 = vpop.f32.mrb[0].mxu0
    %v999 = vpop.f32.mrb[0].mxu0
    %1000 = vdwg.mxu0
    %v1001 = vpack.c.bf16 %v996, %v950
    %v1002 = vld [vmem:[#allocation5 + $0x3c] sm:$0xf]
    %v1004 = vsel %vm365, %v1001, 0
    %v1007 = vsel %vm485, %v1002, 0
    %1009 = vmatprep.subr.bf16.mxu0 0
    %1010 = vmatpush1.bf16.msra.mxu0 %v1007
    %1011 = vmatprep.subr.bf16.mxu0 0
    %1012 = vmatpush1.bf16.msra.mxu0 0
    %1013 = vmatprep.subr.bf16.mxu0 0
    %1014 = vmatpush1.bf16.msra.mxu0 0
    %1015 = vmatprep.subr.bf16.mxu0 0
    %1016 = vmatpush1.bf16.msra.mxu0 0
    %1017 = vmatprep.subr.bf16.mxu0 0
    %1018 = vmatpush1.bf16.msra.mxu0 0
    %1019 = vmatprep.subr.bf16.mxu0 0
    %1020 = vmatpush1.bf16.msra.mxu0 0
    %1021 = vmatprep.subr.bf16.mxu0 0
    %1022 = vmatpush1.bf16.msra.mxu0 0
    %1023 = vmatprep.subr.bf16.mxu0 0
    %1024 = vmatpush1.bf16.msra.mxu0 0
    %1025 = vmatprep.subr.bf16.mxu0 0
    %1026 = vmatpush1.bf16.msra.mxu0 0
    %1027 = vmatprep.subr.bf16.mxu0 0
    %1028 = vmatpush1.bf16.msra.mxu0 0
    %1029 = vmatprep.subr.bf16.mxu0 0
    %1030 = vmatpush1.bf16.msra.mxu0 0
    %1031 = vmatprep.subr.bf16.mxu0 0
    %1032 = vmatpush1.bf16.msra.mxu0 0
    %1033 = vmatprep.subr.bf16.mxu0 0
    %1034 = vmatpush1.bf16.msra.mxu0 0
    %1035 = vmatprep.subr.bf16.mxu0 0
    %1036 = vmatpush1.bf16.msra.mxu0 0
    %1037 = vmatprep.subr.bf16.mxu0 0
    %1038 = vmatpush1.bf16.msra.mxu0 0
    %1039 = vmatprep.subr.bf16.mxu0 0
    %1040 = vmatpush1.bf16.msra.mxu0 0
    %1041 = vmatprep.mubr.bf16.mxu0 0
    %1042 = vmatmul.mubr.bf16.gmra.mrb[0].mxu0 %v1004
    %v1043 = vpop.f32.mrb[0].mxu0
    %v1044 = vadd.f32 0.0, %v1043
    %v1045 = vpop.f32.mrb[0].mxu0
    %v1046 = vpop.f32.mrb[0].mxu0
    %v1047 = vadd.f32 0.0, %v1046
    %v1048 = vpop.f32.mrb[0].mxu0
    %1049 = vdwg.mxu0
    %v1051 = vsel %vm365, %v575, 0
    %v1054 = vsel %vm485, %v576, 0
    %1056 = vmatprep.subr.bf16.mxu0 0
    %1057 = vmatpush1.bf16.msra.mxu0 %v1054
    %1058 = vmatprep.subr.bf16.mxu0 0
    %1059 = vmatpush1.bf16.msra.mxu0 0
    %1060 = vmatprep.subr.bf16.mxu0 0
    %1061 = vmatpush1.bf16.msra.mxu0 0
    %1062 = vmatprep.subr.bf16.mxu0 0
    %1063 = vmatpush1.bf16.msra.mxu0 0
    %1064 = vmatprep.subr.bf16.mxu0 0
    %1065 = vmatpush1.bf16.msra.mxu0 0
    %1066 = vmatprep.subr.bf16.mxu0 0
    %1067 = vmatpush1.bf16.msra.mxu0 0
    %1068 = vmatprep.subr.bf16.mxu0 0
    %1069 = vmatpush1.bf16.msra.mxu0 0
    %1070 = vmatprep.subr.bf16.mxu0 0
    %1071 = vmatpush1.bf16.msra.mxu0 0
    %1072 = vmatprep.subr.bf16.mxu0 0
    %1073 = vmatpush1.bf16.msra.mxu0 0
    %1074 = vmatprep.subr.bf16.mxu0 0
    %1075 = vmatpush1.bf16.msra.mxu0 0
    %1076 = vmatprep.subr.bf16.mxu0 0
    %1077 = vmatpush1.bf16.msra.mxu0 0
    %1078 = vmatprep.subr.bf16.mxu0 0
    %1079 = vmatpush1.bf16.msra.mxu0 0
    %1080 = vmatprep.subr.bf16.mxu0 0
    %1081 = vmatpush1.bf16.msra.mxu0 0
    %1082 = vmatprep.subr.bf16.mxu0 0
    %1083 = vmatpush1.bf16.msra.mxu0 0
    %1084 = vmatprep.subr.bf16.mxu0 0
    %1085 = vmatpush1.bf16.msra.mxu0 0
    %1086 = vmatprep.subr.bf16.mxu0 0
    %1087 = vmatpush1.bf16.msra.mxu0 0
    %1088 = vmatprep.mubr.bf16.mxu0 0
    %1089 = vmatmul.mubr.bf16.gmra.mrb[0].mxu0 %v1051
    %v1090 = vpop.f32.mrb[0].mxu0
    %v1091 = vadd.f32 %v1044, %v1090
    %v1092 = vpop.f32.mrb[0].mxu0
    %v1093 = vpop.f32.mrb[0].mxu0
    %v1094 = vadd.f32 %v1047, %v1093
    %v1095 = vpop.f32.mrb[0].mxu0
    %1096 = vdwg.mxu0
    %v1097 = vld [vmem:[#allocation5 + $0x8] sm:$0xf]
    %v1098 = vld [vmem:[#allocation5 + $0xc] sm:$0xf]
    %v1099 = vld [vmem:[#allocation5 + $0x10] sm:$0xf]
    %v1100 = vld [vmem:[#allocation5 + $0x14] sm:$0xf]
    %v1101 = vld [vmem:[#allocation7 + $0xb] sm:$0x1]
    %v1102 = vlaneseq
    %v1103 = vshrl.u32 %v1102, 7
    %v1104 = vsub.s32 0, %v1103
    %v1105 = vrot.slane %v1101, %v1104
    %v1110 = vunpack.c.l.b16 %v1097
    %v1111 = vunpack.c.l.b16 %v1098
    %v1112 = vunpack.c.l.b16 %v1099
    %v1113 = vunpack.c.l.b16 %v1100
    %v1114 = vpack.c.b16 %v1111, %v1110
    %v1115 = vpack.c.b16 %v1113, %v1112
    %1116 = vrot.lane.b32.xlu0 %v1114, 112
    %v1117 = vpop.permute.xlu0 %1116
    %1118 = vrot.lane.b32.xlu0 %v1115, 112
    %v1119 = vpop.permute.xlu0 %1118
    %1123 = vrot.lane.b32.xlu0 %v1105, 112
    %v1124 = vpop.permute.xlu0 %1123
    %1126 = vmatprep.subr.bf16.mxu0 0
    %1127 = vmatpush1.bf16.msra.mxu0 %v1117
    %1128 = vmatprep.subr.bf16.mxu0 0
    %1129 = vmatpush1.bf16.msra.mxu0 %v1119
    %1130 = vmatprep.subr.bf16.mxu0 0
    %1131 = vmatpush1.bf16.msra.mxu0 0
    %1132 = vmatprep.subr.bf16.mxu0 0
    %1133 = vmatpush1.bf16.msra.mxu0 0
    %1134 = vmatprep.subr.bf16.mxu0 0
    %1135 = vmatpush1.bf16.msra.mxu0 0
    %1136 = vmatprep.subr.bf16.mxu0 0
    %1137 = vmatpush1.bf16.msra.mxu0 0
    %1138 = vmatprep.subr.bf16.mxu0 0
    %1139 = vmatpush1.bf16.msra.mxu0 0
    %1140 = vmatprep.subr.bf16.mxu0 0
    %1141 = vmatpush1.bf16.msra.mxu0 0
    %1142 = vmatprep.subr.bf16.mxu0 0
    %1143 = vmatpush1.bf16.msra.mxu0 0
    %1144 = vmatprep.subr.bf16.mxu0 0
    %1145 = vmatpush1.bf16.msra.mxu0 0
    %1146 = vmatprep.subr.bf16.mxu0 0
    %1147 = vmatpush1.bf16.msra.mxu0 0
    %1148 = vmatprep.subr.bf16.mxu0 0
    %1149 = vmatpush1.bf16.msra.mxu0 0
    %1150 = vmatprep.subr.bf16.mxu0 0
    %1151 = vmatpush1.bf16.msra.mxu0 0
    %1152 = vmatprep.subr.bf16.mxu0 0
    %1153 = vmatpush1.bf16.msra.mxu0 0
    %1154 = vmatprep.subr.bf16.mxu0 0
    %1155 = vmatpush1.bf16.msra.mxu0 0
    %1156 = vmatprep.subr.bf16.mxu0 0
    %1157 = vmatpush1.bf16.msra.mxu0 0
    %1158 = vmatprep.mubr.bf16.mxu0 0
    %1159 = vmatmul.mubr.bf16.gmra.mrb[0].mxu0 %v192
    %v1160 = vpop.f32.mrb[0].mxu0
    %v1161 = vadd.f32 %v1124, %v1160
    %v1162 = vpop.f32.mrb[0].mxu0
    %v1163 = vpop.f32.mrb[0].mxu0
    %v1164 = vadd.f32 %v1124, %v1163
    %v1165 = vpop.f32.mrb[0].mxu0
    %1166 = vdwg.mxu0
    %v1167 = vld [vmem:[#allocation5 + $0x18] sm:$0xf]
    %v1168 = vld [vmem:[#allocation5 + $0x1c] sm:$0xf]
    %v1169 = vld [vmem:[#allocation5 + $0x20] sm:$0xf]
    %v1170 = vld [vmem:[#allocation5 + $0x24] sm:$0xf]
    %v1171 = vld [vmem:[#allocation7 + $0xc] sm:$0x1]
    %v1172 = vlaneseq
    %v1173 = vshrl.u32 %v1172, 7
    %v1174 = vsub.s32 0, %v1173
    %v1175 = vrot.slane %v1171, %v1174
    %v1180 = vunpack.c.l.b16 %v1167
    %v1181 = vunpack.c.l.b16 %v1168
    %v1182 = vunpack.c.l.b16 %v1169
    %v1183 = vunpack.c.l.b16 %v1170
    %v1184 = vpack.c.b16 %v1181, %v1180
    %v1185 = vpack.c.b16 %v1183, %v1182
    %1186 = vrot.lane.b32.xlu0 %v1184, 112
    %v1187 = vpop.permute.xlu0 %1186
    %1188 = vrot.lane.b32.xlu0 %v1185, 112
    %v1189 = vpop.permute.xlu0 %1188
    %1193 = vrot.lane.b32.xlu0 %v1175, 112
    %v1194 = vpop.permute.xlu0 %1193
    %1196 = vmatprep.subr.bf16.mxu0 0
    %1197 = vmatpush1.bf16.msra.mxu0 %v1187
    %1198 = vmatprep.subr.bf16.mxu0 0
    %1199 = vmatpush1.bf16.msra.mxu0 %v1189
    %1200 = vmatprep.subr.bf16.mxu0 0
    %1201 = vmatpush1.bf16.msra.mxu0 0
    %1202 = vmatprep.subr.bf16.mxu0 0
    %1203 = vmatpush1.bf16.msra.mxu0 0
    %1204 = vmatprep.subr.bf16.mxu0 0
    %1205 = vmatpush1.bf16.msra.mxu0 0
    %1206 = vmatprep.subr.bf16.mxu0 0
    %1207 = vmatpush1.bf16.msra.mxu0 0
    %1208 = vmatprep.subr.bf16.mxu0 0
    %1209 = vmatpush1.bf16.msra.mxu0 0
    %1210 = vmatprep.subr.bf16.mxu0 0
    %1211 = vmatpush1.bf16.msra.mxu0 0
    %1212 = vmatprep.subr.bf16.mxu0 0
    %1213 = vmatpush1.bf16.msra.mxu0 0
    %1214 = vmatprep.subr.bf16.mxu0 0
    %1215 = vmatpush1.bf16.msra.mxu0 0
    %1216 = vmatprep.subr.bf16.mxu0 0
    %1217 = vmatpush1.bf16.msra.mxu0 0
    %1218 = vmatprep.subr.bf16.mxu0 0
    %1219 = vmatpush1.bf16.msra.mxu0 0
    %1220 = vmatprep.subr.bf16.mxu0 0
    %1221 = vmatpush1.bf16.msra.mxu0 0
    %1222 = vmatprep.subr.bf16.mxu0 0
    %1223 = vmatpush1.bf16.msra.mxu0 0
    %1224 = vmatprep.subr.bf16.mxu0 0
    %1225 = vmatpush1.bf16.msra.mxu0 0
    %1226 = vmatprep.subr.bf16.mxu0 0
    %1227 = vmatpush1.bf16.msra.mxu0 0
    %1228 = vmatprep.mubr.bf16.mxu0 0
    %1229 = vmatmul.mubr.bf16.gmra.mrb[0].mxu0 %v192
    %v1230 = vpop.f32.mrb[0].mxu0
    %v1231 = vadd.f32 %v1194, %v1230
    %v1232 = vpop.f32.mrb[0].mxu0
    %v1233 = vpop.f32.mrb[0].mxu0
    %v1234 = vadd.f32 %v1194, %v1233
    %v1235 = vpop.f32.mrb[0].mxu0
    %1236 = vdwg.mxu0
    %v1237 = vld [vmem:[#allocation5 + $0x28] sm:$0xf]
    %v1238 = vld [vmem:[#allocation5 + $0x2c] sm:$0xf]
    %v1239 = vld [vmem:[#allocation5 + $0x30] sm:$0xf]
    %v1240 = vld [vmem:[#allocation5 + $0x34] sm:$0xf]
    %v1241 = vld [vmem:[#allocation7 + $0xd] sm:$0x1]
    %v1242 = vlaneseq
    %v1243 = vshrl.u32 %v1242, 7
    %v1244 = vsub.s32 0, %v1243
    %v1245 = vrot.slane %v1241, %v1244
    %v1250 = vunpack.c.l.b16 %v1237
    %v1251 = vunpack.c.l.b16 %v1238
    %v1252 = vunpack.c.l.b16 %v1239
    %v1253 = vunpack.c.l.b16 %v1240
    %v1254 = vpack.c.b16 %v1251, %v1250
    %v1255 = vpack.c.b16 %v1253, %v1252
    %1256 = vrot.lane.b32.xlu0 %v1254, 112
    %v1257 = vpop.permute.xlu0 %1256
    %1258 = vrot.lane.b32.xlu0 %v1255, 112
    %v1259 = vpop.permute.xlu0 %1258
    %1263 = vrot.lane.b32.xlu0 %v1245, 112
    %v1264 = vpop.permute.xlu0 %1263
    %1266 = vmatprep.subr.bf16.mxu0 0
    %1267 = vmatpush1.bf16.msra.mxu0 %v1257
    %1268 = vmatprep.subr.bf16.mxu0 0
    %1269 = vmatpush1.bf16.msra.mxu0 %v1259
    %1270 = vmatprep.subr.bf16.mxu0 0
    %1271 = vmatpush1.bf16.msra.mxu0 0
    %1272 = vmatprep.subr.bf16.mxu0 0
    %1273 = vmatpush1.bf16.msra.mxu0 0
    %1274 = vmatprep.subr.bf16.mxu0 0
    %1275 = vmatpush1.bf16.msra.mxu0 0
    %1276 = vmatprep.subr.bf16.mxu0 0
    %1277 = vmatpush1.bf16.msra.mxu0 0
    %1278 = vmatprep.subr.bf16.mxu0 0
    %1279 = vmatpush1.bf16.msra.mxu0 0
    %1280 = vmatprep.subr.bf16.mxu0 0
    %1281 = vmatpush1.bf16.msra.mxu0 0
    %1282 = vmatprep.subr.bf16.mxu0 0
    %1283 = vmatpush1.bf16.msra.mxu0 0
    %1284 = vmatprep.subr.bf16.mxu0 0
    %1285 = vmatpush1.bf16.msra.mxu0 0
    %1286 = vmatprep.subr.bf16.mxu0 0
    %1287 = vmatpush1.bf16.msra.mxu0 0
    %1288 = vmatprep.subr.bf16.mxu0 0
    %1289 = vmatpush1.bf16.msra.mxu0 0
    %1290 = vmatprep.subr.bf16.mxu0 0
    %1291 = vmatpush1.bf16.msra.mxu0 0
    %1292 = vmatprep.subr.bf16.mxu0 0
    %1293 = vmatpush1.bf16.msra.mxu0 0
    %1294 = vmatprep.subr.bf16.mxu0 0
    %1295 = vmatpush1.bf16.msra.mxu0 0
    %1296 = vmatprep.subr.bf16.mxu0 0
    %1297 = vmatpush1.bf16.msra.mxu0 0
    %1298 = vmatprep.mubr.bf16.mxu0 0
    %1299 = vmatmul.mubr.bf16.gmra.mrb[0].mxu0 %v192
    %v1300 = vpop.f32.mrb[0].mxu0
    %v1301 = vadd.f32 %v1264, %v1300
    %v1302 = vpop.f32.mrb[0].mxu0
    %v1303 = vpop.f32.mrb[0].mxu0
    %v1304 = vadd.f32 %v1264, %v1303
    %v1305 = vpop.f32.mrb[0].mxu0
    %1306 = vdwg.mxu0
    %v1307 = vpack.c.bf16 %v1161, %v1161
    %v1308 = vpack.c.bf16 %v1164, %v1164
    %v1309 = vpack.c.bf16 %v1231, %v1231
    %v1310 = vpack.c.bf16 %v1234, %v1234
    %v1311 = vpack.c.bf16 %v1301, %v1301
    %v1312 = vpack.c.bf16 %v1304, %v1304
    %v1314 = vsel %vm365, %v1307, 0
    %v1317 = vsel %vm365, %v1309, 0
    %1319 = vmatprep.subr.bf16.mxu0 0
    %1320 = vmatpush1.bf16.xpose.msra.mxu0 %v1317
    %1321 = vmatprep.subr.bf16.mxu0 0
    %1322 = vmatpush1.bf16.xpose.msra.mxu0 0
    %1323 = vmatprep.subr.bf16.mxu0 0
    %1324 = vmatpush1.bf16.xpose.msra.mxu0 0
    %1325 = vmatprep.subr.bf16.mxu0 0
    %1326 = vmatpush1.bf16.xpose.msra.mxu0 0
    %1327 = vmatprep.subr.bf16.mxu0 0
    %1328 = vmatpush1.bf16.xpose.msra.mxu0 0
    %1329 = vmatprep.subr.bf16.mxu0 0
    %1330 = vmatpush1.bf16.xpose.msra.mxu0 0
    %1331 = vmatprep.subr.bf16.mxu0 0
    %1332 = vmatpush1.bf16.xpose.msra.mxu0 0
    %1333 = vmatprep.subr.bf16.mxu0 0
    %1334 = vmatpush1.bf16.xpose.msra.mxu0 0
    %1335 = vmatprep.subr.bf16.mxu0 0
    %1336 = vmatpush1.bf16.xpose.msra.mxu0 0
    %1337 = vmatprep.subr.bf16.mxu0 0
    %1338 = vmatpush1.bf16.xpose.msra.mxu0 0
    %1339 = vmatprep.subr.bf16.mxu0 0
    %1340 = vmatpush1.bf16.xpose.msra.mxu0 0
    %1341 = vmatprep.subr.bf16.mxu0 0
    %1342 = vmatpush1.bf16.xpose.msra.mxu0 0
    %1343 = vmatprep.subr.bf16.mxu0 0
    %1344 = vmatpush1.bf16.xpose.msra.mxu0 0
    %1345 = vmatprep.subr.bf16.mxu0 0
    %1346 = vmatpush1.bf16.xpose.msra.mxu0 0
    %1347 = vmatprep.subr.bf16.mxu0 0
    %1348 = vmatpush1.bf16.xpose.msra.mxu0 0
    %1349 = vmatprep.subr.bf16.mxu0 0
    %1350 = vmatpush1.bf16.xpose.msra.mxu0 0
    %1351 = vmatprep.mubr.bf16.mxu0 0
    %1352 = vmatmul.mubr.bf16.gmra.mrb[0].mxu0 %v1314
    %v1353 = vpop.f32.mrb[0].mxu0
    %v1354 = vadd.f32 0.0, %v1353
    %v1355 = vpop.f32.mrb[0].mxu0
    %v1356 = vpop.f32.mrb[0].mxu0
    %v1357 = vpop.f32.mrb[0].mxu0
    %1358 = vdwg.mxu0
    %v1360 = vsel %vm365, %v1308, 0
    %v1363 = vsel %vm365, %v1310, 0
    %1365 = vmatprep.subr.bf16.mxu0 0
    %1366 = vmatpush1.bf16.xpose.msra.mxu0 %v1363
    %1367 = vmatprep.subr.bf16.mxu0 0
    %1368 = vmatpush1.bf16.xpose.msra.mxu0 0
    %1369 = vmatprep.subr.bf16.mxu0 0
    %1370 = vmatpush1.bf16.xpose.msra.mxu0 0
    %1371 = vmatprep.subr.bf16.mxu0 0
    %1372 = vmatpush1.bf16.xpose.msra.mxu0 0
    %1373 = vmatprep.subr.bf16.mxu0 0
    %1374 = vmatpush1.bf16.xpose.msra.mxu0 0
    %1375 = vmatprep.subr.bf16.mxu0 0
    %1376 = vmatpush1.bf16.xpose.msra.mxu0 0
    %1377 = vmatprep.subr.bf16.mxu0 0
    %1378 = vmatpush1.bf16.xpose.msra.mxu0 0
    %1379 = vmatprep.subr.bf16.mxu0 0
    %1380 = vmatpush1.bf16.xpose.msra.mxu0 0
    %1381 = vmatprep.subr.bf16.mxu0 0
    %1382 = vmatpush1.bf16.xpose.msra.mxu0 0
    %1383 = vmatprep.subr.bf16.mxu0 0
    %1384 = vmatpush1.bf16.xpose.msra.mxu0 0
    %1385 = vmatprep.subr.bf16.mxu0 0
    %1386 = vmatpush1.bf16.xpose.msra.mxu0 0
    %1387 = vmatprep.subr.bf16.mxu0 0
    %1388 = vmatpush1.bf16.xpose.msra.mxu0 0
    %1389 = vmatprep.subr.bf16.mxu0 0
    %1390 = vmatpush1.bf16.xpose.msra.mxu0 0
    %1391 = vmatprep.subr.bf16.mxu0 0
    %1392 = vmatpush1.bf16.xpose.msra.mxu0 0
    %1393 = vmatprep.subr.bf16.mxu0 0
    %1394 = vmatpush1.bf16.xpose.msra.mxu0 0
    %1395 = vmatprep.subr.bf16.mxu0 0
    %1396 = vmatpush1.bf16.xpose.msra.mxu0 0
    %1397 = vmatprep.mubr.bf16.mxu0 0
    %1398 = vmatmul.mubr.bf16.gmra.mrb[0].mxu0 %v1360
    %v1399 = vpop.f32.mrb[0].mxu0
    %v1400 = vadd.f32 0.0, %v1399
    %v1401 = vpop.f32.mrb[0].mxu0
    %v1402 = vpop.f32.mrb[0].mxu0
    %v1403 = vpop.f32.mrb[0].mxu0
    %1404 = vdwg.mxu0
    %v1405 = vsel %vm365, %v1354, -inf
    %1406 = vmax.xlane.f32.xlu0 %v1405
    %v1407 = vpop.xlane.xlu0 %1406
    %v1408 = vsel %vm365, %v1400, -inf
    %1409 = vmax.xlane.f32.xlu0 %v1408
    %v1410 = vpop.xlane.xlu0 %1409
    %v1411 = vsub.f32 %v1354, %v1407
    %v1412 = vsub.f32 %v1400, %v1410
    %v1413 = vmul.f32 %v1411, 1.442695
    %v1414 = vpow.pop %v1413
    %v1415 = vmul.f32 %v1412, 1.442695
    %v1416 = vpow.pop %v1415
    %v1417 = vsel %vm365, %v1414, 0.0
    %1418 = vadd.xlane.f32.xlu0 %v1417
    %v1419 = vpop.xlane.xlu0 %1418
    %v1420 = vsel %vm365, %v1416, 0.0
    %1421 = vadd.xlane.f32.xlu0 %v1420
    %v1422 = vpop.xlane.xlu0 %1421
    %v1423 = vrcp.pop %v1419
    %v1424 = vrcp.pop %v1422
    %v1425 = vmul.f32 %v1414, %v1423
    %v1426 = vmul.f32 %v1416, %v1424
    %v1427 = vpack.c.bf16 %v1425, %v1425
    %v1428 = vpack.c.bf16 %v1426, %v1426
    %v1430 = vsel %vm365, %v1427, 0
    %v1433 = vsel %vm485, %v1311, 0
    %1435 = vmatprep.subr.bf16.mxu0 0
    %1436 = vmatpush1.bf16.msra.mxu0 %v1433
    %1437 = vmatprep.subr.bf16.mxu0 0
    %1438 = vmatpush1.bf16.msra.mxu0 0
    %1439 = vmatprep.subr.bf16.mxu0 0
    %1440 = vmatpush1.bf16.msra.mxu0 0
    %1441 = vmatprep.subr.bf16.mxu0 0
    %1442 = vmatpush1.bf16.msra.mxu0 0
    %1443 = vmatprep.subr.bf16.mxu0 0
    %1444 = vmatpush1.bf16.msra.mxu0 0
    %1445 = vmatprep.subr.bf16.mxu0 0
    %1446 = vmatpush1.bf16.msra.mxu0 0
    %1447 = vmatprep.subr.bf16.mxu0 0
    %1448 = vmatpush1.bf16.msra.mxu0 0
    %1449 = vmatprep.subr.bf16.mxu0 0
    %1450 = vmatpush1.bf16.msra.mxu0 0
    %1451 = vmatprep.subr.bf16.mxu0 0
    %1452 = vmatpush1.bf16.msra.mxu0 0
    %1453 = vmatprep.subr.bf16.mxu0 0
    %1454 = vmatpush1.bf16.msra.mxu0 0
    %1455 = vmatprep.subr.bf16.mxu0 0
    %1456 = vmatpush1.bf16.msra.mxu0 0
    %1457 = vmatprep.subr.bf16.mxu0 0
    %1458 = vmatpush1.bf16.msra.mxu0 0
    %1459 = vmatprep.subr.bf16.mxu0 0
    %1460 = vmatpush1.bf16.msra.mxu0 0
    %1461 = vmatprep.subr.bf16.mxu0 0
    %1462 = vmatpush1.bf16.msra.mxu0 0
    %1463 = vmatprep.subr.bf16.mxu0 0
    %1464 = vmatpush1.bf16.msra.mxu0 0
    %1465 = vmatprep.subr.bf16.mxu0 0
    %1466 = vmatpush1.bf16.msra.mxu0 0
    %1467 = vmatprep.mubr.bf16.mxu0 0
    %1468 = vmatmul.mubr.bf16.gmra.mrb[0].mxu0 %v1430
    %v1469 = vpop.f32.mrb[0].mxu0
    %v1470 = vadd.f32 0.0, %v1469
    %v1471 = vpop.f32.mrb[0].mxu0
    %v1472 = vpop.f32.mrb[0].mxu0
    %v1473 = vpop.f32.mrb[0].mxu0
    %1474 = vdwg.mxu0
    %v1476 = vsel %vm365, %v1428, 0
    %v1479 = vsel %vm485, %v1312, 0
    %1481 = vmatprep.subr.bf16.mxu0 0
    %1482 = vmatpush1.bf16.msra.mxu0 %v1479
    %1483 = vmatprep.subr.bf16.mxu0 0
    %1484 = vmatpush1.bf16.msra.mxu0 0
    %1485 = vmatprep.subr.bf16.mxu0 0
    %1486 = vmatpush1.bf16.msra.mxu0 0
    %1487 = vmatprep.subr.bf16.mxu0 0
    %1488 = vmatpush1.bf16.msra.mxu0 0
    %1489 = vmatprep.subr.bf16.mxu0 0
    %1490 = vmatpush1.bf16.msra.mxu0 0
    %1491 = vmatprep.subr.bf16.mxu0 0
    %1492 = vmatpush1.bf16.msra.mxu0 0
    %1493 = vmatprep.subr.bf16.mxu0 0
    %1494 = vmatpush1.bf16.msra.mxu0 0
    %1495 = vmatprep.subr.bf16.mxu0 0
    %1496 = vmatpush1.bf16.msra.mxu0 0
    %1497 = vmatprep.subr.bf16.mxu0 0
    %1498 = vmatpush1.bf16.msra.mxu0 0
    %1499 = vmatprep.subr.bf16.mxu0 0
    %1500 = vmatpush1.bf16.msra.mxu0 0
    %1501 = vmatprep.subr.bf16.mxu0 0
    %1502 = vmatpush1.bf16.msra.mxu0 0
    %1503 = vmatprep.subr.bf16.mxu0 0
    %1504 = vmatpush1.bf16.msra.mxu0 0
    %1505 = vmatprep.subr.bf16.mxu0 0
    %1506 = vmatpush1.bf16.msra.mxu0 0
    %1507 = vmatprep.subr.bf16.mxu0 0
    %1508 = vmatpush1.bf16.msra.mxu0 0
    %1509 = vmatprep.subr.bf16.mxu0 0
    %1510 = vmatpush1.bf16.msra.mxu0 0
    %1511 = vmatprep.subr.bf16.mxu0 0
    %1512 = vmatpush1.bf16.msra.mxu0 0
    %1513 = vmatprep.mubr.bf16.mxu0 0
    %1514 = vmatmul.mubr.bf16.gmra.mrb[0].mxu0 %v1476
    %v1515 = vpop.f32.mrb[0].mxu0
    %v1516 = vadd.f32 0.0, %v1515
    %v1517 = vpop.f32.mrb[0].mxu0
    %v1518 = vpop.f32.mrb[0].mxu0
    %v1519 = vpop.f32.mrb[0].mxu0
    %1520 = vdwg.mxu0
    %v1521 = vpack.c.bf16 %v1516, %v1470
    %v1522 = vld [vmem:[#allocation5 + $0x40] sm:$0xf]
    %v1524 = vsel %vm365, %v1521, 0
    %v1527 = vsel %vm485, %v1522, 0
    %1529 = vmatprep.subr.bf16.mxu0 0
    %1530 = vmatpush1.bf16.msra.mxu0 %v1527
    %1531 = vmatprep.subr.bf16.mxu0 0
    %1532 = vmatpush1.bf16.msra.mxu0 0
    %1533 = vmatprep.subr.bf16.mxu0 0
    %1534 = vmatpush1.bf16.msra.mxu0 0
    %1535 = vmatprep.subr.bf16.mxu0 0
    %1536 = vmatpush1.bf16.msra.mxu0 0
    %1537 = vmatprep.subr.bf16.mxu0 0
    %1538 = vmatpush1.bf16.msra.mxu0 0
    %1539 = vmatprep.subr.bf16.mxu0 0
    %1540 = vmatpush1.bf16.msra.mxu0 0
    %1541 = vmatprep.subr.bf16.mxu0 0
    %1542 = vmatpush1.bf16.msra.mxu0 0
    %1543 = vmatprep.subr.bf16.mxu0 0
    %1544 = vmatpush1.bf16.msra.mxu0 0
    %1545 = vmatprep.subr.bf16.mxu0 0
    %1546 = vmatpush1.bf16.msra.mxu0 0
    %1547 = vmatprep.subr.bf16.mxu0 0
    %1548 = vmatpush1.bf16.msra.mxu0 0
    %1549 = vmatprep.subr.bf16.mxu0 0
    %1550 = vmatpush1.bf16.msra.mxu0 0
    %1551 = vmatprep.subr.bf16.mxu0 0
    %1552 = vmatpush1.bf16.msra.mxu0 0
    %1553 = vmatprep.subr.bf16.mxu0 0
    %1554 = vmatpush1.bf16.msra.mxu0 0
    %1555 = vmatprep.subr.bf16.mxu0 0
    %1556 = vmatpush1.bf16.msra.mxu0 0
    %1557 = vmatprep.subr.bf16.mxu0 0
    %1558 = vmatpush1.bf16.msra.mxu0 0
    %1559 = vmatprep.subr.bf16.mxu0 0
    %1560 = vmatpush1.bf16.msra.mxu0 0
    %1561 = vmatprep.mubr.bf16.mxu0 0
    %1562 = vmatmul.mubr.bf16.gmra.mrb[0].mxu0 %v1524
    %v1563 = vpop.f32.mrb[0].mxu0
    %v1564 = vadd.f32 0.0, %v1563
    %v1565 = vpop.f32.mrb[0].mxu0
    %v1566 = vpop.f32.mrb[0].mxu0
    %v1567 = vadd.f32 0.0, %v1566
    %v1568 = vpop.f32.mrb[0].mxu0
    %1569 = vdwg.mxu0
    %v1570 = vadd.f32 %v1091, %v1564
    %v1571 = vadd.f32 %v1094, %v1567
    %v1572 = vld [vmem:[#allocation5 + $0x8] sm:$0xf]
    %v1573 = vld [vmem:[#allocation5 + $0xc] sm:$0xf]
    %v1574 = vld [vmem:[#allocation5 + $0x10] sm:$0xf]
    %v1575 = vld [vmem:[#allocation5 + $0x14] sm:$0xf]
    %v1576 = vld [vmem:[#allocation7 + $0xb] sm:$0x1]
    %v1577 = vlaneseq
    %v1578 = vshrl.u32 %v1577, 7
    %v1579 = vsub.s32 0, %v1578
    %v1580 = vrot.slane %v1576, %v1579
    %v1585 = vunpack.c.l.b16 %v1572
    %v1586 = vunpack.c.l.b16 %v1573
    %v1587 = vunpack.c.l.b16 %v1574
    %v1588 = vunpack.c.l.b16 %v1575
    %v1589 = vpack.c.b16 %v1586, %v1585
    %v1590 = vpack.c.b16 %v1588, %v1587
    %1591 = vrot.lane.b32.xlu0 %v1589, 104
    %v1592 = vpop.permute.xlu0 %1591
    %1593 = vrot.lane.b32.xlu0 %v1590, 104
    %v1594 = vpop.permute.xlu0 %1593
    %1598 = vrot.lane.b32.xlu0 %v1580, 104
    %v1599 = vpop.permute.xlu0 %1598
    %1601 = vmatprep.subr.bf16.mxu0 0
    %1602 = vmatpush1.bf16.msra.mxu0 %v1592
    %1603 = vmatprep.subr.bf16.mxu0 0
    %1604 = vmatpush1.bf16.msra.mxu0 %v1594
    %1605 = vmatprep.subr.bf16.mxu0 0
    %1606 = vmatpush1.bf16.msra.mxu0 0
    %1607 = vmatprep.subr.bf16.mxu0 0
    %1608 = vmatpush1.bf16.msra.mxu0 0
    %1609 = vmatprep.subr.bf16.mxu0 0
    %1610 = vmatpush1.bf16.msra.mxu0 0
    %1611 = vmatprep.subr.bf16.mxu0 0
    %1612 = vmatpush1.bf16.msra.mxu0 0
    %1613 = vmatprep.subr.bf16.mxu0 0
    %1614 = vmatpush1.bf16.msra.mxu0 0
    %1615 = vmatprep.subr.bf16.mxu0 0
    %1616 = vmatpush1.bf16.msra.mxu0 0
    %1617 = vmatprep.subr.bf16.mxu0 0
    %1618 = vmatpush1.bf16.msra.mxu0 0
    %1619 = vmatprep.subr.bf16.mxu0 0
    %1620 = vmatpush1.bf16.msra.mxu0 0
    %1621 = vmatprep.subr.bf16.mxu0 0
    %1622 = vmatpush1.bf16.msra.mxu0 0
    %1623 = vmatprep.subr.bf16.mxu0 0
    %1624 = vmatpush1.bf16.msra.mxu0 0
    %1625 = vmatprep.subr.bf16.mxu0 0
    %1626 = vmatpush1.bf16.msra.mxu0 0
    %1627 = vmatprep.subr.bf16.mxu0 0
    %1628 = vmatpush1.bf16.msra.mxu0 0
    %1629 = vmatprep.subr.bf16.mxu0 0
    %1630 = vmatpush1.bf16.msra.mxu0 0
    %1631 = vmatprep.subr.bf16.mxu0 0
    %1632 = vmatpush1.bf16.msra.mxu0 0
    %1633 = vmatprep.mubr.bf16.mxu0 0
    %1634 = vmatmul.mubr.bf16.gmra.mrb[0].mxu0 %v192
    %v1635 = vpop.f32.mrb[0].mxu0
    %v1636 = vadd.f32 %v1599, %v1635
    %v1637 = vpop.f32.mrb[0].mxu0
    %v1638 = vpop.f32.mrb[0].mxu0
    %v1639 = vadd.f32 %v1599, %v1638
    %v1640 = vpop.f32.mrb[0].mxu0
    %1641 = vdwg.mxu0
    %v1642 = vld [vmem:[#allocation5 + $0x18] sm:$0xf]
    %v1643 = vld [vmem:[#allocation5 + $0x1c] sm:$0xf]
    %v1644 = vld [vmem:[#allocation5 + $0x20] sm:$0xf]
    %v1645 = vld [vmem:[#allocation5 + $0x24] sm:$0xf]
    %v1646 = vld [vmem:[#allocation7 + $0xc] sm:$0x1]
    %v1647 = vlaneseq
    %v1648 = vshrl.u32 %v1647, 7
    %v1649 = vsub.s32 0, %v1648
    %v1650 = vrot.slane %v1646, %v1649
    %v1655 = vunpack.c.l.b16 %v1642
    %v1656 = vunpack.c.l.b16 %v1643
    %v1657 = vunpack.c.l.b16 %v1644
    %v1658 = vunpack.c.l.b16 %v1645
    %v1659 = vpack.c.b16 %v1656, %v1655
    %v1660 = vpack.c.b16 %v1658, %v1657
    %1661 = vrot.lane.b32.xlu0 %v1659, 104
    %v1662 = vpop.permute.xlu0 %1661
    %1663 = vrot.lane.b32.xlu0 %v1660, 104
    %v1664 = vpop.permute.xlu0 %1663
    %1668 = vrot.lane.b32.xlu0 %v1650, 104
    %v1669 = vpop.permute.xlu0 %1668
    %1671 = vmatprep.subr.bf16.mxu0 0
    %1672 = vmatpush1.bf16.msra.mxu0 %v1662
    %1673 = vmatprep.subr.bf16.mxu0 0
    %1674 = vmatpush1.bf16.msra.mxu0 %v1664
    %1675 = vmatprep.subr.bf16.mxu0 0
    %1676 = vmatpush1.bf16.msra.mxu0 0
    %1677 = vmatprep.subr.bf16.mxu0 0
    %1678 = vmatpush1.bf16.msra.mxu0 0
    %1679 = vmatprep.subr.bf16.mxu0 0
    %1680 = vmatpush1.bf16.msra.mxu0 0
    %1681 = vmatprep.subr.bf16.mxu0 0
    %1682 = vmatpush1.bf16.msra.mxu0 0
    %1683 = vmatprep.subr.bf16.mxu0 0
    %1684 = vmatpush1.bf16.msra.mxu0 0
    %1685 = vmatprep.subr.bf16.mxu0 0
    %1686 = vmatpush1.bf16.msra.mxu0 0
    %1687 = vmatprep.subr.bf16.mxu0 0
    %1688 = vmatpush1.bf16.msra.mxu0 0
    %1689 = vmatprep.subr.bf16.mxu0 0
    %1690 = vmatpush1.bf16.msra.mxu0 0
    %1691 = vmatprep.subr.bf16.mxu0 0
    %1692 = vmatpush1.bf16.msra.mxu0 0
    %1693 = vmatprep.subr.bf16.mxu0 0
    %1694 = vmatpush1.bf16.msra.mxu0 0
    %1695 = vmatprep.subr.bf16.mxu0 0
    %1696 = vmatpush1.bf16.msra.mxu0 0
    %1697 = vmatprep.subr.bf16.mxu0 0
    %1698 = vmatpush1.bf16.msra.mxu0 0
    %1699 = vmatprep.subr.bf16.mxu0 0
    %1700 = vmatpush1.bf16.msra.mxu0 0
    %1701 = vmatprep.subr.bf16.mxu0 0
    %1702 = vmatpush1.bf16.msra.mxu0 0
    %1703 = vmatprep.mubr.bf16.mxu0 0
    %1704 = vmatmul.mubr.bf16.gmra.mrb[0].mxu0 %v192
    %v1705 = vpop.f32.mrb[0].mxu0
    %v1706 = vadd.f32 %v1669, %v1705
    %v1707 = vpop.f32.mrb[0].mxu0
    %v1708 = vpop.f32.mrb[0].mxu0
    %v1709 = vadd.f32 %v1669, %v1708
    %v1710 = vpop.f32.mrb[0].mxu0
    %1711 = vdwg.mxu0
    %v1712 = vld [vmem:[#allocation5 + $0x28] sm:$0xf]
    %v1713 = vld [vmem:[#allocation5 + $0x2c] sm:$0xf]
    %v1714 = vld [vmem:[#allocation5 + $0x30] sm:$0xf]
    %v1715 = vld [vmem:[#allocation5 + $0x34] sm:$0xf]
    %v1716 = vld [vmem:[#allocation7 + $0xd] sm:$0x1]
    %v1717 = vlaneseq
    %v1718 = vshrl.u32 %v1717, 7
    %v1719 = vsub.s32 0, %v1718
    %v1720 = vrot.slane %v1716, %v1719
    %v1725 = vunpack.c.l.b16 %v1712
    %v1726 = vunpack.c.l.b16 %v1713
    %v1727 = vunpack.c.l.b16 %v1714
    %v1728 = vunpack.c.l.b16 %v1715
    %v1729 = vpack.c.b16 %v1726, %v1725
    %v1730 = vpack.c.b16 %v1728, %v1727
    %1731 = vrot.lane.b32.xlu0 %v1729, 104
    %v1732 = vpop.permute.xlu0 %1731
    %1733 = vrot.lane.b32.xlu0 %v1730, 104
    %v1734 = vpop.permute.xlu0 %1733
    %1738 = vrot.lane.b32.xlu0 %v1720, 104
    %v1739 = vpop.permute.xlu0 %1738
    %1741 = vmatprep.subr.bf16.mxu0 0
    %1742 = vmatpush1.bf16.msra.mxu0 %v1732
    %1743 = vmatprep.subr.bf16.mxu0 0
    %1744 = vmatpush1.bf16.msra.mxu0 %v1734
    %1745 = vmatprep.subr.bf16.mxu0 0
    %1746 = vmatpush1.bf16.msra.mxu0 0
    %1747 = vmatprep.subr.bf16.mxu0 0
    %1748 = vmatpush1.bf16.msra.mxu0 0
    %1749 = vmatprep.subr.bf16.mxu0 0
    %1750 = vmatpush1.bf16.msra.mxu0 0
    %1751 = vmatprep.subr.bf16.mxu0 0
    %1752 = vmatpush1.bf16.msra.mxu0 0
    %1753 = vmatprep.subr.bf16.mxu0 0
    %1754 = vmatpush1.bf16.msra.mxu0 0
    %1755 = vmatprep.subr.bf16.mxu0 0
    %1756 = vmatpush1.bf16.msra.mxu0 0
    %1757 = vmatprep.subr.bf16.mxu0 0
    %1758 = vmatpush1.bf16.msra.mxu0 0
    %1759 = vmatprep.subr.bf16.mxu0 0
    %1760 = vmatpush1.bf16.msra.mxu0 0
    %1761 = vmatprep.subr.bf16.mxu0 0
    %1762 = vmatpush1.bf16.msra.mxu0 0
    %1763 = vmatprep.subr.bf16.mxu0 0
    %1764 = vmatpush1.bf16.msra.mxu0 0
    %1765 = vmatprep.subr.bf16.mxu0 0
    %1766 = vmatpush1.bf16.msra.mxu0 0
    %1767 = vmatprep.subr.bf16.mxu0 0
    %1768 = vmatpush1.bf16.msra.mxu0 0
    %1769 = vmatprep.subr.bf16.mxu0 0
    %1770 = vmatpush1.bf16.msra.mxu0 0
    %1771 = vmatprep.subr.bf16.mxu0 0
    %1772 = vmatpush1.bf16.msra.mxu0 0
    %1773 = vmatprep.mubr.bf16.mxu0 0
    %1774 = vmatmul.mubr.bf16.gmra.mrb[0].mxu0 %v192
    %v1775 = vpop.f32.mrb[0].mxu0
    %v1776 = vadd.f32 %v1739, %v1775
    %v1777 = vpop.f32.mrb[0].mxu0
    %v1778 = vpop.f32.mrb[0].mxu0
    %v1779 = vadd.f32 %v1739, %v1778
    %v1780 = vpop.f32.mrb[0].mxu0
    %1781 = vdwg.mxu0
    %v1782 = vpack.c.bf16 %v1636, %v1636
    %v1783 = vpack.c.bf16 %v1639, %v1639
    %v1784 = vpack.c.bf16 %v1706, %v1706
    %v1785 = vpack.c.bf16 %v1709, %v1709
    %v1786 = vpack.c.bf16 %v1776, %v1776
    %v1787 = vpack.c.bf16 %v1779, %v1779
    %v1789 = vsel %vm365, %v1782, 0
    %v1792 = vsel %vm365, %v1784, 0
    %1794 = vmatprep.subr.bf16.mxu0 0
    %1795 = vmatpush1.bf16.xpose.msra.mxu0 %v1792
    %1796 = vmatprep.subr.bf16.mxu0 0
    %1797 = vmatpush1.bf16.xpose.msra.mxu0 0
    %1798 = vmatprep.subr.bf16.mxu0 0
    %1799 = vmatpush1.bf16.xpose.msra.mxu0 0
    %1800 = vmatprep.subr.bf16.mxu0 0
    %1801 = vmatpush1.bf16.xpose.msra.mxu0 0
    %1802 = vmatprep.subr.bf16.mxu0 0
    %1803 = vmatpush1.bf16.xpose.msra.mxu0 0
    %1804 = vmatprep.subr.bf16.mxu0 0
    %1805 = vmatpush1.bf16.xpose.msra.mxu0 0
    %1806 = vmatprep.subr.bf16.mxu0 0
    %1807 = vmatpush1.bf16.xpose.msra.mxu0 0
    %1808 = vmatprep.subr.bf16.mxu0 0
    %1809 = vmatpush1.bf16.xpose.msra.mxu0 0
    %1810 = vmatprep.subr.bf16.mxu0 0
    %1811 = vmatpush1.bf16.xpose.msra.mxu0 0
    %1812 = vmatprep.subr.bf16.mxu0 0
    %1813 = vmatpush1.bf16.xpose.msra.mxu0 0
    %1814 = vmatprep.subr.bf16.mxu0 0
    %1815 = vmatpush1.bf16.xpose.msra.mxu0 0
    %1816 = vmatprep.subr.bf16.mxu0 0
    %1817 = vmatpush1.bf16.xpose.msra.mxu0 0
    %1818 = vmatprep.subr.bf16.mxu0 0
    %1819 = vmatpush1.bf16.xpose.msra.mxu0 0
    %1820 = vmatprep.subr.bf16.mxu0 0
    %1821 = vmatpush1.bf16.xpose.msra.mxu0 0
    %1822 = vmatprep.subr.bf16.mxu0 0
    %1823 = vmatpush1.bf16.xpose.msra.mxu0 0
    %1824 = vmatprep.subr.bf16.mxu0 0
    %1825 = vmatpush1.bf16.xpose.msra.mxu0 0
    %1826 = vmatprep.mubr.bf16.mxu0 0
    %1827 = vmatmul.mubr.bf16.gmra.mrb[0].mxu0 %v1789
    %v1828 = vpop.f32.mrb[0].mxu0
    %v1829 = vadd.f32 0.0, %v1828
    %v1830 = vpop.f32.mrb[0].mxu0
    %v1831 = vpop.f32.mrb[0].mxu0
    %v1832 = vpop.f32.mrb[0].mxu0
    %1833 = vdwg.mxu0
    %v1835 = vsel %vm365, %v1783, 0
    %v1838 = vsel %vm365, %v1785, 0
    %1840 = vmatprep.subr.bf16.mxu0 0
    %1841 = vmatpush1.bf16.xpose.msra.mxu0 %v1838
    %1842 = vmatprep.subr.bf16.mxu0 0
    %1843 = vmatpush1.bf16.xpose.msra.mxu0 0
    %1844 = vmatprep.subr.bf16.mxu0 0
    %1845 = vmatpush1.bf16.xpose.msra.mxu0 0
    %1846 = vmatprep.subr.bf16.mxu0 0
    %1847 = vmatpush1.bf16.xpose.msra.mxu0 0
    %1848 = vmatprep.subr.bf16.mxu0 0
    %1849 = vmatpush1.bf16.xpose.msra.mxu0 0
    %1850 = vmatprep.subr.bf16.mxu0 0
    %1851 = vmatpush1.bf16.xpose.msra.mxu0 0
    %1852 = vmatprep.subr.bf16.mxu0 0
    %1853 = vmatpush1.bf16.xpose.msra.mxu0 0
    %1854 = vmatprep.subr.bf16.mxu0 0
    %1855 = vmatpush1.bf16.xpose.msra.mxu0 0
    %1856 = vmatprep.subr.bf16.mxu0 0
    %1857 = vmatpush1.bf16.xpose.msra.mxu0 0
    %1858 = vmatprep.subr.bf16.mxu0 0
    %1859 = vmatpush1.bf16.xpose.msra.mxu0 0
    %1860 = vmatprep.subr.bf16.mxu0 0
    %1861 = vmatpush1.bf16.xpose.msra.mxu0 0
    %1862 = vmatprep.subr.bf16.mxu0 0
    %1863 = vmatpush1.bf16.xpose.msra.mxu0 0
    %1864 = vmatprep.subr.bf16.mxu0 0
    %1865 = vmatpush1.bf16.xpose.msra.mxu0 0
    %1866 = vmatprep.subr.bf16.mxu0 0
    %1867 = vmatpush1.bf16.xpose.msra.mxu0 0
    %1868 = vmatprep.subr.bf16.mxu0 0
    %1869 = vmatpush1.bf16.xpose.msra.mxu0 0
    %1870 = vmatprep.subr.bf16.mxu0 0
    %1871 = vmatpush1.bf16.xpose.msra.mxu0 0
    %1872 = vmatprep.mubr.bf16.mxu0 0
    %1873 = vmatmul.mubr.bf16.gmra.mrb[0].mxu0 %v1835
    %v1874 = vpop.f32.mrb[0].mxu0
    %v1875 = vadd.f32 0.0, %v1874
    %v1876 = vpop.f32.mrb[0].mxu0
    %v1877 = vpop.f32.mrb[0].mxu0
    %v1878 = vpop.f32.mrb[0].mxu0
    %1879 = vdwg.mxu0
    %v1880 = vsel %vm365, %v1829, -inf
    %1881 = vmax.xlane.f32.xlu0 %v1880
    %v1882 = vpop.xlane.xlu0 %1881
    %v1883 = vsel %vm365, %v1875, -inf
    %1884 = vmax.xlane.f32.xlu0 %v1883
    %v1885 = vpop.xlane.xlu0 %1884
    %v1886 = vsub.f32 %v1829, %v1882
    %v1887 = vsub.f32 %v1875, %v1885
    %v1888 = vmul.f32 %v1886, 1.442695
    %v1889 = vpow.pop %v1888
    %v1890 = vmul.f32 %v1887, 1.442695
    %v1891 = vpow.pop %v1890
    %v1892 = vsel %vm365, %v1889, 0.0
    %1893 = vadd.xlane.f32.xlu0 %v1892
    %v1894 = vpop.xlane.xlu0 %1893
    %v1895 = vsel %vm365, %v1891, 0.0
    %1896 = vadd.xlane.f32.xlu0 %v1895
    %v1897 = vpop.xlane.xlu0 %1896
    %v1898 = vrcp.pop %v1894
    %v1899 = vrcp.pop %v1897
    %v1900 = vmul.f32 %v1889, %v1898
    %v1901 = vmul.f32 %v1891, %v1899
    %v1902 = vpack.c.bf16 %v1900, %v1900
    %v1903 = vpack.c.bf16 %v1901, %v1901
    %v1905 = vsel %vm365, %v1902, 0
    %v1908 = vsel %vm485, %v1786, 0
    %1910 = vmatprep.subr.bf16.mxu0 0
    %1911 = vmatpush1.bf16.msra.mxu0 %v1908
    %1912 = vmatprep.subr.bf16.mxu0 0
    %1913 = vmatpush1.bf16.msra.mxu0 0
    %1914 = vmatprep.subr.bf16.mxu0 0
    %1915 = vmatpush1.bf16.msra.mxu0 0
    %1916 = vmatprep.subr.bf16.mxu0 0
    %1917 = vmatpush1.bf16.msra.mxu0 0
    %1918 = vmatprep.subr.bf16.mxu0 0
    %1919 = vmatpush1.bf16.msra.mxu0 0
    %1920 = vmatprep.subr.bf16.mxu0 0
    %1921 = vmatpush1.bf16.msra.mxu0 0
    %1922 = vmatprep.subr.bf16.mxu0 0
    %1923 = vmatpush1.bf16.msra.mxu0 0
    %1924 = vmatprep.subr.bf16.mxu0 0
    %1925 = vmatpush1.bf16.msra.mxu0 0
    %1926 = vmatprep.subr.bf16.mxu0 0
    %1927 = vmatpush1.bf16.msra.mxu0 0
    %1928 = vmatprep.subr.bf16.mxu0 0
    %1929 = vmatpush1.bf16.msra.mxu0 0
    %1930 = vmatprep.subr.bf16.mxu0 0
    %1931 = vmatpush1.bf16.msra.mxu0 0
    %1932 = vmatprep.subr.bf16.mxu0 0
    %1933 = vmatpush1.bf16.msra.mxu0 0
    %1934 = vmatprep.subr.bf16.mxu0 0
    %1935 = vmatpush1.bf16.msra.mxu0 0
    %1936 = vmatprep.subr.bf16.mxu0 0
    %1937 = vmatpush1.bf16.msra.mxu0 0
    %1938 = vmatprep.subr.bf16.mxu0 0
    %1939 = vmatpush1.bf16.msra.mxu0 0
    %1940 = vmatprep.subr.bf16.mxu0 0
    %1941 = vmatpush1.bf16.msra.mxu0 0
    %1942 = vmatprep.mubr.bf16.mxu0 0
    %1943 = vmatmul.mubr.bf16.gmra.mrb[0].mxu0 %v1905
    %v1944 = vpop.f32.mrb[0].mxu0
    %v1945 = vadd.f32 0.0, %v1944
    %v1946 = vpop.f32.mrb[0].mxu0
    %v1947 = vpop.f32.mrb[0].mxu0
    %v1948 = vpop.f32.mrb[0].mxu0
    %1949 = vdwg.mxu0
    %v1951 = vsel %vm365, %v1903, 0
    %v1954 = vsel %vm485, %v1787, 0
    %1956 = vmatprep.subr.bf16.mxu0 0
    %1957 = vmatpush1.bf16.msra.mxu0 %v1954
    %1958 = vmatprep.subr.bf16.mxu0 0
    %1959 = vmatpush1.bf16.msra.mxu0 0
    %1960 = vmatprep.subr.bf16.mxu0 0
    %1961 = vmatpush1.bf16.msra.mxu0 0
    %1962 = vmatprep.subr.bf16.mxu0 0
    %1963 = vmatpush1.bf16.msra.mxu0 0
    %1964 = vmatprep.subr.bf16.mxu0 0
    %1965 = vmatpush1.bf16.msra.mxu0 0
    %1966 = vmatprep.subr.bf16.mxu0 0
    %1967 = vmatpush1.bf16.msra.mxu0 0
    %1968 = vmatprep.subr.bf16.mxu0 0
    %1969 = vmatpush1.bf16.msra.mxu0 0
    %1970 = vmatprep.subr.bf16.mxu0 0
    %1971 = vmatpush1.bf16.msra.mxu0 0
    %1972 = vmatprep.subr.bf16.mxu0 0
    %1973 = vmatpush1.bf16.msra.mxu0 0
    %1974 = vmatprep.subr.bf16.mxu0 0
    %1975 = vmatpush1.bf16.msra.mxu0 0
    %1976 = vmatprep.subr.bf16.mxu0 0
    %1977 = vmatpush1.bf16.msra.mxu0 0
    %1978 = vmatprep.subr.bf16.mxu0 0
    %1979 = vmatpush1.bf16.msra.mxu0 0
    %1980 = vmatprep.subr.bf16.mxu0 0
    %1981 = vmatpush1.bf16.msra.mxu0 0
    %1982 = vmatprep.subr.bf16.mxu0 0
    %1983 = vmatpush1.bf16.msra.mxu0 0
    %1984 = vmatprep.subr.bf16.mxu0 0
    %1985 = vmatpush1.bf16.msra.mxu0 0
    %1986 = vmatprep.subr.bf16.mxu0 0
    %1987 = vmatpush1.bf16.msra.mxu0 0
    %1988 = vmatprep.mubr.bf16.mxu0 0
    %1989 = vmatmul.mubr.bf16.gmra.mrb[0].mxu0 %v1951
    %v1990 = vpop.f32.mrb[0].mxu0
    %v1991 = vadd.f32 0.0, %v1990
    %v1992 = vpop.f32.mrb[0].mxu0
    %v1993 = vpop.f32.mrb[0].mxu0
    %v1994 = vpop.f32.mrb[0].mxu0
    %1995 = vdwg.mxu0
    %v1996 = vpack.c.bf16 %v1991, %v1945
    %v1997 = vld [vmem:[#allocation5 + $0x44] sm:$0xf]
    %v1999 = vsel %vm365, %v1996, 0
    %v2002 = vsel %vm485, %v1997, 0
    %2004 = vmatprep.subr.bf16.mxu0 0
    %2005 = vmatpush1.bf16.msra.mxu0 %v2002
    %2006 = vmatprep.subr.bf16.mxu0 0
    %2007 = vmatpush1.bf16.msra.mxu0 0
    %2008 = vmatprep.subr.bf16.mxu0 0
    %2009 = vmatpush1.bf16.msra.mxu0 0
    %2010 = vmatprep.subr.bf16.mxu0 0
    %2011 = vmatpush1.bf16.msra.mxu0 0
    %2012 = vmatprep.subr.bf16.mxu0 0
    %2013 = vmatpush1.bf16.msra.mxu0 0
    %2014 = vmatprep.subr.bf16.mxu0 0
    %2015 = vmatpush1.bf16.msra.mxu0 0
    %2016 = vmatprep.subr.bf16.mxu0 0
    %2017 = vmatpush1.bf16.msra.mxu0 0
    %2018 = vmatprep.subr.bf16.mxu0 0
    %2019 = vmatpush1.bf16.msra.mxu0 0
    %2020 = vmatprep.subr.bf16.mxu0 0
    %2021 = vmatpush1.bf16.msra.mxu0 0
    %2022 = vmatprep.subr.bf16.mxu0 0
    %2023 = vmatpush1.bf16.msra.mxu0 0
    %2024 = vmatprep.subr.bf16.mxu0 0
    %2025 = vmatpush1.bf16.msra.mxu0 0
    %2026 = vmatprep.subr.bf16.mxu0 0
    %2027 = vmatpush1.bf16.msra.mxu0 0
    %2028 = vmatprep.subr.bf16.mxu0 0
    %2029 = vmatpush1.bf16.msra.mxu0 0
    %2030 = vmatprep.subr.bf16.mxu0 0
    %2031 = vmatpush1.bf16.msra.mxu0 0
    %2032 = vmatprep.subr.bf16.mxu0 0
    %2033 = vmatpush1.bf16.msra.mxu0 0
    %2034 = vmatprep.subr.bf16.mxu0 0
    %2035 = vmatpush1.bf16.msra.mxu0 0
    %2036 = vmatprep.mubr.bf16.mxu0 0
    %2037 = vmatmul.mubr.bf16.gmra.mrb[0].mxu0 %v1999
    %v2038 = vpop.f32.mrb[0].mxu0
    %v2039 = vadd.f32 0.0, %v2038
    %v2040 = vpop.f32.mrb[0].mxu0
    %v2041 = vpop.f32.mrb[0].mxu0
    %v2042 = vadd.f32 0.0, %v2041
    %v2043 = vpop.f32.mrb[0].mxu0
    %2044 = vdwg.mxu0
    %v2045 = vadd.f32 %v1570, %v2039
    %v2046 = vadd.f32 %v1571, %v2042
    %v2047 = vld [vmem:[#allocation7 + $0xe] sm:$0x1]
    %v2048 = vlaneseq
    %v2049 = vshrl.u32 %v2048, 7
    %v2050 = vsub.s32 0, %v2049
    %v2051 = vrot.slane %v2047, %v2050
    %v2052 = vadd.f32 %v2045, %v2051
    %v2053 = vadd.f32 %v2046, %v2051
    %v2054 = vadd.f32 %v125, %v2052
    %v2055 = vadd.f32 %v126, %v2053
    %v2056 = vld [vmem:[#allocation7 + $0xf] sm:$0x1]
    %v2057 = vld [vmem:[#allocation7 + $0x10] sm:$0x1]
    %v2058 = vsel %vm129, %v2054, 0.0
    %2059 = vadd.xlane.f32.xlu0 %v2058
    %v2060 = vpop.xlane.xlu0 %2059
    %v2061 = vsel %vm129, %v2055, 0.0
    %2062 = vadd.xlane.f32.xlu0 %v2061
    %v2063 = vpop.xlane.xlu0 %2062
    %v2064 = vmul.f32 %v2060, %v136
    %v2065 = vmul.f32 %v2063, %v136
    %v2066 = vsub.f32 %v2054, %v2064
    %v2067 = vsub.f32 %v2055, %v2065
    %v2068 = vmul.f32 %v2066, %v2066
    %v2069 = vmul.f32 %v2067, %v2067
    %v2070 = vsel %vm129, %v2068, 0.0
    %2071 = vadd.xlane.f32.xlu0 %v2070
    %v2072 = vpop.xlane.xlu0 %2071
    %v2073 = vsel %vm129, %v2069, 0.0
    %2074 = vadd.xlane.f32.xlu0 %v2073
    %v2075 = vpop.xlane.xlu0 %2074
    %v2076 = vmul.f32 %v2072, %v136
    %v2077 = vmul.f32 %v2075, %v136
    %v2078 = vadd.f32 %v2076, 1e-05
    %v2079 = vadd.f32 %v2077, 1e-05
    %v2080 = vrsqrt.pop %v2078
    %v2081 = vrsqrt.pop %v2079
    %v2082 = vmul.f32 %v2066, %v2080
    %v2083 = vmul.f32 %v2067, %v2081
    %v2084 = vlaneseq
    %v2085 = vshrl.u32 %v2084, 7
    %v2086 = vsub.s32 0, %v2085
    %v2087 = vrot.slane %v2056, %v2086
    %v2088 = vmul.f32 %v2082, %v2087
    %v2089 = vmul.f32 %v2083, %v2087
    %v2090 = vlaneseq
    %v2091 = vshrl.u32 %v2090, 7
    %v2092 = vsub.s32 0, %v2091
    %v2093 = vrot.slane %v2057, %v2092
    %v2094 = vadd.f32 %v2088, %v2093
    %v2095 = vadd.f32 %v2089, %v2093
    %v2096 = vpack.c.bf16 %v2095, %v2094
    %v2097 = vld [vmem:[#allocation5 + $0x48] sm:$0xf]
    %v2098 = vld [vmem:[#allocation5 + $0x4c] sm:$0xf]
    %v2099 = vld [vmem:[#allocation5 + $0x50] sm:$0xf]
    %v2100 = vld [vmem:[#allocation5 + $0x54] sm:$0xf]
    %v2101 = vld [vmem:[#allocation7 + $0x11] sm:$0x1]
    %v2102 = vlaneseq
    %v2103 = vshrl.u32 %v2102, 7
    %v2104 = vsub.s32 0, %v2103
    %v2105 = vrot.slane %v2101, %v2104
    %v2110 = vunpack.c.l.b16 %v2097
    %v2111 = vunpack.c.l.b16 %v2098
    %v2112 = vunpack.c.l.b16 %v2099
    %v2113 = vunpack.c.l.b16 %v2100
    %v2114 = vpack.c.b16 %v2111, %v2110
    %v2115 = vpack.c.b16 %v2113, %v2112
    %v2119 = vsel %vm129, %v2096, 0
    %2121 = vmatprep.subr.bf16.mxu0 0
    %2122 = vmatpush1.bf16.msra.mxu0 %v2114
    %2123 = vmatprep.subr.bf16.mxu0 0
    %2124 = vmatpush1.bf16.msra.mxu0 %v2115
    %2125 = vmatprep.subr.bf16.mxu0 0
    %2126 = vmatpush1.bf16.msra.mxu0 0
    %2127 = vmatprep.subr.bf16.mxu0 0
    %2128 = vmatpush1.bf16.msra.mxu0 0
    %2129 = vmatprep.subr.bf16.mxu0 0
    %2130 = vmatpush1.bf16.msra.mxu0 0
    %2131 = vmatprep.subr.bf16.mxu0 0
    %2132 = vmatpush1.bf16.msra.mxu0 0
    %2133 = vmatprep.subr.bf16.mxu0 0
    %2134 = vmatpush1.bf16.msra.mxu0 0
    %2135 = vmatprep.subr.bf16.mxu0 0
    %2136 = vmatpush1.bf16.msra.mxu0 0
    %2137 = vmatprep.subr.bf16.mxu0 0
    %2138 = vmatpush1.bf16.msra.mxu0 0
    %2139 = vmatprep.subr.bf16.mxu0 0
    %2140 = vmatpush1.bf16.msra.mxu0 0
    %2141 = vmatprep.subr.bf16.mxu0 0
    %2142 = vmatpush1.bf16.msra.mxu0 0
    %2143 = vmatprep.subr.bf16.mxu0 0
    %2144 = vmatpush1.bf16.msra.mxu0 0
    %2145 = vmatprep.subr.bf16.mxu0 0
    %2146 = vmatpush1.bf16.msra.mxu0 0
    %2147 = vmatprep.subr.bf16.mxu0 0
    %2148 = vmatpush1.bf16.msra.mxu0 0
    %2149 = vmatprep.subr.bf16.mxu0 0
    %2150 = vmatpush1.bf16.msra.mxu0 0
    %2151 = vmatprep.subr.bf16.mxu0 0
    %2152 = vmatpush1.bf16.msra.mxu0 0
    %2153 = vmatprep.mubr.bf16.mxu0 0
    %2154 = vmatmul.mubr.bf16.gmra.mrb[0].mxu0 %v2119
    %v2155 = vpop.f32.mrb[0].mxu0
    %v2156 = vadd.f32 %v2105, %v2155
    %v2157 = vpop.f32.mrb[0].mxu0
    %v2158 = vpop.f32.mrb[0].mxu0
    %v2159 = vadd.f32 %v2105, %v2158
    %v2160 = vpop.f32.mrb[0].mxu0
    %2161 = vdwg.mxu0
    %v2162 = vmul.f32 %v2156, 0.5
    %v2163 = vmul.f32 %v2159, 0.5
    %v2164 = vmul.f32 %v2156, 0.044715
    %v2165 = vmul.f32 %v2159, 0.044715
    %v2166 = vmul.f32 %v2164, %v2156
    %v2167 = vmul.f32 %v2165, %v2159
    %v2168 = vmul.f32 %v2166, %v2156
    %v2169 = vmul.f32 %v2167, %v2159
    %v2170 = vadd.f32 %v2156, %v2168
    %v2171 = vadd.f32 %v2159, %v2169
    %v2172 = vmul.f32 %v2170, 0.7978846
    %v2173 = vmul.f32 %v2171, 0.7978846
    %v2174 = vtanh.pop %v2172
    %v2175 = vtanh.pop %v2173
    %v2176 = vadd.f32 %v2174, 1.0
    %v2177 = vadd.f32 %v2175, 1.0
    %v2178 = vmul.f32 %v2162, %v2176
    %v2179 = vmul.f32 %v2163, %v2177
    %v2180 = vpack.c.bf16 %v2179, %v2178
    %v2181 = vld [vmem:[#allocation5 + $0x58] sm:$0xf]
    %v2182 = vld [vmem:[#allocation5 + $0x5c] sm:$0xf]
    %v2183 = vld [vmem:[#allocation5 + $0x60] sm:$0xf]
    %v2184 = vld [vmem:[#allocation5 + $0x64] sm:$0xf]
    %v2185 = vld [vmem:[#allocation5 + $0x68] sm:$0xf]
    %v2186 = vld [vmem:[#allocation5 + $0x6c] sm:$0xf]
    %v2187 = vld [vmem:[#allocation5 + $0x70] sm:$0xf]
    %v2188 = vld [vmem:[#allocation5 + $0x74] sm:$0xf]
    %v2189 = vld [vmem:[#allocation7 + $0x12] sm:$0x1]
    %v2190 = vlaneseq
    %v2191 = vshrl.u32 %v2190, 7
    %v2192 = vsub.s32 0, %v2191
    %v2193 = vrot.slane %v2189, %v2192
    %v2202 = vunpack.c.l.b16 %v2181
    %v2203 = vunpack.c.l.b16 %v2182
    %v2204 = vunpack.c.l.b16 %v2183
    %v2205 = vunpack.c.l.b16 %v2184
    %v2206 = vunpack.c.l.b16 %v2185
    %v2207 = vunpack.c.l.b16 %v2186
    %v2208 = vunpack.c.l.b16 %v2187
    %v2209 = vunpack.c.l.b16 %v2188
    %v2210 = vpack.c.b16 %v2203, %v2202
    %v2211 = vpack.c.b16 %v2205, %v2204
    %v2212 = vpack.c.b16 %v2207, %v2206
    %v2213 = vpack.c.b16 %v2209, %v2208
    %vm2218 = vcmask 523264
    %v2220 = vsel %vm2218, %v2180, 0
    %2222 = vmatprep.subr.bf16.mxu0 0
    %2223 = vmatpush1.bf16.msra.mxu0 %v2210
    %2224 = vmatprep.subr.bf16.mxu0 0
    %2225 = vmatpush1.bf16.msra.mxu0 %v2211
    %2226 = vmatprep.subr.bf16.mxu0 0
    %2227 = vmatpush1.bf16.msra.mxu0 %v2212
    %2228 = vmatprep.subr.bf16.mxu0 0
    %2229 = vmatpush1.bf16.msra.mxu0 %v2213
    %2230 = vmatprep.subr.bf16.mxu0 0
    %2231 = vmatpush1.bf16.msra.mxu0 0
    %2232 = vmatprep.subr.bf16.mxu0 0
    %2233 = vmatpush1.bf16.msra.mxu0 0
    %2234 = vmatprep.subr.bf16.mxu0 0
    %2235 = vmatpush1.bf16.msra.mxu0 0
    %2236 = vmatprep.subr.bf16.mxu0 0
    %2237 = vmatpush1.bf16.msra.mxu0 0
    %2238 = vmatprep.subr.bf16.mxu0 0
    %2239 = vmatpush1.bf16.msra.mxu0 0
    %2240 = vmatprep.subr.bf16.mxu0 0
    %2241 = vmatpush1.bf16.msra.mxu0 0
    %2242 = vmatprep.subr.bf16.mxu0 0
    %2243 = vmatpush1.bf16.msra.mxu0 0
    %2244 = vmatprep.subr.bf16.mxu0 0
    %2245 = vmatpush1.bf16.msra.mxu0 0
    %2246 = vmatprep.subr.bf16.mxu0 0
    %2247 = vmatpush1.bf16.msra.mxu0 0
    %2248 = vmatprep.subr.bf16.mxu0 0
    %2249 = vmatpush1.bf16.msra.mxu0 0
    %2250 = vmatprep.subr.bf16.mxu0 0
    %2251 = vmatpush1.bf16.msra.mxu0 0
    %2252 = vmatprep.subr.bf16.mxu0 0
    %2253 = vmatpush1.bf16.msra.mxu0 0
    %2254 = vmatprep.mubr.bf16.mxu0 0
    %2255 = vmatmul.mubr.bf16.gmra.mrb[0].mxu0 %v2220
    %v2256 = vpop.f32.mrb[0].mxu0
    %v2257 = vadd.f32 %v2193, %v2256
    %v2258 = vpop.f32.mrb[0].mxu0
    %v2259 = vpop.f32.mrb[0].mxu0
    %v2260 = vadd.f32 %v2193, %v2259
    %v2261 = vpop.f32.mrb[0].mxu0
    %2262 = vdwg.mxu0
    %v2263 = vadd.f32 %v2054, %v2257
    %v2264 = vadd.f32 %v2055, %v2260
    %v2265 = vld [vmem:[#allocation7 + $0x13] sm:$0x1]
    %v2266 = vld [vmem:[#allocation7 + $0x14] sm:$0x1]
    %v2267 = vsel %vm129, %v2263, 0.0
    %2268 = vadd.xlane.f32.xlu0 %v2267
    %v2269 = vpop.xlane.xlu0 %2268
    %v2270 = vsel %vm129, %v2264, 0.0
    %2271 = vadd.xlane.f32.xlu0 %v2270
    %v2272 = vpop.xlane.xlu0 %2271
    %v2273 = vmul.f32 %v2269, %v136
    %v2274 = vmul.f32 %v2272, %v136
    %v2275 = vsub.f32 %v2263, %v2273
    %v2276 = vsub.f32 %v2264, %v2274
    %v2277 = vmul.f32 %v2275, %v2275
    %v2278 = vmul.f32 %v2276, %v2276
    %v2279 = vsel %vm129, %v2277, 0.0
    %2280 = vadd.xlane.f32.xlu0 %v2279
    %v2281 = vpop.xlane.xlu0 %2280
    %v2282 = vsel %vm129, %v2278, 0.0
    %2283 = vadd.xlane.f32.xlu0 %v2282
    %v2284 = vpop.xlane.xlu0 %2283
    %v2285 = vmul.f32 %v2281, %v136
    %v2286 = vmul.f32 %v2284, %v136
    %v2287 = vadd.f32 %v2285, 1e-05
    %v2288 = vadd.f32 %v2286, 1e-05
    %v2289 = vrsqrt.pop %v2287
    %v2290 = vrsqrt.pop %v2288
    %v2291 = vmul.f32 %v2275, %v2289
    %v2292 = vmul.f32 %v2276, %v2290
    %v2293 = vlaneseq
    %v2294 = vshrl.u32 %v2293, 7
    %v2295 = vsub.s32 0, %v2294
    %v2296 = vrot.slane %v2265, %v2295
    %v2297 = vmul.f32 %v2291, %v2296
    %v2298 = vmul.f32 %v2292, %v2296
    %v2299 = vlaneseq
    %v2300 = vshrl.u32 %v2299, 7
    %v2301 = vsub.s32 0, %v2300
    %v2302 = vrot.slane %v2266, %v2301
    %v2303 = vadd.f32 %v2297, %v2302
    %v2304 = vadd.f32 %v2298, %v2302
    %v2305 = vpack.c.bf16 %v2304, %v2303
    %v2306 = vld [vmem:[#allocation5 + $0x78] sm:$0xf]
    %v2307 = vld [vmem:[#allocation5 + $0x7c] sm:$0xf]
    %v2308 = vld [vmem:[#allocation5 + $0x80] sm:$0xf]
    %v2309 = vld [vmem:[#allocation5 + $0x84] sm:$0xf]
    %v2310 = vld [vmem:[#allocation7 + $0x15] sm:$0x1]
    %v2311 = vlaneseq
    %v2312 = vshrl.u32 %v2311, 7
    %v2313 = vsub.s32 0, %v2312
    %v2314 = vrot.slane %v2310, %v2313
    %v2319 = vunpack.c.l.b16 %v2306
    %v2320 = vunpack.c.l.b16 %v2307
    %v2321 = vunpack.c.l.b16 %v2308
    %v2322 = vunpack.c.l.b16 %v2309
    %v2323 = vpack.c.b16 %v2320, %v2319
    %v2324 = vpack.c.b16 %v2322, %v2321
    %v2328 = vsel %vm129, %v2305, 0
    %2330 = vmatprep.subr.bf16.mxu0 0
    %2331 = vmatpush1.bf16.msra.mxu0 %v2323
    %2332 = vmatprep.subr.bf16.mxu0 0
    %2333 = vmatpush1.bf16.msra.mxu0 %v2324
    %2334 = vmatprep.subr.bf16.mxu0 0
    %2335 = vmatpush1.bf16.msra.mxu0 0
    %2336 = vmatprep.subr.bf16.mxu0 0
    %2337 = vmatpush1.bf16.msra.mxu0 0
    %2338 = vmatprep.subr.bf16.mxu0 0
    %2339 = vmatpush1.bf16.msra.mxu0 0
    %2340 = vmatprep.subr.bf16.mxu0 0
    %2341 = vmatpush1.bf16.msra.mxu0 0
    %2342 = vmatprep.subr.bf16.mxu0 0
    %2343 = vmatpush1.bf16.msra.mxu0 0
    %2344 = vmatprep.subr.bf16.mxu0 0
    %2345 = vmatpush1.bf16.msra.mxu0 0
    %2346 = vmatprep.subr.bf16.mxu0 0
    %2347 = vmatpush1.bf16.msra.mxu0 0
    %2348 = vmatprep.subr.bf16.mxu0 0
    %2349 = vmatpush1.bf16.msra.mxu0 0
    %2350 = vmatprep.subr.bf16.mxu0 0
    %2351 = vmatpush1.bf16.msra.mxu0 0
    %2352 = vmatprep.subr.bf16.mxu0 0
    %2353 = vmatpush1.bf16.msra.mxu0 0
    %2354 = vmatprep.subr.bf16.mxu0 0
    %2355 = vmatpush1.bf16.msra.mxu0 0
    %2356 = vmatprep.subr.bf16.mxu0 0
    %2357 = vmatpush1.bf16.msra.mxu0 0
    %2358 = vmatprep.subr.bf16.mxu0 0
    %2359 = vmatpush1.bf16.msra.mxu0 0
    %2360 = vmatprep.subr.bf16.mxu0 0
    %2361 = vmatpush1.bf16.msra.mxu0 0
    %2362 = vmatprep.mubr.bf16.mxu0 0
    %2363 = vmatmul.mubr.bf16.gmra.mrb[0].mxu0 %v2328
    %v2364 = vpop.f32.mrb[0].mxu0
    %v2365 = vadd.f32 %v2314, %v2364
    %v2366 = vpop.f32.mrb[0].mxu0
    %v2367 = vpop.f32.mrb[0].mxu0
    %v2368 = vadd.f32 %v2314, %v2367
    %v2369 = vpop.f32.mrb[0].mxu0
    %2370 = vdwg.mxu0
    %v2371 = vld [vmem:[#allocation5 + $0x88] sm:$0xf]
    %v2372 = vld [vmem:[#allocation5 + $0x8c] sm:$0xf]
    %v2373 = vld [vmem:[#allocation5 + $0x90] sm:$0xf]
    %v2374 = vld [vmem:[#allocation5 + $0x94] sm:$0xf]
    %v2375 = vld [vmem:[#allocation7 + $0x16] sm:$0x1]
    %v2376 = vlaneseq
    %v2377 = vshrl.u32 %v2376, 7
    %v2378 = vsub.s32 0, %v2377
    %v2379 = vrot.slane %v2375, %v2378
    %v2384 = vunpack.c.l.b16 %v2371
    %v2385 = vunpack.c.l.b16 %v2372
    %v2386 = vunpack.c.l.b16 %v2373
    %v2387 = vunpack.c.l.b16 %v2374
    %v2388 = vpack.c.b16 %v2385, %v2384
    %v2389 = vpack.c.b16 %v2387, %v2386
    %2392 = vmatprep.subr.bf16.mxu0 0
    %2393 = vmatpush1.bf16.msra.mxu0 %v2388
    %2394 = vmatprep.subr.bf16.mxu0 0
    %2395 = vmatpush1.bf16.msra.mxu0 %v2389
    %2396 = vmatprep.subr.bf16.mxu0 0
    %2397 = vmatpush1.bf16.msra.mxu0 0
    %2398 = vmatprep.subr.bf16.mxu0 0
    %2399 = vmatpush1.bf16.msra.mxu0 0
    %2400 = vmatprep.subr.bf16.mxu0 0
    %2401 = vmatpush1.bf16.msra.mxu0 0
    %2402 = vmatprep.subr.bf16.mxu0 0
    %2403 = vmatpush1.bf16.msra.mxu0 0
    %2404 = vmatprep.subr.bf16.mxu0 0
    %2405 = vmatpush1.bf16.msra.mxu0 0
    %2406 = vmatprep.subr.bf16.mxu0 0
    %2407 = vmatpush1.bf16.msra.mxu0 0
    %2408 = vmatprep.subr.bf16.mxu0 0
    %2409 = vmatpush1.bf16.msra.mxu0 0
    %2410 = vmatprep.subr.bf16.mxu0 0
    %2411 = vmatpush1.bf16.msra.mxu0 0
    %2412 = vmatprep.subr.bf16.mxu0 0
    %2413 = vmatpush1.bf16.msra.mxu0 0
    %2414 = vmatprep.subr.bf16.mxu0 0
    %2415 = vmatpush1.bf16.msra.mxu0 0
    %2416 = vmatprep.subr.bf16.mxu0 0
    %2417 = vmatpush1.bf16.msra.mxu0 0
    %2418 = vmatprep.subr.bf16.mxu0 0
    %2419 = vmatpush1.bf16.msra.mxu0 0
    %2420 = vmatprep.subr.bf16.mxu0 0
    %2421 = vmatpush1.bf16.msra.mxu0 0
    %2422 = vmatprep.subr.bf16.mxu0 0
    %2423 = vmatpush1.bf16.msra.mxu0 0
    %2424 = vmatprep.mubr.bf16.mxu0 0
    %2425 = vmatmul.mubr.bf16.gmra.mrb[0].mxu0 %v2328
    %v2426 = vpop.f32.mrb[0].mxu0
    %v2427 = vadd.f32 %v2379, %v2426
    %v2428 = vpop.f32.mrb[0].mxu0
    %v2429 = vpop.f32.mrb[0].mxu0
    %v2430 = vadd.f32 %v2379, %v2429
    %v2431 = vpop.f32.mrb[0].mxu0
    %2432 = vdwg.mxu0
    %v2433 = vld [vmem:[#allocation5 + $0x98] sm:$0xf]
    %v2434 = vld [vmem:[#allocation5 + $0x9c] sm:$0xf]
    %v2435 = vld [vmem:[#allocation5 + $0xa0] sm:$0xf]
    %v2436 = vld [vmem:[#allocation5 + $0xa4] sm:$0xf]
    %v2437 = vld [vmem:[#allocation7 + $0x17] sm:$0x1]
    %v2438 = vlaneseq
    %v2439 = vshrl.u32 %v2438, 7
    %v2440 = vsub.s32 0, %v2439
    %v2441 = vrot.slane %v2437, %v2440
    %v2446 = vunpack.c.l.b16 %v2433
    %v2447 = vunpack.c.l.b16 %v2434
    %v2448 = vunpack.c.l.b16 %v2435
    %v2449 = vunpack.c.l.b16 %v2436
    %v2450 = vpack.c.b16 %v2447, %v2446
    %v2451 = vpack.c.b16 %v2449, %v2448
    %2454 = vmatprep.subr.bf16.mxu0 0
    %2455 = vmatpush1.bf16.msra.mxu0 %v2450
    %2456 = vmatprep.subr.bf16.mxu0 0
    %2457 = vmatpush1.bf16.msra.mxu0 %v2451
    %2458 = vmatprep.subr.bf16.mxu0 0
    %2459 = vmatpush1.bf16.msra.mxu0 0
    %2460 = vmatprep.subr.bf16.mxu0 0
    %2461 = vmatpush1.bf16.msra.mxu0 0
    %2462 = vmatprep.subr.bf16.mxu0 0
    %2463 = vmatpush1.bf16.msra.mxu0 0
    %2464 = vmatprep.subr.bf16.mxu0 0
    %2465 = vmatpush1.bf16.msra.mxu0 0
    %2466 = vmatprep.subr.bf16.mxu0 0
    %2467 = vmatpush1.bf16.msra.mxu0 0
    %2468 = vmatprep.subr.bf16.mxu0 0
    %2469 = vmatpush1.bf16.msra.mxu0 0
    %2470 = vmatprep.subr.bf16.mxu0 0
    %2471 = vmatpush1.bf16.msra.mxu0 0
    %2472 = vmatprep.subr.bf16.mxu0 0
    %2473 = vmatpush1.bf16.msra.mxu0 0
    %2474 = vmatprep.subr.bf16.mxu0 0
    %2475 = vmatpush1.bf16.msra.mxu0 0
    %2476 = vmatprep.subr.bf16.mxu0 0
    %2477 = vmatpush1.bf16.msra.mxu0 0
    %2478 = vmatprep.subr.bf16.mxu0 0
    %2479 = vmatpush1.bf16.msra.mxu0 0
    %2480 = vmatprep.subr.bf16.mxu0 0
    %2481 = vmatpush1.bf16.msra.mxu0 0
    %2482 = vmatprep.subr.bf16.mxu0 0
    %2483 = vmatpush1.bf16.msra.mxu0 0
    %2484 = vmatprep.subr.bf16.mxu0 0
    %2485 = vmatpush1.bf16.msra.mxu0 0
    %2486 = vmatprep.mubr.bf16.mxu0 0
    %2487 = vmatmul.mubr.bf16.gmra.mrb[0].mxu0 %v2328
    %v2488 = vpop.f32.mrb[0].mxu0
    %v2489 = vadd.f32 %v2441, %v2488
    %v2490 = vpop.f32.mrb[0].mxu0
    %v2491 = vpop.f32.mrb[0].mxu0
    %v2492 = vadd.f32 %v2441, %v2491
    %v2493 = vpop.f32.mrb[0].mxu0
    %2494 = vdwg.mxu0
    %v2495 = vpack.c.bf16 %v2365, %v2365
    %v2496 = vpack.c.bf16 %v2368, %v2368
    %v2497 = vpack.c.bf16 %v2427, %v2427
    %v2498 = vpack.c.bf16 %v2430, %v2430
    %v2499 = vpack.c.bf16 %v2489, %v2489
    %v2500 = vpack.c.bf16 %v2492, %v2492
    %v2502 = vsel %vm365, %v2495, 0
    %v2505 = vsel %vm365, %v2497, 0
    %2507 = vmatprep.subr.bf16.mxu0 0
    %2508 = vmatpush1.bf16.xpose.msra.mxu0 %v2505
    %2509 = vmatprep.subr.bf16.mxu0 0
    %2510 = vmatpush1.bf16.xpose.msra.mxu0 0
    %2511 = vmatprep.subr.bf16.mxu0 0
    %2512 = vmatpush1.bf16.xpose.msra.mxu0 0
    %2513 = vmatprep.subr.bf16.mxu0 0
    %2514 = vmatpush1.bf16.xpose.msra.mxu0 0
    %2515 = vmatprep.subr.bf16.mxu0 0
    %2516 = vmatpush1.bf16.xpose.msra.mxu0 0
    %2517 = vmatprep.subr.bf16.mxu0 0
    %2518 = vmatpush1.bf16.xpose.msra.mxu0 0
    %2519 = vmatprep.subr.bf16.mxu0 0
    %2520 = vmatpush1.bf16.xpose.msra.mxu0 0
    %2521 = vmatprep.subr.bf16.mxu0 0
    %2522 = vmatpush1.bf16.xpose.msra.mxu0 0
    %2523 = vmatprep.subr.bf16.mxu0 0
    %2524 = vmatpush1.bf16.xpose.msra.mxu0 0
    %2525 = vmatprep.subr.bf16.mxu0 0
    %2526 = vmatpush1.bf16.xpose.msra.mxu0 0
    %2527 = vmatprep.subr.bf16.mxu0 0
    %2528 = vmatpush1.bf16.xpose.msra.mxu0 0
    %2529 = vmatprep.subr.bf16.mxu0 0
    %2530 = vmatpush1.bf16.xpose.msra.mxu0 0
    %2531 = vmatprep.subr.bf16.mxu0 0
    %2532 = vmatpush1.bf16.xpose.msra.mxu0 0
    %2533 = vmatprep.subr.bf16.mxu0 0
    %2534 = vmatpush1.bf16.xpose.msra.mxu0 0
    %2535 = vmatprep.subr.bf16.mxu0 0
    %2536 = vmatpush1.bf16.xpose.msra.mxu0 0
    %2537 = vmatprep.subr.bf16.mxu0 0
    %2538 = vmatpush1.bf16.xpose.msra.mxu0 0
    %2539 = vmatprep.mubr.bf16.mxu0 0
    %2540 = vmatmul.mubr.bf16.gmra.mrb[0].mxu0 %v2502
    %v2541 = vpop.f32.mrb[0].mxu0
    %v2542 = vadd.f32 0.0, %v2541
    %v2543 = vpop.f32.mrb[0].mxu0
    %v2544 = vpop.f32.mrb[0].mxu0
    %v2545 = vpop.f32.mrb[0].mxu0
    %2546 = vdwg.mxu0
    %v2548 = vsel %vm365, %v2496, 0
    %v2551 = vsel %vm365, %v2498, 0
    %2553 = vmatprep.subr.bf16.mxu0 0
    %2554 = vmatpush1.bf16.xpose.msra.mxu0 %v2551
    %2555 = vmatprep.subr.bf16.mxu0 0
    %2556 = vmatpush1.bf16.xpose.msra.mxu0 0
    %2557 = vmatprep.subr.bf16.mxu0 0
    %2558 = vmatpush1.bf16.xpose.msra.mxu0 0
    %2559 = vmatprep.subr.bf16.mxu0 0
    %2560 = vmatpush1.bf16.xpose.msra.mxu0 0
    %2561 = vmatprep.subr.bf16.mxu0 0
    %2562 = vmatpush1.bf16.xpose.msra.mxu0 0
    %2563 = vmatprep.subr.bf16.mxu0 0
    %2564 = vmatpush1.bf16.xpose.msra.mxu0 0
    %2565 = vmatprep.subr.bf16.mxu0 0
    %2566 = vmatpush1.bf16.xpose.msra.mxu0 0
    %2567 = vmatprep.subr.bf16.mxu0 0
    %2568 = vmatpush1.bf16.xpose.msra.mxu0 0
    %2569 = vmatprep.subr.bf16.mxu0 0
    %2570 = vmatpush1.bf16.xpose.msra.mxu0 0
    %2571 = vmatprep.subr.bf16.mxu0 0
    %2572 = vmatpush1.bf16.xpose.msra.mxu0 0
    %2573 = vmatprep.subr.bf16.mxu0 0
    %2574 = vmatpush1.bf16.xpose.msra.mxu0 0
    %2575 = vmatprep.subr.bf16.mxu0 0
    %2576 = vmatpush1.bf16.xpose.msra.mxu0 0
    %2577 = vmatprep.subr.bf16.mxu0 0
    %2578 = vmatpush1.bf16.xpose.msra.mxu0 0
    %2579 = vmatprep.subr.bf16.mxu0 0
    %2580 = vmatpush1.bf16.xpose.msra.mxu0 0
    %2581 = vmatprep.subr.bf16.mxu0 0
    %2582 = vmatpush1.bf16.xpose.msra.mxu0 0
    %2583 = vmatprep.subr.bf16.mxu0 0
    %2584 = vmatpush1.bf16.xpose.msra.mxu0 0
    %2585 = vmatprep.mubr.bf16.mxu0 0
    %2586 = vmatmul.mubr.bf16.gmra.mrb[0].mxu0 %v2548
    %v2587 = vpop.f32.mrb[0].mxu0
    %v2588 = vadd.f32 0.0, %v2587
    %v2589 = vpop.f32.mrb[0].mxu0
    %v2590 = vpop.f32.mrb[0].mxu0
    %v2591 = vpop.f32.mrb[0].mxu0
    %2592 = vdwg.mxu0
    %v2593 = vsel %vm365, %v2542, -inf
    %2594 = vmax.xlane.f32.xlu0 %v2593
    %v2595 = vpop.xlane.xlu0 %2594
    %v2596 = vsel %vm365, %v2588, -inf
    %2597 = vmax.xlane.f32.xlu0 %v2596
    %v2598 = vpop.xlane.xlu0 %2597
    %v2599 = vsub.f32 %v2542, %v2595
    %v2600 = vsub.f32 %v2588, %v2598
    %v2601 = vmul.f32 %v2599, 1.442695
    %v2602 = vpow.pop %v2601
    %v2603 = vmul.f32 %v2600, 1.442695
    %v2604 = vpow.pop %v2603
    %v2605 = vsel %vm365, %v2602, 0.0
    %2606 = vadd.xlane.f32.xlu0 %v2605
    %v2607 = vpop.xlane.xlu0 %2606
    %v2608 = vsel %vm365, %v2604, 0.0
    %2609 = vadd.xlane.f32.xlu0 %v2608
    %v2610 = vpop.xlane.xlu0 %2609
    %v2611 = vrcp.pop %v2607
    %v2612 = vrcp.pop %v2610
    %v2613 = vmul.f32 %v2602, %v2611
    %v2614 = vmul.f32 %v2604, %v2612
    %v2615 = vpack.c.bf16 %v2613, %v2613
    %v2616 = vpack.c.bf16 %v2614, %v2614
    %v2618 = vsel %vm365, %v2615, 0
    %v2621 = vsel %vm485, %v2499, 0
    %2623 = vmatprep.subr.bf16.mxu0 0
    %2624 = vmatpush1.bf16.msra.mxu0 %v2621
    %2625 = vmatprep.subr.bf16.mxu0 0
    %2626 = vmatpush1.bf16.msra.mxu0 0
    %2627 = vmatprep.subr.bf16.mxu0 0
    %2628 = vmatpush1.bf16.msra.mxu0 0
    %2629 = vmatprep.subr.bf16.mxu0 0
    %2630 = vmatpush1.bf16.msra.mxu0 0
    %2631 = vmatprep.subr.bf16.mxu0 0
    %2632 = vmatpush1.bf16.msra.mxu0 0
    %2633 = vmatprep.subr.bf16.mxu0 0
    %2634 = vmatpush1.bf16.msra.mxu0 0
    %2635 = vmatprep.subr.bf16.mxu0 0
    %2636 = vmatpush1.bf16.msra.mxu0 0
    %2637 = vmatprep.subr.bf16.mxu0 0
    %2638 = vmatpush1.bf16.msra.mxu0 0
    %2639 = vmatprep.subr.bf16.mxu0 0
    %2640 = vmatpush1.bf16.msra.mxu0 0
    %2641 = vmatprep.subr.bf16.mxu0 0
    %2642 = vmatpush1.bf16.msra.mxu0 0
    %2643 = vmatprep.subr.bf16.mxu0 0
    %2644 = vmatpush1.bf16.msra.mxu0 0
    %2645 = vmatprep.subr.bf16.mxu0 0
    %2646 = vmatpush1.bf16.msra.mxu0 0
    %2647 = vmatprep.subr.bf16.mxu0 0
    %2648 = vmatpush1.bf16.msra.mxu0 0
    %2649 = vmatprep.subr.bf16.mxu0 0
    %2650 = vmatpush1.bf16.msra.mxu0 0
    %2651 = vmatprep.subr.bf16.mxu0 0
    %2652 = vmatpush1.bf16.msra.mxu0 0
    %2653 = vmatprep.subr.bf16.mxu0 0
    %2654 = vmatpush1.bf16.msra.mxu0 0
    %2655 = vmatprep.mubr.bf16.mxu0 0
    %2656 = vmatmul.mubr.bf16.gmra.mrb[0].mxu0 %v2618
    %v2657 = vpop.f32.mrb[0].mxu0
    %v2658 = vadd.f32 0.0, %v2657
    %v2659 = vpop.f32.mrb[0].mxu0
    %v2660 = vpop.f32.mrb[0].mxu0
    %v2661 = vpop.f32.mrb[0].mxu0
    %2662 = vdwg.mxu0
    %v2664 = vsel %vm365, %v2616, 0
    %v2667 = vsel %vm485, %v2500, 0
    %2669 = vmatprep.subr.bf16.mxu0 0
    %2670 = vmatpush1.bf16.msra.mxu0 %v2667
    %2671 = vmatprep.subr.bf16.mxu0 0
    %2672 = vmatpush1.bf16.msra.mxu0 0
    %2673 = vmatprep.subr.bf16.mxu0 0
    %2674 = vmatpush1.bf16.msra.mxu0 0
    %2675 = vmatprep.subr.bf16.mxu0 0
    %2676 = vmatpush1.bf16.msra.mxu0 0
    %2677 = vmatprep.subr.bf16.mxu0 0
    %2678 = vmatpush1.bf16.msra.mxu0 0
    %2679 = vmatprep.subr.bf16.mxu0 0
    %2680 = vmatpush1.bf16.msra.mxu0 0
    %2681 = vmatprep.subr.bf16.mxu0 0
    %2682 = vmatpush1.bf16.msra.mxu0 0
    %2683 = vmatprep.subr.bf16.mxu0 0
    %2684 = vmatpush1.bf16.msra.mxu0 0
    %2685 = vmatprep.subr.bf16.mxu0 0
    %2686 = vmatpush1.bf16.msra.mxu0 0
    %2687 = vmatprep.subr.bf16.mxu0 0
    %2688 = vmatpush1.bf16.msra.mxu0 0
    %2689 = vmatprep.subr.bf16.mxu0 0
    %2690 = vmatpush1.bf16.msra.mxu0 0
    %2691 = vmatprep.subr.bf16.mxu0 0
    %2692 = vmatpush1.bf16.msra.mxu0 0
    %2693 = vmatprep.subr.bf16.mxu0 0
    %2694 = vmatpush1.bf16.msra.mxu0 0
    %2695 = vmatprep.subr.bf16.mxu0 0
    %2696 = vmatpush1.bf16.msra.mxu0 0
    %2697 = vmatprep.subr.bf16.mxu0 0
    %2698 = vmatpush1.bf16.msra.mxu0 0
    %2699 = vmatprep.subr.bf16.mxu0 0
    %2700 = vmatpush1.bf16.msra.mxu0 0
    %2701 = vmatprep.mubr.bf16.mxu0 0
    %2702 = vmatmul.mubr.bf16.gmra.mrb[0].mxu0 %v2664
    %v2703 = vpop.f32.mrb[0].mxu0
    %v2704 = vadd.f32 0.0, %v2703
    %v2705 = vpop.f32.mrb[0].mxu0
    %v2706 = vpop.f32.mrb[0].mxu0
    %v2707 = vpop.f32.mrb[0].mxu0
    %2708 = vdwg.mxu0
    %v2709 = vpack.c.bf16 %v2704, %v2658
    %v2710 = vld [vmem:[#allocation5 + $0xa8] sm:$0xf]
    %v2711 = vld [vmem:[#allocation5 + $0x78] sm:$0xf]
    %v2712 = vld [vmem:[#allocation5 + $0x7c] sm:$0xf]
    %v2713 = vld [vmem:[#allocation5 + $0x80] sm:$0xf]
    %v2714 = vld [vmem:[#allocation5 + $0x84] sm:$0xf]
    %v2715 = vld [vmem:[#allocation7 + $0x15] sm:$0x1]
    %v2716 = vlaneseq
    %v2717 = vshrl.u32 %v2716, 7
    %v2718 = vsub.s32 0, %v2717
    %v2719 = vrot.slane %v2715, %v2718
    %v2724 = vunpack.c.l.b16 %v2711
    %v2725 = vunpack.c.l.b16 %v2712
    %v2726 = vunpack.c.l.b16 %v2713
    %v2727 = vunpack.c.l.b16 %v2714
    %v2728 = vpack.c.b16 %v2725, %v2724
    %v2729 = vpack.c.b16 %v2727, %v2726
    %2730 = vrot.lane.b32.xlu0 %v2728, 120
    %v2731 = vpop.permute.xlu0 %2730
    %2732 = vrot.lane.b32.xlu0 %v2729, 120
    %v2733 = vpop.permute.xlu0 %2732
    %2737 = vrot.lane.b32.xlu0 %v2719, 120
    %v2738 = vpop.permute.xlu0 %2737
    %2740 = vmatprep.subr.bf16.mxu0 0
    %2741 = vmatpush1.bf16.msra.mxu0 %v2731
    %2742 = vmatprep.subr.bf16.mxu0 0
    %2743 = vmatpush1.bf16.msra.mxu0 %v2733
    %2744 = vmatprep.subr.bf16.mxu0 0
    %2745 = vmatpush1.bf16.msra.mxu0 0
    %2746 = vmatprep.subr.bf16.mxu0 0
    %2747 = vmatpush1.bf16.msra.mxu0 0
    %2748 = vmatprep.subr.bf16.mxu0 0
    %2749 = vmatpush1.bf16.msra.mxu0 0
    %2750 = vmatprep.subr.bf16.mxu0 0
    %2751 = vmatpush1.bf16.msra.mxu0 0
    %2752 = vmatprep.subr.bf16.mxu0 0
    %2753 = vmatpush1.bf16.msra.mxu0 0
    %2754 = vmatprep.subr.bf16.mxu0 0
    %2755 = vmatpush1.bf16.msra.mxu0 0
    %2756 = vmatprep.subr.bf16.mxu0 0
    %2757 = vmatpush1.bf16.msra.mxu0 0
    %2758 = vmatprep.subr.bf16.mxu0 0
    %2759 = vmatpush1.bf16.msra.mxu0 0
    %2760 = vmatprep.subr.bf16.mxu0 0
    %2761 = vmatpush1.bf16.msra.mxu0 0
    %2762 = vmatprep.subr.bf16.mxu0 0
    %2763 = vmatpush1.bf16.msra.mxu0 0
    %2764 = vmatprep.subr.bf16.mxu0 0
    %2765 = vmatpush1.bf16.msra.mxu0 0
    %2766 = vmatprep.subr.bf16.mxu0 0
    %2767 = vmatpush1.bf16.msra.mxu0 0
    %2768 = vmatprep.subr.bf16.mxu0 0
    %2769 = vmatpush1.bf16.msra.mxu0 0
    %2770 = vmatprep.subr.bf16.mxu0 0
    %2771 = vmatpush1.bf16.msra.mxu0 0
    %2772 = vmatprep.mubr.bf16.mxu0 0
    %2773 = vmatmul.mubr.bf16.gmra.mrb[0].mxu0 %v2328
    %v2774 = vpop.f32.mrb[0].mxu0
    %v2775 = vadd.f32 %v2738, %v2774
    %v2776 = vpop.f32.mrb[0].mxu0
    %v2777 = vpop.f32.mrb[0].mxu0
    %v2778 = vadd.f32 %v2738, %v2777
    %v2779 = vpop.f32.mrb[0].mxu0
    %2780 = vdwg.mxu0
    %v2781 = vld [vmem:[#allocation5 + $0x88] sm:$0xf]
    %v2782 = vld [vmem:[#allocation5 + $0x8c] sm:$0xf]
    %v2783 = vld [vmem:[#allocation5 + $0x90] sm:$0xf]
    %v2784 = vld [vmem:[#allocation5 + $0x94] sm:$0xf]
    %v2785 = vld [vmem:[#allocation7 + $0x16] sm:$0x1]
    %v2786 = vlaneseq
    %v2787 = vshrl.u32 %v2786, 7
    %v2788 = vsub.s32 0, %v2787
    %v2789 = vrot.slane %v2785, %v2788
    %v2794 = vunpack.c.l.b16 %v2781
    %v2795 = vunpack.c.l.b16 %v2782
    %v2796 = vunpack.c.l.b16 %v2783
    %v2797 = vunpack.c.l.b16 %v2784
    %v2798 = vpack.c.b16 %v2795, %v2794
    %v2799 = vpack.c.b16 %v2797, %v2796
    %2800 = vrot.lane.b32.xlu0 %v2798, 120
    %v2801 = vpop.permute.xlu0 %2800
    %2802 = vrot.lane.b32.xlu0 %v2799, 120
    %v2803 = vpop.permute.xlu0 %2802
    %2807 = vrot.lane.b32.xlu0 %v2789, 120
    %v2808 = vpop.permute.xlu0 %2807
    %2810 = vmatprep.subr.bf16.mxu0 0
    %2811 = vmatpush1.bf16.msra.mxu0 %v2801
    %2812 = vmatprep.subr.bf16.mxu0 0
    %2813 = vmatpush1.bf16.msra.mxu0 %v2803
    %2814 = vmatprep.subr.bf16.mxu0 0
    %2815 = vmatpush1.bf16.msra.mxu0 0
    %2816 = vmatprep.subr.bf16.mxu0 0
    %2817 = vmatpush1.bf16.msra.mxu0 0
    %2818 = vmatprep.subr.bf16.mxu0 0
    %2819 = vmatpush1.bf16.msra.mxu0 0
    %2820 = vmatprep.subr.bf16.mxu0 0
    %2821 = vmatpush1.bf16.msra.mxu0 0
    %2822 = vmatprep.subr.bf16.mxu0 0
    %2823 = vmatpush1.bf16.msra.mxu0 0
    %2824 = vmatprep.subr.bf16.mxu0 0
    %2825 = vmatpush1.bf16.msra.mxu0 0
    %2826 = vmatprep.subr.bf16.mxu0 0
    %2827 = vmatpush1.bf16.msra.mxu0 0
    %2828 = vmatprep.subr.bf16.mxu0 0
    %2829 = vmatpush1.bf16.msra.mxu0 0
    %2830 = vmatprep.subr.bf16.mxu0 0
    %2831 = vmatpush1.bf16.msra.mxu0 0
    %2832 = vmatprep.subr.bf16.mxu0 0
    %2833 = vmatpush1.bf16.msra.mxu0 0
    %2834 = vmatprep.subr.bf16.mxu0 0
    %2835 = vmatpush1.bf16.msra.mxu0 0
    %2836 = vmatprep.subr.bf16.mxu0 0
    %2837 = vmatpush1.bf16.msra.mxu0 0
    %2838 = vmatprep.subr.bf16.mxu0 0
    %2839 = vmatpush1.bf16.msra.mxu0 0
    %2840 = vmatprep.subr.bf16.mxu0 0
    %2841 = vmatpush1.bf16.msra.mxu0 0
    %2842 = vmatprep.mubr.bf16.mxu0 0
    %2843 = vmatmul.mubr.bf16.gmra.mrb[0].mxu0 %v2328
    %v2844 = vpop.f32.mrb[0].mxu0
    %v2845 = vadd.f32 %v2808, %v2844
    %v2846 = vpop.f32.mrb[0].mxu0
    %v2847 = vpop.f32.mrb[0].mxu0
    %v2848 = vadd.f32 %v2808, %v2847
    %v2849 = vpop.f32.mrb[0].mxu0
    %2850 = vdwg.mxu0
    %v2851 = vld [vmem:[#allocation5 + $0x98] sm:$0xf]
    %v2852 = vld [vmem:[#allocation5 + $0x9c] sm:$0xf]
    %v2853 = vld [vmem:[#allocation5 + $0xa0] sm:$0xf]
    %v2854 = vld [vmem:[#allocation5 + $0xa4] sm:$0xf]
    %v2855 = vld [vmem:[#allocation7 + $0x17] sm:$0x1]
    %v2856 = vlaneseq
    %v2857 = vshrl.u32 %v2856, 7
    %v2858 = vsub.s32 0, %v2857
    %v2859 = vrot.slane %v2855, %v2858
    %v2864 = vunpack.c.l.b16 %v2851
    %v2865 = vunpack.c.l.b16 %v2852
    %v2866 = vunpack.c.l.b16 %v2853
    %v2867 = vunpack.c.l.b16 %v2854
    %v2868 = vpack.c.b16 %v2865, %v2864
    %v2869 = vpack.c.b16 %v2867, %v2866
    %2870 = vrot.lane.b32.xlu0 %v2868, 120
    %v2871 = vpop.permute.xlu0 %2870
    %2872 = vrot.lane.b32.xlu0 %v2869, 120
    %v2873 = vpop.permute.xlu0 %2872
    %2877 = vrot.lane.b32.xlu0 %v2859, 120
    %v2878 = vpop.permute.xlu0 %2877
    %2880 = vmatprep.subr.bf16.mxu0 0
    %2881 = vmatpush1.bf16.msra.mxu0 %v2871
    %2882 = vmatprep.subr.bf16.mxu0 0
    %2883 = vmatpush1.bf16.msra.mxu0 %v2873
    %2884 = vmatprep.subr.bf16.mxu0 0
    %2885 = vmatpush1.bf16.msra.mxu0 0
    %2886 = vmatprep.subr.bf16.mxu0 0
    %2887 = vmatpush1.bf16.msra.mxu0 0
    %2888 = vmatprep.subr.bf16.mxu0 0
    %2889 = vmatpush1.bf16.msra.mxu0 0
    %2890 = vmatprep.subr.bf16.mxu0 0
    %2891 = vmatpush1.bf16.msra.mxu0 0
    %2892 = vmatprep.subr.bf16.mxu0 0
    %2893 = vmatpush1.bf16.msra.mxu0 0
    %2894 = vmatprep.subr.bf16.mxu0 0
    %2895 = vmatpush1.bf16.msra.mxu0 0
    %2896 = vmatprep.subr.bf16.mxu0 0
    %2897 = vmatpush1.bf16.msra.mxu0 0
    %2898 = vmatprep.subr.bf16.mxu0 0
    %2899 = vmatpush1.bf16.msra.mxu0 0
    %2900 = vmatprep.subr.bf16.mxu0 0
    %2901 = vmatpush1.bf16.msra.mxu0 0
    %2902 = vmatprep.subr.bf16.mxu0 0
    %2903 = vmatpush1.bf16.msra.mxu0 0
    %2904 = vmatprep.subr.bf16.mxu0 0
    %2905 = vmatpush1.bf16.msra.mxu0 0
    %2906 = vmatprep.subr.bf16.mxu0 0
    %2907 = vmatpush1.bf16.msra.mxu0 0
    %2908 = vmatprep.subr.bf16.mxu0 0
    %2909 = vmatpush1.bf16.msra.mxu0 0
    %2910 = vmatprep.subr.bf16.mxu0 0
    %2911 = vmatpush1.bf16.msra.mxu0 0
    %2912 = vmatprep.mubr.bf16.mxu0 0
    %2913 = vmatmul.mubr.bf16.gmra.mrb[0].mxu0 %v2328
    %v2914 = vpop.f32.mrb[0].mxu0
    %v2915 = vadd.f32 %v2878, %v2914
    %v2916 = vpop.f32.mrb[0].mxu0
    %v2917 = vpop.f32.mrb[0].mxu0
    %v2918 = vadd.f32 %v2878, %v2917
    %v2919 = vpop.f32.mrb[0].mxu0
    %2920 = vdwg.mxu0
    %v2921 = vpack.c.bf16 %v2775, %v2775
    %v2922 = vpack.c.bf16 %v2778, %v2778
    %v2923 = vpack.c.bf16 %v2845, %v2845
    %v2924 = vpack.c.bf16 %v2848, %v2848
    %v2925 = vpack.c.bf16 %v2915, %v2915
    %v2926 = vpack.c.bf16 %v2918, %v2918
    %v2928 = vsel %vm365, %v2921, 0
    %v2931 = vsel %vm365, %v2923, 0
    %2933 = vmatprep.subr.bf16.mxu0 0
    %2934 = vmatpush1.bf16.xpose.msra.mxu0 %v2931
    %2935 = vmatprep.subr.bf16.mxu0 0
    %2936 = vmatpush1.bf16.xpose.msra.mxu0 0
    %2937 = vmatprep.subr.bf16.mxu0 0
    %2938 = vmatpush1.bf16.xpose.msra.mxu0 0
    %2939 = vmatprep.subr.bf16.mxu0 0
    %2940 = vmatpush1.bf16.xpose.msra.mxu0 0
    %2941 = vmatprep.subr.bf16.mxu0 0
    %2942 = vmatpush1.bf16.xpose.msra.mxu0 0
    %2943 = vmatprep.subr.bf16.mxu0 0
    %2944 = vmatpush1.bf16.xpose.msra.mxu0 0
    %2945 = vmatprep.subr.bf16.mxu0 0
    %2946 = vmatpush1.bf16.xpose.msra.mxu0 0
    %2947 = vmatprep.subr.bf16.mxu0 0
    %2948 = vmatpush1.bf16.xpose.msra.mxu0 0
    %2949 = vmatprep.subr.bf16.mxu0 0
    %2950 = vmatpush1.bf16.xpose.msra.mxu0 0
    %2951 = vmatprep.subr.bf16.mxu0 0
    %2952 = vmatpush1.bf16.xpose.msra.mxu0 0
    %2953 = vmatprep.subr.bf16.mxu0 0
    %2954 = vmatpush1.bf16.xpose.msra.mxu0 0
    %2955 = vmatprep.subr.bf16.mxu0 0
    %2956 = vmatpush1.bf16.xpose.msra.mxu0 0
    %2957 = vmatprep.subr.bf16.mxu0 0
    %2958 = vmatpush1.bf16.xpose.msra.mxu0 0
    %2959 = vmatprep.subr.bf16.mxu0 0
    %2960 = vmatpush1.bf16.xpose.msra.mxu0 0
    %2961 = vmatprep.subr.bf16.mxu0 0
    %2962 = vmatpush1.bf16.xpose.msra.mxu0 0
    %2963 = vmatprep.subr.bf16.mxu0 0
    %2964 = vmatpush1.bf16.xpose.msra.mxu0 0
    %2965 = vmatprep.mubr.bf16.mxu0 0
    %2966 = vmatmul.mubr.bf16.gmra.mrb[0].mxu0 %v2928
    %v2967 = vpop.f32.mrb[0].mxu0
    %v2968 = vadd.f32 0.0, %v2967
    %v2969 = vpop.f32.mrb[0].mxu0
    %v2970 = vpop.f32.mrb[0].mxu0
    %v2971 = vpop.f32.mrb[0].mxu0
    %2972 = vdwg.mxu0
    %v2974 = vsel %vm365, %v2922, 0
    %v2977 = vsel %vm365, %v2924, 0
    %2979 = vmatprep.subr.bf16.mxu0 0
    %2980 = vmatpush1.bf16.xpose.msra.mxu0 %v2977
    %2981 = vmatprep.subr.bf16.mxu0 0
    %2982 = vmatpush1.bf16.xpose.msra.mxu0 0
    %2983 = vmatprep.subr.bf16.mxu0 0
    %2984 = vmatpush1.bf16.xpose.msra.mxu0 0
    %2985 = vmatprep.subr.bf16.mxu0 0
    %2986 = vmatpush1.bf16.xpose.msra.mxu0 0
    %2987 = vmatprep.subr.bf16.mxu0 0
    %2988 = vmatpush1.bf16.xpose.msra.mxu0 0
    %2989 = vmatprep.subr.bf16.mxu0 0
    %2990 = vmatpush1.bf16.xpose.msra.mxu0 0
    %2991 = vmatprep.subr.bf16.mxu0 0
    %2992 = vmatpush1.bf16.xpose.msra.mxu0 0
    %2993 = vmatprep.subr.bf16.mxu0 0
    %2994 = vmatpush1.bf16.xpose.msra.mxu0 0
    %2995 = vmatprep.subr.bf16.mxu0 0
    %2996 = vmatpush1.bf16.xpose.msra.mxu0 0
    %2997 = vmatprep.subr.bf16.mxu0 0
    %2998 = vmatpush1.bf16.xpose.msra.mxu0 0
    %2999 = vmatprep.subr.bf16.mxu0 0
    %3000 = vmatpush1.bf16.xpose.msra.mxu0 0
    %3001 = vmatprep.subr.bf16.mxu0 0
    %3002 = vmatpush1.bf16.xpose.msra.mxu0 0
    %3003 = vmatprep.subr.bf16.mxu0 0
    %3004 = vmatpush1.bf16.xpose.msra.mxu0 0
    %3005 = vmatprep.subr.bf16.mxu0 0
    %3006 = vmatpush1.bf16.xpose.msra.mxu0 0
    %3007 = vmatprep.subr.bf16.mxu0 0
    %3008 = vmatpush1.bf16.xpose.msra.mxu0 0
    %3009 = vmatprep.subr.bf16.mxu0 0
    %3010 = vmatpush1.bf16.xpose.msra.mxu0 0
    %3011 = vmatprep.mubr.bf16.mxu0 0
    %3012 = vmatmul.mubr.bf16.gmra.mrb[0].mxu0 %v2974
    %v3013 = vpop.f32.mrb[0].mxu0
    %v3014 = vadd.f32 0.0, %v3013
    %v3015 = vpop.f32.mrb[0].mxu0
    %v3016 = vpop.f32.mrb[0].mxu0
    %v3017 = vpop.f32.mrb[0].mxu0
    %3018 = vdwg.mxu0
    %v3019 = vsel %vm365, %v2968, -inf
    %3020 = vmax.xlane.f32.xlu0 %v3019
    %v3021 = vpop.xlane.xlu0 %3020
    %v3022 = vsel %vm365, %v3014, -inf
    %3023 = vmax.xlane.f32.xlu0 %v3022
    %v3024 = vpop.xlane.xlu0 %3023
    %v3025 = vsub.f32 %v2968, %v3021
    %v3026 = vsub.f32 %v3014, %v3024
    %v3027 = vmul.f32 %v3025, 1.442695
    %v3028 = vpow.pop %v3027
    %v3029 = vmul.f32 %v3026, 1.442695
    %v3030 = vpow.pop %v3029
    %v3031 = vsel %vm365, %v3028, 0.0
    %3032 = vadd.xlane.f32.xlu0 %v3031
    %v3033 = vpop.xlane.xlu0 %3032
    %v3034 = vsel %vm365, %v3030, 0.0
    %3035 = vadd.xlane.f32.xlu0 %v3034
    %v3036 = vpop.xlane.xlu0 %3035
    %v3037 = vrcp.pop %v3033
    %v3038 = vrcp.pop %v3036
    %v3039 = vmul.f32 %v3028, %v3037
    %v3040 = vmul.f32 %v3030, %v3038
    %v3041 = vpack.c.bf16 %v3039, %v3039
    %v3042 = vpack.c.bf16 %v3040, %v3040
    %v3044 = vsel %vm365, %v3041, 0
    %v3047 = vsel %vm485, %v2925, 0
    %3049 = vmatprep.subr.bf16.mxu0 0
    %3050 = vmatpush1.bf16.msra.mxu0 %v3047
    %3051 = vmatprep.subr.bf16.mxu0 0
    %3052 = vmatpush1.bf16.msra.mxu0 0
    %3053 = vmatprep.subr.bf16.mxu0 0
    %3054 = vmatpush1.bf16.msra.mxu0 0
    %3055 = vmatprep.subr.bf16.mxu0 0
    %3056 = vmatpush1.bf16.msra.mxu0 0
    %3057 = vmatprep.subr.bf16.mxu0 0
    %3058 = vmatpush1.bf16.msra.mxu0 0
    %3059 = vmatprep.subr.bf16.mxu0 0
    %3060 = vmatpush1.bf16.msra.mxu0 0
    %3061 = vmatprep.subr.bf16.mxu0 0
    %3062 = vmatpush1.bf16.msra.mxu0 0
    %3063 = vmatprep.subr.bf16.mxu0 0
    %3064 = vmatpush1.bf16.msra.mxu0 0
    %3065 = vmatprep.subr.bf16.mxu0 0
    %3066 = vmatpush1.bf16.msra.mxu0 0
    %3067 = vmatprep.subr.bf16.mxu0 0
    %3068 = vmatpush1.bf16.msra.mxu0 0
    %3069 = vmatprep.subr.bf16.mxu0 0
    %3070 = vmatpush1.bf16.msra.mxu0 0
    %3071 = vmatprep.subr.bf16.mxu0 0
    %3072 = vmatpush1.bf16.msra.mxu0 0
    %3073 = vmatprep.subr.bf16.mxu0 0
    %3074 = vmatpush1.bf16.msra.mxu0 0
    %3075 = vmatprep.subr.bf16.mxu0 0
    %3076 = vmatpush1.bf16.msra.mxu0 0
    %3077 = vmatprep.subr.bf16.mxu0 0
    %3078 = vmatpush1.bf16.msra.mxu0 0
    %3079 = vmatprep.subr.bf16.mxu0 0
    %3080 = vmatpush1.bf16.msra.mxu0 0
    %3081 = vmatprep.mubr.bf16.mxu0 0
    %3082 = vmatmul.mubr.bf16.gmra.mrb[0].mxu0 %v3044
    %v3083 = vpop.f32.mrb[0].mxu0
    %v3084 = vadd.f32 0.0, %v3083
    %v3085 = vpop.f32.mrb[0].mxu0
    %v3086 = vpop.f32.mrb[0].mxu0
    %v3087 = vpop.f32.mrb[0].mxu0
    %3088 = vdwg.mxu0
    %v3090 = vsel %vm365, %v3042, 0
    %v3093 = vsel %vm485, %v2926, 0
    %3095 = vmatprep.subr.bf16.mxu0 0
    %3096 = vmatpush1.bf16.msra.mxu0 %v3093
    %3097 = vmatprep.subr.bf16.mxu0 0
    %3098 = vmatpush1.bf16.msra.mxu0 0
    %3099 = vmatprep.subr.bf16.mxu0 0
    %3100 = vmatpush1.bf16.msra.mxu0 0
    %3101 = vmatprep.subr.bf16.mxu0 0
    %3102 = vmatpush1.bf16.msra.mxu0 0
    %3103 = vmatprep.subr.bf16.mxu0 0
    %3104 = vmatpush1.bf16.msra.mxu0 0
    %3105 = vmatprep.subr.bf16.mxu0 0
    %3106 = vmatpush1.bf16.msra.mxu0 0
    %3107 = vmatprep.subr.bf16.mxu0 0
    %3108 = vmatpush1.bf16.msra.mxu0 0
    %3109 = vmatprep.subr.bf16.mxu0 0
    %3110 = vmatpush1.bf16.msra.mxu0 0
    %3111 = vmatprep.subr.bf16.mxu0 0
    %3112 = vmatpush1.bf16.msra.mxu0 0
    %3113 = vmatprep.subr.bf16.mxu0 0
    %3114 = vmatpush1.bf16.msra.mxu0 0
    %3115 = vmatprep.subr.bf16.mxu0 0
    %3116 = vmatpush1.bf16.msra.mxu0 0
    %3117 = vmatprep.subr.bf16.mxu0 0
    %3118 = vmatpush1.bf16.msra.mxu0 0
    %3119 = vmatprep.subr.bf16.mxu0 0
    %3120 = vmatpush1.bf16.msra.mxu0 0
    %3121 = vmatprep.subr.bf16.mxu0 0
    %3122 = vmatpush1.bf16.msra.mxu0 0
    %3123 = vmatprep.subr.bf16.mxu0 0
    %3124 = vmatpush1.bf16.msra.mxu0 0
    %3125 = vmatprep.subr.bf16.mxu0 0
    %3126 = vmatpush1.bf16.msra.mxu0 0
    %3127 = vmatprep.mubr.bf16.mxu0 0
    %3128 = vmatmul.mubr.bf16.gmra.mrb[0].mxu0 %v3090
    %v3129 = vpop.f32.mrb[0].mxu0
    %v3130 = vadd.f32 0.0, %v3129
    %v3131 = vpop.f32.mrb[0].mxu0
    %v3132 = vpop.f32.mrb[0].mxu0
    %v3133 = vpop.f32.mrb[0].mxu0
    %3134 = vdwg.mxu0
    %v3135 = vpack.c.bf16 %v3130, %v3084
    %v3136 = vld [vmem:[#allocation5 + $0xac] sm:$0xf]
    %v3138 = vsel %vm365, %v3135, 0
    %v3141 = vsel %vm485, %v3136, 0
    %3143 = vmatprep.subr.bf16.mxu0 0
    %3144 = vmatpush1.bf16.msra.mxu0 %v3141
    %3145 = vmatprep.subr.bf16.mxu0 0
    %3146 = vmatpush1.bf16.msra.mxu0 0
    %3147 = vmatprep.subr.bf16.mxu0 0
    %3148 = vmatpush1.bf16.msra.mxu0 0
    %3149 = vmatprep.subr.bf16.mxu0 0
    %3150 = vmatpush1.bf16.msra.mxu0 0
    %3151 = vmatprep.subr.bf16.mxu0 0
    %3152 = vmatpush1.bf16.msra.mxu0 0
    %3153 = vmatprep.subr.bf16.mxu0 0
    %3154 = vmatpush1.bf16.msra.mxu0 0
    %3155 = vmatprep.subr.bf16.mxu0 0
    %3156 = vmatpush1.bf16.msra.mxu0 0
    %3157 = vmatprep.subr.bf16.mxu0 0
    %3158 = vmatpush1.bf16.msra.mxu0 0
    %3159 = vmatprep.subr.bf16.mxu0 0
    %3160 = vmatpush1.bf16.msra.mxu0 0
    %3161 = vmatprep.subr.bf16.mxu0 0
    %3162 = vmatpush1.bf16.msra.mxu0 0
    %3163 = vmatprep.subr.bf16.mxu0 0
    %3164 = vmatpush1.bf16.msra.mxu0 0
    %3165 = vmatprep.subr.bf16.mxu0 0
    %3166 = vmatpush1.bf16.msra.mxu0 0
    %3167 = vmatprep.subr.bf16.mxu0 0
    %3168 = vmatpush1.bf16.msra.mxu0 0
    %3169 = vmatprep.subr.bf16.mxu0 0
    %3170 = vmatpush1.bf16.msra.mxu0 0
    %3171 = vmatprep.subr.bf16.mxu0 0
    %3172 = vmatpush1.bf16.msra.mxu0 0
    %3173 = vmatprep.subr.bf16.mxu0 0
    %3174 = vmatpush1.bf16.msra.mxu0 0
    %3175 = vmatprep.mubr.bf16.mxu0 0
    %3176 = vmatmul.mubr.bf16.gmra.mrb[0].mxu0 %v3138
    %v3177 = vpop.f32.mrb[0].mxu0
    %v3178 = vadd.f32 0.0, %v3177
    %v3179 = vpop.f32.mrb[0].mxu0
    %v3180 = vpop.f32.mrb[0].mxu0
    %v3181 = vadd.f32 0.0, %v3180
    %v3182 = vpop.f32.mrb[0].mxu0
    %3183 = vdwg.mxu0
    %v3185 = vsel %vm365, %v2709, 0
    %v3188 = vsel %vm485, %v2710, 0
    %3190 = vmatprep.subr.bf16.mxu0 0
    %3191 = vmatpush1.bf16.msra.mxu0 %v3188
    %3192 = vmatprep.subr.bf16.mxu0 0
    %3193 = vmatpush1.bf16.msra.mxu0 0
    %3194 = vmatprep.subr.bf16.mxu0 0
    %3195 = vmatpush1.bf16.msra.mxu0 0
    %3196 = vmatprep.subr.bf16.mxu0 0
    %3197 = vmatpush1.bf16.msra.mxu0 0
    %3198 = vmatprep.subr.bf16.mxu0 0
    %3199 = vmatpush1.bf16.msra.mxu0 0
    %3200 = vmatprep.subr.bf16.mxu0 0
    %3201 = vmatpush1.bf16.msra.mxu0 0
    %3202 = vmatprep.subr.bf16.mxu0 0
    %3203 = vmatpush1.bf16.msra.mxu0 0
    %3204 = vmatprep.subr.bf16.mxu0 0
    %3205 = vmatpush1.bf16.msra.mxu0 0
    %3206 = vmatprep.subr.bf16.mxu0 0
    %3207 = vmatpush1.bf16.msra.mxu0 0
    %3208 = vmatprep.subr.bf16.mxu0 0
    %3209 = vmatpush1.bf16.msra.mxu0 0
    %3210 = vmatprep.subr.bf16.mxu0 0
    %3211 = vmatpush1.bf16.msra.mxu0 0
    %3212 = vmatprep.subr.bf16.mxu0 0
    %3213 = vmatpush1.bf16.msra.mxu0 0
    %3214 = vmatprep.subr.bf16.mxu0 0
    %3215 = vmatpush1.bf16.msra.mxu0 0
    %3216 = vmatprep.subr.bf16.mxu0 0
    %3217 = vmatpush1.bf16.msra.mxu0 0
    %3218 = vmatprep.subr.bf16.mxu0 0
    %3219 = vmatpush1.bf16.msra.mxu0 0
    %3220 = vmatprep.subr.bf16.mxu0 0
    %3221 = vmatpush1.bf16.msra.mxu0 0
    %3222 = vmatprep.mubr.bf16.mxu0 0
    %3223 = vmatmul.mubr.bf16.gmra.mrb[0].mxu0 %v3185
    %v3224 = vpop.f32.mrb[0].mxu0
    %v3225 = vadd.f32 %v3178, %v3224
    %v3226 = vpop.f32.mrb[0].mxu0
    %v3227 = vpop.f32.mrb[0].mxu0
    %v3228 = vadd.f32 %v3181, %v3227
    %v3229 = vpop.f32.mrb[0].mxu0
    %3230 = vdwg.mxu0
    %v3231 = vld [vmem:[#allocation5 + $0x78] sm:$0xf]
    %v3232 = vld [vmem:[#allocation5 + $0x7c] sm:$0xf]
    %v3233 = vld [vmem:[#allocation5 + $0x80] sm:$0xf]
    %v3234 = vld [vmem:[#allocation5 + $0x84] sm:$0xf]
    %v3235 = vld [vmem:[#allocation7 + $0x15] sm:$0x1]
    %v3236 = vlaneseq
    %v3237 = vshrl.u32 %v3236, 7
    %v3238 = vsub.s32 0, %v3237
    %v3239 = vrot.slane %v3235, %v3238
    %v3244 = vunpack.c.l.b16 %v3231
    %v3245 = vunpack.c.l.b16 %v3232
    %v3246 = vunpack.c.l.b16 %v3233
    %v3247 = vunpack.c.l.b16 %v3234
    %v3248 = vpack.c.b16 %v3245, %v3244
    %v3249 = vpack.c.b16 %v3247, %v3246
    %3250 = vrot.lane.b32.xlu0 %v3248, 112
    %v3251 = vpop.permute.xlu0 %3250
    %3252 = vrot.lane.b32.xlu0 %v3249, 112
    %v3253 = vpop.permute.xlu0 %3252
    %3257 = vrot.lane.b32.xlu0 %v3239, 112
    %v3258 = vpop.permute.xlu0 %3257
    %3260 = vmatprep.subr.bf16.mxu0 0
    %3261 = vmatpush1.bf16.msra.mxu0 %v3251
    %3262 = vmatprep.subr.bf16.mxu0 0
    %3263 = vmatpush1.bf16.msra.mxu0 %v3253
    %3264 = vmatprep.subr.bf16.mxu0 0
    %3265 = vmatpush1.bf16.msra.mxu0 0
    %3266 = vmatprep.subr.bf16.mxu0 0
    %3267 = vmatpush1.bf16.msra.mxu0 0
    %3268 = vmatprep.subr.bf16.mxu0 0
    %3269 = vmatpush1.bf16.msra.mxu0 0
    %3270 = vmatprep.subr.bf16.mxu0 0
    %3271 = vmatpush1.bf16.msra.mxu0 0
    %3272 = vmatprep.subr.bf16.mxu0 0
    %3273 = vmatpush1.bf16.msra.mxu0 0
    %3274 = vmatprep.subr.bf16.mxu0 0
    %3275 = vmatpush1.bf16.msra.mxu0 0
    %3276 = vmatprep.subr.bf16.mxu0 0
    %3277 = vmatpush1.bf16.msra.mxu0 0
    %3278 = vmatprep.subr.bf16.mxu0 0
    %3279 = vmatpush1.bf16.msra.mxu0 0
    %3280 = vmatprep.subr.bf16.mxu0 0
    %3281 = vmatpush1.bf16.msra.mxu0 0
    %3282 = vmatprep.subr.bf16.mxu0 0
    %3283 = vmatpush1.bf16.msra.mxu0 0
    %3284 = vmatprep.subr.bf16.mxu0 0
    %3285 = vmatpush1.bf16.msra.mxu0 0
    %3286 = vmatprep.subr.bf16.mxu0 0
    %3287 = vmatpush1.bf16.msra.mxu0 0
    %3288 = vmatprep.subr.bf16.mxu0 0
    %3289 = vmatpush1.bf16.msra.mxu0 0
    %3290 = vmatprep.subr.bf16.mxu0 0
    %3291 = vmatpush1.bf16.msra.mxu0 0
    %3292 = vmatprep.mubr.bf16.mxu0 0
    %3293 = vmatmul.mubr.bf16.gmra.mrb[0].mxu0 %v2328
    %v3294 = vpop.f32.mrb[0].mxu0
    %v3295 = vadd.f32 %v3258, %v3294
    %v3296 = vpop.f32.mrb[0].mxu0
    %v3297 = vpop.f32.mrb[0].mxu0
    %v3298 = vadd.f32 %v3258, %v3297
    %v3299 = vpop.f32.mrb[0].mxu0
    %3300 = vdwg.mxu0
    %v3301 = vld [vmem:[#allocation5 + $0x88] sm:$0xf]
    %v3302 = vld [vmem:[#allocation5 + $0x8c] sm:$0xf]
    %v3303 = vld [vmem:[#allocation5 + $0x90] sm:$0xf]
    %v3304 = vld [vmem:[#allocation5 + $0x94] sm:$0xf]
    %v3305 = vld [vmem:[#allocation7 + $0x16] sm:$0x1]
    %v3306 = vlaneseq
    %v3307 = vshrl.u32 %v3306, 7
    %v3308 = vsub.s32 0, %v3307
    %v3309 = vrot.slane %v3305, %v3308
    %v3314 = vunpack.c.l.b16 %v3301
    %v3315 = vunpack.c.l.b16 %v3302
    %v3316 = vunpack.c.l.b16 %v3303
    %v3317 = vunpack.c.l.b16 %v3304
    %v3318 = vpack.c.b16 %v3315, %v3314
    %v3319 = vpack.c.b16 %v3317, %v3316
    %3320 = vrot.lane.b32.xlu0 %v3318, 112
    %v3321 = vpop.permute.xlu0 %3320
    %3322 = vrot.lane.b32.xlu0 %v3319, 112
    %v3323 = vpop.permute.xlu0 %3322
    %3327 = vrot.lane.b32.xlu0 %v3309, 112
    %v3328 = vpop.permute.xlu0 %3327
    %3330 = vmatprep.subr.bf16.mxu0 0
    %3331 = vmatpush1.bf16.msra.mxu0 %v3321
    %3332 = vmatprep.subr.bf16.mxu0 0
    %3333 = vmatpush1.bf16.msra.mxu0 %v3323
    %3334 = vmatprep.subr.bf16.mxu0 0
    %3335 = vmatpush1.bf16.msra.mxu0 0
    %3336 = vmatprep.subr.bf16.mxu0 0
    %3337 = vmatpush1.bf16.msra.mxu0 0
    %3338 = vmatprep.subr.bf16.mxu0 0
    %3339 = vmatpush1.bf16.msra.mxu0 0
    %3340 = vmatprep.subr.bf16.mxu0 0
    %3341 = vmatpush1.bf16.msra.mxu0 0
    %3342 = vmatprep.subr.bf16.mxu0 0
    %3343 = vmatpush1.bf16.msra.mxu0 0
    %3344 = vmatprep.subr.bf16.mxu0 0
    %3345 = vmatpush1.bf16.msra.mxu0 0
    %3346 = vmatprep.subr.bf16.mxu0 0
    %3347 = vmatpush1.bf16.msra.mxu0 0
    %3348 = vmatprep.subr.bf16.mxu0 0
    %3349 = vmatpush1.bf16.msra.mxu0 0
    %3350 = vmatprep.subr.bf16.mxu0 0
    %3351 = vmatpush1.bf16.msra.mxu0 0
    %3352 = vmatprep.subr.bf16.mxu0 0
    %3353 = vmatpush1.bf16.msra.mxu0 0
    %3354 = vmatprep.subr.bf16.mxu0 0
    %3355 = vmatpush1.bf16.msra.mxu0 0
    %3356 = vmatprep.subr.bf16.mxu0 0
    %3357 = vmatpush1.bf16.msra.mxu0 0
    %3358 = vmatprep.subr.bf16.mxu0 0
    %3359 = vmatpush1.bf16.msra.mxu0 0
    %3360 = vmatprep.subr.bf16.mxu0 0
    %3361 = vmatpush1.bf16.msra.mxu0 0
    %3362 = vmatprep.mubr.bf16.mxu0 0
    %3363 = vmatmul.mubr.bf16.gmra.mrb[0].mxu0 %v2328
    %v3364 = vpop.f32.mrb[0].mxu0
    %v3365 = vadd.f32 %v3328, %v3364
    %v3366 = vpop.f32.mrb[0].mxu0
    %v3367 = vpop.f32.mrb[0].mxu0
    %v3368 = vadd.f32 %v3328, %v3367
    %v3369 = vpop.f32.mrb[0].mxu0
    %3370 = vdwg.mxu0
    %v3371 = vld [vmem:[#allocation5 + $0x98] sm:$0xf]
    %v3372 = vld [vmem:[#allocation5 + $0x9c] sm:$0xf]
    %v3373 = vld [vmem:[#allocation5 + $0xa0] sm:$0xf]
    %v3374 = vld [vmem:[#allocation5 + $0xa4] sm:$0xf]
    %v3375 = vld [vmem:[#allocation7 + $0x17] sm:$0x1]
    %v3376 = vlaneseq
    %v3377 = vshrl.u32 %v3376, 7
    %v3378 = vsub.s32 0, %v3377
    %v3379 = vrot.slane %v3375, %v3378
    %v3384 = vunpack.c.l.b16 %v3371
    %v3385 = vunpack.c.l.b16 %v3372
    %v3386 = vunpack.c.l.b16 %v3373
    %v3387 = vunpack.c.l.b16 %v3374
    %v3388 = vpack.c.b16 %v3385, %v3384
    %v3389 = vpack.c.b16 %v3387, %v3386
    %3390 = vrot.lane.b32.xlu0 %v3388, 112
    %v3391 = vpop.permute.xlu0 %3390
    %3392 = vrot.lane.b32.xlu0 %v3389, 112
    %v3393 = vpop.permute.xlu0 %3392
    %3397 = vrot.lane.b32.xlu0 %v3379, 112
    %v3398 = vpop.permute.xlu0 %3397
    %3400 = vmatprep.subr.bf16.mxu0 0
    %3401 = vmatpush1.bf16.msra.mxu0 %v3391
    %3402 = vmatprep.subr.bf16.mxu0 0
    %3403 = vmatpush1.bf16.msra.mxu0 %v3393
    %3404 = vmatprep.subr.bf16.mxu0 0
    %3405 = vmatpush1.bf16.msra.mxu0 0
    %3406 = vmatprep.subr.bf16.mxu0 0
    %3407 = vmatpush1.bf16.msra.mxu0 0
    %3408 = vmatprep.subr.bf16.mxu0 0
    %3409 = vmatpush1.bf16.msra.mxu0 0
    %3410 = vmatprep.subr.bf16.mxu0 0
    %3411 = vmatpush1.bf16.msra.mxu0 0
    %3412 = vmatprep.subr.bf16.mxu0 0
    %3413 = vmatpush1.bf16.msra.mxu0 0
    %3414 = vmatprep.subr.bf16.mxu0 0
    %3415 = vmatpush1.bf16.msra.mxu0 0
    %3416 = vmatprep.subr.bf16.mxu0 0
    %3417 = vmatpush1.bf16.msra.mxu0 0
    %3418 = vmatprep.subr.bf16.mxu0 0
    %3419 = vmatpush1.bf16.msra.mxu0 0
    %3420 = vmatprep.subr.bf16.mxu0 0
    %3421 = vmatpush1.bf16.msra.mxu0 0
    %3422 = vmatprep.subr.bf16.mxu0 0
    %3423 = vmatpush1.bf16.msra.mxu0 0
    %3424 = vmatprep.subr.bf16.mxu0 0
    %3425 = vmatpush1.bf16.msra.mxu0 0
    %3426 = vmatprep.subr.bf16.mxu0 0
    %3427 = vmatpush1.bf16.msra.mxu0 0
    %3428 = vmatprep.subr.bf16.mxu0 0
    %3429 = vmatpush1.bf16.msra.mxu0 0
    %3430 = vmatprep.subr.bf16.mxu0 0
    %3431 = vmatpush1.bf16.msra.mxu0 0
    %3432 = vmatprep.mubr.bf16.mxu0 0
    %3433 = vmatmul.mubr.bf16.gmra.mrb[0].mxu0 %v2328
    %v3434 = vpop.f32.mrb[0].mxu0
    %v3435 = vadd.f32 %v3398, %v3434
    %v3436 = vpop.f32.mrb[0].mxu0
    %v3437 = vpop.f32.mrb[0].mxu0
    %v3438 = vadd.f32 %v3398, %v3437
    %v3439 = vpop.f32.mrb[0].mxu0
    %3440 = vdwg.mxu0
    %v3441 = vpack.c.bf16 %v3295, %v3295
    %v3442 = vpack.c.bf16 %v3298, %v3298
    %v3443 = vpack.c.bf16 %v3365, %v3365
    %v3444 = vpack.c.bf16 %v3368, %v3368
    %v3445 = vpack.c.bf16 %v3435, %v3435
    %v3446 = vpack.c.bf16 %v3438, %v3438
    %v3448 = vsel %vm365, %v3441, 0
    %v3451 = vsel %vm365, %v3443, 0
    %3453 = vmatprep.subr.bf16.mxu0 0
    %3454 = vmatpush1.bf16.xpose.msra.mxu0 %v3451
    %3455 = vmatprep.subr.bf16.mxu0 0
    %3456 = vmatpush1.bf16.xpose.msra.mxu0 0
    %3457 = vmatprep.subr.bf16.mxu0 0
    %3458 = vmatpush1.bf16.xpose.msra.mxu0 0
    %3459 = vmatprep.subr.bf16.mxu0 0
    %3460 = vmatpush1.bf16.xpose.msra.mxu0 0
    %3461 = vmatprep.subr.bf16.mxu0 0
    %3462 = vmatpush1.bf16.xpose.msra.mxu0 0
    %3463 = vmatprep.subr.bf16.mxu0 0
    %3464 = vmatpush1.bf16.xpose.msra.mxu0 0
    %3465 = vmatprep.subr.bf16.mxu0 0
    %3466 = vmatpush1.bf16.xpose.msra.mxu0 0
    %3467 = vmatprep.subr.bf16.mxu0 0
    %3468 = vmatpush1.bf16.xpose.msra.mxu0 0
    %3469 = vmatprep.subr.bf16.mxu0 0
    %3470 = vmatpush1.bf16.xpose.msra.mxu0 0
    %3471 = vmatprep.subr.bf16.mxu0 0
    %3472 = vmatpush1.bf16.xpose.msra.mxu0 0
    %3473 = vmatprep.subr.bf16.mxu0 0
    %3474 = vmatpush1.bf16.xpose.msra.mxu0 0
    %3475 = vmatprep.subr.bf16.mxu0 0
    %3476 = vmatpush1.bf16.xpose.msra.mxu0 0
    %3477 = vmatprep.subr.bf16.mxu0 0
    %3478 = vmatpush1.bf16.xpose.msra.mxu0 0
    %3479 = vmatprep.subr.bf16.mxu0 0
    %3480 = vmatpush1.bf16.xpose.msra.mxu0 0
    %3481 = vmatprep.subr.bf16.mxu0 0
    %3482 = vmatpush1.bf16.xpose.msra.mxu0 0
    %3483 = vmatprep.subr.bf16.mxu0 0
    %3484 = vmatpush1.bf16.xpose.msra.mxu0 0
    %3485 = vmatprep.mubr.bf16.mxu0 0
    %3486 = vmatmul.mubr.bf16.gmra.mrb[0].mxu0 %v3448
    %v3487 = vpop.f32.mrb[0].mxu0
    %v3488 = vadd.f32 0.0, %v3487
    %v3489 = vpop.f32.mrb[0].mxu0
    %v3490 = vpop.f32.mrb[0].mxu0
    %v3491 = vpop.f32.mrb[0].mxu0
    %3492 = vdwg.mxu0
    %v3494 = vsel %vm365, %v3442, 0
    %v3497 = vsel %vm365, %v3444, 0
    %3499 = vmatprep.subr.bf16.mxu0 0
    %3500 = vmatpush1.bf16.xpose.msra.mxu0 %v3497
    %3501 = vmatprep.subr.bf16.mxu0 0
    %3502 = vmatpush1.bf16.xpose.msra.mxu0 0
    %3503 = vmatprep.subr.bf16.mxu0 0
    %3504 = vmatpush1.bf16.xpose.msra.mxu0 0
    %3505 = vmatprep.subr.bf16.mxu0 0
    %3506 = vmatpush1.bf16.xpose.msra.mxu0 0
    %3507 = vmatprep.subr.bf16.mxu0 0
    %3508 = vmatpush1.bf16.xpose.msra.mxu0 0
    %3509 = vmatprep.subr.bf16.mxu0 0
    %3510 = vmatpush1.bf16.xpose.msra.mxu0 0
    %3511 = vmatprep.subr.bf16.mxu0 0
    %3512 = vmatpush1.bf16.xpose.msra.mxu0 0
    %3513 = vmatprep.subr.bf16.mxu0 0
    %3514 = vmatpush1.bf16.xpose.msra.mxu0 0
    %3515 = vmatprep.subr.bf16.mxu0 0
    %3516 = vmatpush1.bf16.xpose.msra.mxu0 0
    %3517 = vmatprep.subr.bf16.mxu0 0
    %3518 = vmatpush1.bf16.xpose.msra.mxu0 0
    %3519 = vmatprep.subr.bf16.mxu0 0
    %3520 = vmatpush1.bf16.xpose.msra.mxu0 0
    %3521 = vmatprep.subr.bf16.mxu0 0
    %3522 = vmatpush1.bf16.xpose.msra.mxu0 0
    %3523 = vmatprep.subr.bf16.mxu0 0
    %3524 = vmatpush1.bf16.xpose.msra.mxu0 0
    %3525 = vmatprep.subr.bf16.mxu0 0
    %3526 = vmatpush1.bf16.xpose.msra.mxu0 0
    %3527 = vmatprep.subr.bf16.mxu0 0
    %3528 = vmatpush1.bf16.xpose.msra.mxu0 0
    %3529 = vmatprep.subr.bf16.mxu0 0
    %3530 = vmatpush1.bf16.xpose.msra.mxu0 0
    %3531 = vmatprep.mubr.bf16.mxu0 0
    %3532 = vmatmul.mubr.bf16.gmra.mrb[0].mxu0 %v3494
    %v3533 = vpop.f32.mrb[0].mxu0
    %v3534 = vadd.f32 0.0, %v3533
    %v3535 = vpop.f32.mrb[0].mxu0
    %v3536 = vpop.f32.mrb[0].mxu0
    %v3537 = vpop.f32.mrb[0].mxu0
    %3538 = vdwg.mxu0
    %v3539 = vsel %vm365, %v3488, -inf
    %3540 = vmax.xlane.f32.xlu0 %v3539
    %v3541 = vpop.xlane.xlu0 %3540
    %v3542 = vsel %vm365, %v3534, -inf
    %3543 = vmax.xlane.f32.xlu0 %v3542
    %v3544 = vpop.xlane.xlu0 %3543
    %v3545 = vsub.f32 %v3488, %v3541
    %v3546 = vsub.f32 %v3534, %v3544
    %v3547 = vmul.f32 %v3545, 1.442695
    %v3548 = vpow.pop %v3547
    %v3549 = vmul.f32 %v3546, 1.442695
    %v3550 = vpow.pop %v3549
    %v3551 = vsel %vm365, %v3548, 0.0
    %3552 = vadd.xlane.f32.xlu0 %v3551
    %v3553 = vpop.xlane.xlu0 %3552
    %v3554 = vsel %vm365, %v3550, 0.0
    %3555 = vadd.xlane.f32.xlu0 %v3554
    %v3556 = vpop.xlane.xlu0 %3555
    %v3557 = vrcp.pop %v3553
    %v3558 = vrcp.pop %v3556
    %v3559 = vmul.f32 %v3548, %v3557
    %v3560 = vmul.f32 %v3550, %v3558
    %v3561 = vpack.c.bf16 %v3559, %v3559
    %v3562 = vpack.c.bf16 %v3560, %v3560
    %v3564 = vsel %vm365, %v3561, 0
    %v3567 = vsel %vm485, %v3445, 0
    %3569 = vmatprep.subr.bf16.mxu0 0
    %3570 = vmatpush1.bf16.msra.mxu0 %v3567
    %3571 = vmatprep.subr.bf16.mxu0 0
    %3572 = vmatpush1.bf16.msra.mxu0 0
    %3573 = vmatprep.subr.bf16.mxu0 0
    %3574 = vmatpush1.bf16.msra.mxu0 0
    %3575 = vmatprep.subr.bf16.mxu0 0
    %3576 = vmatpush1.bf16.msra.mxu0 0
    %3577 = vmatprep.subr.bf16.mxu0 0
    %3578 = vmatpush1.bf16.msra.mxu0 0
    %3579 = vmatprep.subr.bf16.mxu0 0
    %3580 = vmatpush1.bf16.msra.mxu0 0
    %3581 = vmatprep.subr.bf16.mxu0 0
    %3582 = vmatpush1.bf16.msra.mxu0 0
    %3583 = vmatprep.subr.bf16.mxu0 0
    %3584 = vmatpush1.bf16.msra.mxu0 0
    %3585 = vmatprep.subr.bf16.mxu0 0
    %3586 = vmatpush1.bf16.msra.mxu0 0
    %3587 = vmatprep.subr.bf16.mxu0 0
    %3588 = vmatpush1.bf16.msra.mxu0 0
    %3589 = vmatprep.subr.bf16.mxu0 0
    %3590 = vmatpush1.bf16.msra.mxu0 0
    %3591 = vmatprep.subr.bf16.mxu0 0
    %3592 = vmatpush1.bf16.msra.mxu0 0
    %3593 = vmatprep.subr.bf16.mxu0 0
    %3594 = vmatpush1.bf16.msra.mxu0 0
    %3595 = vmatprep.subr.bf16.mxu0 0
    %3596 = vmatpush1.bf16.msra.mxu0 0
    %3597 = vmatprep.subr.bf16.mxu0 0
    %3598 = vmatpush1.bf16.msra.mxu0 0
    %3599 = vmatprep.subr.bf16.mxu0 0
    %3600 = vmatpush1.bf16.msra.mxu0 0
    %3601 = vmatprep.mubr.bf16.mxu0 0
    %3602 = vmatmul.mubr.bf16.gmra.mrb[0].mxu0 %v3564
    %v3603 = vpop.f32.mrb[0].mxu0
    %v3604 = vadd.f32 0.0, %v3603
    %v3605 = vpop.f32.mrb[0].mxu0
    %v3606 = vpop.f32.mrb[0].mxu0
    %v3607 = vpop.f32.mrb[0].mxu0
    %3608 = vdwg.mxu0
    %v3610 = vsel %vm365, %v3562, 0
    %v3613 = vsel %vm485, %v3446, 0
    %3615 = vmatprep.subr.bf16.mxu0 0
    %3616 = vmatpush1.bf16.msra.mxu0 %v3613
    %3617 = vmatprep.subr.bf16.mxu0 0
    %3618 = vmatpush1.bf16.msra.mxu0 0
    %3619 = vmatprep.subr.bf16.mxu0 0
    %3620 = vmatpush1.bf16.msra.mxu0 0
    %3621 = vmatprep.subr.bf16.mxu0 0
    %3622 = vmatpush1.bf16.msra.mxu0 0
    %3623 = vmatprep.subr.bf16.mxu0 0
    %3624 = vmatpush1.bf16.msra.mxu0 0
    %3625 = vmatprep.subr.bf16.mxu0 0
    %3626 = vmatpush1.bf16.msra.mxu0 0
    %3627 = vmatprep.subr.bf16.mxu0 0
    %3628 = vmatpush1.bf16.msra.mxu0 0
    %3629 = vmatprep.subr.bf16.mxu0 0
    %3630 = vmatpush1.bf16.msra.mxu0 0
    %3631 = vmatprep.subr.bf16.mxu0 0
    %3632 = vmatpush1.bf16.msra.mxu0 0
    %3633 = vmatprep.subr.bf16.mxu0 0
    %3634 = vmatpush1.bf16.msra.mxu0 0
    %3635 = vmatprep.subr.bf16.mxu0 0
    %3636 = vmatpush1.bf16.msra.mxu0 0
    %3637 = vmatprep.subr.bf16.mxu0 0
    %3638 = vmatpush1.bf16.msra.mxu0 0
    %3639 = vmatprep.subr.bf16.mxu0 0
    %3640 = vmatpush1.bf16.msra.mxu0 0
    %3641 = vmatprep.subr.bf16.mxu0 0
    %3642 = vmatpush1.bf16.msra.mxu0 0
    %3643 = vmatprep.subr.bf16.mxu0 0
    %3644 = vmatpush1.bf16.msra.mxu0 0
    %3645 = vmatprep.subr.bf16.mxu0 0
    %3646 = vmatpush1.bf16.msra.mxu0 0
    %3647 = vmatprep.mubr.bf16.mxu0 0
    %3648 = vmatmul.mubr.bf16.gmra.mrb[0].mxu0 %v3610
    %v3649 = vpop.f32.mrb[0].mxu0
    %v3650 = vadd.f32 0.0, %v3649
    %v3651 = vpop.f32.mrb[0].mxu0
    %v3652 = vpop.f32.mrb[0].mxu0
    %v3653 = vpop.f32.mrb[0].mxu0
    %3654 = vdwg.mxu0
    %v3655 = vpack.c.bf16 %v3650, %v3604
    %v3656 = vld [vmem:[#allocation5 + $0xb0] sm:$0xf]
    %v3658 = vsel %vm365, %v3655, 0
    %v3661 = vsel %vm485, %v3656, 0
    %3663 = vmatprep.subr.bf16.mxu0 0
    %3664 = vmatpush1.bf16.msra.mxu0 %v3661
    %3665 = vmatprep.subr.bf16.mxu0 0
    %3666 = vmatpush1.bf16.msra.mxu0 0
    %3667 = vmatprep.subr.bf16.mxu0 0
    %3668 = vmatpush1.bf16.msra.mxu0 0
    %3669 = vmatprep.subr.bf16.mxu0 0
    %3670 = vmatpush1.bf16.msra.mxu0 0
    %3671 = vmatprep.subr.bf16.mxu0 0
    %3672 = vmatpush1.bf16.msra.mxu0 0
    %3673 = vmatprep.subr.bf16.mxu0 0
    %3674 = vmatpush1.bf16.msra.mxu0 0
    %3675 = vmatprep.subr.bf16.mxu0 0
    %3676 = vmatpush1.bf16.msra.mxu0 0
    %3677 = vmatprep.subr.bf16.mxu0 0
    %3678 = vmatpush1.bf16.msra.mxu0 0
    %3679 = vmatprep.subr.bf16.mxu0 0
    %3680 = vmatpush1.bf16.msra.mxu0 0
    %3681 = vmatprep.subr.bf16.mxu0 0
    %3682 = vmatpush1.bf16.msra.mxu0 0
    %3683 = vmatprep.subr.bf16.mxu0 0
    %3684 = vmatpush1.bf16.msra.mxu0 0
    %3685 = vmatprep.subr.bf16.mxu0 0
    %3686 = vmatpush1.bf16.msra.mxu0 0
    %3687 = vmatprep.subr.bf16.mxu0 0
    %3688 = vmatpush1.bf16.msra.mxu0 0
    %3689 = vmatprep.subr.bf16.mxu0 0
    %3690 = vmatpush1.bf16.msra.mxu0 0
    %3691 = vmatprep.subr.bf16.mxu0 0
    %3692 = vmatpush1.bf16.msra.mxu0 0
    %3693 = vmatprep.subr.bf16.mxu0 0
    %3694 = vmatpush1.bf16.msra.mxu0 0
    %3695 = vmatprep.mubr.bf16.mxu0 0
    %3696 = vmatmul.mubr.bf16.gmra.mrb[0].mxu0 %v3658
    %v3697 = vpop.f32.mrb[0].mxu0
    %v3698 = vadd.f32 0.0, %v3697
    %v3699 = vpop.f32.mrb[0].mxu0
    %v3700 = vpop.f32.mrb[0].mxu0
    %v3701 = vadd.f32 0.0, %v3700
    %v3702 = vpop.f32.mrb[0].mxu0
    %3703 = vdwg.mxu0
    %v3704 = vadd.f32 %v3225, %v3698
    %v3705 = vadd.f32 %v3228, %v3701
    %v3706 = vld [vmem:[#allocation5 + $0x78] sm:$0xf]
    %v3707 = vld [vmem:[#allocation5 + $0x7c] sm:$0xf]
    %v3708 = vld [vmem:[#allocation5 + $0x80] sm:$0xf]
    %v3709 = vld [vmem:[#allocation5 + $0x84] sm:$0xf]
    %v3710 = vld [vmem:[#allocation7 + $0x15] sm:$0x1]
    %v3711 = vlaneseq
    %v3712 = vshrl.u32 %v3711, 7
    %v3713 = vsub.s32 0, %v3712
    %v3714 = vrot.slane %v3710, %v3713
    %v3719 = vunpack.c.l.b16 %v3706
    %v3720 = vunpack.c.l.b16 %v3707
    %v3721 = vunpack.c.l.b16 %v3708
    %v3722 = vunpack.c.l.b16 %v3709
    %v3723 = vpack.c.b16 %v3720, %v3719
    %v3724 = vpack.c.b16 %v3722, %v3721
    %3725 = vrot.lane.b32.xlu0 %v3723, 104
    %v3726 = vpop.permute.xlu0 %3725
    %3727 = vrot.lane.b32.xlu0 %v3724, 104
    %v3728 = vpop.permute.xlu0 %3727
    %3732 = vrot.lane.b32.xlu0 %v3714, 104
    %v3733 = vpop.permute.xlu0 %3732
    %3735 = vmatprep.subr.bf16.mxu0 0
    %3736 = vmatpush1.bf16.msra.mxu0 %v3726
    %3737 = vmatprep.subr.bf16.mxu0 0
    %3738 = vmatpush1.bf16.msra.mxu0 %v3728
    %3739 = vmatprep.subr.bf16.mxu0 0
    %3740 = vmatpush1.bf16.msra.mxu0 0
    %3741 = vmatprep.subr.bf16.mxu0 0
    %3742 = vmatpush1.bf16.msra.mxu0 0
    %3743 = vmatprep.subr.bf16.mxu0 0
    %3744 = vmatpush1.bf16.msra.mxu0 0
    %3745 = vmatprep.subr.bf16.mxu0 0
    %3746 = vmatpush1.bf16.msra.mxu0 0
    %3747 = vmatprep.subr.bf16.mxu0 0
    %3748 = vmatpush1.bf16.msra.mxu0 0
    %3749 = vmatprep.subr.bf16.mxu0 0
    %3750 = vmatpush1.bf16.msra.mxu0 0
    %3751 = vmatprep.subr.bf16.mxu0 0
    %3752 = vmatpush1.bf16.msra.mxu0 0
    %3753 = vmatprep.subr.bf16.mxu0 0
    %3754 = vmatpush1.bf16.msra.mxu0 0
    %3755 = vmatprep.subr.bf16.mxu0 0
    %3756 = vmatpush1.bf16.msra.mxu0 0
    %3757 = vmatprep.subr.bf16.mxu0 0
    %3758 = vmatpush1.bf16.msra.mxu0 0
    %3759 = vmatprep.subr.bf16.mxu0 0
    %3760 = vmatpush1.bf16.msra.mxu0 0
    %3761 = vmatprep.subr.bf16.mxu0 0
    %3762 = vmatpush1.bf16.msra.mxu0 0
    %3763 = vmatprep.subr.bf16.mxu0 0
    %3764 = vmatpush1.bf16.msra.mxu0 0
    %3765 = vmatprep.subr.bf16.mxu0 0
    %3766 = vmatpush1.bf16.msra.mxu0 0
    %3767 = vmatprep.mubr.bf16.mxu0 0
    %3768 = vmatmul.mubr.bf16.gmra.mrb[0].mxu0 %v2328
    %v3769 = vpop.f32.mrb[0].mxu0
    %v3770 = vadd.f32 %v3733, %v3769
    %v3771 = vpop.f32.mrb[0].mxu0
    %v3772 = vpop.f32.mrb[0].mxu0
    %v3773 = vadd.f32 %v3733, %v3772
    %v3774 = vpop.f32.mrb[0].mxu0
    %3775 = vdwg.mxu0
    %v3776 = vld [vmem:[#allocation5 + $0x88] sm:$0xf]
    %v3777 = vld [vmem:[#allocation5 + $0x8c] sm:$0xf]
    %v3778 = vld [vmem:[#allocation5 + $0x90] sm:$0xf]
    %v3779 = vld [vmem:[#allocation5 + $0x94] sm:$0xf]
    %v3780 = vld [vmem:[#allocation7 + $0x16] sm:$0x1]
    %v3781 = vlaneseq
    %v3782 = vshrl.u32 %v3781, 7
    %v3783 = vsub.s32 0, %v3782
    %v3784 = vrot.slane %v3780, %v3783
    %v3789 = vunpack.c.l.b16 %v3776
    %v3790 = vunpack.c.l.b16 %v3777
    %v3791 = vunpack.c.l.b16 %v3778
    %v3792 = vunpack.c.l.b16 %v3779
    %v3793 = vpack.c.b16 %v3790, %v3789
    %v3794 = vpack.c.b16 %v3792, %v3791
    %3795 = vrot.lane.b32.xlu0 %v3793, 104
    %v3796 = vpop.permute.xlu0 %3795
    %3797 = vrot.lane.b32.xlu0 %v3794, 104
    %v3798 = vpop.permute.xlu0 %3797
    %3802 = vrot.lane.b32.xlu0 %v3784, 104
    %v3803 = vpop.permute.xlu0 %3802
    %3805 = vmatprep.subr.bf16.mxu0 0
    %3806 = vmatpush1.bf16.msra.mxu0 %v3796
    %3807 = vmatprep.subr.bf16.mxu0 0
    %3808 = vmatpush1.bf16.msra.mxu0 %v3798
    %3809 = vmatprep.subr.bf16.mxu0 0
    %3810 = vmatpush1.bf16.msra.mxu0 0
    %3811 = vmatprep.subr.bf16.mxu0 0
    %3812 = vmatpush1.bf16.msra.mxu0 0
    %3813 = vmatprep.subr.bf16.mxu0 0
    %3814 = vmatpush1.bf16.msra.mxu0 0
    %3815 = vmatprep.subr.bf16.mxu0 0
    %3816 = vmatpush1.bf16.msra.mxu0 0
    %3817 = vmatprep.subr.bf16.mxu0 0
    %3818 = vmatpush1.bf16.msra.mxu0 0
    %3819 = vmatprep.subr.bf16.mxu0 0
    %3820 = vmatpush1.bf16.msra.mxu0 0
    %3821 = vmatprep.subr.bf16.mxu0 0
    %3822 = vmatpush1.bf16.msra.mxu0 0
    %3823 = vmatprep.subr.bf16.mxu0 0
    %3824 = vmatpush1.bf16.msra.mxu0 0
    %3825 = vmatprep.subr.bf16.mxu0 0
    %3826 = vmatpush1.bf16.msra.mxu0 0
    %3827 = vmatprep.subr.bf16.mxu0 0
    %3828 = vmatpush1.bf16.msra.mxu0 0
    %3829 = vmatprep.subr.bf16.mxu0 0
    %3830 = vmatpush1.bf16.msra.mxu0 0
    %3831 = vmatprep.subr.bf16.mxu0 0
    %3832 = vmatpush1.bf16.msra.mxu0 0
    %3833 = vmatprep.subr.bf16.mxu0 0
    %3834 = vmatpush1.bf16.msra.mxu0 0
    %3835 = vmatprep.subr.bf16.mxu0 0
    %3836 = vmatpush1.bf16.msra.mxu0 0
    %3837 = vmatprep.mubr.bf16.mxu0 0
    %3838 = vmatmul.mubr.bf16.gmra.mrb[0].mxu0 %v2328
    %v3839 = vpop.f32.mrb[0].mxu0
    %v3840 = vadd.f32 %v3803, %v3839
    %v3841 = vpop.f32.mrb[0].mxu0
    %v3842 = vpop.f32.mrb[0].mxu0
    %v3843 = vadd.f32 %v3803, %v3842
    %v3844 = vpop.f32.mrb[0].mxu0
    %3845 = vdwg.mxu0
    %v3846 = vld [vmem:[#allocation5 + $0x98] sm:$0xf]
    %v3847 = vld [vmem:[#allocation5 + $0x9c] sm:$0xf]
    %v3848 = vld [vmem:[#allocation5 + $0xa0] sm:$0xf]
    %v3849 = vld [vmem:[#allocation5 + $0xa4] sm:$0xf]
    %v3850 = vld [vmem:[#allocation7 + $0x17] sm:$0x1]
    %v3851 = vlaneseq
    %v3852 = vshrl.u32 %v3851, 7
    %v3853 = vsub.s32 0, %v3852
    %v3854 = vrot.slane %v3850, %v3853
    %v3859 = vunpack.c.l.b16 %v3846
    %v3860 = vunpack.c.l.b16 %v3847
    %v3861 = vunpack.c.l.b16 %v3848
    %v3862 = vunpack.c.l.b16 %v3849
    %v3863 = vpack.c.b16 %v3860, %v3859
    %v3864 = vpack.c.b16 %v3862, %v3861
    %3865 = vrot.lane.b32.xlu0 %v3863, 104
    %v3866 = vpop.permute.xlu0 %3865
    %3867 = vrot.lane.b32.xlu0 %v3864, 104
    %v3868 = vpop.permute.xlu0 %3867
    %3872 = vrot.lane.b32.xlu0 %v3854, 104
    %v3873 = vpop.permute.xlu0 %3872
    %3875 = vmatprep.subr.bf16.mxu0 0
    %3876 = vmatpush1.bf16.msra.mxu0 %v3866
    %3877 = vmatprep.subr.bf16.mxu0 0
    %3878 = vmatpush1.bf16.msra.mxu0 %v3868
    %3879 = vmatprep.subr.bf16.mxu0 0
    %3880 = vmatpush1.bf16.msra.mxu0 0
    %3881 = vmatprep.subr.bf16.mxu0 0
    %3882 = vmatpush1.bf16.msra.mxu0 0
    %3883 = vmatprep.subr.bf16.mxu0 0
    %3884 = vmatpush1.bf16.msra.mxu0 0
    %3885 = vmatprep.subr.bf16.mxu0 0
    %3886 = vmatpush1.bf16.msra.mxu0 0
    %3887 = vmatprep.subr.bf16.mxu0 0
    %3888 = vmatpush1.bf16.msra.mxu0 0
    %3889 = vmatprep.subr.bf16.mxu0 0
    %3890 = vmatpush1.bf16.msra.mxu0 0
    %3891 = vmatprep.subr.bf16.mxu0 0
    %3892 = vmatpush1.bf16.msra.mxu0 0
    %3893 = vmatprep.subr.bf16.mxu0 0
    %3894 = vmatpush1.bf16.msra.mxu0 0
    %3895 = vmatprep.subr.bf16.mxu0 0
    %3896 = vmatpush1.bf16.msra.mxu0 0
    %3897 = vmatprep.subr.bf16.mxu0 0
    %3898 = vmatpush1.bf16.msra.mxu0 0
    %3899 = vmatprep.subr.bf16.mxu0 0
    %3900 = vmatpush1.bf16.msra.mxu0 0
    %3901 = vmatprep.subr.bf16.mxu0 0
    %3902 = vmatpush1.bf16.msra.mxu0 0
    %3903 = vmatprep.subr.bf16.mxu0 0
    %3904 = vmatpush1.bf16.msra.mxu0 0
    %3905 = vmatprep.subr.bf16.mxu0 0
    %3906 = vmatpush1.bf16.msra.mxu0 0
    %3907 = vmatprep.mubr.bf16.mxu0 0
    %3908 = vmatmul.mubr.bf16.gmra.mrb[0].mxu0 %v2328
    %v3909 = vpop.f32.mrb[0].mxu0
    %v3910 = vadd.f32 %v3873, %v3909
    %v3911 = vpop.f32.mrb[0].mxu0
    %v3912 = vpop.f32.mrb[0].mxu0
    %v3913 = vadd.f32 %v3873, %v3912
    %v3914 = vpop.f32.mrb[0].mxu0
    %3915 = vdwg.mxu0
    %v3916 = vpack.c.bf16 %v3770, %v3770
    %v3917 = vpack.c.bf16 %v3773, %v3773
    %v3918 = vpack.c.bf16 %v3840, %v3840
    %v3919 = vpack.c.bf16 %v3843, %v3843
    %v3920 = vpack.c.bf16 %v3910, %v3910
    %v3921 = vpack.c.bf16 %v3913, %v3913
    %v3923 = vsel %vm365, %v3916, 0
    %v3926 = vsel %vm365, %v3918, 0
    %3928 = vmatprep.subr.bf16.mxu0 0
    %3929 = vmatpush1.bf16.xpose.msra.mxu0 %v3926
    %3930 = vmatprep.subr.bf16.mxu0 0
    %3931 = vmatpush1.bf16.xpose.msra.mxu0 0
    %3932 = vmatprep.subr.bf16.mxu0 0
    %3933 = vmatpush1.bf16.xpose.msra.mxu0 0
    %3934 = vmatprep.subr.bf16.mxu0 0
    %3935 = vmatpush1.bf16.xpose.msra.mxu0 0
    %3936 = vmatprep.subr.bf16.mxu0 0
    %3937 = vmatpush1.bf16.xpose.msra.mxu0 0
    %3938 = vmatprep.subr.bf16.mxu0 0
    %3939 = vmatpush1.bf16.xpose.msra.mxu0 0
    %3940 = vmatprep.subr.bf16.mxu0 0
    %3941 = vmatpush1.bf16.xpose.msra.mxu0 0
    %3942 = vmatprep.subr.bf16.mxu0 0
    %3943 = vmatpush1.bf16.xpose.msra.mxu0 0
    %3944 = vmatprep.subr.bf16.mxu0 0
    %3945 = vmatpush1.bf16.xpose.msra.mxu0 0
    %3946 = vmatprep.subr.bf16.mxu0 0
    %3947 = vmatpush1.bf16.xpose.msra.mxu0 0
    %3948 = vmatprep.subr.bf16.mxu0 0
    %3949 = vmatpush1.bf16.xpose.msra.mxu0 0
    %3950 = vmatprep.subr.bf16.mxu0 0
    %3951 = vmatpush1.bf16.xpose.msra.mxu0 0
    %3952 = vmatprep.subr.bf16.mxu0 0
    %3953 = vmatpush1.bf16.xpose.msra.mxu0 0
    %3954 = vmatprep.subr.bf16.mxu0 0
    %3955 = vmatpush1.bf16.xpose.msra.mxu0 0
    %3956 = vmatprep.subr.bf16.mxu0 0
    %3957 = vmatpush1.bf16.xpose.msra.mxu0 0
    %3958 = vmatprep.subr.bf16.mxu0 0
    %3959 = vmatpush1.bf16.xpose.msra.mxu0 0
    %3960 = vmatprep.mubr.bf16.mxu0 0
    %3961 = vmatmul.mubr.bf16.gmra.mrb[0].mxu0 %v3923
    %v3962 = vpop.f32.mrb[0].mxu0
    %v3963 = vadd.f32 0.0, %v3962
    %v3964 = vpop.f32.mrb[0].mxu0
    %v3965 = vpop.f32.mrb[0].mxu0
    %v3966 = vpop.f32.mrb[0].mxu0
    %3967 = vdwg.mxu0
    %v3969 = vsel %vm365, %v3917, 0
    %v3972 = vsel %vm365, %v3919, 0
    %3974 = vmatprep.subr.bf16.mxu0 0
    %3975 = vmatpush1.bf16.xpose.msra.mxu0 %v3972
    %3976 = vmatprep.subr.bf16.mxu0 0
    %3977 = vmatpush1.bf16.xpose.msra.mxu0 0
    %3978 = vmatprep.subr.bf16.mxu0 0
    %3979 = vmatpush1.bf16.xpose.msra.mxu0 0
    %3980 = vmatprep.subr.bf16.mxu0 0
    %3981 = vmatpush1.bf16.xpose.msra.mxu0 0
    %3982 = vmatprep.subr.bf16.mxu0 0
    %3983 = vmatpush1.bf16.xpose.msra.mxu0 0
    %3984 = vmatprep.subr.bf16.mxu0 0
    %3985 = vmatpush1.bf16.xpose.msra.mxu0 0
    %3986 = vmatprep.subr.bf16.mxu0 0
    %3987 = vmatpush1.bf16.xpose.msra.mxu0 0
    %3988 = vmatprep.subr.bf16.mxu0 0
    %3989 = vmatpush1.bf16.xpose.msra.mxu0 0
    %3990 = vmatprep.subr.bf16.mxu0 0
    %3991 = vmatpush1.bf16.xpose.msra.mxu0 0
    %3992 = vmatprep.subr.bf16.mxu0 0
    %3993 = vmatpush1.bf16.xpose.msra.mxu0 0
    %3994 = vmatprep.subr.bf16.mxu0 0
    %3995 = vmatpush1.bf16.xpose.msra.mxu0 0
    %3996 = vmatprep.subr.bf16.mxu0 0
    %3997 = vmatpush1.bf16.xpose.msra.mxu0 0
    %3998 = vmatprep.subr.bf16.mxu0 0
    %3999 = vmatpush1.bf16.xpose.msra.mxu0 0
    %4000 = vmatprep.subr.bf16.mxu0 0
    %4001 = vmatpush1.bf16.xpose.msra.mxu0 0
    %4002 = vmatprep.subr.bf16.mxu0 0
    %4003 = vmatpush1.bf16.xpose.msra.mxu0 0
    %4004 = vmatprep.subr.bf16.mxu0 0
    %4005 = vmatpush1.bf16.xpose.msra.mxu0 0
    %4006 = vmatprep.mubr.bf16.mxu0 0
    %4007 = vmatmul.mubr.bf16.gmra.mrb[0].mxu0 %v3969
    %v4008 = vpop.f32.mrb[0].mxu0
    %v4009 = vadd.f32 0.0, %v4008
    %v4010 = vpop.f32.mrb[0].mxu0
    %v4011 = vpop.f32.mrb[0].mxu0
    %v4012 = vpop.f32.mrb[0].mxu0
    %4013 = vdwg.mxu0
    %v4014 = vsel %vm365, %v3963, -inf
    %4015 = vmax.xlane.f32.xlu0 %v4014
    %v4016 = vpop.xlane.xlu0 %4015
    %v4017 = vsel %vm365, %v4009, -inf
    %4018 = vmax.xlane.f32.xlu0 %v4017
    %v4019 = vpop.xlane.xlu0 %4018
    %v4020 = vsub.f32 %v3963, %v4016
    %v4021 = vsub.f32 %v4009, %v4019
    %v4022 = vmul.f32 %v4020, 1.442695
    %v4023 = vpow.pop %v4022
    %v4024 = vmul.f32 %v4021, 1.442695
    %v4025 = vpow.pop %v4024
    %v4026 = vsel %vm365, %v4023, 0.0
    %4027 = vadd.xlane.f32.xlu0 %v4026
    %v4028 = vpop.xlane.xlu0 %4027
    %v4029 = vsel %vm365, %v4025, 0.0
    %4030 = vadd.xlane.f32.xlu0 %v4029
    %v4031 = vpop.xlane.xlu0 %4030
    %v4032 = vrcp.pop %v4028
    %v4033 = vrcp.pop %v4031
    %v4034 = vmul.f32 %v4023, %v4032
    %v4035 = vmul.f32 %v4025, %v4033
    %v4036 = vpack.c.bf16 %v4034, %v4034
    %v4037 = vpack.c.bf16 %v4035, %v4035
    %v4039 = vsel %vm365, %v4036, 0
    %v4042 = vsel %vm485, %v3920, 0
    %4044 = vmatprep.subr.bf16.mxu0 0
    %4045 = vmatpush1.bf16.msra.mxu0 %v4042
    %4046 = vmatprep.subr.bf16.mxu0 0
    %4047 = vmatpush1.bf16.msra.mxu0 0
    %4048 = vmatprep.subr.bf16.mxu0 0
    %4049 = vmatpush1.bf16.msra.mxu0 0
    %4050 = vmatprep.subr.bf16.mxu0 0
    %4051 = vmatpush1.bf16.msra.mxu0 0
    %4052 = vmatprep.subr.bf16.mxu0 0
    %4053 = vmatpush1.bf16.msra.mxu0 0
    %4054 = vmatprep.subr.bf16.mxu0 0
    %4055 = vmatpush1.bf16.msra.mxu0 0
    %4056 = vmatprep.subr.bf16.mxu0 0
    %4057 = vmatpush1.bf16.msra.mxu0 0
    %4058 = vmatprep.subr.bf16.mxu0 0
    %4059 = vmatpush1.bf16.msra.mxu0 0
    %4060 = vmatprep.subr.bf16.mxu0 0
    %4061 = vmatpush1.bf16.msra.mxu0 0
    %4062 = vmatprep.subr.bf16.mxu0 0
    %4063 = vmatpush1.bf16.msra.mxu0 0
    %4064 = vmatprep.subr.bf16.mxu0 0
    %4065 = vmatpush1.bf16.msra.mxu0 0
    %4066 = vmatprep.subr.bf16.mxu0 0
    %4067 = vmatpush1.bf16.msra.mxu0 0
    %4068 = vmatprep.subr.bf16.mxu0 0
    %4069 = vmatpush1.bf16.msra.mxu0 0
    %4070 = vmatprep.subr.bf16.mxu0 0
    %4071 = vmatpush1.bf16.msra.mxu0 0
    %4072 = vmatprep.subr.bf16.mxu0 0
    %4073 = vmatpush1.bf16.msra.mxu0 0
    %4074 = vmatprep.subr.bf16.mxu0 0
    %4075 = vmatpush1.bf16.msra.mxu0 0
    %4076 = vmatprep.mubr.bf16.mxu0 0
    %4077 = vmatmul.mubr.bf16.gmra.mrb[0].mxu0 %v4039
    %v4078 = vpop.f32.mrb[0].mxu0
    %v4079 = vadd.f32 0.0, %v4078
    %v4080 = vpop.f32.mrb[0].mxu0
    %v4081 = vpop.f32.mrb[0].mxu0
    %v4082 = vpop.f32.mrb[0].mxu0
    %4083 = vdwg.mxu0
    %v4085 = vsel %vm365, %v4037, 0
    %v4088 = vsel %vm485, %v3921, 0
    %4090 = vmatprep.subr.bf16.mxu0 0
    %4091 = vmatpush1.bf16.msra.mxu0 %v4088
    %4092 = vmatprep.subr.bf16.mxu0 0
    %4093 = vmatpush1.bf16.msra.mxu0 0
    %4094 = vmatprep.subr.bf16.mxu0 0
    %4095 = vmatpush1.bf16.msra.mxu0 0
    %4096 = vmatprep.subr.bf16.mxu0 0
    %4097 = vmatpush1.bf16.msra.mxu0 0
    %4098 = vmatprep.subr.bf16.mxu0 0
    %4099 = vmatpush1.bf16.msra.mxu0 0
    %4100 = vmatprep.subr.bf16.mxu0 0
    %4101 = vmatpush1.bf16.msra.mxu0 0
    %4102 = vmatprep.subr.bf16.mxu0 0
    %4103 = vmatpush1.bf16.msra.mxu0 0
    %4104 = vmatprep.subr.bf16.mxu0 0
    %4105 = vmatpush1.bf16.msra.mxu0 0
    %4106 = vmatprep.subr.bf16.mxu0 0
    %4107 = vmatpush1.bf16.msra.mxu0 0
    %4108 = vmatprep.subr.bf16.mxu0 0
    %4109 = vmatpush1.bf16.msra.mxu0 0
    %4110 = vmatprep.subr.bf16.mxu0 0
    %4111 = vmatpush1.bf16.msra.mxu0 0
    %4112 = vmatprep.subr.bf16.mxu0 0
    %4113 = vmatpush1.bf16.msra.mxu0 0
    %4114 = vmatprep.subr.bf16.mxu0 0
    %4115 = vmatpush1.bf16.msra.mxu0 0
    %4116 = vmatprep.subr.bf16.mxu0 0
    %4117 = vmatpush1.bf16.msra.mxu0 0
    %4118 = vmatprep.subr.bf16.mxu0 0
    %4119 = vmatpush1.bf16.msra.mxu0 0
    %4120 = vmatprep.subr.bf16.mxu0 0
    %4121 = vmatpush1.bf16.msra.mxu0 0
    %4122 = vmatprep.mubr.bf16.mxu0 0
    %4123 = vmatmul.mubr.bf16.gmra.mrb[0].mxu0 %v4085
    %v4124 = vpop.f32.mrb[0].mxu0
    %v4125 = vadd.f32 0.0, %v4124
    %v4126 = vpop.f32.mrb[0].mxu0
    %v4127 = vpop.f32.mrb[0].mxu0
    %v4128 = vpop.f32.mrb[0].mxu0
    %4129 = vdwg.mxu0
    %v4130 = vpack.c.bf16 %v4125, %v4079
    %v4131 = vld [vmem:[#allocation5 + $0xb4] sm:$0xf]
    %v4133 = vsel %vm365, %v4130, 0
    %v4136 = vsel %vm485, %v4131, 0
    %4138 = vmatprep.subr.bf16.mxu0 0
    %4139 = vmatpush1.bf16.msra.mxu0 %v4136
    %4140 = vmatprep.subr.bf16.mxu0 0
    %4141 = vmatpush1.bf16.msra.mxu0 0
    %4142 = vmatprep.subr.bf16.mxu0 0
    %4143 = vmatpush1.bf16.msra.mxu0 0
    %4144 = vmatprep.subr.bf16.mxu0 0
    %4145 = vmatpush1.bf16.msra.mxu0 0
    %4146 = vmatprep.subr.bf16.mxu0 0
    %4147 = vmatpush1.bf16.msra.mxu0 0
    %4148 = vmatprep.subr.bf16.mxu0 0
    %4149 = vmatpush1.bf16.msra.mxu0 0
    %4150 = vmatprep.subr.bf16.mxu0 0
    %4151 = vmatpush1.bf16.msra.mxu0 0
    %4152 = vmatprep.subr.bf16.mxu0 0
    %4153 = vmatpush1.bf16.msra.mxu0 0
    %4154 = vmatprep.subr.bf16.mxu0 0
    %4155 = vmatpush1.bf16.msra.mxu0 0
    %4156 = vmatprep.subr.bf16.mxu0 0
    %4157 = vmatpush1.bf16.msra.mxu0 0
    %4158 = vmatprep.subr.bf16.mxu0 0
    %4159 = vmatpush1.bf16.msra.mxu0 0
    %4160 = vmatprep.subr.bf16.mxu0 0
    %4161 = vmatpush1.bf16.msra.mxu0 0
    %4162 = vmatprep.subr.bf16.mxu0 0
    %4163 = vmatpush1.bf16.msra.mxu0 0
    %4164 = vmatprep.subr.bf16.mxu0 0
    %4165 = vmatpush1.bf16.msra.mxu0 0
    %4166 = vmatprep.subr.bf16.mxu0 0
    %4167 = vmatpush1.bf16.msra.mxu0 0
    %4168 = vmatprep.subr.bf16.mxu0 0
    %4169 = vmatpush1.bf16.msra.mxu0 0
    %4170 = vmatprep.mubr.bf16.mxu0 0
    %4171 = vmatmul.mubr.bf16.gmra.mrb[0].mxu0 %v4133
    %v4172 = vpop.f32.mrb[0].mxu0
    %v4173 = vadd.f32 0.0, %v4172
    %v4174 = vpop.f32.mrb[0].mxu0
    %v4175 = vpop.f32.mrb[0].mxu0
    %v4176 = vadd.f32 0.0, %v4175
    %v4177 = vpop.f32.mrb[0].mxu0
    %4178 = vdwg.mxu0
    %v4179 = vadd.f32 %v3704, %v4173
    %v4180 = vadd.f32 %v3705, %v4176
    %v4181 = vld [vmem:[#allocation7 + $0x18] sm:$0x1]
    %v4182 = vlaneseq
    %v4183 = vshrl.u32 %v4182, 7
    %v4184 = vsub.s32 0, %v4183
    %v4185 = vrot.slane %v4181, %v4184
    %v4186 = vadd.f32 %v4179, %v4185
    %v4187 = vadd.f32 %v4180, %v4185
    %v4188 = vadd.f32 %v2263, %v4186
    %v4189 = vadd.f32 %v2264, %v4187
    %v4190 = vld [vmem:[#allocation7 + $0x19] sm:$0x1]
    %v4191 = vld [vmem:[#allocation7 + $0x1a] sm:$0x1]
    %v4192 = vsel %vm129, %v4188, 0.0
    %4193 = vadd.xlane.f32.xlu0 %v4192
    %v4194 = vpop.xlane.xlu0 %4193
    %v4195 = vsel %vm129, %v4189, 0.0
    %4196 = vadd.xlane.f32.xlu0 %v4195
    %v4197 = vpop.xlane.xlu0 %4196
    %v4198 = vmul.f32 %v4194, %v136
    %v4199 = vmul.f32 %v4197, %v136
    %v4200 = vsub.f32 %v4188, %v4198
    %v4201 = vsub.f32 %v4189, %v4199
    %v4202 = vmul.f32 %v4200, %v4200
    %v4203 = vmul.f32 %v4201, %v4201
    %v4204 = vsel %vm129, %v4202, 0.0
    %4205 = vadd.xlane.f32.xlu0 %v4204
    %v4206 = vpop.xlane.xlu0 %4205
    %v4207 = vsel %vm129, %v4203, 0.0
    %4208 = vadd.xlane.f32.xlu0 %v4207
    %v4209 = vpop.xlane.xlu0 %4208
    %v4210 = vmul.f32 %v4206, %v136
    %v4211 = vmul.f32 %v4209, %v136
    %v4212 = vadd.f32 %v4210, 1e-05
    %v4213 = vadd.f32 %v4211, 1e-05
    %v4214 = vrsqrt.pop %v4212
    %v4215 = vrsqrt.pop %v4213
    %v4216 = vmul.f32 %v4200, %v4214
    %v4217 = vmul.f32 %v4201, %v4215
    %v4218 = vlaneseq
    %v4219 = vshrl.u32 %v4218, 7
    %v4220 = vsub.s32 0, %v4219
    %v4221 = vrot.slane %v4190, %v4220
    %v4222 = vmul.f32 %v4216, %v4221
    %v4223 = vmul.f32 %v4217, %v4221
    %v4224 = vlaneseq
    %v4225 = vshrl.u32 %v4224, 7
    %v4226 = vsub.s32 0, %v4225
    %v4227 = vrot.slane %v4191, %v4226
    %v4228 = vadd.f32 %v4222, %v4227
    %v4229 = vadd.f32 %v4223, %v4227
    %v4230 = vpack.c.bf16 %v4229, %v4228
    %v4231 = vld [vmem:[#allocation5 + $0xb8] sm:$0xf]
    %v4232 = vld [vmem:[#allocation5 + $0xbc] sm:$0xf]
    %v4233 = vld [vmem:[#allocation5 + $0xc0] sm:$0xf]
    %v4234 = vld [vmem:[#allocation5 + $0xc4] sm:$0xf]
    %v4235 = vld [vmem:[#allocation7 + $0x1b] sm:$0x1]
    %v4236 = vlaneseq
    %v4237 = vshrl.u32 %v4236, 7
    %v4238 = vsub.s32 0, %v4237
    %v4239 = vrot.slane %v4235, %v4238
    %v4244 = vunpack.c.l.b16 %v4231
    %v4245 = vunpack.c.l.b16 %v4232
    %v4246 = vunpack.c.l.b16 %v4233
    %v4247 = vunpack.c.l.b16 %v4234
    %v4248 = vpack.c.b16 %v4245, %v4244
    %v4249 = vpack.c.b16 %v4247, %v4246
    %v4253 = vsel %vm129, %v4230, 0
    %4255 = vmatprep.subr.bf16.mxu0 0
    %4256 = vmatpush1.bf16.msra.mxu0 %v4248
    %4257 = vmatprep.subr.bf16.mxu0 0
    %4258 = vmatpush1.bf16.msra.mxu0 %v4249
    %4259 = vmatprep.subr.bf16.mxu0 0
    %4260 = vmatpush1.bf16.msra.mxu0 0
    %4261 = vmatprep.subr.bf16.mxu0 0
    %4262 = vmatpush1.bf16.msra.mxu0 0
    %4263 = vmatprep.subr.bf16.mxu0 0
    %4264 = vmatpush1.bf16.msra.mxu0 0
    %4265 = vmatprep.subr.bf16.mxu0 0
    %4266 = vmatpush1.bf16.msra.mxu0 0
    %4267 = vmatprep.subr.bf16.mxu0 0
    %4268 = vmatpush1.bf16.msra.mxu0 0
    %4269 = vmatprep.subr.bf16.mxu0 0
    %4270 = vmatpush1.bf16.msra.mxu0 0
    %4271 = vmatprep.subr.bf16.mxu0 0
    %4272 = vmatpush1.bf16.msra.mxu0 0
    %4273 = vmatprep.subr.bf16.mxu0 0
    %4274 = vmatpush1.bf16.msra.mxu0 0
    %4275 = vmatprep.subr.bf16.mxu0 0
    %4276 = vmatpush1.bf16.msra.mxu0 0
    %4277 = vmatprep.subr.bf16.mxu0 0
    %4278 = vmatpush1.bf16.msra.mxu0 0
    %4279 = vmatprep.subr.bf16.mxu0 0
    %4280 = vmatpush1.bf16.msra.mxu0 0
    %4281 = vmatprep.subr.bf16.mxu0 0
    %4282 = vmatpush1.bf16.msra.mxu0 0
    %4283 = vmatprep.subr.bf16.mxu0 0
    %4284 = vmatpush1.bf16.msra.mxu0 0
    %4285 = vmatprep.subr.bf16.mxu0 0
    %4286 = vmatpush1.bf16.msra.mxu0 0
    %4287 = vmatprep.mubr.bf16.mxu0 0
    %4288 = vmatmul.mubr.bf16.gmra.mrb[0].mxu0 %v4253
    %v4289 = vpop.f32.mrb[0].mxu0
    %v4290 = vadd.f32 %v4239, %v4289
    %v4291 = vpop.f32.mrb[0].mxu0
    %v4292 = vpop.f32.mrb[0].mxu0
    %v4293 = vadd.f32 %v4239, %v4292
    %v4294 = vpop.f32.mrb[0].mxu0
    %4295 = vdwg.mxu0
    %v4296 = vmul.f32 %v4290, 0.5
    %v4297 = vmul.f32 %v4293, 0.5
    %v4298 = vmul.f32 %v4290, 0.044715
    %v4299 = vmul.f32 %v4293, 0.044715
    %v4300 = vmul.f32 %v4298, %v4290
    %v4301 = vmul.f32 %v4299, %v4293
    %v4302 = vmul.f32 %v4300, %v4290
    %v4303 = vmul.f32 %v4301, %v4293
    %v4304 = vadd.f32 %v4290, %v4302
    %v4305 = vadd.f32 %v4293, %v4303
    %v4306 = vmul.f32 %v4304, 0.7978846
    %v4307 = vmul.f32 %v4305, 0.7978846
    %v4308 = vtanh.pop %v4306
    %v4309 = vtanh.pop %v4307
    %v4310 = vadd.f32 %v4308, 1.0
    %v4311 = vadd.f32 %v4309, 1.0
    %v4312 = vmul.f32 %v4296, %v4310
    %v4313 = vmul.f32 %v4297, %v4311
    %v4314 = vpack.c.bf16 %v4313, %v4312
    %v4315 = vld [vmem:[#allocation5 + $0xc8] sm:$0xf]
    %v4316 = vld [vmem:[#allocation5 + $0xcc] sm:$0xf]
    %v4317 = vld [vmem:[#allocation5 + $0xd0] sm:$0xf]
    %v4318 = vld [vmem:[#allocation5 + $0xd4] sm:$0xf]
    %v4319 = vld [vmem:[#allocation5 + $0xd8] sm:$0xf]
    %v4320 = vld [vmem:[#allocation5 + $0xdc] sm:$0xf]
    %v4321 = vld [vmem:[#allocation5 + $0xe0] sm:$0xf]
    %v4322 = vld [vmem:[#allocation5 + $0xe4] sm:$0xf]
    %v4323 = vld [vmem:[#allocation7 + $0x1c] sm:$0x1]
    %v4324 = vlaneseq
    %v4325 = vshrl.u32 %v4324, 7
    %v4326 = vsub.s32 0, %v4325
    %v4327 = vrot.slane %v4323, %v4326
    %v4336 = vunpack.c.l.b16 %v4315
    %v4337 = vunpack.c.l.b16 %v4316
    %v4338 = vunpack.c.l.b16 %v4317
    %v4339 = vunpack.c.l.b16 %v4318
    %v4340 = vunpack.c.l.b16 %v4319
    %v4341 = vunpack.c.l.b16 %v4320
    %v4342 = vunpack.c.l.b16 %v4321
    %v4343 = vunpack.c.l.b16 %v4322
    %v4344 = vpack.c.b16 %v4337, %v4336
    %v4345 = vpack.c.b16 %v4339, %v4338
    %v4346 = vpack.c.b16 %v4341, %v4340
    %v4347 = vpack.c.b16 %v4343, %v4342
    %v4353 = vsel %vm2218, %v4314, 0
    %4355 = vmatprep.subr.bf16.mxu0 0
    %4356 = vmatpush1.bf16.msra.mxu0 %v4344
    %4357 = vmatprep.subr.bf16.mxu0 0
    %4358 = vmatpush1.bf16.msra.mxu0 %v4345
    %4359 = vmatprep.subr.bf16.mxu0 0
    %4360 = vmatpush1.bf16.msra.mxu0 %v4346
    %4361 = vmatprep.subr.bf16.mxu0 0
    %4362 = vmatpush1.bf16.msra.mxu0 %v4347
    %4363 = vmatprep.subr.bf16.mxu0 0
    %4364 = vmatpush1.bf16.msra.mxu0 0
    %4365 = vmatprep.subr.bf16.mxu0 0
    %4366 = vmatpush1.bf16.msra.mxu0 0
    %4367 = vmatprep.subr.bf16.mxu0 0
    %4368 = vmatpush1.bf16.msra.mxu0 0
    %4369 = vmatprep.subr.bf16.mxu0 0
    %4370 = vmatpush1.bf16.msra.mxu0 0
    %4371 = vmatprep.subr.bf16.mxu0 0
    %4372 = vmatpush1.bf16.msra.mxu0 0
    %4373 = vmatprep.subr.bf16.mxu0 0
    %4374 = vmatpush1.bf16.msra.mxu0 0
    %4375 = vmatprep.subr.bf16.mxu0 0
    %4376 = vmatpush1.bf16.msra.mxu0 0
    %4377 = vmatprep.subr.bf16.mxu0 0
    %4378 = vmatpush1.bf16.msra.mxu0 0
    %4379 = vmatprep.subr.bf16.mxu0 0
    %4380 = vmatpush1.bf16.msra.mxu0 0
    %4381 = vmatprep.subr.bf16.mxu0 0
    %4382 = vmatpush1.bf16.msra.mxu0 0
    %4383 = vmatprep.subr.bf16.mxu0 0
    %4384 = vmatpush1.bf16.msra.mxu0 0
    %4385 = vmatprep.subr.bf16.mxu0 0
    %4386 = vmatpush1.bf16.msra.mxu0 0
    %4387 = vmatprep.mubr.bf16.mxu0 0
    %4388 = vmatmul.mubr.bf16.gmra.mrb[0].mxu0 %v4353
    %v4389 = vpop.f32.mrb[0].mxu0
    %v4390 = vadd.f32 %v4327, %v4389
    %v4391 = vpop.f32.mrb[0].mxu0
    %v4392 = vpop.f32.mrb[0].mxu0
    %v4393 = vadd.f32 %v4327, %v4392
    %v4394 = vpop.f32.mrb[0].mxu0
    %4395 = vdwg.mxu0
    %v4396 = vadd.f32 %v4188, %v4390
    %v4397 = vadd.f32 %v4189, %v4393
    %v4398 = vlaneseq
    %v4399 = vshrl.u32 %v4398, 7
    %v4400 = vadd.s32 %v4399, 8
    %v4401 = vlaneseq
    %v4402 = vand.u32 %v4401, 127
    %vm4403 = vcmp.lt.s32.totalorder %v4399, 0
    %v4404 = vsub.s32 0, %v4399
    %v4405 = vsel %vm4403, %v4404, %v4399
    %v4406 = vshrl.u32 %v4405, 3
    %v4407 = vand.u32 %v4405, 7
    %v4408 = vsub.s32 0, %v4407
    %v4409 = vsel %vm4403, %v4408, %v4407
    %vm4410 = vcmp.lt.s32.totalorder %v4400, 0
    %v4411 = vsub.s32 0, %v4400
    %v4412 = vsel %vm4410, %v4411, %v4400
    %v4413 = vshrl.u32 %v4412, 3
    %v4414 = vand.u32 %v4412, 7
    %v4415 = vsub.s32 0, %v4414
    %v4416 = vsel %vm4410, %v4415, %v4414
    %vm4417 = vcmp.ne.s32.totalorder %v4409, 0
    %vm4418 = vcmp.ne.s32.totalorder %v4416, 0
    %vm4419 = vcmp.lt.s32.totalorder %v4409, 0
    %vm4420 = vcmp.lt.s32.totalorder %v4416, 0
    %vm4421 = vmand %vm4419, %vm4417
    %vm4422 = vmand %vm4420, %vm4418
    %v4423 = vadd.s32 %v4409, 8
    %v4424 = vadd.s32 %v4416, 8
    %v4425 = vsel %vm4421, %v4423, %v4409
    %v4426 = vsel %vm4422, %v4424, %v4416
    %v4427 = vsub.s32 %v4399, 1
    %v4428 = vsub.s32 %v4400, 1
    %vm4429 = vcmp.eq.s32.totalorder %v4402, %v4427
    %vm4430 = vcmp.eq.s32.totalorder %v4402, %v4428
    %vm4431 = vcmp.gt.s32.totalorder %v4425, 0
    %vm4432 = vcmp.gt.s32.totalorder %v4426, 0
    %vm4433 = vmand %vm4429, %vm4431
    %vm4434 = vmand %vm4430, %vm4432
    %v4435 = vsel %vm4433, 1.0, 0.0
    %v4436 = vsel %vm4434, 1.0, 0.0
    %v4437 = vpack.c.bf16 %v4436, %v4435
    %v4438 = vadd.s32 %v4399, 1
    %v4439 = vadd.s32 %v4400, 1
    %vm4440 = vcmp.eq.s32.totalorder %v4402, %v4438
    %vm4441 = vcmp.eq.s32.totalorder %v4402, %v4439
    %vm4442 = vcmp.lt.s32.totalorder %v4425, 7
    %vm4443 = vcmp.lt.s32.totalorder %v4426, 7
    %vm4444 = vmand %vm4440, %vm4442
    %vm4445 = vmand %vm4441, %vm4443
    %v4446 = vsel %vm4444, 1.0, 0.0
    %v4447 = vsel %vm4445, 1.0, 0.0
    %v4448 = vpack.c.bf16 %v4447, %v4446
    %vm4449 = vcmask 130048
    %v4451 = vsel %vm4449, %v4437, 0
    %4453 = vmatprep.subr.bf16.mxu0 0
    %4454 = vmatpush1.bf16.msra.mxu0 %v59
    %4455 = vmatprep.subr.bf16.mxu0 0
    %4456 = vmatpush1.bf16.msra.mxu0 0
    %4457 = vmatprep.subr.bf16.mxu0 0
    %4458 = vmatpush1.bf16.msra.mxu0 0
    %4459 = vmatprep.subr.bf16.mxu0 0
    %4460 = vmatpush1.bf16.msra.mxu0 0
    %4461 = vmatprep.subr.bf16.mxu0 0
    %4462 = vmatpush1.bf16.msra.mxu0 0
    %4463 = vmatprep.subr.bf16.mxu0 0
    %4464 = vmatpush1.bf16.msra.mxu0 0
    %4465 = vmatprep.subr.bf16.mxu0 0
    %4466 = vmatpush1.bf16.msra.mxu0 0
    %4467 = vmatprep.subr.bf16.mxu0 0
    %4468 = vmatpush1.bf16.msra.mxu0 0
    %4469 = vmatprep.subr.bf16.mxu0 0
    %4470 = vmatpush1.bf16.msra.mxu0 0
    %4471 = vmatprep.subr.bf16.mxu0 0
    %4472 = vmatpush1.bf16.msra.mxu0 0
    %4473 = vmatprep.subr.bf16.mxu0 0
    %4474 = vmatpush1.bf16.msra.mxu0 0
    %4475 = vmatprep.subr.bf16.mxu0 0
    %4476 = vmatpush1.bf16.msra.mxu0 0
    %4477 = vmatprep.subr.bf16.mxu0 0
    %4478 = vmatpush1.bf16.msra.mxu0 0
    %4479 = vmatprep.subr.bf16.mxu0 0
    %4480 = vmatpush1.bf16.msra.mxu0 0
    %4481 = vmatprep.subr.bf16.mxu0 0
    %4482 = vmatpush1.bf16.msra.mxu0 0
    %4483 = vmatprep.subr.bf16.mxu0 0
    %4484 = vmatpush1.bf16.msra.mxu0 0
    %4485 = vmatprep.mubr.bf16.mxu0 0
    %4486 = vmatmul.mubr.bf16.gmra.mrb[0].mxu0 %v4451
    %v4487 = vpop.f32.mrb[0].mxu0
    %v4488 = vadd.f32 0.0, %v4487
    %v4489 = vpop.f32.mrb[0].mxu0
    %v4490 = vpop.f32.mrb[0].mxu0
    %v4491 = vadd.f32 0.0, %v4490
    %v4492 = vpop.f32.mrb[0].mxu0
    %4493 = vdwg.mxu0
    %v4494 = vpack.c.bf16 %v4491, %v4488
    %v4496 = vsel %vm4449, %v4448, 0
    %4498 = vmatprep.subr.bf16.mxu0 0
    %4499 = vmatpush1.bf16.msra.mxu0 %v59
    %4500 = vmatprep.subr.bf16.mxu0 0
    %4501 = vmatpush1.bf16.msra.mxu0 0
    %4502 = vmatprep.subr.bf16.mxu0 0
    %4503 = vmatpush1.bf16.msra.mxu0 0
    %4504 = vmatprep.subr.bf16.mxu0 0
    %4505 = vmatpush1.bf16.msra.mxu0 0
    %4506 = vmatprep.subr.bf16.mxu0 0
    %4507 = vmatpush1.bf16.msra.mxu0 0
    %4508 = vmatprep.subr.bf16.mxu0 0
    %4509 = vmatpush1.bf16.msra.mxu0 0
    %4510 = vmatprep.subr.bf16.mxu0 0
    %4511 = vmatpush1.bf16.msra.mxu0 0
    %4512 = vmatprep.subr.bf16.mxu0 0
    %4513 = vmatpush1.bf16.msra.mxu0 0
    %4514 = vmatprep.subr.bf16.mxu0 0
    %4515 = vmatpush1.bf16.msra.mxu0 0
    %4516 = vmatprep.subr.bf16.mxu0 0
    %4517 = vmatpush1.bf16.msra.mxu0 0
    %4518 = vmatprep.subr.bf16.mxu0 0
    %4519 = vmatpush1.bf16.msra.mxu0 0
    %4520 = vmatprep.subr.bf16.mxu0 0
    %4521 = vmatpush1.bf16.msra.mxu0 0
    %4522 = vmatprep.subr.bf16.mxu0 0
    %4523 = vmatpush1.bf16.msra.mxu0 0
    %4524 = vmatprep.subr.bf16.mxu0 0
    %4525 = vmatpush1.bf16.msra.mxu0 0
    %4526 = vmatprep.subr.bf16.mxu0 0
    %4527 = vmatpush1.bf16.msra.mxu0 0
    %4528 = vmatprep.subr.bf16.mxu0 0
    %4529 = vmatpush1.bf16.msra.mxu0 0
    %4530 = vmatprep.mubr.bf16.mxu0 0
    %4531 = vmatmul.mubr.bf16.gmra.mrb[0].mxu0 %v4496
    %v4532 = vpop.f32.mrb[0].mxu0
    %v4533 = vadd.f32 0.0, %v4532
    %v4534 = vpop.f32.mrb[0].mxu0
    %v4535 = vpop.f32.mrb[0].mxu0
    %v4536 = vadd.f32 0.0, %v4535
    %v4537 = vpop.f32.mrb[0].mxu0
    %4538 = vdwg.mxu0
    %v4539 = vpack.c.bf16 %v4536, %v4533
    %v4540 = vld [vmem:[#allocation5 + $0xe8] sm:$0xf]
    %v4541 = vld [vmem:[#allocation5 + $0xec] sm:$0x3]
    %v4542 = vld [vmem:[#allocation5 + $0xf0] sm:$0xf]
    %v4543 = vld [vmem:[#allocation5 + $0xf4] sm:$0x3]
    %v4546 = vunpack.c.l.b16 %v4542
    %v4547 = vunpack.c.l.b16 %v4543
    %v4548 = vpack.c.b16 %v4547, %v4546
    %v4550 = vand.u32 %v4548, %v79
    %4552 = vmatprep.subr.bf16.mxu0 0
    %4553 = vmatpush1.bf16.msra.mxu0 %v4550
    %4554 = vmatprep.subr.bf16.mxu0 0
    %4555 = vmatpush1.bf16.msra.mxu0 0
    %4556 = vmatprep.subr.bf16.mxu0 0
    %4557 = vmatpush1.bf16.msra.mxu0 0
    %4558 = vmatprep.subr.bf16.mxu0 0
    %4559 = vmatpush1.bf16.msra.mxu0 0
    %4560 = vmatprep.subr.bf16.mxu0 0
    %4561 = vmatpush1.bf16.msra.mxu0 0
    %4562 = vmatprep.subr.bf16.mxu0 0
    %4563 = vmatpush1.bf16.msra.mxu0 0
    %4564 = vmatprep.subr.bf16.mxu0 0
    %4565 = vmatpush1.bf16.msra.mxu0 0
    %4566 = vmatprep.subr.bf16.mxu0 0
    %4567 = vmatpush1.bf16.msra.mxu0 0
    %4568 = vmatprep.subr.bf16.mxu0 0
    %4569 = vmatpush1.bf16.msra.mxu0 0
    %4570 = vmatprep.subr.bf16.mxu0 0
    %4571 = vmatpush1.bf16.msra.mxu0 0
    %4572 = vmatprep.subr.bf16.mxu0 0
    %4573 = vmatpush1.bf16.msra.mxu0 0
    %4574 = vmatprep.subr.bf16.mxu0 0
    %4575 = vmatpush1.bf16.msra.mxu0 0
    %4576 = vmatprep.subr.bf16.mxu0 0
    %4577 = vmatpush1.bf16.msra.mxu0 0
    %4578 = vmatprep.subr.bf16.mxu0 0
    %4579 = vmatpush1.bf16.msra.mxu0 0
    %4580 = vmatprep.subr.bf16.mxu0 0
    %4581 = vmatpush1.bf16.msra.mxu0 0
    %4582 = vmatprep.subr.bf16.mxu0 0
    %4583 = vmatpush1.bf16.msra.mxu0 0
    %4584 = vmatprep.mubr.bf16.mxu0 0
    %4585 = vmatmul.mubr.bf16.gmra.mrb[0].mxu0 %v74
    %v4586 = vpop.f32.mrb[0].mxu0
    %v4587 = vadd.f32 0.0, %v4586
    %v4588 = vpop.f32.mrb[0].mxu0
    %v4589 = vpop.f32.mrb[0].mxu0
    %v4590 = vadd.f32 0.0, %v4589
    %v4591 = vpop.f32.mrb[0].mxu0
    %4592 = vdwg.mxu0
    %v4595 = vunpack.c.l.b16 %v4540
    %v4596 = vunpack.c.l.b16 %v4541
    %v4597 = vpack.c.b16 %v4596, %v4595
    %v4599 = vsel %vm72, %v4494, 0
    %v4602 = vand.u32 %v4597, %v79
    %4604 = vmatprep.subr.bf16.mxu0 0
    %4605 = vmatpush1.bf16.msra.mxu0 %v4602
    %4606 = vmatprep.subr.bf16.mxu0 0
    %4607 = vmatpush1.bf16.msra.mxu0 0
    %4608 = vmatprep.subr.bf16.mxu0 0
    %4609 = vmatpush1.bf16.msra.mxu0 0
    %4610 = vmatprep.subr.bf16.mxu0 0
    %4611 = vmatpush1.bf16.msra.mxu0 0
    %4612 = vmatprep.subr.bf16.mxu0 0
    %4613 = vmatpush1.bf16.msra.mxu0 0
    %4614 = vmatprep.subr.bf16.mxu0 0
    %4615 = vmatpush1.bf16.msra.mxu0 0
    %4616 = vmatprep.subr.bf16.mxu0 0
    %4617 = vmatpush1.bf16.msra.mxu0 0
    %4618 = vmatprep.subr.bf16.mxu0 0
    %4619 = vmatpush1.bf16.msra.mxu0 0
    %4620 = vmatprep.subr.bf16.mxu0 0
    %4621 = vmatpush1.bf16.msra.mxu0 0
    %4622 = vmatprep.subr.bf16.mxu0 0
    %4623 = vmatpush1.bf16.msra.mxu0 0
    %4624 = vmatprep.subr.bf16.mxu0 0
    %4625 = vmatpush1.bf16.msra.mxu0 0
    %4626 = vmatprep.subr.bf16.mxu0 0
    %4627 = vmatpush1.bf16.msra.mxu0 0
    %4628 = vmatprep.subr.bf16.mxu0 0
    %4629 = vmatpush1.bf16.msra.mxu0 0
    %4630 = vmatprep.subr.bf16.mxu0 0
    %4631 = vmatpush1.bf16.msra.mxu0 0
    %4632 = vmatprep.subr.bf16.mxu0 0
    %4633 = vmatpush1.bf16.msra.mxu0 0
    %4634 = vmatprep.subr.bf16.mxu0 0
    %4635 = vmatpush1.bf16.msra.mxu0 0
    %4636 = vmatprep.mubr.bf16.mxu0 0
    %4637 = vmatmul.mubr.bf16.gmra.mrb[0].mxu0 %v4599
    %v4638 = vpop.f32.mrb[0].mxu0
    %v4639 = vadd.f32 %v4587, %v4638
    %v4640 = vpop.f32.mrb[0].mxu0
    %v4641 = vpop.f32.mrb[0].mxu0
    %v4642 = vadd.f32 %v4590, %v4641
    %v4643 = vpop.f32.mrb[0].mxu0
    %4644 = vdwg.mxu0
    %v4645 = vld [vmem:[#allocation5 + $0xf8] sm:$0xf]
    %v4646 = vld [vmem:[#allocation5 + $0xfc] sm:$0x3]
    %v4649 = vunpack.c.l.b16 %v4645
    %v4650 = vunpack.c.l.b16 %v4646
    %v4651 = vpack.c.b16 %v4650, %v4649
    %v4653 = vsel %vm72, %v4539, 0
    %v4656 = vand.u32 %v4651, %v79
    %4658 = vmatprep.subr.bf16.mxu0 0
    %4659 = vmatpush1.bf16.msra.mxu0 %v4656
    %4660 = vmatprep.subr.bf16.mxu0 0
    %4661 = vmatpush1.bf16.msra.mxu0 0
    %4662 = vmatprep.subr.bf16.mxu0 0
    %4663 = vmatpush1.bf16.msra.mxu0 0
    %4664 = vmatprep.subr.bf16.mxu0 0
    %4665 = vmatpush1.bf16.msra.mxu0 0
    %4666 = vmatprep.subr.bf16.mxu0 0
    %4667 = vmatpush1.bf16.msra.mxu0 0
    %4668 = vmatprep.subr.bf16.mxu0 0
    %4669 = vmatpush1.bf16.msra.mxu0 0
    %4670 = vmatprep.subr.bf16.mxu0 0
    %4671 = vmatpush1.bf16.msra.mxu0 0
    %4672 = vmatprep.subr.bf16.mxu0 0
    %4673 = vmatpush1.bf16.msra.mxu0 0
    %4674 = vmatprep.subr.bf16.mxu0 0
    %4675 = vmatpush1.bf16.msra.mxu0 0
    %4676 = vmatprep.subr.bf16.mxu0 0
    %4677 = vmatpush1.bf16.msra.mxu0 0
    %4678 = vmatprep.subr.bf16.mxu0 0
    %4679 = vmatpush1.bf16.msra.mxu0 0
    %4680 = vmatprep.subr.bf16.mxu0 0
    %4681 = vmatpush1.bf16.msra.mxu0 0
    %4682 = vmatprep.subr.bf16.mxu0 0
    %4683 = vmatpush1.bf16.msra.mxu0 0
    %4684 = vmatprep.subr.bf16.mxu0 0
    %4685 = vmatpush1.bf16.msra.mxu0 0
    %4686 = vmatprep.subr.bf16.mxu0 0
    %4687 = vmatpush1.bf16.msra.mxu0 0
    %4688 = vmatprep.subr.bf16.mxu0 0
    %4689 = vmatpush1.bf16.msra.mxu0 0
    %4690 = vmatprep.mubr.bf16.mxu0 0
    %4691 = vmatmul.mubr.bf16.gmra.mrb[0].mxu0 %v4653
    %v4692 = vpop.f32.mrb[0].mxu0
    %v4693 = vadd.f32 0.0, %v4692
    %v4694 = vpop.f32.mrb[0].mxu0
    %v4695 = vpop.f32.mrb[0].mxu0
    %v4696 = vadd.f32 0.0, %v4695
    %v4697 = vpop.f32.mrb[0].mxu0
    %4698 = vdwg.mxu0
    %v4699 = vadd.f32 %v4639, %v4693
    %v4700 = vadd.f32 %v4642, %v4696
    %v4701 = vld [vmem:[#allocation7 + $0x1d] sm:$0x1]
    %v4702 = vlaneseq
    %v4703 = vshrl.u32 %v4702, 7
    %v4704 = vsub.s32 0, %v4703
    %v4705 = vrot.slane %v4701, %v4704
    %v4706 = vadd.f32 %v4699, %v4705
    %v4707 = vadd.f32 %v4700, %v4705
    %v4708 = vmax.f32 %v4706, 0.0
    %v4709 = vmax.f32 %v4707, 0.0
    %v4710 = vpack.c.bf16 %v4709, %v4708
    %4711 = vmatprep.subr.bf16.mxu0 0
    %4712 = vmatpush1.bf16.msra.mxu0 %v4710
    %4713 = vmatprep.subr.bf16.mxu0 0
    %4714 = vmatpush1.bf16.msra.mxu0 0
    %4715 = vmatprep.subr.bf16.mxu0 0
    %4716 = vmatpush1.bf16.msra.mxu0 0
    %4717 = vmatprep.subr.bf16.mxu0 0
    %4718 = vmatpush1.bf16.msra.mxu0 0
    %4719 = vmatprep.subr.bf16.mxu0 0
    %4720 = vmatpush1.bf16.msra.mxu0 0
    %4721 = vmatprep.subr.bf16.mxu0 0
    %4722 = vmatpush1.bf16.msra.mxu0 0
    %4723 = vmatprep.subr.bf16.mxu0 0
    %4724 = vmatpush1.bf16.msra.mxu0 0
    %4725 = vmatprep.subr.bf16.mxu0 0
    %4726 = vmatpush1.bf16.msra.mxu0 0
    %4727 = vmatprep.subr.bf16.mxu0 0
    %4728 = vmatpush1.bf16.msra.mxu0 0
    %4729 = vmatprep.subr.bf16.mxu0 0
    %4730 = vmatpush1.bf16.msra.mxu0 0
    %4731 = vmatprep.subr.bf16.mxu0 0
    %4732 = vmatpush1.bf16.msra.mxu0 0
    %4733 = vmatprep.subr.bf16.mxu0 0
    %4734 = vmatpush1.bf16.msra.mxu0 0
    %4735 = vmatprep.subr.bf16.mxu0 0
    %4736 = vmatpush1.bf16.msra.mxu0 0
    %4737 = vmatprep.subr.bf16.mxu0 0
    %4738 = vmatpush1.bf16.msra.mxu0 0
    %4739 = vmatprep.subr.bf16.mxu0 0
    %4740 = vmatpush1.bf16.msra.mxu0 0
    %4741 = vmatprep.subr.bf16.mxu0 0
    %4742 = vmatpush1.bf16.msra.mxu0 0
    %4743 = vmatprep.mubr.bf16.mxu0 0
    %4744 = vmatmul.mubr.bf16.gmra.mrb[0].mxu0 %v4451
    %v4745 = vpop.f32.mrb[0].mxu0
    %v4746 = vadd.f32 0.0, %v4745
    %v4747 = vpop.f32.mrb[0].mxu0
    %v4748 = vpop.f32.mrb[0].mxu0
    %v4749 = vadd.f32 0.0, %v4748
    %v4750 = vpop.f32.mrb[0].mxu0
    %4751 = vdwg.mxu0
    %v4752 = vpack.c.bf16 %v4749, %v4746
    %4753 = vmatprep.subr.bf16.mxu0 0
    %4754 = vmatpush1.bf16.msra.mxu0 %v4710
    %4755 = vmatprep.subr.bf16.mxu0 0
    %4756 = vmatpush1.bf16.msra.mxu0 0
    %4757 = vmatprep.subr.bf16.mxu0 0
    %4758 = vmatpush1.bf16.msra.mxu0 0
    %4759 = vmatprep.subr.bf16.mxu0 0
    %4760 = vmatpush1.bf16.msra.mxu0 0
    %4761 = vmatprep.subr.bf16.mxu0 0
    %4762 = vmatpush1.bf16.msra.mxu0 0
    %4763 = vmatprep.subr.bf16.mxu0 0
    %4764 = vmatpush1.bf16.msra.mxu0 0
    %4765 = vmatprep.subr.bf16.mxu0 0
    %4766 = vmatpush1.bf16.msra.mxu0 0
    %4767 = vmatprep.subr.bf16.mxu0 0
    %4768 = vmatpush1.bf16.msra.mxu0 0
    %4769 = vmatprep.subr.bf16.mxu0 0
    %4770 = vmatpush1.bf16.msra.mxu0 0
    %4771 = vmatprep.subr.bf16.mxu0 0
    %4772 = vmatpush1.bf16.msra.mxu0 0
    %4773 = vmatprep.subr.bf16.mxu0 0
    %4774 = vmatpush1.bf16.msra.mxu0 0
    %4775 = vmatprep.subr.bf16.mxu0 0
    %4776 = vmatpush1.bf16.msra.mxu0 0
    %4777 = vmatprep.subr.bf16.mxu0 0
    %4778 = vmatpush1.bf16.msra.mxu0 0
    %4779 = vmatprep.subr.bf16.mxu0 0
    %4780 = vmatpush1.bf16.msra.mxu0 0
    %4781 = vmatprep.subr.bf16.mxu0 0
    %4782 = vmatpush1.bf16.msra.mxu0 0
    %4783 = vmatprep.subr.bf16.mxu0 0
    %4784 = vmatpush1.bf16.msra.mxu0 0
    %4785 = vmatprep.mubr.bf16.mxu0 0
    %4786 = vmatmul.mubr.bf16.gmra.mrb[0].mxu0 %v4496
    %v4787 = vpop.f32.mrb[0].mxu0
    %v4788 = vadd.f32 0.0, %v4787
    %v4789 = vpop.f32.mrb[0].mxu0
    %v4790 = vpop.f32.mrb[0].mxu0
    %v4791 = vadd.f32 0.0, %v4790
    %v4792 = vpop.f32.mrb[0].mxu0
    %4793 = vdwg.mxu0
    %v4794 = vpack.c.bf16 %v4791, %v4788
    %v4795 = vld [vmem:[#allocation5 + $0x100] sm:$0xf]
    %v4796 = vld [vmem:[#allocation5 + $0x104] sm:$0xf]
    %v4797 = vld [vmem:[#allocation5 + $0x108] sm:$0xf]
    %v4798 = vld [vmem:[#allocation5 + $0x10c] sm:$0xf]
    %v4799 = vld [vmem:[#allocation5 + $0x110] sm:$0xf]
    %v4800 = vld [vmem:[#allocation5 + $0x114] sm:$0xf]
    %v4801 = vld [vmem:[#allocation5 + $0x118] sm:$0xf]
    %v4802 = vld [vmem:[#allocation5 + $0x11c] sm:$0xf]
    %v4803 = vld [vmem:[#allocation5 + $0x120] sm:$0xf]
    %v4804 = vld [vmem:[#allocation5 + $0x124] sm:$0xf]
    %v4805 = vld [vmem:[#allocation5 + $0x128] sm:$0xf]
    %v4806 = vld [vmem:[#allocation5 + $0x12c] sm:$0xf]
    %v4807 = vld [vmem:[#allocation5 + $0x130] sm:$0xf]
    %v4808 = vld [vmem:[#allocation5 + $0x134] sm:$0xf]
    %v4809 = vld [vmem:[#allocation5 + $0x138] sm:$0xf]
    %v4810 = vld [vmem:[#allocation5 + $0x13c] sm:$0xf]
    %v4819 = vunpack.c.l.b16 %v4803
    %v4820 = vunpack.c.l.b16 %v4804
    %v4821 = vunpack.c.l.b16 %v4805
    %v4822 = vunpack.c.l.b16 %v4806
    %v4823 = vunpack.c.l.b16 %v4807
    %v4824 = vunpack.c.l.b16 %v4808
    %v4825 = vunpack.c.l.b16 %v4809
    %v4826 = vunpack.c.l.b16 %v4810
    %v4827 = vpack.c.b16 %v4820, %v4819
    %v4828 = vpack.c.b16 %v4822, %v4821
    %v4829 = vpack.c.b16 %v4824, %v4823
    %v4830 = vpack.c.b16 %v4826, %v4825
    %v4836 = vsel %vm2218, %v4710, 0
    %4838 = vmatprep.subr.bf16.mxu0 0
    %4839 = vmatpush1.bf16.msra.mxu0 %v4827
    %4840 = vmatprep.subr.bf16.mxu0 0
    %4841 = vmatpush1.bf16.msra.mxu0 %v4828
    %4842 = vmatprep.subr.bf16.mxu0 0
    %4843 = vmatpush1.bf16.msra.mxu0 %v4829
    %4844 = vmatprep.subr.bf16.mxu0 0
    %4845 = vmatpush1.bf16.msra.mxu0 %v4830
    %4846 = vmatprep.subr.bf16.mxu0 0
    %4847 = vmatpush1.bf16.msra.mxu0 0
    %4848 = vmatprep.subr.bf16.mxu0 0
    %4849 = vmatpush1.bf16.msra.mxu0 0
    %4850 = vmatprep.subr.bf16.mxu0 0
    %4851 = vmatpush1.bf16.msra.mxu0 0
    %4852 = vmatprep.subr.bf16.mxu0 0
    %4853 = vmatpush1.bf16.msra.mxu0 0
    %4854 = vmatprep.subr.bf16.mxu0 0
    %4855 = vmatpush1.bf16.msra.mxu0 0
    %4856 = vmatprep.subr.bf16.mxu0 0
    %4857 = vmatpush1.bf16.msra.mxu0 0
    %4858 = vmatprep.subr.bf16.mxu0 0
    %4859 = vmatpush1.bf16.msra.mxu0 0
    %4860 = vmatprep.subr.bf16.mxu0 0
    %4861 = vmatpush1.bf16.msra.mxu0 0
    %4862 = vmatprep.subr.bf16.mxu0 0
    %4863 = vmatpush1.bf16.msra.mxu0 0
    %4864 = vmatprep.subr.bf16.mxu0 0
    %4865 = vmatpush1.bf16.msra.mxu0 0
    %4866 = vmatprep.subr.bf16.mxu0 0
    %4867 = vmatpush1.bf16.msra.mxu0 0
    %4868 = vmatprep.subr.bf16.mxu0 0
    %4869 = vmatpush1.bf16.msra.mxu0 0
    %4870 = vmatprep.mubr.bf16.mxu0 0
    %4871 = vmatmul.mubr.bf16.gmra.mrb[0].mxu0 %v4836
    %v4872 = vpop.f32.mrb[0].mxu0
    %v4873 = vadd.f32 0.0, %v4872
    %v4874 = vpop.f32.mrb[0].mxu0
    %v4875 = vpop.f32.mrb[0].mxu0
    %v4876 = vadd.f32 0.0, %v4875
    %v4877 = vpop.f32.mrb[0].mxu0
    %4878 = vdwg.mxu0
    %v4887 = vunpack.c.l.b16 %v4795
    %v4888 = vunpack.c.l.b16 %v4796
    %v4889 = vunpack.c.l.b16 %v4797
    %v4890 = vunpack.c.l.b16 %v4798
    %v4891 = vunpack.c.l.b16 %v4799
    %v4892 = vunpack.c.l.b16 %v4800
    %v4893 = vunpack.c.l.b16 %v4801
    %v4894 = vunpack.c.l.b16 %v4802
    %v4895 = vpack.c.b16 %v4888, %v4887
    %v4896 = vpack.c.b16 %v4890, %v4889
    %v4897 = vpack.c.b16 %v4892, %v4891
    %v4898 = vpack.c.b16 %v4894, %v4893
    %v4904 = vsel %vm2218, %v4752, 0
    %4906 = vmatprep.subr.bf16.mxu0 0
    %4907 = vmatpush1.bf16.msra.mxu0 %v4895
    %4908 = vmatprep.subr.bf16.mxu0 0
    %4909 = vmatpush1.bf16.msra.mxu0 %v4896
    %4910 = vmatprep.subr.bf16.mxu0 0
    %4911 = vmatpush1.bf16.msra.mxu0 %v4897
    %4912 = vmatprep.subr.bf16.mxu0 0
    %4913 = vmatpush1.bf16.msra.mxu0 %v4898
    %4914 = vmatprep.subr.bf16.mxu0 0
    %4915 = vmatpush1.bf16.msra.mxu0 0
    %4916 = vmatprep.subr.bf16.mxu0 0
    %4917 = vmatpush1.bf16.msra.mxu0 0
    %4918 = vmatprep.subr.bf16.mxu0 0
    %4919 = vmatpush1.bf16.msra.mxu0 0
    %4920 = vmatprep.subr.bf16.mxu0 0
    %4921 = vmatpush1.bf16.msra.mxu0 0
    %4922 = vmatprep.subr.bf16.mxu0 0
    %4923 = vmatpush1.bf16.msra.mxu0 0
    %4924 = vmatprep.subr.bf16.mxu0 0
    %4925 = vmatpush1.bf16.msra.mxu0 0
    %4926 = vmatprep.subr.bf16.mxu0 0
    %4927 = vmatpush1.bf16.msra.mxu0 0
    %4928 = vmatprep.subr.bf16.mxu0 0
    %4929 = vmatpush1.bf16.msra.mxu0 0
    %4930 = vmatprep.subr.bf16.mxu0 0
    %4931 = vmatpush1.bf16.msra.mxu0 0
    %4932 = vmatprep.subr.bf16.mxu0 0
    %4933 = vmatpush1.bf16.msra.mxu0 0
    %4934 = vmatprep.subr.bf16.mxu0 0
    %4935 = vmatpush1.bf16.msra.mxu0 0
    %4936 = vmatprep.subr.bf16.mxu0 0
    %4937 = vmatpush1.bf16.msra.mxu0 0
    %4938 = vmatprep.mubr.bf16.mxu0 0
    %4939 = vmatmul.mubr.bf16.gmra.mrb[0].mxu0 %v4904
    %v4940 = vpop.f32.mrb[0].mxu0
    %v4941 = vadd.f32 %v4873, %v4940
    %v4942 = vpop.f32.mrb[0].mxu0
    %v4943 = vpop.f32.mrb[0].mxu0
    %v4944 = vadd.f32 %v4876, %v4943
    %v4945 = vpop.f32.mrb[0].mxu0
    %4946 = vdwg.mxu0
    %v4947 = vld [vmem:[#allocation5 + $0x140] sm:$0xf]
    %v4948 = vld [vmem:[#allocation5 + $0x144] sm:$0xf]
    %v4949 = vld [vmem:[#allocation5 + $0x148] sm:$0xf]
    %v4950 = vld [vmem:[#allocation5 + $0x14c] sm:$0xf]
    %v4951 = vld [vmem:[#allocation5 + $0x150] sm:$0xf]
    %v4952 = vld [vmem:[#allocation5 + $0x154] sm:$0xf]
    %v4953 = vld [vmem:[#allocation5 + $0x158] sm:$0xf]
    %v4954 = vld [vmem:[#allocation5 + $0x15c] sm:$0xf]
    %v4963 = vunpack.c.l.b16 %v4947
    %v4964 = vunpack.c.l.b16 %v4948
    %v4965 = vunpack.c.l.b16 %v4949
    %v4966 = vunpack.c.l.b16 %v4950
    %v4967 = vunpack.c.l.b16 %v4951
    %v4968 = vunpack.c.l.b16 %v4952
    %v4969 = vunpack.c.l.b16 %v4953
    %v4970 = vunpack.c.l.b16 %v4954
    %v4971 = vpack.c.b16 %v4964, %v4963
    %v4972 = vpack.c.b16 %v4966, %v4965
    %v4973 = vpack.c.b16 %v4968, %v4967
    %v4974 = vpack.c.b16 %v4970, %v4969
    %v4980 = vsel %vm2218, %v4794, 0
    %4982 = vmatprep.subr.bf16.mxu0 0
    %4983 = vmatpush1.bf16.msra.mxu0 %v4971
    %4984 = vmatprep.subr.bf16.mxu0 0
    %4985 = vmatpush1.bf16.msra.mxu0 %v4972
    %4986 = vmatprep.subr.bf16.mxu0 0
    %4987 = vmatpush1.bf16.msra.mxu0 %v4973
    %4988 = vmatprep.subr.bf16.mxu0 0
    %4989 = vmatpush1.bf16.msra.mxu0 %v4974
    %4990 = vmatprep.subr.bf16.mxu0 0
    %4991 = vmatpush1.bf16.msra.mxu0 0
    %4992 = vmatprep.subr.bf16.mxu0 0
    %4993 = vmatpush1.bf16.msra.mxu0 0
    %4994 = vmatprep.subr.bf16.mxu0 0
    %4995 = vmatpush1.bf16.msra.mxu0 0
    %4996 = vmatprep.subr.bf16.mxu0 0
    %4997 = vmatpush1.bf16.msra.mxu0 0
    %4998 = vmatprep.subr.bf16.mxu0 0
    %4999 = vmatpush1.bf16.msra.mxu0 0
    %5000 = vmatprep.subr.bf16.mxu0 0
    %5001 = vmatpush1.bf16.msra.mxu0 0
    %5002 = vmatprep.subr.bf16.mxu0 0
    %5003 = vmatpush1.bf16.msra.mxu0 0
    %5004 = vmatprep.subr.bf16.mxu0 0
    %5005 = vmatpush1.bf16.msra.mxu0 0
    %5006 = vmatprep.subr.bf16.mxu0 0
    %5007 = vmatpush1.bf16.msra.mxu0 0
    %5008 = vmatprep.subr.bf16.mxu0 0
    %5009 = vmatpush1.bf16.msra.mxu0 0
    %5010 = vmatprep.subr.bf16.mxu0 0
    %5011 = vmatpush1.bf16.msra.mxu0 0
    %5012 = vmatprep.subr.bf16.mxu0 0
    %5013 = vmatpush1.bf16.msra.mxu0 0
    %5014 = vmatprep.mubr.bf16.mxu0 0
    %5015 = vmatmul.mubr.bf16.gmra.mrb[0].mxu0 %v4980
    %v5016 = vpop.f32.mrb[0].mxu0
    %v5017 = vadd.f32 0.0, %v5016
    %v5018 = vpop.f32.mrb[0].mxu0
    %v5019 = vpop.f32.mrb[0].mxu0
    %v5020 = vadd.f32 0.0, %v5019
    %v5021 = vpop.f32.mrb[0].mxu0
    %5022 = vdwg.mxu0
    %v5023 = vadd.f32 %v4941, %v5017
    %v5024 = vadd.f32 %v4944, %v5020
    %v5025 = vld [vmem:[#allocation7 + $0x1e] sm:$0x1]
    %v5026 = vlaneseq
    %v5027 = vshrl.u32 %v5026, 7
    %v5028 = vsub.s32 0, %v5027
    %v5029 = vrot.slane %v5025, %v5028
    %v5030 = vadd.f32 %v5023, %v5029
    %v5031 = vadd.f32 %v5024, %v5029
    %v5032 = vmax.f32 %v5030, 0.0
    %v5033 = vmax.f32 %v5031, 0.0
    %v5034 = vpack.c.bf16 %v5033, %v5032
    %5035 = vmatprep.subr.bf16.mxu0 0
    %5036 = vmatpush1.bf16.msra.mxu0 %v5034
    %5037 = vmatprep.subr.bf16.mxu0 0
    %5038 = vmatpush1.bf16.msra.mxu0 0
    %5039 = vmatprep.subr.bf16.mxu0 0
    %5040 = vmatpush1.bf16.msra.mxu0 0
    %5041 = vmatprep.subr.bf16.mxu0 0
    %5042 = vmatpush1.bf16.msra.mxu0 0
    %5043 = vmatprep.subr.bf16.mxu0 0
    %5044 = vmatpush1.bf16.msra.mxu0 0
    %5045 = vmatprep.subr.bf16.mxu0 0
    %5046 = vmatpush1.bf16.msra.mxu0 0
    %5047 = vmatprep.subr.bf16.mxu0 0
    %5048 = vmatpush1.bf16.msra.mxu0 0
    %5049 = vmatprep.subr.bf16.mxu0 0
    %5050 = vmatpush1.bf16.msra.mxu0 0
    %5051 = vmatprep.subr.bf16.mxu0 0
    %5052 = vmatpush1.bf16.msra.mxu0 0
    %5053 = vmatprep.subr.bf16.mxu0 0
    %5054 = vmatpush1.bf16.msra.mxu0 0
    %5055 = vmatprep.subr.bf16.mxu0 0
    %5056 = vmatpush1.bf16.msra.mxu0 0
    %5057 = vmatprep.subr.bf16.mxu0 0
    %5058 = vmatpush1.bf16.msra.mxu0 0
    %5059 = vmatprep.subr.bf16.mxu0 0
    %5060 = vmatpush1.bf16.msra.mxu0 0
    %5061 = vmatprep.subr.bf16.mxu0 0
    %5062 = vmatpush1.bf16.msra.mxu0 0
    %5063 = vmatprep.subr.bf16.mxu0 0
    %5064 = vmatpush1.bf16.msra.mxu0 0
    %5065 = vmatprep.subr.bf16.mxu0 0
    %5066 = vmatpush1.bf16.msra.mxu0 0
    %5067 = vmatprep.mubr.bf16.mxu0 0
    %5068 = vmatmul.mubr.bf16.gmra.mrb[0].mxu0 %v4451
    %v5069 = vpop.f32.mrb[0].mxu0
    %v5070 = vadd.f32 0.0, %v5069
    %v5071 = vpop.f32.mrb[0].mxu0
    %v5072 = vpop.f32.mrb[0].mxu0
    %v5073 = vadd.f32 0.0, %v5072
    %v5074 = vpop.f32.mrb[0].mxu0
    %5075 = vdwg.mxu0
    %v5076 = vpack.c.bf16 %v5073, %v5070
    %5077 = vmatprep.subr.bf16.mxu0 0
    %5078 = vmatpush1.bf16.msra.mxu0 %v5034
    %5079 = vmatprep.subr.bf16.mxu0 0
    %5080 = vmatpush1.bf16.msra.mxu0 0
    %5081 = vmatprep.subr.bf16.mxu0 0
    %5082 = vmatpush1.bf16.msra.mxu0 0
    %5083 = vmatprep.subr.bf16.mxu0 0
    %5084 = vmatpush1.bf16.msra.mxu0 0
    %5085 = vmatprep.subr.bf16.mxu0 0
    %5086 = vmatpush1.bf16.msra.mxu0 0
    %5087 = vmatprep.subr.bf16.mxu0 0
    %5088 = vmatpush1.bf16.msra.mxu0 0
    %5089 = vmatprep.subr.bf16.mxu0 0
    %5090 = vmatpush1.bf16.msra.mxu0 0
    %5091 = vmatprep.subr.bf16.mxu0 0
    %5092 = vmatpush1.bf16.msra.mxu0 0
    %5093 = vmatprep.subr.bf16.mxu0 0
    %5094 = vmatpush1.bf16.msra.mxu0 0
    %5095 = vmatprep.subr.bf16.mxu0 0
    %5096 = vmatpush1.bf16.msra.mxu0 0
    %5097 = vmatprep.subr.bf16.mxu0 0
    %5098 = vmatpush1.bf16.msra.mxu0 0
    %5099 = vmatprep.subr.bf16.mxu0 0
    %5100 = vmatpush1.bf16.msra.mxu0 0
    %5101 = vmatprep.subr.bf16.mxu0 0
    %5102 = vmatpush1.bf16.msra.mxu0 0
    %5103 = vmatprep.subr.bf16.mxu0 0
    %5104 = vmatpush1.bf16.msra.mxu0 0
    %5105 = vmatprep.subr.bf16.mxu0 0
    %5106 = vmatpush1.bf16.msra.mxu0 0
    %5107 = vmatprep.subr.bf16.mxu0 0
    %5108 = vmatpush1.bf16.msra.mxu0 0
    %5109 = vmatprep.mubr.bf16.mxu0 0
    %5110 = vmatmul.mubr.bf16.gmra.mrb[0].mxu0 %v4496
    %v5111 = vpop.f32.mrb[0].mxu0
    %v5112 = vadd.f32 0.0, %v5111
    %v5113 = vpop.f32.mrb[0].mxu0
    %v5114 = vpop.f32.mrb[0].mxu0
    %v5115 = vadd.f32 0.0, %v5114
    %v5116 = vpop.f32.mrb[0].mxu0
    %5117 = vdwg.mxu0
    %v5118 = vpack.c.bf16 %v5115, %v5112
    %v5119 = vld [vmem:[#allocation5 + $0x160] sm:$0xf]
    %v5120 = vld [vmem:[#allocation5 + $0x164] sm:$0xf]
    %v5121 = vld [vmem:[#allocation5 + $0x168] sm:$0xf]
    %v5122 = vld [vmem:[#allocation5 + $0x16c] sm:$0xf]
    %v5123 = vld [vmem:[#allocation5 + $0x170] sm:$0xf]
    %v5124 = vld [vmem:[#allocation5 + $0x174] sm:$0xf]
    %v5125 = vld [vmem:[#allocation5 + $0x178] sm:$0xf]
    %v5126 = vld [vmem:[#allocation5 + $0x17c] sm:$0xf]
    %v5127 = vld [vmem:[#allocation5 + $0x180] sm:$0xf]
    %v5128 = vld [vmem:[#allocation5 + $0x184] sm:$0xf]
    %v5129 = vld [vmem:[#allocation5 + $0x188] sm:$0xf]
    %v5130 = vld [vmem:[#allocation5 + $0x18c] sm:$0xf]
    %v5131 = vld [vmem:[#allocation5 + $0x190] sm:$0xf]
    %v5132 = vld [vmem:[#allocation5 + $0x194] sm:$0xf]
    %v5133 = vld [vmem:[#allocation5 + $0x198] sm:$0xf]
    %v5134 = vld [vmem:[#allocation5 + $0x19c] sm:$0xf]
    %v5135 = vld [vmem:[#allocation5 + $0x1a0] sm:$0xf]
    %v5136 = vld [vmem:[#allocation5 + $0x1a4] sm:$0xf]
    %v5137 = vld [vmem:[#allocation5 + $0x1a8] sm:$0xf]
    %v5138 = vld [vmem:[#allocation5 + $0x1ac] sm:$0xf]
    %v5139 = vld [vmem:[#allocation5 + $0x1b0] sm:$0xf]
    %v5140 = vld [vmem:[#allocation5 + $0x1b4] sm:$0xf]
    %v5141 = vld [vmem:[#allocation5 + $0x1b8] sm:$0xf]
    %v5142 = vld [vmem:[#allocation5 + $0x1bc] sm:$0xf]
    %v5143 = vld [vmem:[#allocation5 + $0x1c0] sm:$0xf]
    %v5144 = vld [vmem:[#allocation5 + $0x1c4] sm:$0xf]
    %v5145 = vld [vmem:[#allocation5 + $0x1c8] sm:$0xf]
    %v5146 = vld [vmem:[#allocation5 + $0x1cc] sm:$0xf]
    %v5147 = vld [vmem:[#allocation5 + $0x1d0] sm:$0xf]
    %v5148 = vld [vmem:[#allocation5 + $0x1d4] sm:$0xf]
    %v5149 = vld [vmem:[#allocation5 + $0x1d8] sm:$0xf]
    %v5150 = vld [vmem:[#allocation5 + $0x1dc] sm:$0xf]
    %v5167 = vunpack.c.l.b16 %v5135
    %v5168 = vunpack.c.l.b16 %v5136
    %v5169 = vunpack.c.l.b16 %v5137
    %v5170 = vunpack.c.l.b16 %v5138
    %v5171 = vunpack.c.l.b16 %v5139
    %v5172 = vunpack.c.l.b16 %v5140
    %v5173 = vunpack.c.l.b16 %v5141
    %v5174 = vunpack.c.l.b16 %v5142
    %v5175 = vunpack.c.l.b16 %v5143
    %v5176 = vunpack.c.l.b16 %v5144
    %v5177 = vunpack.c.l.b16 %v5145
    %v5178 = vunpack.c.l.b16 %v5146
    %v5179 = vunpack.c.l.b16 %v5147
    %v5180 = vunpack.c.l.b16 %v5148
    %v5181 = vunpack.c.l.b16 %v5149
    %v5182 = vunpack.c.l.b16 %v5150
    %v5183 = vpack.c.b16 %v5168, %v5167
    %v5184 = vpack.c.b16 %v5170, %v5169
    %v5185 = vpack.c.b16 %v5172, %v5171
    %v5186 = vpack.c.b16 %v5174, %v5173
    %v5187 = vpack.c.b16 %v5176, %v5175
    %v5188 = vpack.c.b16 %v5178, %v5177
    %v5189 = vpack.c.b16 %v5180, %v5179
    %v5190 = vpack.c.b16 %v5182, %v5181
    %5199 = vmatprep.subr.bf16.mxu0 0
    %5200 = vmatpush1.bf16.msra.mxu0 %v5183
    %5201 = vmatprep.subr.bf16.mxu0 0
    %5202 = vmatpush1.bf16.msra.mxu0 %v5184
    %5203 = vmatprep.subr.bf16.mxu0 0
    %5204 = vmatpush1.bf16.msra.mxu0 %v5185
    %5205 = vmatprep.subr.bf16.mxu0 0
    %5206 = vmatpush1.bf16.msra.mxu0 %v5186
    %5207 = vmatprep.subr.bf16.mxu0 0
    %5208 = vmatpush1.bf16.msra.mxu0 %v5187
    %5209 = vmatprep.subr.bf16.mxu0 0
    %5210 = vmatpush1.bf16.msra.mxu0 %v5188
    %5211 = vmatprep.subr.bf16.mxu0 0
    %5212 = vmatpush1.bf16.msra.mxu0 %v5189
    %5213 = vmatprep.subr.bf16.mxu0 0
    %5214 = vmatpush1.bf16.msra.mxu0 %v5190
    %5215 = vmatprep.subr.bf16.mxu0 0
    %5216 = vmatpush1.bf16.msra.mxu0 0
    %5217 = vmatprep.subr.bf16.mxu0 0
    %5218 = vmatpush1.bf16.msra.mxu0 0
    %5219 = vmatprep.subr.bf16.mxu0 0
    %5220 = vmatpush1.bf16.msra.mxu0 0
    %5221 = vmatprep.subr.bf16.mxu0 0
    %5222 = vmatpush1.bf16.msra.mxu0 0
    %5223 = vmatprep.subr.bf16.mxu0 0
    %5224 = vmatpush1.bf16.msra.mxu0 0
    %5225 = vmatprep.subr.bf16.mxu0 0
    %5226 = vmatpush1.bf16.msra.mxu0 0
    %5227 = vmatprep.subr.bf16.mxu0 0
    %5228 = vmatpush1.bf16.msra.mxu0 0
    %5229 = vmatprep.subr.bf16.mxu0 0
    %5230 = vmatpush1.bf16.msra.mxu0 0
    %5231 = vmatprep.mubr.bf16.mxu0 0
    %5232 = vmatmul.mubr.bf16.gmra.mrb[0].mxu0 %v5034
    %v5233 = vpop.f32.mrb[0].mxu0
    %v5234 = vadd.f32 0.0, %v5233
    %v5235 = vpop.f32.mrb[0].mxu0
    %v5236 = vpop.f32.mrb[0].mxu0
    %v5237 = vadd.f32 0.0, %v5236
    %v5238 = vpop.f32.mrb[0].mxu0
    %5239 = vdwg.mxu0
    %v5256 = vunpack.c.l.b16 %v5119
    %v5257 = vunpack.c.l.b16 %v5120
    %v5258 = vunpack.c.l.b16 %v5121
    %v5259 = vunpack.c.l.b16 %v5122
    %v5260 = vunpack.c.l.b16 %v5123
    %v5261 = vunpack.c.l.b16 %v5124
    %v5262 = vunpack.c.l.b16 %v5125
    %v5263 = vunpack.c.l.b16 %v5126
    %v5264 = vunpack.c.l.b16 %v5127
    %v5265 = vunpack.c.l.b16 %v5128
    %v5266 = vunpack.c.l.b16 %v5129
    %v5267 = vunpack.c.l.b16 %v5130
    %v5268 = vunpack.c.l.b16 %v5131
    %v5269 = vunpack.c.l.b16 %v5132
    %v5270 = vunpack.c.l.b16 %v5133
    %v5271 = vunpack.c.l.b16 %v5134
    %v5272 = vpack.c.b16 %v5257, %v5256
    %v5273 = vpack.c.b16 %v5259, %v5258
    %v5274 = vpack.c.b16 %v5261, %v5260
    %v5275 = vpack.c.b16 %v5263, %v5262
    %v5276 = vpack.c.b16 %v5265, %v5264
    %v5277 = vpack.c.b16 %v5267, %v5266
    %v5278 = vpack.c.b16 %v5269, %v5268
    %v5279 = vpack.c.b16 %v5271, %v5270
    %5288 = vmatprep.subr.bf16.mxu0 0
    %5289 = vmatpush1.bf16.msra.mxu0 %v5272
    %5290 = vmatprep.subr.bf16.mxu0 0
    %5291 = vmatpush1.bf16.msra.mxu0 %v5273
    %5292 = vmatprep.subr.bf16.mxu0 0
    %5293 = vmatpush1.bf16.msra.mxu0 %v5274
    %5294 = vmatprep.subr.bf16.mxu0 0
    %5295 = vmatpush1.bf16.msra.mxu0 %v5275
    %5296 = vmatprep.subr.bf16.mxu0 0
    %5297 = vmatpush1.bf16.msra.mxu0 %v5276
    %5298 = vmatprep.subr.bf16.mxu0 0
    %5299 = vmatpush1.bf16.msra.mxu0 %v5277
    %5300 = vmatprep.subr.bf16.mxu0 0
    %5301 = vmatpush1.bf16.msra.mxu0 %v5278
    %5302 = vmatprep.subr.bf16.mxu0 0
    %5303 = vmatpush1.bf16.msra.mxu0 %v5279
    %5304 = vmatprep.subr.bf16.mxu0 0
    %5305 = vmatpush1.bf16.msra.mxu0 0
    %5306 = vmatprep.subr.bf16.mxu0 0
    %5307 = vmatpush1.bf16.msra.mxu0 0
    %5308 = vmatprep.subr.bf16.mxu0 0
    %5309 = vmatpush1.bf16.msra.mxu0 0
    %5310 = vmatprep.subr.bf16.mxu0 0
    %5311 = vmatpush1.bf16.msra.mxu0 0
    %5312 = vmatprep.subr.bf16.mxu0 0
    %5313 = vmatpush1.bf16.msra.mxu0 0
    %5314 = vmatprep.subr.bf16.mxu0 0
    %5315 = vmatpush1.bf16.msra.mxu0 0
    %5316 = vmatprep.subr.bf16.mxu0 0
    %5317 = vmatpush1.bf16.msra.mxu0 0
    %5318 = vmatprep.subr.bf16.mxu0 0
    %5319 = vmatpush1.bf16.msra.mxu0 0
    %5320 = vmatprep.mubr.bf16.mxu0 0
    %5321 = vmatmul.mubr.bf16.gmra.mrb[0].mxu0 %v5076
    %v5322 = vpop.f32.mrb[0].mxu0
    %v5323 = vadd.f32 %v5234, %v5322
    %v5324 = vpop.f32.mrb[0].mxu0
    %v5325 = vpop.f32.mrb[0].mxu0
    %v5326 = vadd.f32 %v5237, %v5325
    %v5327 = vpop.f32.mrb[0].mxu0
    %5328 = vdwg.mxu0
    %v5329 = vld [vmem:[#allocation5 + $0x1e0] sm:$0xf]
    %v5330 = vld [vmem:[#allocation5 + $0x1e4] sm:$0xf]
    %v5331 = vld [vmem:[#allocation5 + $0x1e8] sm:$0xf]
    %v5332 = vld [vmem:[#allocation5 + $0x1ec] sm:$0xf]
    %v5333 = vld [vmem:[#allocation5 + $0x1f0] sm:$0xf]
    %v5334 = vld [vmem:[#allocation5 + $0x1f4] sm:$0xf]
    %v5335 = vld [vmem:[#allocation5 + $0x1f8] sm:$0xf]
    %v5336 = vld [vmem:[#allocation5 + $0x1fc] sm:$0xf]
    %v5337 = vld [vmem:[#allocation5 + $0x200] sm:$0xf]
    %v5338 = vld [vmem:[#allocation5 + $0x204] sm:$0xf]
    %v5339 = vld [vmem:[#allocation5 + $0x208] sm:$0xf]
    %v5340 = vld [vmem:[#allocation5 + $0x20c] sm:$0xf]
    %v5341 = vld [vmem:[#allocation5 + $0x210] sm:$0xf]
    %v5342 = vld [vmem:[#allocation5 + $0x214] sm:$0xf]
    %v5343 = vld [vmem:[#allocation5 + $0x218] sm:$0xf]
    %v5344 = vld [vmem:[#allocation5 + $0x21c] sm:$0xf]
    %v5361 = vunpack.c.l.b16 %v5329
    %v5362 = vunpack.c.l.b16 %v5330
    %v5363 = vunpack.c.l.b16 %v5331
    %v5364 = vunpack.c.l.b16 %v5332
    %v5365 = vunpack.c.l.b16 %v5333
    %v5366 = vunpack.c.l.b16 %v5334
    %v5367 = vunpack.c.l.b16 %v5335
    %v5368 = vunpack.c.l.b16 %v5336
    %v5369 = vunpack.c.l.b16 %v5337
    %v5370 = vunpack.c.l.b16 %v5338
    %v5371 = vunpack.c.l.b16 %v5339
    %v5372 = vunpack.c.l.b16 %v5340
    %v5373 = vunpack.c.l.b16 %v5341
    %v5374 = vunpack.c.l.b16 %v5342
    %v5375 = vunpack.c.l.b16 %v5343
    %v5376 = vunpack.c.l.b16 %v5344
    %v5377 = vpack.c.b16 %v5362, %v5361
    %v5378 = vpack.c.b16 %v5364, %v5363
    %v5379 = vpack.c.b16 %v5366, %v5365
    %v5380 = vpack.c.b16 %v5368, %v5367
    %v5381 = vpack.c.b16 %v5370, %v5369
    %v5382 = vpack.c.b16 %v5372, %v5371
    %v5383 = vpack.c.b16 %v5374, %v5373
    %v5384 = vpack.c.b16 %v5376, %v5375
    %5393 = vmatprep.subr.bf16.mxu0 0
    %5394 = vmatpush1.bf16.msra.mxu0 %v5377
    %5395 = vmatprep.subr.bf16.mxu0 0
    %5396 = vmatpush1.bf16.msra.mxu0 %v5378
    %5397 = vmatprep.subr.bf16.mxu0 0
    %5398 = vmatpush1.bf16.msra.mxu0 %v5379
    %5399 = vmatprep.subr.bf16.mxu0 0
    %5400 = vmatpush1.bf16.msra.mxu0 %v5380
    %5401 = vmatprep.subr.bf16.mxu0 0
    %5402 = vmatpush1.bf16.msra.mxu0 %v5381
    %5403 = vmatprep.subr.bf16.mxu0 0
    %5404 = vmatpush1.bf16.msra.mxu0 %v5382
    %5405 = vmatprep.subr.bf16.mxu0 0
    %5406 = vmatpush1.bf16.msra.mxu0 %v5383
    %5407 = vmatprep.subr.bf16.mxu0 0
    %5408 = vmatpush1.bf16.msra.mxu0 %v5384
    %5409 = vmatprep.subr.bf16.mxu0 0
    %5410 = vmatpush1.bf16.msra.mxu0 0
    %5411 = vmatprep.subr.bf16.mxu0 0
    %5412 = vmatpush1.bf16.msra.mxu0 0
    %5413 = vmatprep.subr.bf16.mxu0 0
    %5414 = vmatpush1.bf16.msra.mxu0 0
    %5415 = vmatprep.subr.bf16.mxu0 0
    %5416 = vmatpush1.bf16.msra.mxu0 0
    %5417 = vmatprep.subr.bf16.mxu0 0
    %5418 = vmatpush1.bf16.msra.mxu0 0
    %5419 = vmatprep.subr.bf16.mxu0 0
    %5420 = vmatpush1.bf16.msra.mxu0 0
    %5421 = vmatprep.subr.bf16.mxu0 0
    %5422 = vmatpush1.bf16.msra.mxu0 0
    %5423 = vmatprep.subr.bf16.mxu0 0
    %5424 = vmatpush1.bf16.msra.mxu0 0
    %5425 = vmatprep.mubr.bf16.mxu0 0
    %5426 = vmatmul.mubr.bf16.gmra.mrb[0].mxu0 %v5118
    %v5427 = vpop.f32.mrb[0].mxu0
    %v5428 = vadd.f32 0.0, %v5427
    %v5429 = vpop.f32.mrb[0].mxu0
    %v5430 = vpop.f32.mrb[0].mxu0
    %v5431 = vadd.f32 0.0, %v5430
    %v5432 = vpop.f32.mrb[0].mxu0
    %5433 = vdwg.mxu0
    %v5434 = vadd.f32 %v5323, %v5428
    %v5435 = vadd.f32 %v5326, %v5431
    %v5436 = vld [vmem:[#allocation7 + $0x1f] sm:$0x1]
    %v5437 = vlaneseq
    %v5438 = vshrl.u32 %v5437, 7
    %v5439 = vsub.s32 0, %v5438
    %v5440 = vrot.slane %v5436, %v5439
    %v5441 = vadd.f32 %v5434, %v5440
    %v5442 = vadd.f32 %v5435, %v5440
    %v5443 = vmax.f32 %v5441, 0.0
    %v5444 = vmax.f32 %v5442, 0.0
    %v5445 = vsel %vm129, %v4396, 0.0
    %v5446 = vrot.slane %v5445, 4
    %v5447 = vadd.f32 %v5445, %v5446
    %v5448 = vrot.slane %v5447, 2
    %v5449 = vadd.f32 %v5447, %v5448
    %v5450 = vrot.slane %v5449, 1
    %v5451 = vadd.f32 %v5449, %v5450
    %v5452 = vsel %vm129, %v4397, 0.0
    %v5453 = vrot.slane %v5452, 4
    %v5454 = vadd.f32 %v5452, %v5453
    %v5455 = vrot.slane %v5454, 2
    %v5456 = vadd.f32 %v5454, %v5455
    %v5457 = vrot.slane %v5456, 1
    %v5458 = vadd.f32 %v5456, %v5457
    %v5459 = vrcp.pop 8.0
    %v5460 = vmul.f32 %v5451, %v5459
    %v5461 = vmul.f32 %v5458, %v5459
    %v5462 = vsel %vm129, %v5443, 0.0
    %v5463 = vrot.slane %v5462, 4
    %v5464 = vadd.f32 %v5462, %v5463
    %v5465 = vrot.slane %v5464, 2
    %v5466 = vadd.f32 %v5464, %v5465
    %v5467 = vrot.slane %v5466, 1
    %v5468 = vadd.f32 %v5466, %v5467
    %v5469 = vsel %vm129, %v5444, 0.0
    %v5470 = vrot.slane %v5469, 4
    %v5471 = vadd.f32 %v5469, %v5470
    %v5472 = vrot.slane %v5471, 2
    %v5473 = vadd.f32 %v5471, %v5472
    %v5474 = vrot.slane %v5473, 1
    %v5475 = vadd.f32 %v5473, %v5474
    %v5476 = vmul.f32 %v5468, %v5459
    %v5477 = vmul.f32 %v5475, %v5459
    %v5478 = vpack.c.bf16 %v5460, %v5460
    %v5479 = vpack.c.bf16 %v5461, %v5461
    %v5480 = vld [vmem:[#allocation5 + $0x220] sm:$0xf]
    %v5481 = vld [vmem:[#allocation5 + $0x224] sm:$0xf]
    %v5482 = vld [vmem:[#allocation5 + $0x228] sm:$0xf]
    %v5483 = vld [vmem:[#allocation5 + $0x22c] sm:$0xf]
    %v5484 = vpack.c.bf16 %v5476, %v5476
    %v5485 = vpack.c.bf16 %v5477, %v5477
    %v5486 = vld [vmem:[#allocation5 + $0x230] sm:$0xf]
    %v5487 = vld [vmem:[#allocation5 + $0x234] sm:$0xf]
    %v5488 = vld [vmem:[#allocation5 + $0x238] sm:$0xf]
    %v5489 = vld [vmem:[#allocation5 + $0x23c] sm:$0xf]
    %v5492 = vunpack.c.l.b16 %v5484
    %v5493 = vunpack.c.l.b16 %v5485
    %vm5494 = vcmask 1041409
    %v5495 = vsel %vm5494, %v5493, %v5492
    %v5496 = vpack.c.b16 %v5495, %v5495
    %v5501 = vunpack.c.l.b16 %v5486
    %v5502 = vunpack.c.l.b16 %v5487
    %v5503 = vunpack.c.l.b16 %v5488
    %v5504 = vunpack.c.l.b16 %v5489
    %v5505 = vpack.c.b16 %v5502, %v5501
    %v5506 = vpack.c.b16 %v5504, %v5503
    %v5510 = vsel %vm129, %v5496, 0
    %5512 = vmatprep.subr.bf16.mxu0 0
    %5513 = vmatpush1.bf16.msra.mxu0 %v5505
    %5514 = vmatprep.subr.bf16.mxu0 0
    %5515 = vmatpush1.bf16.msra.mxu0 %v5506
    %5516 = vmatprep.subr.bf16.mxu0 0
    %5517 = vmatpush1.bf16.msra.mxu0 0
    %5518 = vmatprep.subr.bf16.mxu0 0
    %5519 = vmatpush1.bf16.msra.mxu0 0
    %5520 = vmatprep.subr.bf16.mxu0 0
    %5521 = vmatpush1.bf16.msra.mxu0 0
    %5522 = vmatprep.subr.bf16.mxu0 0
    %5523 = vmatpush1.bf16.msra.mxu0 0
    %5524 = vmatprep.subr.bf16.mxu0 0
    %5525 = vmatpush1.bf16.msra.mxu0 0
    %5526 = vmatprep.subr.bf16.mxu0 0
    %5527 = vmatpush1.bf16.msra.mxu0 0
    %5528 = vmatprep.subr.bf16.mxu0 0
    %5529 = vmatpush1.bf16.msra.mxu0 0
    %5530 = vmatprep.subr.bf16.mxu0 0
    %5531 = vmatpush1.bf16.msra.mxu0 0
    %5532 = vmatprep.subr.bf16.mxu0 0
    %5533 = vmatpush1.bf16.msra.mxu0 0
    %5534 = vmatprep.subr.bf16.mxu0 0
    %5535 = vmatpush1.bf16.msra.mxu0 0
    %5536 = vmatprep.subr.bf16.mxu0 0
    %5537 = vmatpush1.bf16.msra.mxu0 0
    %5538 = vmatprep.subr.bf16.mxu0 0
    %5539 = vmatpush1.bf16.msra.mxu0 0
    %5540 = vmatprep.subr.bf16.mxu0 0
    %5541 = vmatpush1.bf16.msra.mxu0 0
    %5542 = vmatprep.subr.bf16.mxu0 0
    %5543 = vmatpush1.bf16.msra.mxu0 0
    %5544 = vmatprep.mubr.bf16.mxu0 0
    %5545 = vmatmul.mubr.bf16.gmra.mrb[0].mxu0 %v5510
    %v5546 = vpop.f32.mrb[0].mxu0
    %v5547 = vadd.f32 0.0, %v5546
    %v5548 = vpop.f32.mrb[0].mxu0
    %v5549 = vpop.f32.mrb[0].mxu0
    %v5550 = vpop.f32.mrb[0].mxu0
    %5551 = vdwg.mxu0
    %v5554 = vunpack.c.l.b16 %v5478
    %v5555 = vunpack.c.l.b16 %v5479
    %v5556 = vsel %vm5494, %v5555, %v5554
    %v5557 = vpack.c.b16 %v5556, %v5556
    %v5562 = vunpack.c.l.b16 %v5480
    %v5563 = vunpack.c.l.b16 %v5481
    %v5564 = vunpack.c.l.b16 %v5482
    %v5565 = vunpack.c.l.b16 %v5483
    %v5566 = vpack.c.b16 %v5563, %v5562
    %v5567 = vpack.c.b16 %v5565, %v5564
    %v5571 = vsel %vm129, %v5557, 0
    %5573 = vmatprep.subr.bf16.mxu0 0
    %5574 = vmatpush1.bf16.msra.mxu0 %v5566
    %5575 = vmatprep.subr.bf16.mxu0 0
    %5576 = vmatpush1.bf16.msra.mxu0 %v5567
    %5577 = vmatprep.subr.bf16.mxu0 0
    %5578 = vmatpush1.bf16.msra.mxu0 0
    %5579 = vmatprep.subr.bf16.mxu0 0
    %5580 = vmatpush1.bf16.msra.mxu0 0
    %5581 = vmatprep.subr.bf16.mxu0 0
    %5582 = vmatpush1.bf16.msra.mxu0 0
    %5583 = vmatprep.subr.bf16.mxu0 0
    %5584 = vmatpush1.bf16.msra.mxu0 0
    %5585 = vmatprep.subr.bf16.mxu0 0
    %5586 = vmatpush1.bf16.msra.mxu0 0
    %5587 = vmatprep.subr.bf16.mxu0 0
    %5588 = vmatpush1.bf16.msra.mxu0 0
    %5589 = vmatprep.subr.bf16.mxu0 0
    %5590 = vmatpush1.bf16.msra.mxu0 0
    %5591 = vmatprep.subr.bf16.mxu0 0
    %5592 = vmatpush1.bf16.msra.mxu0 0
    %5593 = vmatprep.subr.bf16.mxu0 0
    %5594 = vmatpush1.bf16.msra.mxu0 0
    %5595 = vmatprep.subr.bf16.mxu0 0
    %5596 = vmatpush1.bf16.msra.mxu0 0
    %5597 = vmatprep.subr.bf16.mxu0 0
    %5598 = vmatpush1.bf16.msra.mxu0 0
    %5599 = vmatprep.subr.bf16.mxu0 0
    %5600 = vmatpush1.bf16.msra.mxu0 0
    %5601 = vmatprep.subr.bf16.mxu0 0
    %5602 = vmatpush1.bf16.msra.mxu0 0
    %5603 = vmatprep.subr.bf16.mxu0 0
    %5604 = vmatpush1.bf16.msra.mxu0 0
    %5605 = vmatprep.mubr.bf16.mxu0 0
    %5606 = vmatmul.mubr.bf16.gmra.mrb[0].mxu0 %v5571
    %v5607 = vpop.f32.mrb[0].mxu0
    %v5608 = vadd.f32 %v5547, %v5607
    %v5609 = vpop.f32.mrb[0].mxu0
    %v5610 = vpop.f32.mrb[0].mxu0
    %v5611 = vpop.f32.mrb[0].mxu0
    %5612 = vdwg.mxu0
    %v5613 = vld [vmem:[#allocation7 + $0x20] sm:$0x1]
    %v5614 = vlaneseq
    %v5615 = vshrl.u32 %v5614, 7
    %v5616 = vsub.s32 0, %v5615
    %v5617 = vrot.slane %v5613, %v5616
    %v5618 = vadd.f32 %v5608, %v5617
    %v5619 = vld [vmem:[#allocation7 + $0x21] sm:$0x1]
    %v5620 = vld [vmem:[#allocation7 + $0x22] sm:$0x1]
    %vm5621 = vcmask 254976
    %v5622 = vsel %vm5621, %v5618, 0.0
    %5623 = vadd.xlane.f32.xlu0 %v5622
    %v5624 = vpop.xlane.xlu0 %5623
    %v5625 = vmul.f32 %v5624, %v136
    %v5626 = vsub.f32 %v5618, %v5625
    %v5627 = vmul.f32 %v5626, %v5626
    %v5628 = vsel %vm5621, %v5627, 0.0
    %5629 = vadd.xlane.f32.xlu0 %v5628
    %v5630 = vpop.xlane.xlu0 %5629
    %v5631 = vmul.f32 %v5630, %v136
    %v5632 = vadd.f32 %v5631, 1e-05
    %v5633 = vrsqrt.pop %v5632
    %v5634 = vmul.f32 %v5626, %v5633
    %v5635 = vlaneseq
    %v5636 = vshrl.u32 %v5635, 7
    %v5637 = vsub.s32 0, %v5636
    %v5638 = vrot.slane %v5619, %v5637
    %v5639 = vmul.f32 %v5634, %v5638
    %v5640 = vlaneseq
    %v5641 = vshrl.u32 %v5640, 7
    %v5642 = vsub.s32 0, %v5641
    %v5643 = vrot.slane %v5620, %v5642
    %v5644 = vadd.f32 %v5639, %v5643
    %v5645 = vmax.f32 %v5644, 0.0
    %v5646 = vpack.c.bf16 %v5645, %v5645
    %v5647 = vld [vmem:[#allocation5 + $0x240] sm:$0xf]
    %v5648 = vld [vmem:[#allocation5 + $0x244] sm:$0xf]
    %v5649 = vld [vmem:[#allocation5 + $0x248] sm:$0xf]
    %v5650 = vld [vmem:[#allocation5 + $0x24c] sm:$0xf]
    %v5651 = vld [vmem:[#allocation7 + $0x23] sm:$0x1]
    %v5652 = vlaneseq
    %v5653 = vshrl.u32 %v5652, 7
    %v5654 = vsub.s32 0, %v5653
    %v5655 = vrot.slane %v5651, %v5654
    %v5660 = vunpack.c.l.b16 %v5647
    %v5661 = vunpack.c.l.b16 %v5648
    %v5662 = vunpack.c.l.b16 %v5649
    %v5663 = vunpack.c.l.b16 %v5650
    %v5664 = vpack.c.b16 %v5661, %v5660
    %v5665 = vpack.c.b16 %v5663, %v5662
    %v5669 = vsel %vm129, %v5646, 0
    %5671 = vmatprep.subr.bf16.mxu0 0
    %5672 = vmatpush1.bf16.msra.mxu0 %v5664
    %5673 = vmatprep.subr.bf16.mxu0 0
    %5674 = vmatpush1.bf16.msra.mxu0 %v5665
    %5675 = vmatprep.subr.bf16.mxu0 0
    %5676 = vmatpush1.bf16.msra.mxu0 0
    %5677 = vmatprep.subr.bf16.mxu0 0
    %5678 = vmatpush1.bf16.msra.mxu0 0
    %5679 = vmatprep.subr.bf16.mxu0 0
    %5680 = vmatpush1.bf16.msra.mxu0 0
    %5681 = vmatprep.subr.bf16.mxu0 0
    %5682 = vmatpush1.bf16.msra.mxu0 0
    %5683 = vmatprep.subr.bf16.mxu0 0
    %5684 = vmatpush1.bf16.msra.mxu0 0
    %5685 = vmatprep.subr.bf16.mxu0 0
    %5686 = vmatpush1.bf16.msra.mxu0 0
    %5687 = vmatprep.subr.bf16.mxu0 0
    %5688 = vmatpush1.bf16.msra.mxu0 0
    %5689 = vmatprep.subr.bf16.mxu0 0
    %5690 = vmatpush1.bf16.msra.mxu0 0
    %5691 = vmatprep.subr.bf16.mxu0 0
    %5692 = vmatpush1.bf16.msra.mxu0 0
    %5693 = vmatprep.subr.bf16.mxu0 0
    %5694 = vmatpush1.bf16.msra.mxu0 0
    %5695 = vmatprep.subr.bf16.mxu0 0
    %5696 = vmatpush1.bf16.msra.mxu0 0
    %5697 = vmatprep.subr.bf16.mxu0 0
    %5698 = vmatpush1.bf16.msra.mxu0 0
    %5699 = vmatprep.subr.bf16.mxu0 0
    %5700 = vmatpush1.bf16.msra.mxu0 0
    %5701 = vmatprep.subr.bf16.mxu0 0
    %5702 = vmatpush1.bf16.msra.mxu0 0
    %5703 = vmatprep.mubr.bf16.mxu0 0
    %5704 = vmatmul.mubr.bf16.gmra.mrb[0].mxu0 %v5669
    %v5705 = vpop.f32.mrb[0].mxu0
    %v5706 = vadd.f32 %v5655, %v5705
    %v5707 = vpop.f32.mrb[0].mxu0
    %v5708 = vpop.f32.mrb[0].mxu0
    %v5709 = vpop.f32.mrb[0].mxu0
    %5710 = vdwg.mxu0
    %v5711 = vmax.f32 %v5706, 0.0
    %v5712 = vpack.c.bf16 %v5711, %v5711
    %v5713 = vld [vmem:[#allocation5 + $0x250] sm:$0xf]
    %v5714 = vld [vmem:[#allocation5 + $0x254] sm:$0xf]
    %v5715 = vld [vmem:[#allocation5 + $0x258] sm:$0xf]
    %v5716 = vld [vmem:[#allocation5 + $0x25c] sm:$0xf]
    %v5717 = vld [vmem:[#allocation5 + $0x260] sm:$0xf]
    %v5718 = vld [vmem:[#allocation5 + $0x264] sm:$0xf]
    %v5719 = vld [vmem:[#allocation5 + $0x268] sm:$0xf]
    %v5720 = vld [vmem:[#allocation5 + $0x26c] sm:$0xf]
    %v5721 = vld [vmem:[#allocation7 + $0x24] sm:$0x1]
    %v5722 = vlaneseq
    %v5723 = vshrl.u32 %v5722, 7
    %v5724 = vsub.s32 0, %v5723
    %v5725 = vrot.slane %v5721, %v5724
    %v5734 = vunpack.c.l.b16 %v5713
    %v5735 = vunpack.c.l.b16 %v5714
    %v5736 = vunpack.c.l.b16 %v5715
    %v5737 = vunpack.c.l.b16 %v5716
    %v5738 = vunpack.c.l.b16 %v5717
    %v5739 = vunpack.c.l.b16 %v5718
    %v5740 = vunpack.c.l.b16 %v5719
    %v5741 = vunpack.c.l.b16 %v5720
    %v5742 = vpack.c.b16 %v5735, %v5734
    %v5743 = vpack.c.b16 %v5737, %v5736
    %v5744 = vpack.c.b16 %v5739, %v5738
    %v5745 = vpack.c.b16 %v5741, %v5740
    %v5751 = vsel %vm2218, %v5712, 0
    %5753 = vmatprep.subr.bf16.mxu0 0
    %5754 = vmatpush1.bf16.msra.mxu0 %v5742
    %5755 = vmatprep.subr.bf16.mxu0 0
    %5756 = vmatpush1.bf16.msra.mxu0 %v5743
    %5757 = vmatprep.subr.bf16.mxu0 0
    %5758 = vmatpush1.bf16.msra.mxu0 %v5744
    %5759 = vmatprep.subr.bf16.mxu0 0
    %5760 = vmatpush1.bf16.msra.mxu0 %v5745
    %5761 = vmatprep.subr.bf16.mxu0 0
    %5762 = vmatpush1.bf16.msra.mxu0 0
    %5763 = vmatprep.subr.bf16.mxu0 0
    %5764 = vmatpush1.bf16.msra.mxu0 0
    %5765 = vmatprep.subr.bf16.mxu0 0
    %5766 = vmatpush1.bf16.msra.mxu0 0
    %5767 = vmatprep.subr.bf16.mxu0 0
    %5768 = vmatpush1.bf16.msra.mxu0 0
    %5769 = vmatprep.subr.bf16.mxu0 0
    %5770 = vmatpush1.bf16.msra.mxu0 0
    %5771 = vmatprep.subr.bf16.mxu0 0
    %5772 = vmatpush1.bf16.msra.mxu0 0
    %5773 = vmatprep.subr.bf16.mxu0 0
    %5774 = vmatpush1.bf16.msra.mxu0 0
    %5775 = vmatprep.subr.bf16.mxu0 0
    %5776 = vmatpush1.bf16.msra.mxu0 0
    %5777 = vmatprep.subr.bf16.mxu0 0
    %5778 = vmatpush1.bf16.msra.mxu0 0
    %5779 = vmatprep.subr.bf16.mxu0 0
    %5780 = vmatpush1.bf16.msra.mxu0 0
    %5781 = vmatprep.subr.bf16.mxu0 0
    %5782 = vmatpush1.bf16.msra.mxu0 0
    %5783 = vmatprep.subr.bf16.mxu0 0
    %5784 = vmatpush1.bf16.msra.mxu0 0
    %5785 = vmatprep.mubr.bf16.mxu0 0
    %5786 = vmatmul.mubr.bf16.gmra.mrb[0].mxu0 %v5751
    %v5787 = vpop.f32.mrb[0].mxu0
    %v5788 = vadd.f32 %v5725, %v5787
    %v5789 = vpop.f32.mrb[0].mxu0
    %v5790 = vpop.f32.mrb[0].mxu0
    %v5791 = vpop.f32.mrb[0].mxu0
    %5792 = vdwg.mxu0
    %vm5793 = vcmask 17408
    %v5794 = vsel %vm5793, %v5788, -inf
    %5795 = vmax.xlane.f32.xlu0 %v5794
    %v5796 = vpop.xlane.xlu0 %5795
    %v5797 = vsub.f32 %v5788, %v5796
    %v5798 = vmul.f32 %v5797, 1.442695
    %v5799 = vpow.pop %v5798
    %v5800 = vsel %vm5793, %v5799, 0.0
    %5801 = vadd.xlane.f32.xlu0 %v5800
    %v5802 = vpop.xlane.xlu0 %5801
    %v5803 = vrcp.pop %v5802
    %v5804 = vmul.f32 %v5799, %v5803
    %v5805 = vld [vmem:[#allocation5 + $0x270] sm:$0xf]
    %v5806 = vld [vmem:[#allocation5 + $0x274] sm:$0xf]
    %v5807 = vld [vmem:[#allocation5 + $0x278] sm:$0xf]
    %v5808 = vld [vmem:[#allocation5 + $0x27c] sm:$0xf]
    %v5809 = vld [vmem:[#allocation7 + $0x25] sm:$0x1]
    %v5810 = vlaneseq
    %v5811 = vshrl.u32 %v5810, 7
    %v5812 = vsub.s32 0, %v5811
    %v5813 = vrot.slane %v5809, %v5812
    %v5818 = vunpack.c.l.b16 %v5805
    %v5819 = vunpack.c.l.b16 %v5806
    %v5820 = vunpack.c.l.b16 %v5807
    %v5821 = vunpack.c.l.b16 %v5808
    %v5822 = vpack.c.b16 %v5819, %v5818
    %v5823 = vpack.c.b16 %v5821, %v5820
    %5826 = vmatprep.subr.bf16.mxu0 0
    %5827 = vmatpush1.bf16.msra.mxu0 %v5822
    %5828 = vmatprep.subr.bf16.mxu0 0
    %5829 = vmatpush1.bf16.msra.mxu0 %v5823
    %5830 = vmatprep.subr.bf16.mxu0 0
    %5831 = vmatpush1.bf16.msra.mxu0 0
    %5832 = vmatprep.subr.bf16.mxu0 0
    %5833 = vmatpush1.bf16.msra.mxu0 0
    %5834 = vmatprep.subr.bf16.mxu0 0
    %5835 = vmatpush1.bf16.msra.mxu0 0
    %5836 = vmatprep.subr.bf16.mxu0 0
    %5837 = vmatpush1.bf16.msra.mxu0 0
    %5838 = vmatprep.subr.bf16.mxu0 0
    %5839 = vmatpush1.bf16.msra.mxu0 0
    %5840 = vmatprep.subr.bf16.mxu0 0
    %5841 = vmatpush1.bf16.msra.mxu0 0
    %5842 = vmatprep.subr.bf16.mxu0 0
    %5843 = vmatpush1.bf16.msra.mxu0 0
    %5844 = vmatprep.subr.bf16.mxu0 0
    %5845 = vmatpush1.bf16.msra.mxu0 0
    %5846 = vmatprep.subr.bf16.mxu0 0
    %5847 = vmatpush1.bf16.msra.mxu0 0
    %5848 = vmatprep.subr.bf16.mxu0 0
    %5849 = vmatpush1.bf16.msra.mxu0 0
    %5850 = vmatprep.subr.bf16.mxu0 0
    %5851 = vmatpush1.bf16.msra.mxu0 0
    %5852 = vmatprep.subr.bf16.mxu0 0
    %5853 = vmatpush1.bf16.msra.mxu0 0
    %5854 = vmatprep.subr.bf16.mxu0 0
    %5855 = vmatpush1.bf16.msra.mxu0 0
    %5856 = vmatprep.subr.bf16.mxu0 0
    %5857 = vmatpush1.bf16.msra.mxu0 0
    %5858 = vmatprep.mubr.bf16.mxu0 0
    %5859 = vmatmul.mubr.bf16.gmra.mrb[0].mxu0 %v5669
    %v5860 = vpop.f32.mrb[0].mxu0
    %v5861 = vadd.f32 %v5813, %v5860
    %v5862 = vpop.f32.mrb[0].mxu0
    %v5863 = vpop.f32.mrb[0].mxu0
    %v5864 = vpop.f32.mrb[0].mxu0
    %5865 = vdwg.mxu0
    %5867 = vset.pattern.permute.xlu0 0
    %5868 = vperm.xlu0 %5867, %v5804
    %v5869 = vpop.permute.xlu0 %5868
    %v5871 = vmul.f32 %v5861, %v5869
    %v5872 = vld [vmem:[#allocation5 + $0x280] sm:$0xf]
    %v5873 = vld [vmem:[#allocation5 + $0x284] sm:$0xf]
    %v5874 = vld [vmem:[#allocation5 + $0x288] sm:$0xf]
    %v5875 = vld [vmem:[#allocation5 + $0x28c] sm:$0xf]
    %v5876 = vld [vmem:[#allocation7 + $0x26] sm:$0x1]
    %v5877 = vlaneseq
    %v5878 = vshrl.u32 %v5877, 7
    %v5879 = vsub.s32 0, %v5878
    %v5880 = vrot.slane %v5876, %v5879
    %v5885 = vunpack.c.l.b16 %v5872
    %v5886 = vunpack.c.l.b16 %v5873
    %v5887 = vunpack.c.l.b16 %v5874
    %v5888 = vunpack.c.l.b16 %v5875
    %v5889 = vpack.c.b16 %v5886, %v5885
    %v5890 = vpack.c.b16 %v5888, %v5887
    %5893 = vmatprep.subr.bf16.mxu0 0
    %5894 = vmatpush1.bf16.msra.mxu0 %v5889
    %5895 = vmatprep.subr.bf16.mxu0 0
    %5896 = vmatpush1.bf16.msra.mxu0 %v5890
    %5897 = vmatprep.subr.bf16.mxu0 0
    %5898 = vmatpush1.bf16.msra.mxu0 0
    %5899 = vmatprep.subr.bf16.mxu0 0
    %5900 = vmatpush1.bf16.msra.mxu0 0
    %5901 = vmatprep.subr.bf16.mxu0 0
    %5902 = vmatpush1.bf16.msra.mxu0 0
    %5903 = vmatprep.subr.bf16.mxu0 0
    %5904 = vmatpush1.bf16.msra.mxu0 0
    %5905 = vmatprep.subr.bf16.mxu0 0
    %5906 = vmatpush1.bf16.msra.mxu0 0
    %5907 = vmatprep.subr.bf16.mxu0 0
    %5908 = vmatpush1.bf16.msra.mxu0 0
    %5909 = vmatprep.subr.bf16.mxu0 0
    %5910 = vmatpush1.bf16.msra.mxu0 0
    %5911 = vmatprep.subr.bf16.mxu0 0
    %5912 = vmatpush1.bf16.msra.mxu0 0
    %5913 = vmatprep.subr.bf16.mxu0 0
    %5914 = vmatpush1.bf16.msra.mxu0 0
    %5915 = vmatprep.subr.bf16.mxu0 0
    %5916 = vmatpush1.bf16.msra.mxu0 0
    %5917 = vmatprep.subr.bf16.mxu0 0
    %5918 = vmatpush1.bf16.msra.mxu0 0
    %5919 = vmatprep.subr.bf16.mxu0 0
    %5920 = vmatpush1.bf16.msra.mxu0 0
    %5921 = vmatprep.subr.bf16.mxu0 0
    %5922 = vmatpush1.bf16.msra.mxu0 0
    %5923 = vmatprep.subr.bf16.mxu0 0
    %5924 = vmatpush1.bf16.msra.mxu0 0
    %5925 = vmatprep.mubr.bf16.mxu0 0
    %5926 = vmatmul.mubr.bf16.gmra.mrb[0].mxu0 %v5669
    %v5927 = vpop.f32.mrb[0].mxu0
    %v5928 = vadd.f32 %v5880, %v5927
    %v5929 = vpop.f32.mrb[0].mxu0
    %v5930 = vpop.f32.mrb[0].mxu0
    %v5931 = vpop.f32.mrb[0].mxu0
    %5932 = vdwg.mxu0
    %5933 = vset.pattern.permute.xlu0 1
    %5934 = vperm.xlu0 %5933, %v5804
    %v5935 = vpop.permute.xlu0 %5934
    %v5937 = vmul.f32 %v5928, %v5935
    %v5938 = vadd.f32 %v5871, %v5937
    %v5939 = vld [vmem:[#allocation5 + $0x290] sm:$0xf]
    %v5940 = vld [vmem:[#allocation5 + $0x294] sm:$0xf]
    %v5941 = vld [vmem:[#allocation5 + $0x298] sm:$0xf]
    %v5942 = vld [vmem:[#allocation5 + $0x29c] sm:$0xf]
    %v5943 = vld [vmem:[#allocation7 + $0x27] sm:$0x1]
    %v5944 = vlaneseq
    %v5945 = vshrl.u32 %v5944, 7
    %v5946 = vsub.s32 0, %v5945
    %v5947 = vrot.slane %v5943, %v5946
    %v5952 = vunpack.c.l.b16 %v5939
    %v5953 = vunpack.c.l.b16 %v5940
    %v5954 = vunpack.c.l.b16 %v5941
    %v5955 = vunpack.c.l.b16 %v5942
    %v5956 = vpack.c.b16 %v5953, %v5952
    %v5957 = vpack.c.b16 %v5955, %v5954
    %5960 = vmatprep.subr.bf16.mxu0 0
    %5961 = vmatpush1.bf16.msra.mxu0 %v5956
    %5962 = vmatprep.subr.bf16.mxu0 0
    %5963 = vmatpush1.bf16.msra.mxu0 %v5957
    %5964 = vmatprep.subr.bf16.mxu0 0
    %5965 = vmatpush1.bf16.msra.mxu0 0
    %5966 = vmatprep.subr.bf16.mxu0 0
    %5967 = vmatpush1.bf16.msra.mxu0 0
    %5968 = vmatprep.subr.bf16.mxu0 0
    %5969 = vmatpush1.bf16.msra.mxu0 0
    %5970 = vmatprep.subr.bf16.mxu0 0
    %5971 = vmatpush1.bf16.msra.mxu0 0
    %5972 = vmatprep.subr.bf16.mxu0 0
    %5973 = vmatpush1.bf16.msra.mxu0 0
    %5974 = vmatprep.subr.bf16.mxu0 0
    %5975 = vmatpush1.bf16.msra.mxu0 0
    %5976 = vmatprep.subr.bf16.mxu0 0
    %5977 = vmatpush1.bf16.msra.mxu0 0
    %5978 = vmatprep.subr.bf16.mxu0 0
    %5979 = vmatpush1.bf16.msra.mxu0 0
    %5980 = vmatprep.subr.bf16.mxu0 0
    %5981 = vmatpush1.bf16.msra.mxu0 0
    %5982 = vmatprep.subr.bf16.mxu0 0
    %5983 = vmatpush1.bf16.msra.mxu0 0
    %5984 = vmatprep.subr.bf16.mxu0 0
    %5985 = vmatpush1.bf16.msra.mxu0 0
    %5986 = vmatprep.subr.bf16.mxu0 0
    %5987 = vmatpush1.bf16.msra.mxu0 0
    %5988 = vmatprep.subr.bf16.mxu0 0
    %5989 = vmatpush1.bf16.msra.mxu0 0
    %5990 = vmatprep.subr.bf16.mxu0 0
    %5991 = vmatpush1.bf16.msra.mxu0 0
    %5992 = vmatprep.mubr.bf16.mxu0 0
    %5993 = vmatmul.mubr.bf16.gmra.mrb[0].mxu0 %v5669
    %v5994 = vpop.f32.mrb[0].mxu0
    %v5995 = vadd.f32 %v5947, %v5994
    %v5996 = vpop.f32.mrb[0].mxu0
    %v5997 = vpop.f32.mrb[0].mxu0
    %v5998 = vpop.f32.mrb[0].mxu0
    %5999 = vdwg.mxu0
    %6000 = vset.pattern.permute.xlu0 2
    %6001 = vperm.xlu0 %6000, %v5804
    %v6002 = vpop.permute.xlu0 %6001
    %v6004 = vmul.f32 %v5995, %v6002
    %v6005 = vadd.f32 %v5938, %v6004
    %v6006 = vpack.c.bf16 %v6005, %v6005
    %v6007 = vld [vmem:[#allocation5 + $0x2a0] sm:$0xf]
    %v6008 = vld [vmem:[#allocation5 + $0x2a4] sm:$0xf]
    %v6009 = vld [vmem:[#allocation5 + $0x2a8] sm:$0xf]
    %v6010 = vld [vmem:[#allocation5 + $0x2ac] sm:$0xf]
    %v6011 = vld [vmem:[#allocation7 + $0x28] sm:$0x1]
    %v6012 = vlaneseq
    %v6013 = vshrl.u32 %v6012, 7
    %v6014 = vsub.s32 0, %v6013
    %v6015 = vrot.slane %v6011, %v6014
    %v6020 = vunpack.c.l.b16 %v6007
    %v6021 = vunpack.c.l.b16 %v6008
    %v6022 = vunpack.c.l.b16 %v6009
    %v6023 = vunpack.c.l.b16 %v6010
    %v6024 = vpack.c.b16 %v6021, %v6020
    %v6025 = vpack.c.b16 %v6023, %v6022
    %v6029 = vsel %vm129, %v6006, 0
    %6031 = vmatprep.subr.bf16.mxu0 0
    %6032 = vmatpush1.bf16.msra.mxu0 %v6024
    %6033 = vmatprep.subr.bf16.mxu0 0
    %6034 = vmatpush1.bf16.msra.mxu0 %v6025
    %6035 = vmatprep.subr.bf16.mxu0 0
    %6036 = vmatpush1.bf16.msra.mxu0 0
    %6037 = vmatprep.subr.bf16.mxu0 0
    %6038 = vmatpush1.bf16.msra.mxu0 0
    %6039 = vmatprep.subr.bf16.mxu0 0
    %6040 = vmatpush1.bf16.msra.mxu0 0
    %6041 = vmatprep.subr.bf16.mxu0 0
    %6042 = vmatpush1.bf16.msra.mxu0 0
    %6043 = vmatprep.subr.bf16.mxu0 0
    %6044 = vmatpush1.bf16.msra.mxu0 0
    %6045 = vmatprep.subr.bf16.mxu0 0
    %6046 = vmatpush1.bf16.msra.mxu0 0
    %6047 = vmatprep.subr.bf16.mxu0 0
    %6048 = vmatpush1.bf16.msra.mxu0 0
    %6049 = vmatprep.subr.bf16.mxu0 0
    %6050 = vmatpush1.bf16.msra.mxu0 0
    %6051 = vmatprep.subr.bf16.mxu0 0
    %6052 = vmatpush1.bf16.msra.mxu0 0
    %6053 = vmatprep.subr.bf16.mxu0 0
    %6054 = vmatpush1.bf16.msra.mxu0 0
    %6055 = vmatprep.subr.bf16.mxu0 0
    %6056 = vmatpush1.bf16.msra.mxu0 0
    %6057 = vmatprep.subr.bf16.mxu0 0
    %6058 = vmatpush1.bf16.msra.mxu0 0
    %6059 = vmatprep.subr.bf16.mxu0 0
    %6060 = vmatpush1.bf16.msra.mxu0 0
    %6061 = vmatprep.subr.bf16.mxu0 0
    %6062 = vmatpush1.bf16.msra.mxu0 0
    %6063 = vmatprep.mubr.bf16.mxu0 0
    %6064 = vmatmul.mubr.bf16.gmra.mrb[0].mxu0 %v6029
    %v6065 = vpop.f32.mrb[0].mxu0
    %v6066 = vadd.f32 %v6015, %v6065
    %v6067 = vpop.f32.mrb[0].mxu0
    %v6068 = vpop.f32.mrb[0].mxu0
    %v6069 = vpop.f32.mrb[0].mxu0
    %6070 = vdwg.mxu0
    %6071 = vst.msk [vmem:[#allocation8] sm:$0x3] %vm5621, %v6066
    // Predicated region
    $region26: #{cnn_transformer_forward.1} parent=1 // pred_check
      _
    $region27: #{cnn_transformer_forward.1} parent=1 // pred_check_branch
      %6073 = sbr.rel (0) target = $region29
    $region28: #{cnn_transformer_forward.1} parent=1 // pred_region
      %s6075 = ssub.s32 32, 32
      %6076 = vsyncadd [#allocation4], %s6075
      %s6078 = sshll.u32 [#allocation8], 4
      %s6079 = int_to_ptr.vmem [resolvable:$true] %s6078
      %6081 = dma.vmem_to_hbm [thread:$0]  %s6079, 32, %s3, [#allocation4]
    $region29: #{cnn_transformer_forward.1} parent=1 // pred_fallthru
      _
    // Predicated region
    $region30: #{cnn_transformer_forward.1} parent=1 // pred_check
      _
    $region31: #{cnn_transformer_forward.1} parent=1 // pred_check_branch
      %6083 = sbr.rel (0) target = $region33
    $region32: #{cnn_transformer_forward.1} parent=1 // pred_region
      %6084 = dma.done [#allocation4], 32
    $region33: #{cnn_transformer_forward.1} parent=1 // pred_fallthru
      _
    %6085 = vsyncpa [#allocation3], 1
    %6086 = vsyncpa [#allocation6], 1
    %6087 = vsyncpa [#allocation4], 1

</llo_original>
